<compile_context>
chip_gen: v5e
topology: v5e:2x2
jax: 0.10.0
libtpu: 0.0.40
codegen_flags: <defaults>
</compile_context>

<pallas_src>
from functools import partial

import jax
import jax.numpy as jnp
import numpy as np
from jax import lax
from jax.experimental import pallas as pl
from jax.experimental.pallas import tpu as pltpu

EPS = 1e-5
LANES = 128


def _round_up(n, m):
    return ((n + m - 1) // m) * m


# ------------------------------ kernel helpers -------------------------------

def _store_with_zero_ring(val, scr_ref):
    """scr_ref gets a zero 1-px ring with `val` (H, W, C) in its interior."""
    hh, ww, _ = val.shape
    scr_ref[...] = jnp.zeros_like(scr_ref)
    scr_ref[1:hh + 1, 1:ww + 1, :] = val.astype(scr_ref.dtype)


def _conv3x3(h_ref, w_ref, ho, wo):
    """3x3 / stride-1 conv over the interior of a zero-ring-padded scratch.

    h_ref: (ho+2, wo+2, Ci) bf16 VMEM scratch (1-px ring is zero)
    w_ref: (3, 3, Ci, Co) bf16 weight ref
    returns (ho, wo, Co) float32 -- 9 accumulating lane-dense MXU dots.
    """
    ci = h_ref.shape[-1]
    co = w_ref.shape[-1]
    acc = jnp.zeros((ho * wo, co), jnp.float32)
    for ky in range(3):
        for kx in range(3):
            tap = h_ref[ky:ky + ho, kx:kx + wo, :].reshape(ho * wo, ci)
            acc = acc + jnp.dot(tap, w_ref[ky, kx],
                                preferred_element_type=jnp.float32)
    return acc.reshape(ho, wo, co)


# -------------------------------- kernels ------------------------------------

def _kernel_plain(x_ref, s1_ref, b1_ref, w1_ref, b2_ref, w2_ref, o_ref,
                  h1_ref, h2_ref):
    _, H, W, _ = x_ref.shape
    x = x_ref[0].astype(jnp.float32)                       # (H, W, Cp)

    # BN1 + ReLU into zero-ring scratch (ring = conv1's zero padding).
    _store_with_zero_ring(jnp.maximum(x * s1_ref[...] + b1_ref[...], 0.0),
                          h1_ref)

    # Conv3x3 hidden->hidden (BN2 scale folded into w1), shift + ReLU into the
    # second zero-ring scratch (ring = conv2's zero padding).  Interior only.
    y1 = _conv3x3(h1_ref, w1_ref, H, W)
    _store_with_zero_ring(jnp.maximum(y1 + b2_ref[...], 0.0), h2_ref)

    # Conv3x3 hidden->output + residual add in f32; lane-dense bf16 store.
    y2 = _conv3x3(h2_ref, w2_ref, H, W)
    o_ref[0] = (y2 + x).astype(o_ref.dtype)


def _kernel_up(x_ref, s1_ref, b1_ref, w1_ref, b2_ref, s3_ref, b3_ref,
               wup_ref, o_ref, h1_ref, h2_ref):
    _, H, W, Cp = x_ref.shape
    x = x_ref[0].astype(jnp.float32)                       # (H, W, Cp)

    _store_with_zero_ring(jnp.maximum(x * s1_ref[...] + b1_ref[...], 0.0),
                          h1_ref)
    y1 = _conv3x3(h1_ref, w1_ref, H, W)
    # 1-px zero ring supplies the out-of-range zeros the stride-2 ConvT needs.
    _store_with_zero_ring(jnp.maximum(y1 + b2_ref[...], 0.0), h2_ref)

    # Identity branch (ConvT 1x1 / s2 only writes the even/even output phase).
    idh = jnp.maximum(x * s3_ref[...] + b3_ref[...], 0.0).astype(jnp.bfloat16)

    # Fused ConvT3x3(s=2,p=1,op=1) + ConvT1x1(s=2,op=1): 5 accumulating dots.
    # wup_ref rows are taps [x(i,j), x(i,j+1), x(i+1,j), x(i+1,j+1), identity];
    # columns are ordered (a, b, cout) for output pixel y[2i+a, 2j+b].
    co4 = wup_ref.shape[-1]                                # 4 * Cop
    taps = (h2_ref[1:H + 1, 1:W + 1, :],                   # x[i,   j  ]
            h2_ref[1:H + 1, 2:W + 2, :],                   # x[i,   j+1]
            h2_ref[2:H + 2, 1:W + 1, :],                   # x[i+1, j  ]
            h2_ref[2:H + 2, 2:W + 2, :],                   # x[i+1, j+1]
            idh)                                           # identity input
    acc = jnp.zeros((H * W, co4), jnp.float32)
    for t, tap in enumerate(taps):
        acc = acc + jnp.dot(tap.reshape(H * W, Cp), wup_ref[t],
                            preferred_element_type=jnp.float32)
    out = acc.reshape(H, W, co4)
    co2 = co4 // 2                                         # = 2 * Cop
    o_ref[0, :, 0, :, :] = out[..., :co2].astype(o_ref.dtype)   # rows 2i
    o_ref[0, :, 1, :, :] = out[..., co2:].astype(o_ref.dtype)   # rows 2i+1


# ------------------------------ wrapper / glue --------------------------------

def _bn_scale_shift(gamma, beta, mean, var):
    scale = gamma / jnp.sqrt(var + EPS)
    return scale.astype(jnp.float32), (beta - mean * scale).astype(jnp.float32)


def _pad_vec(v, cp):
    return jnp.zeros((1, 1, cp), jnp.float32).at[0, 0, :v.shape[0]].set(v)


def _conv_weight(w_oihw, cip, cop, out_scale=None):
    """Conv2d OIHW (Co, Ci, 3, 3) -> channel-padded (3, 3, cip, cop) bf16."""
    co, ci = w_oihw.shape[0], w_oihw.shape[1]
    w = jnp.transpose(w_oihw, (2, 3, 1, 0))                # (3, 3, Ci, Co)
    if out_scale is not None:
        w = w * out_scale.reshape(1, 1, 1, co)
    wp = jnp.zeros((3, 3, cip, cop), jnp.float32).at[:, :, :ci, :co].set(w)
    return wp.astype(jnp.bfloat16)


def _upsample_block_weight(w_convt, w_up1x1, cip, cop):
    """Fused ConvT3x3(s2,p1,op1) + ConvT1x1(s2,op1) block weight.

    w_convt: (Ci, Co, 3, 3) PyTorch ConvTranspose2d layout; w_up1x1: (Ci, Co, 1, 1).
    Returns (5, cip, 4*cop) bf16; rows = taps [x(i,j), x(i,j+1), x(i+1,j),
    x(i+1,j+1), identity]; columns = output phases (0,0),(0,1),(1,0),(1,1),
    each cop wide.
    """
    ci, co = w_convt.shape[0], w_convt.shape[1]
    wt = jnp.transpose(w_convt, (2, 3, 0, 1))              # (ky, kx, Ci, Co)
    wu = w_up1x1[:, :, 0, 0]                               # (Ci, Co)
    Z = jnp.zeros((ci, co), jnp.float32)
    rows = (
        (wt[1, 1], wt[1, 2], wt[2, 1], wt[2, 2]),          # x[i,   j  ]
        (Z,        wt[1, 0], Z,        wt[2, 0]),          # x[i,   j+1]
        (Z,        Z,        wt[0, 1], wt[0, 2]),          # x[i+1, j  ]
        (Z,        Z,        Z,        wt[0, 0]),          # x[i+1, j+1]
        (wu,       Z,        Z,        Z),                 # identity branch
    )
    w = jnp.zeros((5, cip, 4 * cop), jnp.float32)
    for t, row in enumerate(rows):
        for p, blk in enumerate(row):
            w = w.at[t, :ci, p * cop:p * cop + co].set(blk)
    return w.astype(jnp.bfloat16)


def _full_spec(a):
    nd = a.ndim
    return pl.BlockSpec(a.shape, lambda n, nd=nd: (0,) * nd)


@partial(jax.jit, static_argnames=("upsample",))
def decoder_residual_layer(x_nchw, params, upsample):
    """Pallas forward. x_nchw: (N, hidden, H, W) float32. Returns NCHW f32."""
    x = jnp.transpose(x_nchw, (0, 2, 3, 1)).astype(jnp.float32)   # NCHW -> NHWC
    N, H, W, Chid = x.shape
    Cp = _round_up(Chid, LANES)
    # Channel pad only (no spatial pad); x stays f32 so the residual/identity
    # contributions keep full precision (only the final store is bf16).
    x = jnp.pad(x, ((0, 0), (0, 0), (0, 0), (0, Cp - Chid)))

    s1, b1 = _bn_scale_shift(*params["bn1"])
    s2, b2 = _bn_scale_shift(*params["bn2"])
    s1p, b1p, b2p = _pad_vec(s1, Cp), _pad_vec(b1, Cp), _pad_vec(b2, Cp)
    # Conv1 weight with BN2's scale folded into its output columns.
    w1 = _conv_weight(params["w1"], Cp, Cp, out_scale=s2)

    x_spec = pl.BlockSpec((1, H, W, Cp), lambda n: (n, 0, 0, 0))
    cparams = pltpu.CompilerParams(dimension_semantics=("parallel",))
    scratch = [pltpu.VMEM((H + 2, W + 2, Cp), jnp.bfloat16),
               pltpu.VMEM((H + 2, W + 2, Cp), jnp.bfloat16)]

    if not upsample:
        Cout = params["w2"].shape[0]
        assert Cout == Chid, "residual add requires output_channels == hidden_channels"
        Cop = Cp
        w2 = _conv_weight(params["w2"], Cp, Cop)
        out = pl.pallas_call(
            _kernel_plain,
            out_shape=jax.ShapeDtypeStruct((N, H, W, Cop), jnp.bfloat16),
            grid=(N,),
            in_specs=[x_spec, _full_spec(s1p), _full_spec(b1p), _full_spec(w1),
                      _full_spec(b2p), _full_spec(w2)],
            out_specs=pl.BlockSpec((1, H, W, Cop), lambda n: (n, 0, 0, 0)),
            scratch_shapes=scratch,
            compiler_params=cparams,
        )(x, s1p, b1p, w1, b2p, w2)
        out = out[..., :Cout].astype(jnp.float32)
        return jnp.transpose(out, (0, 3, 1, 2))                   # NHWC -> NCHW

    # upsample == True
    Cout = params["w2"].shape[1]
    Cop = _round_up(Cout, LANES)
    s3, b3 = _bn_scale_shift(*params["bn3"])
    s3p, b3p = _pad_vec(s3, Cp), _pad_vec(b3, Cp)
    wup = _upsample_block_weight(params["w2"], params["wup"], Cp, Cop)

    out5 = pl.pallas_call(
        _kernel_up,
        out_shape=jax.ShapeDtypeStruct((N, H, 2, W, 2 * Cop), jnp.bfloat16),
        grid=(N,),
        in_specs=[x_spec, _full_spec(s1p), _full_spec(b1p), _full_spec(w1),
                  _full_spec(b2p), _full_spec(s3p), _full_spec(b3p),
                  _full_spec(wup)],
        out_specs=pl.BlockSpec((1, H, 2, W, 2 * Cop),
                               lambda n: (n, 0, 0, 0, 0)),
        scratch_shapes=scratch,
        compiler_params=cparams,
    )(x, s1p, b1p, w1, b2p, s3p, b3p, wup)
    # (N, H, 2, W, 2*Cop) -> (N, 2H, 2W, Cop): pure reshape, no transpose.
    out = out5.reshape(N, 2 * H, 2 * W, Cop)[..., :Cout].astype(jnp.float32)
    return jnp.transpose(out, (0, 3, 1, 2))                       # NHWC -> NCHW


# ------------------------- params / pure-JAX reference ------------------------

def init_params(key, hidden, output, upsample):
    ks = jax.random.split(key, 8)

    def bn(k):
        k1, k2, k3, k4 = jax.random.split(k, 4)
        gamma = jax.random.uniform(k1, (hidden,), jnp.float32, 0.5, 1.5)
        beta = jax.random.normal(k2, (hidden,), jnp.float32) * 0.1
        mean = jax.random.normal(k3, (hidden,), jnp.float32) * 0.1
        var = jax.random.uniform(k4, (hidden,), jnp.float32, 0.5, 1.5)
        return (gamma, beta, mean, var)

    params = {
        "bn1": bn(ks[0]),
        "bn2": bn(ks[1]),
        "w1": jax.random.normal(ks[2], (hidden, hidden, 3, 3), jnp.float32) * 0.1,  # Conv OIHW
    }
    if upsample:
        params["w2"] = jax.random.normal(ks[3], (hidden, output, 3, 3), jnp.float32) * 0.1  # ConvT (in,out,kh,kw)
        params["bn3"] = bn(ks[4])
        params["wup"] = jax.random.normal(ks[5], (hidden, output, 1, 1), jnp.float32) * 0.1
    else:
        params["w2"] = jax.random.normal(ks[3], (output, hidden, 3, 3), jnp.float32) * 0.1  # Conv OIHW
    return params


def ref_forward(x, params, upsample):
    def bn_relu(v, p):
        gamma, beta, mean, var = p
        sc = (gamma / jnp.sqrt(var + EPS))[None, :, None, None]
        y = (v - mean[None, :, None, None]) * sc + beta[None, :, None, None]
        return jnp.maximum(y, 0.0)

    dn = ("NCHW", "OIHW", "NCHW")
    hp = lax.Precision.HIGHEST
    h = bn_relu(x, params["bn1"])
    y1 = lax.conv_general_dilated(h, params["w1"], (1, 1), ((1, 1), (1, 1)),
                                  dimension_numbers=dn, precision=hp)
    h2 = bn_relu(y1, params["bn2"])
    if upsample:
        w2 = jnp.transpose(jnp.flip(params["w2"], (2, 3)), (1, 0, 2, 3))
        y2 = lax.conv_general_dilated(h2, w2, (1, 1), ((1, 2), (1, 2)),
                                      lhs_dilation=(2, 2), dimension_numbers=dn, precision=hp)
        idh = bn_relu(x, params["bn3"])
        wup = jnp.transpose(params["wup"], (1, 0, 2, 3))
        ident = lax.conv_general_dilated(idh, wup, (1, 1), ((0, 1), (0, 1)),
                                         lhs_dilation=(2, 2), dimension_numbers=dn, precision=hp)
    else:
        y2 = lax.conv_general_dilated(h2, params["w2"], (1, 1), ((1, 1), (1, 1)),
                                      dimension_numbers=dn, precision=hp)
        ident = x
    return y2 + ident


# ----------------------------------- main --------------------------------------

if __name__ == "__main__":
    key = jax.random.PRNGKey(0)
    kx, kp1, kp2 = jax.random.split(key, 3)

    N, Chid, H, W = 2, 8, 16, 16
    x = jax.random.normal(kx, (N, Chid, H, W), jnp.float32)   # NCHW, like PyTorch

    # ---- upsample=False (residual add => output_channels == hidden_channels) ----
    p_plain = init_params(kp1, Chid, Chid, upsample=False)
    out_plain = jax.block_until_ready(decoder_residual_layer(x, p_plain, upsample=False))
    ref_plain = jax.block_until_ready(ref_forward(x, p_plain, upsample=False))
    assert out_plain.shape == (N, Chid, H, W)
    # bf16 MXU operands + bf16 output store (f32 accumulation/residual) tolerance.
    np.testing.assert_allclose(np.asarray(out_plain), np.asarray(ref_plain),
                               rtol=3e-2, atol=3e-2)

    # ---- upsample=True (2x spatial upsampling, hidden -> output channels) ----
    Cout = 16
    p_up = init_params(kp2, Chid, Cout, upsample=True)
    out_up = jax.block_until_ready(decoder_residual_layer(x, p_up, upsample=True))
    ref_up = jax.block_until_ready(ref_forward(x, p_up, upsample=True))
    assert out_up.shape == (N, Cout, 2 * H, 2 * W)
    np.testing.assert_allclose(np.asarray(out_up), np.asarray(ref_up),
                               rtol=3e-2, atol=3e-2)

    print("KERNEL_OK")
</pallas_src>

<mosaic_0001>
module attributes {stable_mosaic.version = 11 : i64} {
  func.func @_kernel_plain(%arg0: i32, %arg1: memref<1x16x16x128xf32, #tpu.memory_space<vmem>>, %arg2: memref<1x1x128xf32, #tpu.memory_space<vmem>>, %arg3: memref<1x1x128xf32, #tpu.memory_space<vmem>>, %arg4: memref<3x3x128x128xbf16, #tpu.memory_space<vmem>>, %arg5: memref<1x1x128xf32, #tpu.memory_space<vmem>>, %arg6: memref<3x3x128x128xbf16, #tpu.memory_space<vmem>>, %arg7: memref<1x16x16x128xbf16, #tpu.memory_space<vmem>>, %arg8: memref<18x18x128xbf16, #tpu.memory_space<vmem>>, %arg9: memref<18x18x128xbf16, #tpu.memory_space<vmem>>) attributes {dimension_semantics = [#tpu.dimension_semantics<parallel>], iteration_bounds = array<i64: 2>, scalar_prefetch = 0 : i64, scratch_operands = 2 : i64, tpu.core_type = #tpu.core_type<tc>, window_params = [{transform_indices = @transform_0, window_bounds = array<i64: 1, 16, 16, 128>}, {pipeline_mode = #tpu.pipeline_mode<synchronous>, transform_indices = @transform_1, window_bounds = array<i64: 1, 1, 128>}, {pipeline_mode = #tpu.pipeline_mode<synchronous>, transform_indices = @transform_2, window_bounds = array<i64: 1, 1, 128>}, {pipeline_mode = #tpu.pipeline_mode<synchronous>, transform_indices = @transform_3, window_bounds = array<i64: 3, 3, 128, 128>}, {pipeline_mode = #tpu.pipeline_mode<synchronous>, transform_indices = @transform_4, window_bounds = array<i64: 1, 1, 128>}, {pipeline_mode = #tpu.pipeline_mode<synchronous>, transform_indices = @transform_5, window_bounds = array<i64: 3, 3, 128, 128>}, {transform_indices = @transform_6, window_bounds = array<i64: 1, 16, 16, 128>}]} {
    %c0 = arith.constant 0 : index
    %c0_0 = arith.constant 0 : index
    %c0_1 = arith.constant 0 : index
    %c0_2 = arith.constant 0 : index
    %0 = vector.load %arg1[%c0, %c0_0, %c0_1, %c0_2] : memref<1x16x16x128xf32, #tpu.memory_space<vmem>>, vector<1x16x16x128xf32>
    %1 = vector.shape_cast %0 : vector<1x16x16x128xf32> to vector<16x16x128xf32>
    %c0_3 = arith.constant 0 : index
    %c0_4 = arith.constant 0 : index
    %c0_5 = arith.constant 0 : index
    %2 = vector.load %arg2[%c0_3, %c0_4, %c0_5] : memref<1x1x128xf32, #tpu.memory_space<vmem>>, vector<1x1x128xf32>
    %3 = vector.broadcast %2 : vector<1x1x128xf32> to vector<16x16x128xf32>
    %4 = arith.mulf %1, %3 : vector<16x16x128xf32>
    %c0_6 = arith.constant 0 : index
    %c0_7 = arith.constant 0 : index
    %c0_8 = arith.constant 0 : index
    %5 = vector.load %arg3[%c0_6, %c0_7, %c0_8] : memref<1x1x128xf32, #tpu.memory_space<vmem>>, vector<1x1x128xf32>
    %6 = vector.broadcast %5 : vector<1x1x128xf32> to vector<16x16x128xf32>
    %7 = arith.addf %4, %6 : vector<16x16x128xf32>
    %cst = arith.constant 0.000000e+00 : f32
    %8 = vector.broadcast %cst : f32 to vector<16x16x128xf32>
    %9 = arith.maximumf %7, %8 : vector<16x16x128xf32>
    %cst_9 = arith.constant 0.000000e+00 : bf16
    %10 = vector.broadcast %cst_9 : bf16 to vector<18x18x128xbf16>
    %c0_10 = arith.constant 0 : index
    %c0_11 = arith.constant 0 : index
    %c0_12 = arith.constant 0 : index
    %11 = vector.load %arg8[%c0_10, %c0_11, %c0_12] : memref<18x18x128xbf16, #tpu.memory_space<vmem>>, vector<18x18x128xbf16>
    tpu.vector_store %arg8[%c0_10, %c0_11, %c0_12], %10 {strides = array<i32>} : memref<18x18x128xbf16, #tpu.memory_space<vmem>>, vector<18x18x128xbf16>,
    %12 = arith.truncf %9 : vector<16x16x128xf32> to vector<16x16x128xbf16>
    %c1 = arith.constant 1 : index
    %c1_13 = arith.constant 1 : index
    %c0_14 = arith.constant 0 : index
    %13 = vector.load %arg8[%c1, %c1_13, %c0_14] : memref<18x18x128xbf16, #tpu.memory_space<vmem>>, vector<16x16x128xbf16>
    tpu.vector_store %arg8[%c1, %c1_13, %c0_14], %12 {strides = array<i32>} : memref<18x18x128xbf16, #tpu.memory_space<vmem>>, vector<16x16x128xbf16>,
    %cst_15 = arith.constant 0.000000e+00 : f32
    %14 = vector.broadcast %cst_15 : f32 to vector<256x128xf32>
    %c0_16 = arith.constant 0 : index
    %c0_17 = arith.constant 0 : index
    %c0_18 = arith.constant 0 : index
    %15 = vector.load %arg8[%c0_16, %c0_17, %c0_18] : memref<18x18x128xbf16, #tpu.memory_space<vmem>>, vector<16x16x128xbf16>
    %16 = vector.shape_cast %15 : vector<16x16x128xbf16> to vector<256x128xbf16>
    %c0_19 = arith.constant 0 : index
    %c0_20 = arith.constant 0 : index
    %c0_21 = arith.constant 0 : index
    %c0_22 = arith.constant 0 : index
    %17 = vector.load %arg4[%c0_19, %c0_20, %c0_21, %c0_22] : memref<3x3x128x128xbf16, #tpu.memory_space<vmem>>, vector<1x1x128x128xbf16>
    %18 = vector.shape_cast %17 : vector<1x1x128x128xbf16> to vector<128x128xbf16>
    %cst_23 = arith.constant dense<0.000000e+00> : vector<256x128xf32>
    %19 = tpu.matmul %16, %18, %cst_23 {dimension_numbers = #tpu.dot_dimension_numbers<[1], [0], [0], [1], [0, 0, 1, 1], [], []>} : vector<256x128xbf16>, vector<128x128xbf16>, vector<256x128xf32> -> vector<256x128xf32>
    %20 = arith.addf %14, %19 : vector<256x128xf32>
    %c0_24 = arith.constant 0 : index
    %c1_25 = arith.constant 1 : index
    %c0_26 = arith.constant 0 : index
    %21 = vector.load %arg8[%c0_24, %c1_25, %c0_26] : memref<18x18x128xbf16, #tpu.memory_space<vmem>>, vector<16x16x128xbf16>
    %22 = vector.shape_cast %21 : vector<16x16x128xbf16> to vector<256x128xbf16>
    %c0_27 = arith.constant 0 : index
    %c1_28 = arith.constant 1 : index
    %c0_29 = arith.constant 0 : index
    %c0_30 = arith.constant 0 : index
    %23 = vector.load %arg4[%c0_27, %c1_28, %c0_29, %c0_30] : memref<3x3x128x128xbf16, #tpu.memory_space<vmem>>, vector<1x1x128x128xbf16>
    %24 = vector.shape_cast %23 : vector<1x1x128x128xbf16> to vector<128x128xbf16>
    %cst_31 = arith.constant dense<0.000000e+00> : vector<256x128xf32>
    %25 = tpu.matmul %22, %24, %cst_31 {dimension_numbers = #tpu.dot_dimension_numbers<[1], [0], [0], [1], [0, 0, 1, 1], [], []>} : vector<256x128xbf16>, vector<128x128xbf16>, vector<256x128xf32> -> vector<256x128xf32>
    %26 = arith.addf %20, %25 : vector<256x128xf32>
    %c0_32 = arith.constant 0 : index
    %c2 = arith.constant 2 : index
    %c0_33 = arith.constant 0 : index
    %27 = vector.load %arg8[%c0_32, %c2, %c0_33] : memref<18x18x128xbf16, #tpu.memory_space<vmem>>, vector<16x16x128xbf16>
    %28 = vector.shape_cast %27 : vector<16x16x128xbf16> to vector<256x128xbf16>
    %c0_34 = arith.constant 0 : index
    %c2_35 = arith.constant 2 : index
    %c0_36 = arith.constant 0 : index
    %c0_37 = arith.constant 0 : index
    %29 = vector.load %arg4[%c0_34, %c2_35, %c0_36, %c0_37] : memref<3x3x128x128xbf16, #tpu.memory_space<vmem>>, vector<1x1x128x128xbf16>
    %30 = vector.shape_cast %29 : vector<1x1x128x128xbf16> to vector<128x128xbf16>
    %cst_38 = arith.constant dense<0.000000e+00> : vector<256x128xf32>
    %31 = tpu.matmul %28, %30, %cst_38 {dimension_numbers = #tpu.dot_dimension_numbers<[1], [0], [0], [1], [0, 0, 1, 1], [], []>} : vector<256x128xbf16>, vector<128x128xbf16>, vector<256x128xf32> -> vector<256x128xf32>
    %32 = arith.addf %26, %31 : vector<256x128xf32>
    %c1_39 = arith.constant 1 : index
    %c0_40 = arith.constant 0 : index
    %c0_41 = arith.constant 0 : index
    %33 = vector.load %arg8[%c1_39, %c0_40, %c0_41] : memref<18x18x128xbf16, #tpu.memory_space<vmem>>, vector<16x16x128xbf16>
    %34 = vector.shape_cast %33 : vector<16x16x128xbf16> to vector<256x128xbf16>
    %c1_42 = arith.constant 1 : index
    %c0_43 = arith.constant 0 : index
    %c0_44 = arith.constant 0 : index
    %c0_45 = arith.constant 0 : index
    %35 = vector.load %arg4[%c1_42, %c0_43, %c0_44, %c0_45] : memref<3x3x128x128xbf16, #tpu.memory_space<vmem>>, vector<1x1x128x128xbf16>
    %36 = vector.shape_cast %35 : vector<1x1x128x128xbf16> to vector<128x128xbf16>
    %cst_46 = arith.constant dense<0.000000e+00> : vector<256x128xf32>
    %37 = tpu.matmul %34, %36, %cst_46 {dimension_numbers = #tpu.dot_dimension_numbers<[1], [0], [0], [1], [0, 0, 1, 1], [], []>} : vector<256x128xbf16>, vector<128x128xbf16>, vector<256x128xf32> -> vector<256x128xf32>
    %38 = arith.addf %32, %37 : vector<256x128xf32>
    %c1_47 = arith.constant 1 : index
    %c1_48 = arith.constant 1 : index
    %c0_49 = arith.constant 0 : index
    %39 = vector.load %arg8[%c1_47, %c1_48, %c0_49] : memref<18x18x128xbf16, #tpu.memory_space<vmem>>, vector<16x16x128xbf16>
    %40 = vector.shape_cast %39 : vector<16x16x128xbf16> to vector<256x128xbf16>
    %c1_50 = arith.constant 1 : index
    %c1_51 = arith.constant 1 : index
    %c0_52 = arith.constant 0 : index
    %c0_53 = arith.constant 0 : index
    %41 = vector.load %arg4[%c1_50, %c1_51, %c0_52, %c0_53] : memref<3x3x128x128xbf16, #tpu.memory_space<vmem>>, vector<1x1x128x128xbf16>
    %42 = vector.shape_cast %41 : vector<1x1x128x128xbf16> to vector<128x128xbf16>
    %cst_54 = arith.constant dense<0.000000e+00> : vector<256x128xf32>
    %43 = tpu.matmul %40, %42, %cst_54 {dimension_numbers = #tpu.dot_dimension_numbers<[1], [0], [0], [1], [0, 0, 1, 1], [], []>} : vector<256x128xbf16>, vector<128x128xbf16>, vector<256x128xf32> -> vector<256x128xf32>
    %44 = arith.addf %38, %43 : vector<256x128xf32>
    %c1_55 = arith.constant 1 : index
    %c2_56 = arith.constant 2 : index
    %c0_57 = arith.constant 0 : index
    %45 = vector.load %arg8[%c1_55, %c2_56, %c0_57] : memref<18x18x128xbf16, #tpu.memory_space<vmem>>, vector<16x16x128xbf16>
    %46 = vector.shape_cast %45 : vector<16x16x128xbf16> to vector<256x128xbf16>
    %c1_58 = arith.constant 1 : index
    %c2_59 = arith.constant 2 : index
    %c0_60 = arith.constant 0 : index
    %c0_61 = arith.constant 0 : index
    %47 = vector.load %arg4[%c1_58, %c2_59, %c0_60, %c0_61] : memref<3x3x128x128xbf16, #tpu.memory_space<vmem>>, vector<1x1x128x128xbf16>
    %48 = vector.shape_cast %47 : vector<1x1x128x128xbf16> to vector<128x128xbf16>
    %cst_62 = arith.constant dense<0.000000e+00> : vector<256x128xf32>
    %49 = tpu.matmul %46, %48, %cst_62 {dimension_numbers = #tpu.dot_dimension_numbers<[1], [0], [0], [1], [0, 0, 1, 1], [], []>} : vector<256x128xbf16>, vector<128x128xbf16>, vector<256x128xf32> -> vector<256x128xf32>
    %50 = arith.addf %44, %49 : vector<256x128xf32>
    %c2_63 = arith.constant 2 : index
    %c0_64 = arith.constant 0 : index
    %c0_65 = arith.constant 0 : index
    %51 = vector.load %arg8[%c2_63, %c0_64, %c0_65] : memref<18x18x128xbf16, #tpu.memory_space<vmem>>, vector<16x16x128xbf16>
    %52 = vector.shape_cast %51 : vector<16x16x128xbf16> to vector<256x128xbf16>
    %c2_66 = arith.constant 2 : index
    %c0_67 = arith.constant 0 : index
    %c0_68 = arith.constant 0 : index
    %c0_69 = arith.constant 0 : index
    %53 = vector.load %arg4[%c2_66, %c0_67, %c0_68, %c0_69] : memref<3x3x128x128xbf16, #tpu.memory_space<vmem>>, vector<1x1x128x128xbf16>
    %54 = vector.shape_cast %53 : vector<1x1x128x128xbf16> to vector<128x128xbf16>
    %cst_70 = arith.constant dense<0.000000e+00> : vector<256x128xf32>
    %55 = tpu.matmul %52, %54, %cst_70 {dimension_numbers = #tpu.dot_dimension_numbers<[1], [0], [0], [1], [0, 0, 1, 1], [], []>} : vector<256x128xbf16>, vector<128x128xbf16>, vector<256x128xf32> -> vector<256x128xf32>
    %56 = arith.addf %50, %55 : vector<256x128xf32>
    %c2_71 = arith.constant 2 : index
    %c1_72 = arith.constant 1 : index
    %c0_73 = arith.constant 0 : index
    %57 = vector.load %arg8[%c2_71, %c1_72, %c0_73] : memref<18x18x128xbf16, #tpu.memory_space<vmem>>, vector<16x16x128xbf16>
    %58 = vector.shape_cast %57 : vector<16x16x128xbf16> to vector<256x128xbf16>
    %c2_74 = arith.constant 2 : index
    %c1_75 = arith.constant 1 : index
    %c0_76 = arith.constant 0 : index
    %c0_77 = arith.constant 0 : index
    %59 = vector.load %arg4[%c2_74, %c1_75, %c0_76, %c0_77] : memref<3x3x128x128xbf16, #tpu.memory_space<vmem>>, vector<1x1x128x128xbf16>
    %60 = vector.shape_cast %59 : vector<1x1x128x128xbf16> to vector<128x128xbf16>
    %cst_78 = arith.constant dense<0.000000e+00> : vector<256x128xf32>
    %61 = tpu.matmul %58, %60, %cst_78 {dimension_numbers = #tpu.dot_dimension_numbers<[1], [0], [0], [1], [0, 0, 1, 1], [], []>} : vector<256x128xbf16>, vector<128x128xbf16>, vector<256x128xf32> -> vector<256x128xf32>
    %62 = arith.addf %56, %61 : vector<256x128xf32>
    %c2_79 = arith.constant 2 : index
    %c2_80 = arith.constant 2 : index
    %c0_81 = arith.constant 0 : index
    %63 = vector.load %arg8[%c2_79, %c2_80, %c0_81] : memref<18x18x128xbf16, #tpu.memory_space<vmem>>, vector<16x16x128xbf16>
    %64 = vector.shape_cast %63 : vector<16x16x128xbf16> to vector<256x128xbf16>
    %c2_82 = arith.constant 2 : index
    %c2_83 = arith.constant 2 : index
    %c0_84 = arith.constant 0 : index
    %c0_85 = arith.constant 0 : index
    %65 = vector.load %arg4[%c2_82, %c2_83, %c0_84, %c0_85] : memref<3x3x128x128xbf16, #tpu.memory_space<vmem>>, vector<1x1x128x128xbf16>
    %66 = vector.shape_cast %65 : vector<1x1x128x128xbf16> to vector<128x128xbf16>
    %cst_86 = arith.constant dense<0.000000e+00> : vector<256x128xf32>
    %67 = tpu.matmul %64, %66, %cst_86 {dimension_numbers = #tpu.dot_dimension_numbers<[1], [0], [0], [1], [0, 0, 1, 1], [], []>} : vector<256x128xbf16>, vector<128x128xbf16>, vector<256x128xf32> -> vector<256x128xf32>
    %68 = arith.addf %62, %67 : vector<256x128xf32>
    %69 = vector.shape_cast %68 : vector<256x128xf32> to vector<16x16x128xf32>
    %c0_87 = arith.constant 0 : index
    %c0_88 = arith.constant 0 : index
    %c0_89 = arith.constant 0 : index
    %70 = vector.load %arg5[%c0_87, %c0_88, %c0_89] : memref<1x1x128xf32, #tpu.memory_space<vmem>>, vector<1x1x128xf32>
    %71 = vector.broadcast %70 : vector<1x1x128xf32> to vector<16x16x128xf32>
    %72 = arith.addf %69, %71 : vector<16x16x128xf32>
    %cst_90 = arith.constant 0.000000e+00 : f32
    %73 = vector.broadcast %cst_90 : f32 to vector<16x16x128xf32>
    %74 = arith.maximumf %72, %73 : vector<16x16x128xf32>
    %cst_91 = arith.constant 0.000000e+00 : bf16
    %75 = vector.broadcast %cst_91 : bf16 to vector<18x18x128xbf16>
    %c0_92 = arith.constant 0 : index
    %c0_93 = arith.constant 0 : index
    %c0_94 = arith.constant 0 : index
    %76 = vector.load %arg9[%c0_92, %c0_93, %c0_94] : memref<18x18x128xbf16, #tpu.memory_space<vmem>>, vector<18x18x128xbf16>
    tpu.vector_store %arg9[%c0_92, %c0_93, %c0_94], %75 {strides = array<i32>} : memref<18x18x128xbf16, #tpu.memory_space<vmem>>, vector<18x18x128xbf16>,
    %77 = arith.truncf %74 : vector<16x16x128xf32> to vector<16x16x128xbf16>
    %c1_95 = arith.constant 1 : index
    %c1_96 = arith.constant 1 : index
    %c0_97 = arith.constant 0 : index
    %78 = vector.load %arg9[%c1_95, %c1_96, %c0_97] : memref<18x18x128xbf16, #tpu.memory_space<vmem>>, vector<16x16x128xbf16>
    tpu.vector_store %arg9[%c1_95, %c1_96, %c0_97], %77 {strides = array<i32>} : memref<18x18x128xbf16, #tpu.memory_space<vmem>>, vector<16x16x128xbf16>,
    %cst_98 = arith.constant 0.000000e+00 : f32
    %79 = vector.broadcast %cst_98 : f32 to vector<256x128xf32>
    %c0_99 = arith.constant 0 : index
    %c0_100 = arith.constant 0 : index
    %c0_101 = arith.constant 0 : index
    %80 = vector.load %arg9[%c0_99, %c0_100, %c0_101] : memref<18x18x128xbf16, #tpu.memory_space<vmem>>, vector<16x16x128xbf16>
    %81 = vector.shape_cast %80 : vector<16x16x128xbf16> to vector<256x128xbf16>
    %c0_102 = arith.constant 0 : index
    %c0_103 = arith.constant 0 : index
    %c0_104 = arith.constant 0 : index
    %c0_105 = arith.constant 0 : index
    %82 = vector.load %arg6[%c0_102, %c0_103, %c0_104, %c0_105] : memref<3x3x128x128xbf16, #tpu.memory_space<vmem>>, vector<1x1x128x128xbf16>
    %83 = vector.shape_cast %82 : vector<1x1x128x128xbf16> to vector<128x128xbf16>
    %cst_106 = arith.constant dense<0.000000e+00> : vector<256x128xf32>
    %84 = tpu.matmul %81, %83, %cst_106 {dimension_numbers = #tpu.dot_dimension_numbers<[1], [0], [0], [1], [0, 0, 1, 1], [], []>} : vector<256x128xbf16>, vector<128x128xbf16>, vector<256x128xf32> -> vector<256x128xf32>
    %85 = arith.addf %79, %84 : vector<256x128xf32>
    %c0_107 = arith.constant 0 : index
    %c1_108 = arith.constant 1 : index
    %c0_109 = arith.constant 0 : index
    %86 = vector.load %arg9[%c0_107, %c1_108, %c0_109] : memref<18x18x128xbf16, #tpu.memory_space<vmem>>, vector<16x16x128xbf16>
    %87 = vector.shape_cast %86 : vector<16x16x128xbf16> to vector<256x128xbf16>
    %c0_110 = arith.constant 0 : index
    %c1_111 = arith.constant 1 : index
    %c0_112 = arith.constant 0 : index
    %c0_113 = arith.constant 0 : index
    %88 = vector.load %arg6[%c0_110, %c1_111, %c0_112, %c0_113] : memref<3x3x128x128xbf16, #tpu.memory_space<vmem>>, vector<1x1x128x128xbf16>
    %89 = vector.shape_cast %88 : vector<1x1x128x128xbf16> to vector<128x128xbf16>
    %cst_114 = arith.constant dense<0.000000e+00> : vector<256x128xf32>
    %90 = tpu.matmul %87, %89, %cst_114 {dimension_numbers = #tpu.dot_dimension_numbers<[1], [0], [0], [1], [0, 0, 1, 1], [], []>} : vector<256x128xbf16>, vector<128x128xbf16>, vector<256x128xf32> -> vector<256x128xf32>
    %91 = arith.addf %85, %90 : vector<256x128xf32>
    %c0_115 = arith.constant 0 : index
    %c2_116 = arith.constant 2 : index
    %c0_117 = arith.constant 0 : index
    %92 = vector.load %arg9[%c0_115, %c2_116, %c0_117] : memref<18x18x128xbf16, #tpu.memory_space<vmem>>, vector<16x16x128xbf16>
    %93 = vector.shape_cast %92 : vector<16x16x128xbf16> to vector<256x128xbf16>
    %c0_118 = arith.constant 0 : index
    %c2_119 = arith.constant 2 : index
    %c0_120 = arith.constant 0 : index
    %c0_121 = arith.constant 0 : index
    %94 = vector.load %arg6[%c0_118, %c2_119, %c0_120, %c0_121] : memref<3x3x128x128xbf16, #tpu.memory_space<vmem>>, vector<1x1x128x128xbf16>
    %95 = vector.shape_cast %94 : vector<1x1x128x128xbf16> to vector<128x128xbf16>
    %cst_122 = arith.constant dense<0.000000e+00> : vector<256x128xf32>
    %96 = tpu.matmul %93, %95, %cst_122 {dimension_numbers = #tpu.dot_dimension_numbers<[1], [0], [0], [1], [0, 0, 1, 1], [], []>} : vector<256x128xbf16>, vector<128x128xbf16>, vector<256x128xf32> -> vector<256x128xf32>
    %97 = arith.addf %91, %96 : vector<256x128xf32>
    %c1_123 = arith.constant 1 : index
    %c0_124 = arith.constant 0 : index
    %c0_125 = arith.constant 0 : index
    %98 = vector.load %arg9[%c1_123, %c0_124, %c0_125] : memref<18x18x128xbf16, #tpu.memory_space<vmem>>, vector<16x16x128xbf16>
    %99 = vector.shape_cast %98 : vector<16x16x128xbf16> to vector<256x128xbf16>
    %c1_126 = arith.constant 1 : index
    %c0_127 = arith.constant 0 : index
    %c0_128 = arith.constant 0 : index
    %c0_129 = arith.constant 0 : index
    %100 = vector.load %arg6[%c1_126, %c0_127, %c0_128, %c0_129] : memref<3x3x128x128xbf16, #tpu.memory_space<vmem>>, vector<1x1x128x128xbf16>
    %101 = vector.shape_cast %100 : vector<1x1x128x128xbf16> to vector<128x128xbf16>
    %cst_130 = arith.constant dense<0.000000e+00> : vector<256x128xf32>
    %102 = tpu.matmul %99, %101, %cst_130 {dimension_numbers = #tpu.dot_dimension_numbers<[1], [0], [0], [1], [0, 0, 1, 1], [], []>} : vector<256x128xbf16>, vector<128x128xbf16>, vector<256x128xf32> -> vector<256x128xf32>
    %103 = arith.addf %97, %102 : vector<256x128xf32>
    %c1_131 = arith.constant 1 : index
    %c1_132 = arith.constant 1 : index
    %c0_133 = arith.constant 0 : index
    %104 = vector.load %arg9[%c1_131, %c1_132, %c0_133] : memref<18x18x128xbf16, #tpu.memory_space<vmem>>, vector<16x16x128xbf16>
    %105 = vector.shape_cast %104 : vector<16x16x128xbf16> to vector<256x128xbf16>
    %c1_134 = arith.constant 1 : index
    %c1_135 = arith.constant 1 : index
    %c0_136 = arith.constant 0 : index
    %c0_137 = arith.constant 0 : index
    %106 = vector.load %arg6[%c1_134, %c1_135, %c0_136, %c0_137] : memref<3x3x128x128xbf16, #tpu.memory_space<vmem>>, vector<1x1x128x128xbf16>
    %107 = vector.shape_cast %106 : vector<1x1x128x128xbf16> to vector<128x128xbf16>
    %cst_138 = arith.constant dense<0.000000e+00> : vector<256x128xf32>
    %108 = tpu.matmul %105, %107, %cst_138 {dimension_numbers = #tpu.dot_dimension_numbers<[1], [0], [0], [1], [0, 0, 1, 1], [], []>} : vector<256x128xbf16>, vector<128x128xbf16>, vector<256x128xf32> -> vector<256x128xf32>
    %109 = arith.addf %103, %108 : vector<256x128xf32>
    %c1_139 = arith.constant 1 : index
    %c2_140 = arith.constant 2 : index
    %c0_141 = arith.constant 0 : index
    %110 = vector.load %arg9[%c1_139, %c2_140, %c0_141] : memref<18x18x128xbf16, #tpu.memory_space<vmem>>, vector<16x16x128xbf16>
    %111 = vector.shape_cast %110 : vector<16x16x128xbf16> to vector<256x128xbf16>
    %c1_142 = arith.constant 1 : index
    %c2_143 = arith.constant 2 : index
    %c0_144 = arith.constant 0 : index
    %c0_145 = arith.constant 0 : index
    %112 = vector.load %arg6[%c1_142, %c2_143, %c0_144, %c0_145] : memref<3x3x128x128xbf16, #tpu.memory_space<vmem>>, vector<1x1x128x128xbf16>
    %113 = vector.shape_cast %112 : vector<1x1x128x128xbf16> to vector<128x128xbf16>
    %cst_146 = arith.constant dense<0.000000e+00> : vector<256x128xf32>
    %114 = tpu.matmul %111, %113, %cst_146 {dimension_numbers = #tpu.dot_dimension_numbers<[1], [0], [0], [1], [0, 0, 1, 1], [], []>} : vector<256x128xbf16>, vector<128x128xbf16>, vector<256x128xf32> -> vector<256x128xf32>
    %115 = arith.addf %109, %114 : vector<256x128xf32>
    %c2_147 = arith.constant 2 : index
    %c0_148 = arith.constant 0 : index
    %c0_149 = arith.constant 0 : index
    %116 = vector.load %arg9[%c2_147, %c0_148, %c0_149] : memref<18x18x128xbf16, #tpu.memory_space<vmem>>, vector<16x16x128xbf16>
    %117 = vector.shape_cast %116 : vector<16x16x128xbf16> to vector<256x128xbf16>
    %c2_150 = arith.constant 2 : index
    %c0_151 = arith.constant 0 : index
    %c0_152 = arith.constant 0 : index
    %c0_153 = arith.constant 0 : index
    %118 = vector.load %arg6[%c2_150, %c0_151, %c0_152, %c0_153] : memref<3x3x128x128xbf16, #tpu.memory_space<vmem>>, vector<1x1x128x128xbf16>
    %119 = vector.shape_cast %118 : vector<1x1x128x128xbf16> to vector<128x128xbf16>
    %cst_154 = arith.constant dense<0.000000e+00> : vector<256x128xf32>
    %120 = tpu.matmul %117, %119, %cst_154 {dimension_numbers = #tpu.dot_dimension_numbers<[1], [0], [0], [1], [0, 0, 1, 1], [], []>} : vector<256x128xbf16>, vector<128x128xbf16>, vector<256x128xf32> -> vector<256x128xf32>
    %121 = arith.addf %115, %120 : vector<256x128xf32>
    %c2_155 = arith.constant 2 : index
    %c1_156 = arith.constant 1 : index
    %c0_157 = arith.constant 0 : index
    %122 = vector.load %arg9[%c2_155, %c1_156, %c0_157] : memref<18x18x128xbf16, #tpu.memory_space<vmem>>, vector<16x16x128xbf16>
    %123 = vector.shape_cast %122 : vector<16x16x128xbf16> to vector<256x128xbf16>
    %c2_158 = arith.constant 2 : index
    %c1_159 = arith.constant 1 : index
    %c0_160 = arith.constant 0 : index
    %c0_161 = arith.constant 0 : index
    %124 = vector.load %arg6[%c2_158, %c1_159, %c0_160, %c0_161] : memref<3x3x128x128xbf16, #tpu.memory_space<vmem>>, vector<1x1x128x128xbf16>
    %125 = vector.shape_cast %124 : vector<1x1x128x128xbf16> to vector<128x128xbf16>
    %cst_162 = arith.constant dense<0.000000e+00> : vector<256x128xf32>
    %126 = tpu.matmul %123, %125, %cst_162 {dimension_numbers = #tpu.dot_dimension_numbers<[1], [0], [0], [1], [0, 0, 1, 1], [], []>} : vector<256x128xbf16>, vector<128x128xbf16>, vector<256x128xf32> -> vector<256x128xf32>
    %127 = arith.addf %121, %126 : vector<256x128xf32>
    %c2_163 = arith.constant 2 : index
    %c2_164 = arith.constant 2 : index
    %c0_165 = arith.constant 0 : index
    %128 = vector.load %arg9[%c2_163, %c2_164, %c0_165] : memref<18x18x128xbf16, #tpu.memory_space<vmem>>, vector<16x16x128xbf16>
    %129 = vector.shape_cast %128 : vector<16x16x128xbf16> to vector<256x128xbf16>
    %c2_166 = arith.constant 2 : index
    %c2_167 = arith.constant 2 : index
    %c0_168 = arith.constant 0 : index
    %c0_169 = arith.constant 0 : index
    %130 = vector.load %arg6[%c2_166, %c2_167, %c0_168, %c0_169] : memref<3x3x128x128xbf16, #tpu.memory_space<vmem>>, vector<1x1x128x128xbf16>
    %131 = vector.shape_cast %130 : vector<1x1x128x128xbf16> to vector<128x128xbf16>
    %cst_170 = arith.constant dense<0.000000e+00> : vector<256x128xf32>
    %132 = tpu.matmul %129, %131, %cst_170 {dimension_numbers = #tpu.dot_dimension_numbers<[1], [0], [0], [1], [0, 0, 1, 1], [], []>} : vector<256x128xbf16>, vector<128x128xbf16>, vector<256x128xf32> -> vector<256x128xf32>
    %133 = arith.addf %127, %132 : vector<256x128xf32>
    %134 = vector.shape_cast %133 : vector<256x128xf32> to vector<16x16x128xf32>
    %135 = arith.addf %134, %1 : vector<16x16x128xf32>
    %136 = arith.truncf %135 : vector<16x16x128xf32> to vector<16x16x128xbf16>
    %c0_171 = arith.constant 0 : index
    %c0_172 = arith.constant 0 : index
    %c0_173 = arith.constant 0 : index
    %c0_174 = arith.constant 0 : index
    %137 = vector.load %arg7[%c0_171, %c0_172, %c0_173, %c0_174] : memref<1x16x16x128xbf16, #tpu.memory_space<vmem>>, vector<1x16x16x128xbf16>
    %138 = vector.shape_cast %137 : vector<1x16x16x128xbf16> to vector<16x16x128xbf16>
    %139 = vector.shape_cast %136 : vector<16x16x128xbf16> to vector<1x16x16x128xbf16>
    tpu.vector_store %arg7[%c0_171, %c0_172, %c0_173, %c0_174], %139 {strides = array<i32>} : memref<1x16x16x128xbf16, #tpu.memory_space<vmem>>, vector<1x16x16x128xbf16>,
    return
  }
  func.func @transform_0(%arg0: i32) -> (i32, i32, i32, i32) {
    %c0_i32 = arith.constant 0 : i32
    %c0_i32_0 = arith.constant 0 : i32
    %c0_i32_1 = arith.constant 0 : i32
    %c0_i32_2 = arith.constant 0 : i32
    return %arg0, %c0_i32, %c0_i32_0, %c0_i32_1 : i32, i32, i32, i32
  }
  func.func @transform_1(%arg0: i32) -> (i32, i32, i32) {
    %c0_i32 = arith.constant 0 : i32
    %c0_i32_0 = arith.constant 0 : i32
    %c0_i32_1 = arith.constant 0 : i32
    %c0_i32_2 = arith.constant 0 : i32
    return %c0_i32, %c0_i32_0, %c0_i32_1 : i32, i32, i32
  }
  func.func @transform_2(%arg0: i32) -> (i32, i32, i32) {
    %c0_i32 = arith.constant 0 : i32
    %c0_i32_0 = arith.constant 0 : i32
    %c0_i32_1 = arith.constant 0 : i32
    %c0_i32_2 = arith.constant 0 : i32
    return %c0_i32, %c0_i32_0, %c0_i32_1 : i32, i32, i32
  }
  func.func @transform_3(%arg0: i32) -> (i32, i32, i32, i32) {
    %c0_i32 = arith.constant 0 : i32
    %c0_i32_0 = arith.constant 0 : i32
    %c0_i32_1 = arith.constant 0 : i32
    %c0_i32_2 = arith.constant 0 : i32
    %c0_i32_3 = arith.constant 0 : i32
    return %c0_i32, %c0_i32_0, %c0_i32_1, %c0_i32_2 : i32, i32, i32, i32
  }
  func.func @transform_4(%arg0: i32) -> (i32, i32, i32) {
    %c0_i32 = arith.constant 0 : i32
    %c0_i32_0 = arith.constant 0 : i32
    %c0_i32_1 = arith.constant 0 : i32
    %c0_i32_2 = arith.constant 0 : i32
    return %c0_i32, %c0_i32_0, %c0_i32_1 : i32, i32, i32
  }
  func.func @transform_5(%arg0: i32) -> (i32, i32, i32, i32) {
    %c0_i32 = arith.constant 0 : i32
    %c0_i32_0 = arith.constant 0 : i32
    %c0_i32_1 = arith.constant 0 : i32
    %c0_i32_2 = arith.constant 0 : i32
    %c0_i32_3 = arith.constant 0 : i32
    return %c0_i32, %c0_i32_0, %c0_i32_1, %c0_i32_2 : i32, i32, i32, i32
  }
  func.func @transform_6(%arg0: i32) -> (i32, i32, i32, i32) {
    %c0_i32 = arith.constant 0 : i32
    %c0_i32_0 = arith.constant 0 : i32
    %c0_i32_1 = arith.constant 0 : i32
    %c0_i32_2 = arith.constant 0 : i32
    return %arg0, %c0_i32, %c0_i32_0, %c0_i32_1 : i32, i32, i32, i32
  }
}

</mosaic_0001>

<llo_original>
// kernel: decoder_residual_layer.1
$region0: #{decoder_residual_layer.1}
  #allocation0 [shape = 'u32[]', space=smem, size = 0x4, offset = 0x4, fixed_abs, tag = 'smem constant byte address 0x4 - core index']
  #allocation1 [shape = 'u32[72,128]{1,0:T(1,128)}', space=vmem, size = 0x9000, scoped, tag = 'internal scratch']
  #allocation2 [shape = 'bf16[18,18,128]{2,1,0:T(8,128)(2,1)}', space=vmem, size = 0x1b000, scoped, tag = 'scratch operand']
  #allocation3 [shape = 'bf16[18,18,128]{2,1,0:T(8,128)(2,1)}', space=vmem, size = 0x1b000, scoped, tag = 'scratch operand']
  %s0 = inlined_call_operand.vmem [shape: f32[2,16,16,128], index: 0, kind: input, shape index: {}]
  %s1 = inlined_call_operand.vmem [shape: f32[1,1,128], index: 1, kind: input, shape index: {}]
  %s2 = inlined_call_operand.vmem [shape: f32[1,1,128], index: 2, kind: input, shape index: {}]
  %s3 = inlined_call_operand.vmem [shape: bf16[3,3,128,128], index: 3, kind: input, shape index: {}]
  %s4 = inlined_call_operand.vmem [shape: f32[1,1,128], index: 4, kind: input, shape index: {}]
  %s5 = inlined_call_operand.vmem [shape: bf16[3,3,128,128], index: 5, kind: input, shape index: {}]
  %s6 = inlined_call_operand.vmem [shape: bf16[2,16,16,128], index: 6, kind: output, shape index: {}]
  %s7 = sld [smem:[#allocation0]]
  $region57: #{decoder_residual_layer.1} parent=0
    _
  %s9 = ssub.s32 1, %s7
  %s10 = scalar_select 0, %s9, %s7
  loop: start=0, step=1, limit=4
  $region2: #{decoder_residual_layer.1} parent=0 // loop_pre_header
    _
  $region3: #{decoder_residual_layer.1} parent=0 // loop_header
    %s12 = sphi 0, %s16
    %p13 = scmp.ge.s32.totalorder %s12, 4
    %s22 = sphi 0, %s24
    %s25 = sphi 0, %s22
    %s26 = sphi 0, %s25
    %s42 = sphi 0, %s26
    %s46 = sphi 0, %s46
    %s48 = sphi 0, %s46
    %s49 = sphi 0, %s48
    %s63 = sphi 0, %s49
    %s67 = sphi 0, %s67
    %s69 = sphi 0, %s67
    %s70 = sphi 0, %s69
    %s84 = sphi 0, %s70
    %s88 = sphi 0, %s88
    %s90 = sphi 0, %s88
    %s91 = sphi 0, %s90
    %s105 = sphi 0, %s91
    %s109 = sphi 0, %s109
    %s111 = sphi 0, %s109
    %s112 = sphi 0, %s111
    %s126 = sphi 0, %s112
    %s130 = sphi 0, %s130
    %s132 = sphi 0, %s130
    %s133 = sphi 0, %s132
    %s147 = sphi 0, %s133
    %s153 = sphi 0, %s155
    %s156 = sphi 0, %s153
    %s157 = sphi 0, %s156
    %s173 = sphi 0, %s157
  $region4: #{decoder_residual_layer.1} parent=0 // loop_header_branch
    %15 = sbr.rel (%p13) target = $region8
  $region5: #{decoder_residual_layer.1} parent=0 // loop_body
    %s17 = ssub.s32 %s12, 1
    %s18 = ssub.s32 %s12, 2
    %s19 = sadd.s32 %s12, 1
    %s20 = ssub.s32 %s12, %s19
    %p21 = scmp.eq.s32.totalorder %s20, 0
    %s23 = sadd.s32 %s22, 1
    %s24 = scalar_select %p21, %s22, %s23
    %p27 = pneg %p21
    %p28 = scmp.eq.s32.totalorder %s12, 1
    %p29 = por %p27, %p28
    %p30 = scmp.ne.s32.totalorder %s22, %s25
    %p31 = scmp.eq.s32.totalorder %s12, 0
    %p32 = por %p30, %p31
    %p33 = scmp.ne.s32.totalorder %s22, %s25
    %p34 = scmp.eq.s32.totalorder %s17, 1
    %p35 = por %p33, %p34
    %p36 = scmp.ne.s32.totalorder %s25, %s26
    %p37 = scmp.eq.s32.totalorder %s17, 0
    %p38 = por %p36, %p37
    %p39 = scmp.ne.s32.totalorder %s25, %s26
    %p40 = scmp.eq.s32.totalorder %s18, 1
    %p41 = por %p39, %p40
    %p43 = scmp.ne.s32.totalorder %s26, %s42
    %p44 = scmp.eq.s32.totalorder %s18, 0
    %p45 = por %p43, %p44
    %s47 = sadd.s32 %s46, 1
    %p50 = scmp.eq.s32.totalorder %s12, 1
    %p51 = scmp.ne.s32.totalorder %s46, %s48
    %p52 = scmp.eq.s32.totalorder %s12, 0
    %p53 = por %p51, %p52
    %p54 = scmp.ne.s32.totalorder %s46, %s48
    %p55 = scmp.eq.s32.totalorder %s17, 1
    %p56 = por %p54, %p55
    %p57 = scmp.ne.s32.totalorder %s48, %s49
    %p58 = scmp.eq.s32.totalorder %s17, 0
    %p59 = por %p57, %p58
    %p60 = scmp.ne.s32.totalorder %s48, %s49
    %p61 = scmp.eq.s32.totalorder %s18, 1
    %p62 = por %p60, %p61
    %p64 = scmp.ne.s32.totalorder %s49, %s63
    %p65 = scmp.eq.s32.totalorder %s18, 0
    %p66 = por %p64, %p65
    %s68 = sadd.s32 %s67, 1
    %p71 = scmp.eq.s32.totalorder %s12, 1
    %p72 = scmp.ne.s32.totalorder %s67, %s69
    %p73 = scmp.eq.s32.totalorder %s12, 0
    %p74 = por %p72, %p73
    %p75 = scmp.ne.s32.totalorder %s67, %s69
    %p76 = scmp.eq.s32.totalorder %s17, 1
    %p77 = por %p75, %p76
    %p78 = scmp.ne.s32.totalorder %s69, %s70
    %p79 = scmp.eq.s32.totalorder %s17, 0
    %p80 = por %p78, %p79
    %p81 = scmp.ne.s32.totalorder %s69, %s70
    %p82 = scmp.eq.s32.totalorder %s18, 1
    %p83 = por %p81, %p82
    %p85 = scmp.ne.s32.totalorder %s70, %s84
    %p86 = scmp.eq.s32.totalorder %s18, 0
    %p87 = por %p85, %p86
    %s89 = sadd.s32 %s88, 1
    %p92 = scmp.eq.s32.totalorder %s12, 1
    %p93 = scmp.ne.s32.totalorder %s88, %s90
    %p94 = scmp.eq.s32.totalorder %s12, 0
    %p95 = por %p93, %p94
    %p96 = scmp.ne.s32.totalorder %s88, %s90
    %p97 = scmp.eq.s32.totalorder %s17, 1
    %p98 = por %p96, %p97
    %p99 = scmp.ne.s32.totalorder %s90, %s91
    %p100 = scmp.eq.s32.totalorder %s17, 0
    %p101 = por %p99, %p100
    %p102 = scmp.ne.s32.totalorder %s90, %s91
    %p103 = scmp.eq.s32.totalorder %s18, 1
    %p104 = por %p102, %p103
    %p106 = scmp.ne.s32.totalorder %s91, %s105
    %p107 = scmp.eq.s32.totalorder %s18, 0
    %p108 = por %p106, %p107
    %s110 = sadd.s32 %s109, 1
    %p113 = scmp.eq.s32.totalorder %s12, 1
    %p114 = scmp.ne.s32.totalorder %s109, %s111
    %p115 = scmp.eq.s32.totalorder %s12, 0
    %p116 = por %p114, %p115
    %p117 = scmp.ne.s32.totalorder %s109, %s111
    %p118 = scmp.eq.s32.totalorder %s17, 1
    %p119 = por %p117, %p118
    %p120 = scmp.ne.s32.totalorder %s111, %s112
    %p121 = scmp.eq.s32.totalorder %s17, 0
    %p122 = por %p120, %p121
    %p123 = scmp.ne.s32.totalorder %s111, %s112
    %p124 = scmp.eq.s32.totalorder %s18, 1
    %p125 = por %p123, %p124
    %p127 = scmp.ne.s32.totalorder %s112, %s126
    %p128 = scmp.eq.s32.totalorder %s18, 0
    %p129 = por %p127, %p128
    %s131 = sadd.s32 %s130, 1
    %p134 = scmp.eq.s32.totalorder %s12, 1
    %p135 = scmp.ne.s32.totalorder %s130, %s132
    %p136 = scmp.eq.s32.totalorder %s12, 0
    %p137 = por %p135, %p136
    %p138 = scmp.ne.s32.totalorder %s130, %s132
    %p139 = scmp.eq.s32.totalorder %s17, 1
    %p140 = por %p138, %p139
    %p141 = scmp.ne.s32.totalorder %s132, %s133
    %p142 = scmp.eq.s32.totalorder %s17, 0
    %p143 = por %p141, %p142
    %p144 = scmp.ne.s32.totalorder %s132, %s133
    %p145 = scmp.eq.s32.totalorder %s18, 1
    %p146 = por %p144, %p145
    %p148 = scmp.ne.s32.totalorder %s133, %s147
    %p149 = scmp.eq.s32.totalorder %s18, 0
    %p150 = por %p148, %p149
    %s151 = ssub.s32 %s12, %s19
    %p152 = scmp.eq.s32.totalorder %s151, 0
    %s154 = sadd.s32 %s153, 1
    %s155 = scalar_select %p152, %s153, %s154
    %p158 = pneg %p152
    %p159 = scmp.eq.s32.totalorder %s12, 1
    %p160 = por %p158, %p159
    %p161 = scmp.ne.s32.totalorder %s153, %s156
    %p162 = scmp.eq.s32.totalorder %s12, 0
    %p163 = por %p161, %p162
    %p164 = scmp.ne.s32.totalorder %s153, %s156
    %p165 = scmp.eq.s32.totalorder %s17, 1
    %p166 = por %p164, %p165
    %p167 = scmp.ne.s32.totalorder %s156, %s157
    %p168 = scmp.eq.s32.totalorder %s17, 0
    %p169 = por %p167, %p168
    %p170 = scmp.ne.s32.totalorder %s156, %s157
    %p171 = scmp.eq.s32.totalorder %s18, 1
    %p172 = por %p170, %p171
    %p174 = scmp.ne.s32.totalorder %s157, %s173
    %p175 = scmp.eq.s32.totalorder %s18, 0
    %p176 = por %p174, %p175
    %p177 = scmp.le.s32.totalorder 1, %s12
    %p178 = scmp.lt.s32.totalorder %s12, 3
    %p179 = pnand %p177, %p178
    %p180 = pneg %p179
    // Predicated region
    $region9: #{decoder_residual_layer.1} parent=5 // pred_check
      _
    $region10: #{decoder_residual_layer.1} parent=5 // pred_check_branch
      %182 = sbr.rel (%p179) target = $region12
    $region11: #{decoder_residual_layer.1} parent=5 // pred_region
      %s183 = ssub.s32 %s12, 1
      // Predicated region
      $region13: #{decoder_residual_layer.1} parent=11 // pred_check
        %p184 = pneg %p59
      $region14: #{decoder_residual_layer.1} parent=11 // pred_check_branch
        %186 = sbr.rel (%p184) target = $region16
      $region15: #{decoder_residual_layer.1} parent=11 // pred_region
        _
      $region16: #{decoder_residual_layer.1} parent=11 // pred_fallthru
        _
      // Predicated region
      $region17: #{decoder_residual_layer.1} parent=11 // pred_check
        %p187 = pneg %p80
      $region18: #{decoder_residual_layer.1} parent=11 // pred_check_branch
        %189 = sbr.rel (%p187) target = $region20
      $region19: #{decoder_residual_layer.1} parent=11 // pred_region
        _
      $region20: #{decoder_residual_layer.1} parent=11 // pred_fallthru
        _
      // Predicated region
      $region21: #{decoder_residual_layer.1} parent=11 // pred_check
        %p190 = pneg %p101
      $region22: #{decoder_residual_layer.1} parent=11 // pred_check_branch
        %192 = sbr.rel (%p190) target = $region24
      $region23: #{decoder_residual_layer.1} parent=11 // pred_region
        _
      $region24: #{decoder_residual_layer.1} parent=11 // pred_fallthru
        _
      // Predicated region
      $region25: #{decoder_residual_layer.1} parent=11 // pred_check
        %p193 = pneg %p122
      $region26: #{decoder_residual_layer.1} parent=11 // pred_check_branch
        %195 = sbr.rel (%p193) target = $region28
      $region27: #{decoder_residual_layer.1} parent=11 // pred_region
        _
      $region28: #{decoder_residual_layer.1} parent=11 // pred_fallthru
        _
      // Predicated region
      $region29: #{decoder_residual_layer.1} parent=11 // pred_check
        %p196 = pneg %p143
      $region30: #{decoder_residual_layer.1} parent=11 // pred_check_branch
        %198 = sbr.rel (%p196) target = $region32
      $region31: #{decoder_residual_layer.1} parent=11 // pred_region
        _
      $region32: #{decoder_residual_layer.1} parent=11 // pred_fallthru
        _
    $region12: #{decoder_residual_layer.1} parent=5 // pred_fallthru
      _
    %p199 = scmp.lt.s32.totalorder %s12, 2
    // Predicated region
    $region33: #{decoder_residual_layer.1} parent=5 // pred_check
      %p200 = pneg %p199
    $region34: #{decoder_residual_layer.1} parent=5 // pred_check_branch
      %202 = sbr.rel (%p200) target = $region36
    $region35: #{decoder_residual_layer.1} parent=5 // pred_region
      // Predicated region
      $region37: #{decoder_residual_layer.1} parent=35 // pred_check
        %p203 = pneg %p32
      $region38: #{decoder_residual_layer.1} parent=35 // pred_check_branch
        %205 = sbr.rel (%p203) target = $region40
      $region39: #{decoder_residual_layer.1} parent=35 // pred_region
        %p206 = scmp.lt.s32.totalorder %s12, 1
        %s207 = scalar_select %p206, %s12, 1
        %s208 = smul.addr %s207, 32
        %s209 = smul.addr %s208, 8
        %s210 = scalar_lea.vmem %s0, %s209
      $region40: #{decoder_residual_layer.1} parent=35 // pred_fallthru
        _
    $region36: #{decoder_residual_layer.1} parent=5 // pred_fallthru
      _
    %p211 = scmp.le.s32.totalorder 1, %s12
    %p212 = scmp.lt.s32.totalorder %s12, 3
    %p213 = pnand %p211, %p212
    %p214 = pneg %p213
    // Predicated region
    $region41: #{decoder_residual_layer.1} parent=5 // pred_check
      _
    $region42: #{decoder_residual_layer.1} parent=5 // pred_check_branch
      %216 = sbr.rel (%p213) target = $region44
    $region43: #{decoder_residual_layer.1} parent=5 // pred_region
      %s217 = ssub.s32 %s12, 1
      %p218 = scmp.lt.s32.totalorder %s17, 1
      %s219 = scalar_select %p218, %s17, 1
      %s220 = smul.addr %s219, 32
      %s221 = smul.addr %s220, 8
      %s222 = scalar_lea.vmem %s0, %s221
      %p223 = pneg %p38
      %p224 = pneg %p35
      %p225 = pneg %p59
      %p226 = pneg %p56
      %p227 = pneg %p80
      %p228 = pneg %p77
      %p229 = pneg %p101
      %p230 = pneg %p98
      %p231 = pneg %p122
      %p232 = pneg %p119
      %p233 = pneg %p143
      %p234 = pneg %p140
      %p235 = pneg %p169
      %p236 = pneg %p166
      %p237 = scmp.lt.s32.totalorder %s17, 1
      %s238 = scalar_select %p237, %s17, 1
      %s239 = smul.addr %s238, 32
      %s240 = smul.addr %s239, 4
      %s241 = scalar_lea.vmem %s6, %s240
      %p242 = scmp.lt.s32.totalorder %s17, 1
      %s243 = scalar_select %p242, %s17, 1
      %s244 = smul.addr %s243, 32
      %s245 = smul.addr %s244, 8
      %s246 = scalar_lea.vmem %s0, %s245
      %p247 = scmp.lt.s32.totalorder %s17, 1
      %s248 = scalar_select %p247, %s17, 1
      %s249 = smul.addr %s248, 32
      %s250 = smul.addr %s249, 4
      %s251 = scalar_lea.vmem %s6, %s250
      %v253 = vld [vmem:[%s246] sm:$0xff]
      %v254 = vld [vmem:[%s246 + $0x8] sm:$0xff]
      %v255 = vld [vmem:[%s246 + $0x10] sm:$0xff]
      %v256 = vld [vmem:[%s246 + $0x18] sm:$0xff]
      %v257 = vld [vmem:[%s246 + $0x20] sm:$0xff]
      %v258 = vld [vmem:[%s246 + $0x28] sm:$0xff]
      %v259 = vld [vmem:[%s246 + $0x30] sm:$0xff]
      %v260 = vld [vmem:[%s246 + $0x38] sm:$0xff]
      %v261 = vld [vmem:[%s246 + $0x40] sm:$0xff]
      %v262 = vld [vmem:[%s246 + $0x48] sm:$0xff]
      %v263 = vld [vmem:[%s246 + $0x50] sm:$0xff]
      %v264 = vld [vmem:[%s246 + $0x58] sm:$0xff]
      %v265 = vld [vmem:[%s246 + $0x60] sm:$0xff]
      %v266 = vld [vmem:[%s246 + $0x68] sm:$0xff]
      %v267 = vld [vmem:[%s246 + $0x70] sm:$0xff]
      %v268 = vld [vmem:[%s246 + $0x78] sm:$0xff]
      %v269 = vld [vmem:[%s246 + $0x80] sm:$0xff]
      %v270 = vld [vmem:[%s246 + $0x88] sm:$0xff]
      %v271 = vld [vmem:[%s246 + $0x90] sm:$0xff]
      %v272 = vld [vmem:[%s246 + $0x98] sm:$0xff]
      %v273 = vld [vmem:[%s246 + $0xa0] sm:$0xff]
      %v274 = vld [vmem:[%s246 + $0xa8] sm:$0xff]
      %v275 = vld [vmem:[%s246 + $0xb0] sm:$0xff]
      %v276 = vld [vmem:[%s246 + $0xb8] sm:$0xff]
      %v277 = vld [vmem:[%s246 + $0xc0] sm:$0xff]
      %v278 = vld [vmem:[%s246 + $0xc8] sm:$0xff]
      %v279 = vld [vmem:[%s246 + $0xd0] sm:$0xff]
      %v280 = vld [vmem:[%s246 + $0xd8] sm:$0xff]
      %v281 = vld [vmem:[%s246 + $0xe0] sm:$0xff]
      %v282 = vld [vmem:[%s246 + $0xe8] sm:$0xff]
      %v283 = vld [vmem:[%s246 + $0xf0] sm:$0xff]
      %v284 = vld [vmem:[%s246 + $0xf8] sm:$0xff]
      %v285 = vld [vmem:[%s1] sm:$0x1]
      %v287 = vperm.slane %v285, 0
      %v289 = vmul.f32 %v253, %v287
      %v290 = vmul.f32 %v254, %v287
      %v291 = vmul.f32 %v255, %v287
      %v292 = vmul.f32 %v256, %v287
      %v293 = vmul.f32 %v257, %v287
      %v294 = vmul.f32 %v258, %v287
      %v295 = vmul.f32 %v259, %v287
      %v296 = vmul.f32 %v260, %v287
      %v297 = vmul.f32 %v261, %v287
      %v298 = vmul.f32 %v262, %v287
      %v299 = vmul.f32 %v263, %v287
      %v300 = vmul.f32 %v264, %v287
      %v301 = vmul.f32 %v265, %v287
      %v302 = vmul.f32 %v266, %v287
      %v303 = vmul.f32 %v267, %v287
      %v304 = vmul.f32 %v268, %v287
      %v305 = vmul.f32 %v269, %v287
      %v306 = vmul.f32 %v270, %v287
      %v307 = vmul.f32 %v271, %v287
      %v308 = vmul.f32 %v272, %v287
      %v309 = vmul.f32 %v273, %v287
      %v310 = vmul.f32 %v274, %v287
      %v311 = vmul.f32 %v275, %v287
      %v312 = vmul.f32 %v276, %v287
      %v313 = vmul.f32 %v277, %v287
      %v314 = vmul.f32 %v278, %v287
      %v315 = vmul.f32 %v279, %v287
      %v316 = vmul.f32 %v280, %v287
      %v317 = vmul.f32 %v281, %v287
      %v318 = vmul.f32 %v282, %v287
      %v319 = vmul.f32 %v283, %v287
      %v320 = vmul.f32 %v284, %v287
      %v321 = vld [vmem:[%s2] sm:$0x1]
      %v323 = vperm.slane %v321, 0
      %v325 = vadd.f32 %v289, %v323
      %v326 = vadd.f32 %v290, %v323
      %v327 = vadd.f32 %v291, %v323
      %v328 = vadd.f32 %v292, %v323
      %v329 = vadd.f32 %v293, %v323
      %v330 = vadd.f32 %v294, %v323
      %v331 = vadd.f32 %v295, %v323
      %v332 = vadd.f32 %v296, %v323
      %v333 = vadd.f32 %v297, %v323
      %v334 = vadd.f32 %v298, %v323
      %v335 = vadd.f32 %v299, %v323
      %v336 = vadd.f32 %v300, %v323
      %v337 = vadd.f32 %v301, %v323
      %v338 = vadd.f32 %v302, %v323
      %v339 = vadd.f32 %v303, %v323
      %v340 = vadd.f32 %v304, %v323
      %v341 = vadd.f32 %v305, %v323
      %v342 = vadd.f32 %v306, %v323
      %v343 = vadd.f32 %v307, %v323
      %v344 = vadd.f32 %v308, %v323
      %v345 = vadd.f32 %v309, %v323
      %v346 = vadd.f32 %v310, %v323
      %v347 = vadd.f32 %v311, %v323
      %v348 = vadd.f32 %v312, %v323
      %v349 = vadd.f32 %v313, %v323
      %v350 = vadd.f32 %v314, %v323
      %v351 = vadd.f32 %v315, %v323
      %v352 = vadd.f32 %v316, %v323
      %v353 = vadd.f32 %v317, %v323
      %v354 = vadd.f32 %v318, %v323
      %v355 = vadd.f32 %v319, %v323
      %v356 = vadd.f32 %v320, %v323
      %v357 = vmax.f32 %v325, 0.0
      %v358 = vmax.f32 %v326, 0.0
      %v359 = vmax.f32 %v327, 0.0
      %v360 = vmax.f32 %v328, 0.0
      %v361 = vmax.f32 %v329, 0.0
      %v362 = vmax.f32 %v330, 0.0
      %v363 = vmax.f32 %v331, 0.0
      %v364 = vmax.f32 %v332, 0.0
      %v365 = vmax.f32 %v333, 0.0
      %v366 = vmax.f32 %v334, 0.0
      %v367 = vmax.f32 %v335, 0.0
      %v368 = vmax.f32 %v336, 0.0
      %v369 = vmax.f32 %v337, 0.0
      %v370 = vmax.f32 %v338, 0.0
      %v371 = vmax.f32 %v339, 0.0
      %v372 = vmax.f32 %v340, 0.0
      %v373 = vmax.f32 %v341, 0.0
      %v374 = vmax.f32 %v342, 0.0
      %v375 = vmax.f32 %v343, 0.0
      %v376 = vmax.f32 %v344, 0.0
      %v377 = vmax.f32 %v345, 0.0
      %v378 = vmax.f32 %v346, 0.0
      %v379 = vmax.f32 %v347, 0.0
      %v380 = vmax.f32 %v348, 0.0
      %v381 = vmax.f32 %v349, 0.0
      %v382 = vmax.f32 %v350, 0.0
      %v383 = vmax.f32 %v351, 0.0
      %v384 = vmax.f32 %v352, 0.0
      %v385 = vmax.f32 %v353, 0.0
      %v386 = vmax.f32 %v354, 0.0
      %v387 = vmax.f32 %v355, 0.0
      %v388 = vmax.f32 %v356, 0.0
      %389 = vst [vmem:[#allocation2] sm:$0xf] 0
      %390 = vst [vmem:[#allocation2 + $0x4] sm:$0xf] 0
      %391 = vst [vmem:[#allocation2 + $0x8] sm:$0x1] 0
      %392 = vst [vmem:[#allocation2 + $0xc] sm:$0xf] 0
      %393 = vst [vmem:[#allocation2 + $0x10] sm:$0xf] 0
      %394 = vst [vmem:[#allocation2 + $0x14] sm:$0x1] 0
      %395 = vst [vmem:[#allocation2 + $0x18] sm:$0xf] 0
      %396 = vst [vmem:[#allocation2 + $0x1c] sm:$0xf] 0
      %397 = vst [vmem:[#allocation2 + $0x20] sm:$0x1] 0
      %398 = vst [vmem:[#allocation2 + $0x24] sm:$0xf] 0
      %399 = vst [vmem:[#allocation2 + $0x28] sm:$0xf] 0
      %400 = vst [vmem:[#allocation2 + $0x2c] sm:$0x1] 0
      %401 = vst [vmem:[#allocation2 + $0x30] sm:$0xf] 0
      %402 = vst [vmem:[#allocation2 + $0x34] sm:$0xf] 0
      %403 = vst [vmem:[#allocation2 + $0x38] sm:$0x1] 0
      %404 = vst [vmem:[#allocation2 + $0x3c] sm:$0xf] 0
      %405 = vst [vmem:[#allocation2 + $0x40] sm:$0xf] 0
      %406 = vst [vmem:[#allocation2 + $0x44] sm:$0x1] 0
      %407 = vst [vmem:[#allocation2 + $0x48] sm:$0xf] 0
      %408 = vst [vmem:[#allocation2 + $0x4c] sm:$0xf] 0
      %409 = vst [vmem:[#allocation2 + $0x50] sm:$0x1] 0
      %410 = vst [vmem:[#allocation2 + $0x54] sm:$0xf] 0
      %411 = vst [vmem:[#allocation2 + $0x58] sm:$0xf] 0
      %412 = vst [vmem:[#allocation2 + $0x5c] sm:$0x1] 0
      %413 = vst [vmem:[#allocation2 + $0x60] sm:$0xf] 0
      %414 = vst [vmem:[#allocation2 + $0x64] sm:$0xf] 0
      %415 = vst [vmem:[#allocation2 + $0x68] sm:$0x1] 0
      %416 = vst [vmem:[#allocation2 + $0x6c] sm:$0xf] 0
      %417 = vst [vmem:[#allocation2 + $0x70] sm:$0xf] 0
      %418 = vst [vmem:[#allocation2 + $0x74] sm:$0x1] 0
      %419 = vst [vmem:[#allocation2 + $0x78] sm:$0xf] 0
      %420 = vst [vmem:[#allocation2 + $0x7c] sm:$0xf] 0
      %421 = vst [vmem:[#allocation2 + $0x80] sm:$0x1] 0
      %422 = vst [vmem:[#allocation2 + $0x84] sm:$0xf] 0
      %423 = vst [vmem:[#allocation2 + $0x88] sm:$0xf] 0
      %424 = vst [vmem:[#allocation2 + $0x8c] sm:$0x1] 0
      %425 = vst [vmem:[#allocation2 + $0x90] sm:$0xf] 0
      %426 = vst [vmem:[#allocation2 + $0x94] sm:$0xf] 0
      %427 = vst [vmem:[#allocation2 + $0x98] sm:$0x1] 0
      %428 = vst [vmem:[#allocation2 + $0x9c] sm:$0xf] 0
      %429 = vst [vmem:[#allocation2 + $0xa0] sm:$0xf] 0
      %430 = vst [vmem:[#allocation2 + $0xa4] sm:$0x1] 0
      %431 = vst [vmem:[#allocation2 + $0xa8] sm:$0xf] 0
      %432 = vst [vmem:[#allocation2 + $0xac] sm:$0xf] 0
      %433 = vst [vmem:[#allocation2 + $0xb0] sm:$0x1] 0
      %434 = vst [vmem:[#allocation2 + $0xb4] sm:$0xf] 0
      %435 = vst [vmem:[#allocation2 + $0xb8] sm:$0xf] 0
      %436 = vst [vmem:[#allocation2 + $0xbc] sm:$0x1] 0
      %437 = vst [vmem:[#allocation2 + $0xc0] sm:$0xf] 0
      %438 = vst [vmem:[#allocation2 + $0xc4] sm:$0xf] 0
      %439 = vst [vmem:[#allocation2 + $0xc8] sm:$0x1] 0
      %440 = vst [vmem:[#allocation2 + $0xcc] sm:$0xf] 0
      %441 = vst [vmem:[#allocation2 + $0xd0] sm:$0xf] 0
      %442 = vst [vmem:[#allocation2 + $0xd4] sm:$0x1] 0
      %v443 = vpack.c.bf16 %v357, %v357
      %v444 = vpack.c.bf16 %v358, %v358
      %v445 = vpack.c.bf16 %v359, %v359
      %v446 = vpack.c.bf16 %v360, %v360
      %v447 = vpack.c.bf16 %v361, %v361
      %v448 = vpack.c.bf16 %v362, %v362
      %v449 = vpack.c.bf16 %v363, %v363
      %v450 = vpack.c.bf16 %v364, %v364
      %v451 = vpack.c.bf16 %v365, %v365
      %v452 = vpack.c.bf16 %v366, %v366
      %v453 = vpack.c.bf16 %v367, %v367
      %v454 = vpack.c.bf16 %v368, %v368
      %v455 = vpack.c.bf16 %v369, %v369
      %v456 = vpack.c.bf16 %v370, %v370
      %v457 = vpack.c.bf16 %v371, %v371
      %v458 = vpack.c.bf16 %v372, %v372
      %v459 = vpack.c.bf16 %v373, %v373
      %v460 = vpack.c.bf16 %v374, %v374
      %v461 = vpack.c.bf16 %v375, %v375
      %v462 = vpack.c.bf16 %v376, %v376
      %v463 = vpack.c.bf16 %v377, %v377
      %v464 = vpack.c.bf16 %v378, %v378
      %v465 = vpack.c.bf16 %v379, %v379
      %v466 = vpack.c.bf16 %v380, %v380
      %v467 = vpack.c.bf16 %v381, %v381
      %v468 = vpack.c.bf16 %v382, %v382
      %v469 = vpack.c.bf16 %v383, %v383
      %v470 = vpack.c.bf16 %v384, %v384
      %v471 = vpack.c.bf16 %v385, %v385
      %v472 = vpack.c.bf16 %v386, %v386
      %v473 = vpack.c.bf16 %v387, %v387
      %v474 = vpack.c.bf16 %v388, %v388
      %vm475 = vsmask.f32 256
      %vm476 = vsmask.f32 4368
      %vm477 = vmor %vm475, %vm476
      %v479 = vshrl.u32 %v443, 16
      %v481 = vrot.slane %v479, 7
      %v482 = vshll.u32 %v443, 16
      %v484 = vor.u32 %v481, %v482
      %v485 = vrot.slane %v481, 4
      %v487 = vshrl.u32 %v444, 16
      %v489 = vrot.slane %v487, 7
      %v490 = vshll.u32 %v444, 16
      %v492 = vor.u32 %v489, %v490
      %v493 = vsel %vm477, %v485, %v492
      %v494 = vrot.slane %v489, 4
      %v496 = vshrl.u32 %v445, 16
      %v498 = vrot.slane %v496, 7
      %v499 = vshll.u32 %v445, 16
      %v501 = vor.u32 %v498, %v499
      %v502 = vrot.slane %v498, 4
      %v504 = vshrl.u32 %v446, 16
      %v506 = vrot.slane %v504, 7
      %v507 = vshll.u32 %v446, 16
      %v509 = vor.u32 %v506, %v507
      %v510 = vsel %vm477, %v502, %v509
      %v511 = vrot.slane %v506, 4
      %v513 = vshrl.u32 %v447, 16
      %v515 = vrot.slane %v513, 7
      %v516 = vshll.u32 %v447, 16
      %v518 = vor.u32 %v515, %v516
      %v519 = vrot.slane %v515, 4
      %v521 = vshrl.u32 %v448, 16
      %v523 = vrot.slane %v521, 7
      %v524 = vshll.u32 %v448, 16
      %v526 = vor.u32 %v523, %v524
      %v527 = vsel %vm477, %v519, %v526
      %v528 = vrot.slane %v523, 4
      %v530 = vshrl.u32 %v449, 16
      %v532 = vrot.slane %v530, 7
      %v533 = vshll.u32 %v449, 16
      %v535 = vor.u32 %v532, %v533
      %v536 = vrot.slane %v532, 4
      %v538 = vshrl.u32 %v450, 16
      %v540 = vrot.slane %v538, 7
      %v541 = vshll.u32 %v450, 16
      %v543 = vor.u32 %v540, %v541
      %v544 = vsel %vm477, %v536, %v543
      %v545 = vrot.slane %v540, 4
      %v547 = vshrl.u32 %v451, 16
      %v549 = vrot.slane %v547, 7
      %v550 = vshll.u32 %v451, 16
      %v552 = vor.u32 %v549, %v550
      %v553 = vrot.slane %v549, 4
      %v555 = vshrl.u32 %v452, 16
      %v557 = vrot.slane %v555, 7
      %v558 = vshll.u32 %v452, 16
      %v560 = vor.u32 %v557, %v558
      %v561 = vsel %vm477, %v553, %v560
      %v562 = vrot.slane %v557, 4
      %v564 = vshrl.u32 %v453, 16
      %v566 = vrot.slane %v564, 7
      %v567 = vshll.u32 %v453, 16
      %v569 = vor.u32 %v566, %v567
      %v570 = vrot.slane %v566, 4
      %v572 = vshrl.u32 %v454, 16
      %v574 = vrot.slane %v572, 7
      %v575 = vshll.u32 %v454, 16
      %v577 = vor.u32 %v574, %v575
      %v578 = vsel %vm477, %v570, %v577
      %v579 = vrot.slane %v574, 4
      %v581 = vshrl.u32 %v455, 16
      %v583 = vrot.slane %v581, 7
      %v584 = vshll.u32 %v455, 16
      %v586 = vor.u32 %v583, %v584
      %v587 = vrot.slane %v583, 4
      %v589 = vshrl.u32 %v456, 16
      %v591 = vrot.slane %v589, 7
      %v592 = vshll.u32 %v456, 16
      %v594 = vor.u32 %v591, %v592
      %v595 = vsel %vm477, %v587, %v594
      %v596 = vrot.slane %v591, 4
      %v598 = vshrl.u32 %v457, 16
      %v600 = vrot.slane %v598, 7
      %v601 = vshll.u32 %v457, 16
      %v603 = vor.u32 %v600, %v601
      %v604 = vrot.slane %v600, 4
      %v606 = vshrl.u32 %v458, 16
      %v608 = vrot.slane %v606, 7
      %v609 = vshll.u32 %v458, 16
      %v611 = vor.u32 %v608, %v609
      %v612 = vsel %vm477, %v604, %v611
      %v613 = vrot.slane %v608, 4
      %v615 = vshrl.u32 %v459, 16
      %v617 = vrot.slane %v615, 7
      %v618 = vshll.u32 %v459, 16
      %v620 = vor.u32 %v617, %v618
      %v621 = vrot.slane %v617, 4
      %v623 = vshrl.u32 %v460, 16
      %v625 = vrot.slane %v623, 7
      %v626 = vshll.u32 %v460, 16
      %v628 = vor.u32 %v625, %v626
      %v629 = vsel %vm477, %v621, %v628
      %v630 = vrot.slane %v625, 4
      %v632 = vshrl.u32 %v461, 16
      %v634 = vrot.slane %v632, 7
      %v635 = vshll.u32 %v461, 16
      %v637 = vor.u32 %v634, %v635
      %v638 = vrot.slane %v634, 4
      %v640 = vshrl.u32 %v462, 16
      %v642 = vrot.slane %v640, 7
      %v643 = vshll.u32 %v462, 16
      %v645 = vor.u32 %v642, %v643
      %v646 = vsel %vm477, %v638, %v645
      %v647 = vrot.slane %v642, 4
      %v649 = vshrl.u32 %v463, 16
      %v651 = vrot.slane %v649, 7
      %v652 = vshll.u32 %v463, 16
      %v654 = vor.u32 %v651, %v652
      %v655 = vrot.slane %v651, 4
      %v657 = vshrl.u32 %v464, 16
      %v659 = vrot.slane %v657, 7
      %v660 = vshll.u32 %v464, 16
      %v662 = vor.u32 %v659, %v660
      %v663 = vsel %vm477, %v655, %v662
      %v664 = vrot.slane %v659, 4
      %v666 = vshrl.u32 %v465, 16
      %v668 = vrot.slane %v666, 7
      %v669 = vshll.u32 %v465, 16
      %v671 = vor.u32 %v668, %v669
      %v672 = vrot.slane %v668, 4
      %v674 = vshrl.u32 %v466, 16
      %v676 = vrot.slane %v674, 7
      %v677 = vshll.u32 %v466, 16
      %v679 = vor.u32 %v676, %v677
      %v680 = vsel %vm477, %v672, %v679
      %v681 = vrot.slane %v676, 4
      %v683 = vshrl.u32 %v467, 16
      %v685 = vrot.slane %v683, 7
      %v686 = vshll.u32 %v467, 16
      %v688 = vor.u32 %v685, %v686
      %v689 = vrot.slane %v685, 4
      %v691 = vshrl.u32 %v468, 16
      %v693 = vrot.slane %v691, 7
      %v694 = vshll.u32 %v468, 16
      %v696 = vor.u32 %v693, %v694
      %v697 = vsel %vm477, %v689, %v696
      %v698 = vrot.slane %v693, 4
      %v700 = vshrl.u32 %v469, 16
      %v702 = vrot.slane %v700, 7
      %v703 = vshll.u32 %v469, 16
      %v705 = vor.u32 %v702, %v703
      %v706 = vrot.slane %v702, 4
      %v708 = vshrl.u32 %v470, 16
      %v710 = vrot.slane %v708, 7
      %v711 = vshll.u32 %v470, 16
      %v713 = vor.u32 %v710, %v711
      %v714 = vsel %vm477, %v706, %v713
      %v715 = vrot.slane %v710, 4
      %v717 = vshrl.u32 %v471, 16
      %v719 = vrot.slane %v717, 7
      %v720 = vshll.u32 %v471, 16
      %v722 = vor.u32 %v719, %v720
      %v723 = vrot.slane %v719, 4
      %v725 = vshrl.u32 %v472, 16
      %v727 = vrot.slane %v725, 7
      %v728 = vshll.u32 %v472, 16
      %v730 = vor.u32 %v727, %v728
      %v731 = vsel %vm477, %v723, %v730
      %v732 = vrot.slane %v727, 4
      %v734 = vshrl.u32 %v473, 16
      %v736 = vrot.slane %v734, 7
      %v737 = vshll.u32 %v473, 16
      %v739 = vor.u32 %v736, %v737
      %v740 = vrot.slane %v736, 4
      %v742 = vshrl.u32 %v474, 16
      %v744 = vrot.slane %v742, 7
      %v745 = vshll.u32 %v474, 16
      %v747 = vor.u32 %v744, %v745
      %v748 = vsel %vm477, %v740, %v747
      %v749 = vrot.slane %v744, 4
      %s798 = scalar_lea.vmem [#allocation2], 12
      %vm799 = vcmask 1043456
      %vm800 = vsmask.f32 7938
      %vm801 = vmand %vm799, %vm800
      %v802 = vld [vmem:[%s798] sm:$0xf]
      %v803 = vsel %vm801, %v484, %v802
      %804 = vst [vmem:[%s798] sm:$0xf] %v803
      %805 = vst [vmem:[%s798 + $0x4] sm:$0xf] %v493
      %vm806 = vcmask 1040384
      %vm807 = vmand %vm806, %vm475
      %v808 = vld [vmem:[%s798 + $0x8] sm:$0x1]
      %v809 = vsel %vm807, %v494, %v808
      %810 = vst [vmem:[%s798 + $0x8] sm:$0x1] %v809
      %v811 = vld [vmem:[%s798 + $0xc] sm:$0xf]
      %v812 = vsel %vm801, %v501, %v811
      %813 = vst [vmem:[%s798 + $0xc] sm:$0xf] %v812
      %814 = vst [vmem:[%s798 + $0x10] sm:$0xf] %v510
      %v815 = vld [vmem:[%s798 + $0x14] sm:$0x1]
      %v816 = vsel %vm807, %v511, %v815
      %817 = vst [vmem:[%s798 + $0x14] sm:$0x1] %v816
      %v818 = vld [vmem:[%s798 + $0x18] sm:$0xf]
      %v819 = vsel %vm801, %v518, %v818
      %820 = vst [vmem:[%s798 + $0x18] sm:$0xf] %v819
      %821 = vst [vmem:[%s798 + $0x1c] sm:$0xf] %v527
      %v822 = vld [vmem:[%s798 + $0x20] sm:$0x1]
      %v823 = vsel %vm807, %v528, %v822
      %824 = vst [vmem:[%s798 + $0x20] sm:$0x1] %v823
      %v825 = vld [vmem:[%s798 + $0x24] sm:$0xf]
      %v826 = vsel %vm801, %v535, %v825
      %827 = vst [vmem:[%s798 + $0x24] sm:$0xf] %v826
      %828 = vst [vmem:[%s798 + $0x28] sm:$0xf] %v544
      %v829 = vld [vmem:[%s798 + $0x2c] sm:$0x1]
      %v830 = vsel %vm807, %v545, %v829
      %831 = vst [vmem:[%s798 + $0x2c] sm:$0x1] %v830
      %v832 = vld [vmem:[%s798 + $0x30] sm:$0xf]
      %v833 = vsel %vm801, %v552, %v832
      %834 = vst [vmem:[%s798 + $0x30] sm:$0xf] %v833
      %835 = vst [vmem:[%s798 + $0x34] sm:$0xf] %v561
      %v836 = vld [vmem:[%s798 + $0x38] sm:$0x1]
      %v837 = vsel %vm807, %v562, %v836
      %838 = vst [vmem:[%s798 + $0x38] sm:$0x1] %v837
      %v839 = vld [vmem:[%s798 + $0x3c] sm:$0xf]
      %v840 = vsel %vm801, %v569, %v839
      %841 = vst [vmem:[%s798 + $0x3c] sm:$0xf] %v840
      %842 = vst [vmem:[%s798 + $0x40] sm:$0xf] %v578
      %v843 = vld [vmem:[%s798 + $0x44] sm:$0x1]
      %v844 = vsel %vm807, %v579, %v843
      %845 = vst [vmem:[%s798 + $0x44] sm:$0x1] %v844
      %v846 = vld [vmem:[%s798 + $0x48] sm:$0xf]
      %v847 = vsel %vm801, %v586, %v846
      %848 = vst [vmem:[%s798 + $0x48] sm:$0xf] %v847
      %849 = vst [vmem:[%s798 + $0x4c] sm:$0xf] %v595
      %v850 = vld [vmem:[%s798 + $0x50] sm:$0x1]
      %v851 = vsel %vm807, %v596, %v850
      %852 = vst [vmem:[%s798 + $0x50] sm:$0x1] %v851
      %v853 = vld [vmem:[%s798 + $0x54] sm:$0xf]
      %v854 = vsel %vm801, %v603, %v853
      %855 = vst [vmem:[%s798 + $0x54] sm:$0xf] %v854
      %856 = vst [vmem:[%s798 + $0x58] sm:$0xf] %v612
      %v857 = vld [vmem:[%s798 + $0x5c] sm:$0x1]
      %v858 = vsel %vm807, %v613, %v857
      %859 = vst [vmem:[%s798 + $0x5c] sm:$0x1] %v858
      %v860 = vld [vmem:[%s798 + $0x60] sm:$0xf]
      %v861 = vsel %vm801, %v620, %v860
      %862 = vst [vmem:[%s798 + $0x60] sm:$0xf] %v861
      %863 = vst [vmem:[%s798 + $0x64] sm:$0xf] %v629
      %v864 = vld [vmem:[%s798 + $0x68] sm:$0x1]
      %v865 = vsel %vm807, %v630, %v864
      %866 = vst [vmem:[%s798 + $0x68] sm:$0x1] %v865
      %v867 = vld [vmem:[%s798 + $0x6c] sm:$0xf]
      %v868 = vsel %vm801, %v637, %v867
      %869 = vst [vmem:[%s798 + $0x6c] sm:$0xf] %v868
      %870 = vst [vmem:[%s798 + $0x70] sm:$0xf] %v646
      %v871 = vld [vmem:[%s798 + $0x74] sm:$0x1]
      %v872 = vsel %vm807, %v647, %v871
      %873 = vst [vmem:[%s798 + $0x74] sm:$0x1] %v872
      %v874 = vld [vmem:[%s798 + $0x78] sm:$0xf]
      %v875 = vsel %vm801, %v654, %v874
      %876 = vst [vmem:[%s798 + $0x78] sm:$0xf] %v875
      %877 = vst [vmem:[%s798 + $0x7c] sm:$0xf] %v663
      %v878 = vld [vmem:[%s798 + $0x80] sm:$0x1]
      %v879 = vsel %vm807, %v664, %v878
      %880 = vst [vmem:[%s798 + $0x80] sm:$0x1] %v879
      %v881 = vld [vmem:[%s798 + $0x84] sm:$0xf]
      %v882 = vsel %vm801, %v671, %v881
      %883 = vst [vmem:[%s798 + $0x84] sm:$0xf] %v882
      %884 = vst [vmem:[%s798 + $0x88] sm:$0xf] %v680
      %v885 = vld [vmem:[%s798 + $0x8c] sm:$0x1]
      %v886 = vsel %vm807, %v681, %v885
      %887 = vst [vmem:[%s798 + $0x8c] sm:$0x1] %v886
      %v888 = vld [vmem:[%s798 + $0x90] sm:$0xf]
      %v889 = vsel %vm801, %v688, %v888
      %890 = vst [vmem:[%s798 + $0x90] sm:$0xf] %v889
      %891 = vst [vmem:[%s798 + $0x94] sm:$0xf] %v697
      %v892 = vld [vmem:[%s798 + $0x98] sm:$0x1]
      %v893 = vsel %vm807, %v698, %v892
      %894 = vst [vmem:[%s798 + $0x98] sm:$0x1] %v893
      %v895 = vld [vmem:[%s798 + $0x9c] sm:$0xf]
      %v896 = vsel %vm801, %v705, %v895
      %897 = vst [vmem:[%s798 + $0x9c] sm:$0xf] %v896
      %898 = vst [vmem:[%s798 + $0xa0] sm:$0xf] %v714
      %v899 = vld [vmem:[%s798 + $0xa4] sm:$0x1]
      %v900 = vsel %vm807, %v715, %v899
      %901 = vst [vmem:[%s798 + $0xa4] sm:$0x1] %v900
      %v902 = vld [vmem:[%s798 + $0xa8] sm:$0xf]
      %v903 = vsel %vm801, %v722, %v902
      %904 = vst [vmem:[%s798 + $0xa8] sm:$0xf] %v903
      %905 = vst [vmem:[%s798 + $0xac] sm:$0xf] %v731
      %v906 = vld [vmem:[%s798 + $0xb0] sm:$0x1]
      %v907 = vsel %vm807, %v732, %v906
      %908 = vst [vmem:[%s798 + $0xb0] sm:$0x1] %v907
      %v909 = vld [vmem:[%s798 + $0xb4] sm:$0xf]
      %v910 = vsel %vm801, %v739, %v909
      %911 = vst [vmem:[%s798 + $0xb4] sm:$0xf] %v910
      %912 = vst [vmem:[%s798 + $0xb8] sm:$0xf] %v748
      %v913 = vld [vmem:[%s798 + $0xbc] sm:$0x1]
      %v914 = vsel %vm807, %v749, %v913
      %915 = vst [vmem:[%s798 + $0xbc] sm:$0x1] %v914
      %v916 = vld [vmem:[#allocation2] sm:$0xf]
      %v917 = vld [vmem:[#allocation2 + $0x4] sm:$0xf]
      %v918 = vld [vmem:[#allocation2 + $0xc] sm:$0xf]
      %v919 = vld [vmem:[#allocation2 + $0x10] sm:$0xf]
      %v920 = vld [vmem:[#allocation2 + $0x18] sm:$0xf]
      %v921 = vld [vmem:[#allocation2 + $0x1c] sm:$0xf]
      %v922 = vld [vmem:[#allocation2 + $0x24] sm:$0xf]
      %v923 = vld [vmem:[#allocation2 + $0x28] sm:$0xf]
      %v924 = vld [vmem:[#allocation2 + $0x30] sm:$0xf]
      %v925 = vld [vmem:[#allocation2 + $0x34] sm:$0xf]
      %v926 = vld [vmem:[#allocation2 + $0x3c] sm:$0xf]
      %v927 = vld [vmem:[#allocation2 + $0x40] sm:$0xf]
      %v928 = vld [vmem:[#allocation2 + $0x48] sm:$0xf]
      %v929 = vld [vmem:[#allocation2 + $0x4c] sm:$0xf]
      %v930 = vld [vmem:[#allocation2 + $0x54] sm:$0xf]
      %v931 = vld [vmem:[#allocation2 + $0x58] sm:$0xf]
      %v932 = vld [vmem:[#allocation2 + $0x60] sm:$0xf]
      %v933 = vld [vmem:[#allocation2 + $0x64] sm:$0xf]
      %v934 = vld [vmem:[#allocation2 + $0x6c] sm:$0xf]
      %v935 = vld [vmem:[#allocation2 + $0x70] sm:$0xf]
      %v936 = vld [vmem:[#allocation2 + $0x78] sm:$0xf]
      %v937 = vld [vmem:[#allocation2 + $0x7c] sm:$0xf]
      %v938 = vld [vmem:[#allocation2 + $0x84] sm:$0xf]
      %v939 = vld [vmem:[#allocation2 + $0x88] sm:$0xf]
      %v940 = vld [vmem:[#allocation2 + $0x90] sm:$0xf]
      %v941 = vld [vmem:[#allocation2 + $0x94] sm:$0xf]
      %v942 = vld [vmem:[#allocation2 + $0x9c] sm:$0xf]
      %v943 = vld [vmem:[#allocation2 + $0xa0] sm:$0xf]
      %v944 = vld [vmem:[#allocation2 + $0xa8] sm:$0xf]
      %v945 = vld [vmem:[#allocation2 + $0xac] sm:$0xf]
      %v946 = vld [vmem:[#allocation2 + $0xb4] sm:$0xf]
      %v947 = vld [vmem:[#allocation2 + $0xb8] sm:$0xf]
      %v948 = vld [vmem:[%s3] sm:$0xf]
      %v949 = vld [vmem:[%s3 + $0x4] sm:$0xf]
      %v950 = vld [vmem:[%s3 + $0x8] sm:$0xf]
      %v951 = vld [vmem:[%s3 + $0xc] sm:$0xf]
      %v952 = vld [vmem:[%s3 + $0x10] sm:$0xf]
      %v953 = vld [vmem:[%s3 + $0x14] sm:$0xf]
      %v954 = vld [vmem:[%s3 + $0x18] sm:$0xf]
      %v955 = vld [vmem:[%s3 + $0x1c] sm:$0xf]
      %v956 = vld [vmem:[%s3 + $0x20] sm:$0xf]
      %v957 = vld [vmem:[%s3 + $0x24] sm:$0xf]
      %v958 = vld [vmem:[%s3 + $0x28] sm:$0xf]
      %v959 = vld [vmem:[%s3 + $0x2c] sm:$0xf]
      %v960 = vld [vmem:[%s3 + $0x30] sm:$0xf]
      %v961 = vld [vmem:[%s3 + $0x34] sm:$0xf]
      %v962 = vld [vmem:[%s3 + $0x38] sm:$0xf]
      %v963 = vld [vmem:[%s3 + $0x3c] sm:$0xf]
      %v964 = vld [vmem:[#allocation2 + $0x8] sm:$0x1]
      %v965 = vld [vmem:[#allocation2 + $0x14] sm:$0x1]
      %v966 = vld [vmem:[#allocation2 + $0x20] sm:$0x1]
      %v967 = vld [vmem:[#allocation2 + $0x2c] sm:$0x1]
      %v968 = vld [vmem:[#allocation2 + $0x38] sm:$0x1]
      %v969 = vld [vmem:[#allocation2 + $0x44] sm:$0x1]
      %v970 = vld [vmem:[#allocation2 + $0x50] sm:$0x1]
      %v971 = vld [vmem:[#allocation2 + $0x5c] sm:$0x1]
      %v972 = vld [vmem:[#allocation2 + $0x68] sm:$0x1]
      %v973 = vld [vmem:[#allocation2 + $0x74] sm:$0x1]
      %v974 = vld [vmem:[#allocation2 + $0x80] sm:$0x1]
      %v975 = vld [vmem:[#allocation2 + $0x8c] sm:$0x1]
      %v976 = vld [vmem:[#allocation2 + $0x98] sm:$0x1]
      %v977 = vld [vmem:[#allocation2 + $0xa4] sm:$0x1]
      %v978 = vld [vmem:[#allocation2 + $0xb0] sm:$0x1]
      %v979 = vld [vmem:[#allocation2 + $0xbc] sm:$0x1]
      %vm980 = vsmask.f32 3328
      %vm981 = vsmask.f32 7440
      %vm982 = vmor %vm980, %vm981
      %v984 = vshrl.u32 %v916, 16
      %v986 = vrot.slane %v984, 4
      %v987 = vshll.u32 %v916, 16
      %v989 = vrot.slane %v987, 5
      %v990 = vor.u32 %v986, %v989
      %v991 = vrot.slane %v990, 4
      %v993 = vshll.u32 %v917, 16
      %v995 = vrot.slane %v993, 5
      %v996 = vsel %vm982, %v991, %v995
      %v997 = vshrl.u32 %v917, 16
      %v999 = vrot.slane %v997, 4
      %v1000 = vor.u32 %v999, %v995
      %v1001 = vrot.slane %v1000, 4
      %v1003 = vshll.u32 %v964, 16
      %v1005 = vrot.slane %v1003, 5
      %v1006 = vsel %vm982, %v1001, %v1005
      %v1008 = vshrl.u32 %v918, 16
      %v1010 = vrot.slane %v1008, 4
      %v1011 = vshll.u32 %v918, 16
      %v1013 = vrot.slane %v1011, 5
      %v1014 = vor.u32 %v1010, %v1013
      %v1015 = vrot.slane %v1014, 4
      %v1017 = vshll.u32 %v919, 16
      %v1019 = vrot.slane %v1017, 5
      %v1020 = vsel %vm982, %v1015, %v1019
      %v1021 = vshrl.u32 %v919, 16
      %v1023 = vrot.slane %v1021, 4
      %v1024 = vor.u32 %v1023, %v1019
      %v1025 = vrot.slane %v1024, 4
      %v1027 = vshll.u32 %v965, 16
      %v1029 = vrot.slane %v1027, 5
      %v1030 = vsel %vm982, %v1025, %v1029
      %v1032 = vshrl.u32 %v920, 16
      %v1034 = vrot.slane %v1032, 4
      %v1035 = vshll.u32 %v920, 16
      %v1037 = vrot.slane %v1035, 5
      %v1038 = vor.u32 %v1034, %v1037
      %v1039 = vrot.slane %v1038, 4
      %v1041 = vshll.u32 %v921, 16
      %v1043 = vrot.slane %v1041, 5
      %v1044 = vsel %vm982, %v1039, %v1043
      %v1045 = vshrl.u32 %v921, 16
      %v1047 = vrot.slane %v1045, 4
      %v1048 = vor.u32 %v1047, %v1043
      %v1049 = vrot.slane %v1048, 4
      %v1051 = vshll.u32 %v966, 16
      %v1053 = vrot.slane %v1051, 5
      %v1054 = vsel %vm982, %v1049, %v1053
      %v1056 = vshrl.u32 %v922, 16
      %v1058 = vrot.slane %v1056, 4
      %v1059 = vshll.u32 %v922, 16
      %v1061 = vrot.slane %v1059, 5
      %v1062 = vor.u32 %v1058, %v1061
      %v1063 = vrot.slane %v1062, 4
      %v1065 = vshll.u32 %v923, 16
      %v1067 = vrot.slane %v1065, 5
      %v1068 = vsel %vm982, %v1063, %v1067
      %v1069 = vshrl.u32 %v923, 16
      %v1071 = vrot.slane %v1069, 4
      %v1072 = vor.u32 %v1071, %v1067
      %v1073 = vrot.slane %v1072, 4
      %v1075 = vshll.u32 %v967, 16
      %v1077 = vrot.slane %v1075, 5
      %v1078 = vsel %vm982, %v1073, %v1077
      %v1080 = vshrl.u32 %v924, 16
      %v1082 = vrot.slane %v1080, 4
      %v1083 = vshll.u32 %v924, 16
      %v1085 = vrot.slane %v1083, 5
      %v1086 = vor.u32 %v1082, %v1085
      %v1087 = vrot.slane %v1086, 4
      %v1089 = vshll.u32 %v925, 16
      %v1091 = vrot.slane %v1089, 5
      %v1092 = vsel %vm982, %v1087, %v1091
      %v1093 = vshrl.u32 %v925, 16
      %v1095 = vrot.slane %v1093, 4
      %v1096 = vor.u32 %v1095, %v1091
      %v1097 = vrot.slane %v1096, 4
      %v1099 = vshll.u32 %v968, 16
      %v1101 = vrot.slane %v1099, 5
      %v1102 = vsel %vm982, %v1097, %v1101
      %v1104 = vshrl.u32 %v926, 16
      %v1106 = vrot.slane %v1104, 4
      %v1107 = vshll.u32 %v926, 16
      %v1109 = vrot.slane %v1107, 5
      %v1110 = vor.u32 %v1106, %v1109
      %v1111 = vrot.slane %v1110, 4
      %v1113 = vshll.u32 %v927, 16
      %v1115 = vrot.slane %v1113, 5
      %v1116 = vsel %vm982, %v1111, %v1115
      %v1117 = vshrl.u32 %v927, 16
      %v1119 = vrot.slane %v1117, 4
      %v1120 = vor.u32 %v1119, %v1115
      %v1121 = vrot.slane %v1120, 4
      %v1123 = vshll.u32 %v969, 16
      %v1125 = vrot.slane %v1123, 5
      %v1126 = vsel %vm982, %v1121, %v1125
      %v1128 = vshrl.u32 %v928, 16
      %v1130 = vrot.slane %v1128, 4
      %v1131 = vshll.u32 %v928, 16
      %v1133 = vrot.slane %v1131, 5
      %v1134 = vor.u32 %v1130, %v1133
      %v1135 = vrot.slane %v1134, 4
      %v1137 = vshll.u32 %v929, 16
      %v1139 = vrot.slane %v1137, 5
      %v1140 = vsel %vm982, %v1135, %v1139
      %v1141 = vshrl.u32 %v929, 16
      %v1143 = vrot.slane %v1141, 4
      %v1144 = vor.u32 %v1143, %v1139
      %v1145 = vrot.slane %v1144, 4
      %v1147 = vshll.u32 %v970, 16
      %v1149 = vrot.slane %v1147, 5
      %v1150 = vsel %vm982, %v1145, %v1149
      %v1152 = vshrl.u32 %v930, 16
      %v1154 = vrot.slane %v1152, 4
      %v1155 = vshll.u32 %v930, 16
      %v1157 = vrot.slane %v1155, 5
      %v1158 = vor.u32 %v1154, %v1157
      %v1159 = vrot.slane %v1158, 4
      %v1161 = vshll.u32 %v931, 16
      %v1163 = vrot.slane %v1161, 5
      %v1164 = vsel %vm982, %v1159, %v1163
      %v1165 = vshrl.u32 %v931, 16
      %v1167 = vrot.slane %v1165, 4
      %v1168 = vor.u32 %v1167, %v1163
      %v1169 = vrot.slane %v1168, 4
      %v1171 = vshll.u32 %v971, 16
      %v1173 = vrot.slane %v1171, 5
      %v1174 = vsel %vm982, %v1169, %v1173
      %v1176 = vshrl.u32 %v932, 16
      %v1178 = vrot.slane %v1176, 4
      %v1179 = vshll.u32 %v932, 16
      %v1181 = vrot.slane %v1179, 5
      %v1182 = vor.u32 %v1178, %v1181
      %v1183 = vrot.slane %v1182, 4
      %v1185 = vshll.u32 %v933, 16
      %v1187 = vrot.slane %v1185, 5
      %v1188 = vsel %vm982, %v1183, %v1187
      %v1189 = vshrl.u32 %v933, 16
      %v1191 = vrot.slane %v1189, 4
      %v1192 = vor.u32 %v1191, %v1187
      %v1193 = vrot.slane %v1192, 4
      %v1195 = vshll.u32 %v972, 16
      %v1197 = vrot.slane %v1195, 5
      %v1198 = vsel %vm982, %v1193, %v1197
      %v1200 = vshrl.u32 %v934, 16
      %v1202 = vrot.slane %v1200, 4
      %v1203 = vshll.u32 %v934, 16
      %v1205 = vrot.slane %v1203, 5
      %v1206 = vor.u32 %v1202, %v1205
      %v1207 = vrot.slane %v1206, 4
      %v1209 = vshll.u32 %v935, 16
      %v1211 = vrot.slane %v1209, 5
      %v1212 = vsel %vm982, %v1207, %v1211
      %v1213 = vshrl.u32 %v935, 16
      %v1215 = vrot.slane %v1213, 4
      %v1216 = vor.u32 %v1215, %v1211
      %v1217 = vrot.slane %v1216, 4
      %v1219 = vshll.u32 %v973, 16
      %v1221 = vrot.slane %v1219, 5
      %v1222 = vsel %vm982, %v1217, %v1221
      %v1224 = vshrl.u32 %v936, 16
      %v1226 = vrot.slane %v1224, 4
      %v1227 = vshll.u32 %v936, 16
      %v1229 = vrot.slane %v1227, 5
      %v1230 = vor.u32 %v1226, %v1229
      %v1231 = vrot.slane %v1230, 4
      %v1233 = vshll.u32 %v937, 16
      %v1235 = vrot.slane %v1233, 5
      %v1236 = vsel %vm982, %v1231, %v1235
      %v1237 = vshrl.u32 %v937, 16
      %v1239 = vrot.slane %v1237, 4
      %v1240 = vor.u32 %v1239, %v1235
      %v1241 = vrot.slane %v1240, 4
      %v1243 = vshll.u32 %v974, 16
      %v1245 = vrot.slane %v1243, 5
      %v1246 = vsel %vm982, %v1241, %v1245
      %v1248 = vshrl.u32 %v938, 16
      %v1250 = vrot.slane %v1248, 4
      %v1251 = vshll.u32 %v938, 16
      %v1253 = vrot.slane %v1251, 5
      %v1254 = vor.u32 %v1250, %v1253
      %v1255 = vrot.slane %v1254, 4
      %v1257 = vshll.u32 %v939, 16
      %v1259 = vrot.slane %v1257, 5
      %v1260 = vsel %vm982, %v1255, %v1259
      %v1261 = vshrl.u32 %v939, 16
      %v1263 = vrot.slane %v1261, 4
      %v1264 = vor.u32 %v1263, %v1259
      %v1265 = vrot.slane %v1264, 4
      %v1267 = vshll.u32 %v975, 16
      %v1269 = vrot.slane %v1267, 5
      %v1270 = vsel %vm982, %v1265, %v1269
      %v1272 = vshrl.u32 %v940, 16
      %v1274 = vrot.slane %v1272, 4
      %v1275 = vshll.u32 %v940, 16
      %v1277 = vrot.slane %v1275, 5
      %v1278 = vor.u32 %v1274, %v1277
      %v1279 = vrot.slane %v1278, 4
      %v1281 = vshll.u32 %v941, 16
      %v1283 = vrot.slane %v1281, 5
      %v1284 = vsel %vm982, %v1279, %v1283
      %v1285 = vshrl.u32 %v941, 16
      %v1287 = vrot.slane %v1285, 4
      %v1288 = vor.u32 %v1287, %v1283
      %v1289 = vrot.slane %v1288, 4
      %v1291 = vshll.u32 %v976, 16
      %v1293 = vrot.slane %v1291, 5
      %v1294 = vsel %vm982, %v1289, %v1293
      %v1296 = vshrl.u32 %v942, 16
      %v1298 = vrot.slane %v1296, 4
      %v1299 = vshll.u32 %v942, 16
      %v1301 = vrot.slane %v1299, 5
      %v1302 = vor.u32 %v1298, %v1301
      %v1303 = vrot.slane %v1302, 4
      %v1305 = vshll.u32 %v943, 16
      %v1307 = vrot.slane %v1305, 5
      %v1308 = vsel %vm982, %v1303, %v1307
      %v1309 = vshrl.u32 %v943, 16
      %v1311 = vrot.slane %v1309, 4
      %v1312 = vor.u32 %v1311, %v1307
      %v1313 = vrot.slane %v1312, 4
      %v1315 = vshll.u32 %v977, 16
      %v1317 = vrot.slane %v1315, 5
      %v1318 = vsel %vm982, %v1313, %v1317
      %v1320 = vshrl.u32 %v944, 16
      %v1322 = vrot.slane %v1320, 4
      %v1323 = vshll.u32 %v944, 16
      %v1325 = vrot.slane %v1323, 5
      %v1326 = vor.u32 %v1322, %v1325
      %v1327 = vrot.slane %v1326, 4
      %v1329 = vshll.u32 %v945, 16
      %v1331 = vrot.slane %v1329, 5
      %v1332 = vsel %vm982, %v1327, %v1331
      %v1333 = vshrl.u32 %v945, 16
      %v1335 = vrot.slane %v1333, 4
      %v1336 = vor.u32 %v1335, %v1331
      %v1337 = vrot.slane %v1336, 4
      %v1339 = vshll.u32 %v978, 16
      %v1341 = vrot.slane %v1339, 5
      %v1342 = vsel %vm982, %v1337, %v1341
      %v1344 = vshrl.u32 %v946, 16
      %v1346 = vrot.slane %v1344, 4
      %v1347 = vshll.u32 %v946, 16
      %v1349 = vrot.slane %v1347, 5
      %v1350 = vor.u32 %v1346, %v1349
      %v1351 = vrot.slane %v1350, 4
      %v1353 = vshll.u32 %v947, 16
      %v1355 = vrot.slane %v1353, 5
      %v1356 = vsel %vm982, %v1351, %v1355
      %v1357 = vshrl.u32 %v947, 16
      %v1359 = vrot.slane %v1357, 4
      %v1360 = vor.u32 %v1359, %v1355
      %v1361 = vrot.slane %v1360, 4
      %v1363 = vshll.u32 %v979, 16
      %v1365 = vrot.slane %v1363, 5
      %v1366 = vsel %vm982, %v1361, %v1365
      %s1367 = scalar_lea.vmem %s3, 64
      %v1368 = vld [vmem:[%s1367] sm:$0xf]
      %v1369 = vld [vmem:[%s1367 + $0x4] sm:$0xf]
      %v1370 = vld [vmem:[%s1367 + $0x8] sm:$0xf]
      %v1371 = vld [vmem:[%s1367 + $0xc] sm:$0xf]
      %v1372 = vld [vmem:[%s1367 + $0x10] sm:$0xf]
      %v1373 = vld [vmem:[%s1367 + $0x14] sm:$0xf]
      %v1374 = vld [vmem:[%s1367 + $0x18] sm:$0xf]
      %v1375 = vld [vmem:[%s1367 + $0x1c] sm:$0xf]
      %v1376 = vld [vmem:[%s1367 + $0x20] sm:$0xf]
      %v1377 = vld [vmem:[%s1367 + $0x24] sm:$0xf]
      %v1378 = vld [vmem:[%s1367 + $0x28] sm:$0xf]
      %v1379 = vld [vmem:[%s1367 + $0x2c] sm:$0xf]
      %v1380 = vld [vmem:[%s1367 + $0x30] sm:$0xf]
      %v1381 = vld [vmem:[%s1367 + $0x34] sm:$0xf]
      %v1382 = vld [vmem:[%s1367 + $0x38] sm:$0xf]
      %v1383 = vld [vmem:[%s1367 + $0x3c] sm:$0xf]
      %v1384 = vunpack.c.l.b16 %v996
      %v1385 = vunpack.c.l.b16 %v1006
      %v1386 = vunpack.c.l.b16 %v1020
      %v1387 = vunpack.c.l.b16 %v1030
      %v1388 = vunpack.c.l.b16 %v1044
      %v1389 = vunpack.c.l.b16 %v1054
      %v1390 = vunpack.c.l.b16 %v1068
      %v1391 = vunpack.c.l.b16 %v1078
      %v1392 = vunpack.c.l.b16 %v1092
      %v1393 = vunpack.c.l.b16 %v1102
      %v1394 = vunpack.c.l.b16 %v1116
      %v1395 = vunpack.c.l.b16 %v1126
      %v1396 = vunpack.c.l.b16 %v1140
      %v1397 = vunpack.c.l.b16 %v1150
      %v1398 = vunpack.c.l.b16 %v1164
      %v1399 = vunpack.c.l.b16 %v1174
      %v1400 = vunpack.c.l.b16 %v1188
      %v1401 = vunpack.c.l.b16 %v1198
      %v1402 = vunpack.c.l.b16 %v1212
      %v1403 = vunpack.c.l.b16 %v1222
      %v1404 = vunpack.c.l.b16 %v1236
      %v1405 = vunpack.c.l.b16 %v1246
      %v1406 = vunpack.c.l.b16 %v1260
      %v1407 = vunpack.c.l.b16 %v1270
      %v1408 = vunpack.c.l.b16 %v1284
      %v1409 = vunpack.c.l.b16 %v1294
      %v1410 = vunpack.c.l.b16 %v1308
      %v1411 = vunpack.c.l.b16 %v1318
      %v1412 = vunpack.c.l.b16 %v1332
      %v1413 = vunpack.c.l.b16 %v1342
      %v1414 = vunpack.c.l.b16 %v1356
      %v1415 = vunpack.c.l.b16 %v1366
      %v1416 = vpack.c.b16 %v1385, %v1384
      %v1417 = vpack.c.b16 %v1387, %v1386
      %v1418 = vpack.c.b16 %v1389, %v1388
      %v1419 = vpack.c.b16 %v1391, %v1390
      %v1420 = vpack.c.b16 %v1393, %v1392
      %v1421 = vpack.c.b16 %v1395, %v1394
      %v1422 = vpack.c.b16 %v1397, %v1396
      %v1423 = vpack.c.b16 %v1399, %v1398
      %v1424 = vpack.c.b16 %v1401, %v1400
      %v1425 = vpack.c.b16 %v1403, %v1402
      %v1426 = vpack.c.b16 %v1405, %v1404
      %v1427 = vpack.c.b16 %v1407, %v1406
      %v1428 = vpack.c.b16 %v1409, %v1408
      %v1429 = vpack.c.b16 %v1411, %v1410
      %v1430 = vpack.c.b16 %v1413, %v1412
      %v1431 = vpack.c.b16 %v1415, %v1414
      %v1464 = vunpack.c.l.b16 %v1368
      %v1465 = vunpack.c.l.b16 %v1369
      %v1466 = vunpack.c.l.b16 %v1370
      %v1467 = vunpack.c.l.b16 %v1371
      %v1468 = vunpack.c.l.b16 %v1372
      %v1469 = vunpack.c.l.b16 %v1373
      %v1470 = vunpack.c.l.b16 %v1374
      %v1471 = vunpack.c.l.b16 %v1375
      %v1472 = vunpack.c.l.b16 %v1376
      %v1473 = vunpack.c.l.b16 %v1377
      %v1474 = vunpack.c.l.b16 %v1378
      %v1475 = vunpack.c.l.b16 %v1379
      %v1476 = vunpack.c.l.b16 %v1380
      %v1477 = vunpack.c.l.b16 %v1381
      %v1478 = vunpack.c.l.b16 %v1382
      %v1479 = vunpack.c.l.b16 %v1383
      %v1480 = vpack.c.b16 %v1465, %v1464
      %v1481 = vpack.c.b16 %v1467, %v1466
      %v1482 = vpack.c.b16 %v1469, %v1468
      %v1483 = vpack.c.b16 %v1471, %v1470
      %v1484 = vpack.c.b16 %v1473, %v1472
      %v1485 = vpack.c.b16 %v1475, %v1474
      %v1486 = vpack.c.b16 %v1477, %v1476
      %v1487 = vpack.c.b16 %v1479, %v1478
      %1496 = vmatpush.bf16.msra.mxu0 %v1487
      %1497 = vmatpush.bf16.msra.mxu0 %v1486
      %1498 = vmatpush.bf16.msra.mxu0 %v1485
      %1499 = vmatpush.bf16.msra.mxu0 %v1484
      %1500 = vmatpush.bf16.msra.mxu0 %v1483
      %1501 = vmatpush.bf16.msra.mxu0 %v1482
      %1502 = vmatpush.bf16.msra.mxu0 %v1481
      %1503 = vmatpush.bf16.msra.mxu0 %v1480
      %1504 = vmatmul.bf16.gmra.mxu0 %v1416
      %v1505 = vpop.f32.mrf.mxu0
      %v1506 = vadd.f32 0.0, %v1505
      %v1507 = vpop.f32.mrf.mxu0
      %v1508 = vadd.f32 0.0, %v1507
      %1509 = vmatmul.bf16.gmra.mxu0 %v1417
      %v1510 = vpop.f32.mrf.mxu0
      %v1511 = vadd.f32 0.0, %v1510
      %v1512 = vpop.f32.mrf.mxu0
      %v1513 = vadd.f32 0.0, %v1512
      %1514 = vmatmul.bf16.gmra.mxu0 %v1418
      %v1515 = vpop.f32.mrf.mxu0
      %v1516 = vadd.f32 0.0, %v1515
      %v1517 = vpop.f32.mrf.mxu0
      %v1518 = vadd.f32 0.0, %v1517
      %1519 = vmatmul.bf16.gmra.mxu0 %v1419
      %v1520 = vpop.f32.mrf.mxu0
      %v1521 = vadd.f32 0.0, %v1520
      %v1522 = vpop.f32.mrf.mxu0
      %v1523 = vadd.f32 0.0, %v1522
      %1524 = vmatmul.bf16.gmra.mxu0 %v1420
      %v1525 = vpop.f32.mrf.mxu0
      %v1526 = vadd.f32 0.0, %v1525
      %v1527 = vpop.f32.mrf.mxu0
      %v1528 = vadd.f32 0.0, %v1527
      %1529 = vmatmul.bf16.gmra.mxu0 %v1421
      %v1530 = vpop.f32.mrf.mxu0
      %v1531 = vadd.f32 0.0, %v1530
      %v1532 = vpop.f32.mrf.mxu0
      %v1533 = vadd.f32 0.0, %v1532
      %1534 = vmatmul.bf16.gmra.mxu0 %v1422
      %v1535 = vpop.f32.mrf.mxu0
      %v1536 = vadd.f32 0.0, %v1535
      %v1537 = vpop.f32.mrf.mxu0
      %v1538 = vadd.f32 0.0, %v1537
      %1539 = vmatmul.bf16.gmra.mxu0 %v1423
      %v1540 = vpop.f32.mrf.mxu0
      %v1541 = vadd.f32 0.0, %v1540
      %v1542 = vpop.f32.mrf.mxu0
      %v1543 = vadd.f32 0.0, %v1542
      %1544 = vmatmul.bf16.gmra.mxu0 %v1424
      %v1545 = vpop.f32.mrf.mxu0
      %v1546 = vadd.f32 0.0, %v1545
      %v1547 = vpop.f32.mrf.mxu0
      %v1548 = vadd.f32 0.0, %v1547
      %1549 = vmatmul.bf16.gmra.mxu0 %v1425
      %v1550 = vpop.f32.mrf.mxu0
      %v1551 = vadd.f32 0.0, %v1550
      %v1552 = vpop.f32.mrf.mxu0
      %v1553 = vadd.f32 0.0, %v1552
      %1554 = vmatmul.bf16.gmra.mxu0 %v1426
      %v1555 = vpop.f32.mrf.mxu0
      %v1556 = vadd.f32 0.0, %v1555
      %v1557 = vpop.f32.mrf.mxu0
      %v1558 = vadd.f32 0.0, %v1557
      %1559 = vmatmul.bf16.gmra.mxu0 %v1427
      %v1560 = vpop.f32.mrf.mxu0
      %v1561 = vadd.f32 0.0, %v1560
      %v1562 = vpop.f32.mrf.mxu0
      %v1563 = vadd.f32 0.0, %v1562
      %1564 = vmatmul.bf16.gmra.mxu0 %v1428
      %v1565 = vpop.f32.mrf.mxu0
      %v1566 = vadd.f32 0.0, %v1565
      %v1567 = vpop.f32.mrf.mxu0
      %v1568 = vadd.f32 0.0, %v1567
      %1569 = vmatmul.bf16.gmra.mxu0 %v1429
      %v1570 = vpop.f32.mrf.mxu0
      %v1571 = vadd.f32 0.0, %v1570
      %v1572 = vpop.f32.mrf.mxu0
      %v1573 = vadd.f32 0.0, %v1572
      %1574 = vmatmul.bf16.gmra.mxu0 %v1430
      %v1575 = vpop.f32.mrf.mxu0
      %v1576 = vadd.f32 0.0, %v1575
      %v1577 = vpop.f32.mrf.mxu0
      %v1578 = vadd.f32 0.0, %v1577
      %1579 = vmatmul.bf16.gmra.mxu0 %v1431
      %v1580 = vpop.f32.mrf.mxu0
      %v1581 = vadd.f32 0.0, %v1580
      %v1582 = vpop.f32.mrf.mxu0
      %v1583 = vadd.f32 0.0, %v1582
      %1584 = vdwg.mxu0
      %v1617 = vunpack.c.l.b16 %v916
      %v1618 = vunpack.c.l.b16 %v917
      %v1619 = vunpack.c.l.b16 %v918
      %v1620 = vunpack.c.l.b16 %v919
      %v1621 = vunpack.c.l.b16 %v920
      %v1622 = vunpack.c.l.b16 %v921
      %v1623 = vunpack.c.l.b16 %v922
      %v1624 = vunpack.c.l.b16 %v923
      %v1625 = vunpack.c.l.b16 %v924
      %v1626 = vunpack.c.l.b16 %v925
      %v1627 = vunpack.c.l.b16 %v926
      %v1628 = vunpack.c.l.b16 %v927
      %v1629 = vunpack.c.l.b16 %v928
      %v1630 = vunpack.c.l.b16 %v929
      %v1631 = vunpack.c.l.b16 %v930
      %v1632 = vunpack.c.l.b16 %v931
      %v1633 = vunpack.c.l.b16 %v932
      %v1634 = vunpack.c.l.b16 %v933
      %v1635 = vunpack.c.l.b16 %v934
      %v1636 = vunpack.c.l.b16 %v935
      %v1637 = vunpack.c.l.b16 %v936
      %v1638 = vunpack.c.l.b16 %v937
      %v1639 = vunpack.c.l.b16 %v938
      %v1640 = vunpack.c.l.b16 %v939
      %v1641 = vunpack.c.l.b16 %v940
      %v1642 = vunpack.c.l.b16 %v941
      %v1643 = vunpack.c.l.b16 %v942
      %v1644 = vunpack.c.l.b16 %v943
      %v1645 = vunpack.c.l.b16 %v944
      %v1646 = vunpack.c.l.b16 %v945
      %v1647 = vunpack.c.l.b16 %v946
      %v1648 = vunpack.c.l.b16 %v947
      %v1649 = vpack.c.b16 %v1618, %v1617
      %v1650 = vpack.c.b16 %v1620, %v1619
      %v1651 = vpack.c.b16 %v1622, %v1621
      %v1652 = vpack.c.b16 %v1624, %v1623
      %v1653 = vpack.c.b16 %v1626, %v1625
      %v1654 = vpack.c.b16 %v1628, %v1627
      %v1655 = vpack.c.b16 %v1630, %v1629
      %v1656 = vpack.c.b16 %v1632, %v1631
      %v1657 = vpack.c.b16 %v1634, %v1633
      %v1658 = vpack.c.b16 %v1636, %v1635
      %v1659 = vpack.c.b16 %v1638, %v1637
      %v1660 = vpack.c.b16 %v1640, %v1639
      %v1661 = vpack.c.b16 %v1642, %v1641
      %v1662 = vpack.c.b16 %v1644, %v1643
      %v1663 = vpack.c.b16 %v1646, %v1645
      %v1664 = vpack.c.b16 %v1648, %v1647
      %v1697 = vunpack.c.l.b16 %v948
      %v1698 = vunpack.c.l.b16 %v949
      %v1699 = vunpack.c.l.b16 %v950
      %v1700 = vunpack.c.l.b16 %v951
      %v1701 = vunpack.c.l.b16 %v952
      %v1702 = vunpack.c.l.b16 %v953
      %v1703 = vunpack.c.l.b16 %v954
      %v1704 = vunpack.c.l.b16 %v955
      %v1705 = vunpack.c.l.b16 %v956
      %v1706 = vunpack.c.l.b16 %v957
      %v1707 = vunpack.c.l.b16 %v958
      %v1708 = vunpack.c.l.b16 %v959
      %v1709 = vunpack.c.l.b16 %v960
      %v1710 = vunpack.c.l.b16 %v961
      %v1711 = vunpack.c.l.b16 %v962
      %v1712 = vunpack.c.l.b16 %v963
      %v1713 = vpack.c.b16 %v1698, %v1697
      %v1714 = vpack.c.b16 %v1700, %v1699
      %v1715 = vpack.c.b16 %v1702, %v1701
      %v1716 = vpack.c.b16 %v1704, %v1703
      %v1717 = vpack.c.b16 %v1706, %v1705
      %v1718 = vpack.c.b16 %v1708, %v1707
      %v1719 = vpack.c.b16 %v1710, %v1709
      %v1720 = vpack.c.b16 %v1712, %v1711
      %1729 = vmatpush.bf16.msra.mxu0 %v1720
      %1730 = vmatpush.bf16.msra.mxu0 %v1719
      %1731 = vmatpush.bf16.msra.mxu0 %v1718
      %1732 = vmatpush.bf16.msra.mxu0 %v1717
      %1733 = vmatpush.bf16.msra.mxu0 %v1716
      %1734 = vmatpush.bf16.msra.mxu0 %v1715
      %1735 = vmatpush.bf16.msra.mxu0 %v1714
      %1736 = vmatpush.bf16.msra.mxu0 %v1713
      %1737 = vmatmul.bf16.gmra.mxu0 %v1649
      %v1738 = vpop.f32.mrf.mxu0
      %v1739 = vadd.f32 %v1506, %v1738
      %v1740 = vpop.f32.mrf.mxu0
      %v1741 = vadd.f32 %v1508, %v1740
      %1742 = vmatmul.bf16.gmra.mxu0 %v1650
      %v1743 = vpop.f32.mrf.mxu0
      %v1744 = vadd.f32 %v1511, %v1743
      %v1745 = vpop.f32.mrf.mxu0
      %v1746 = vadd.f32 %v1513, %v1745
      %1747 = vmatmul.bf16.gmra.mxu0 %v1651
      %v1748 = vpop.f32.mrf.mxu0
      %v1749 = vadd.f32 %v1516, %v1748
      %v1750 = vpop.f32.mrf.mxu0
      %v1751 = vadd.f32 %v1518, %v1750
      %1752 = vmatmul.bf16.gmra.mxu0 %v1652
      %v1753 = vpop.f32.mrf.mxu0
      %v1754 = vadd.f32 %v1521, %v1753
      %v1755 = vpop.f32.mrf.mxu0
      %v1756 = vadd.f32 %v1523, %v1755
      %1757 = vmatmul.bf16.gmra.mxu0 %v1653
      %v1758 = vpop.f32.mrf.mxu0
      %v1759 = vadd.f32 %v1526, %v1758
      %v1760 = vpop.f32.mrf.mxu0
      %v1761 = vadd.f32 %v1528, %v1760
      %1762 = vmatmul.bf16.gmra.mxu0 %v1654
      %v1763 = vpop.f32.mrf.mxu0
      %v1764 = vadd.f32 %v1531, %v1763
      %v1765 = vpop.f32.mrf.mxu0
      %v1766 = vadd.f32 %v1533, %v1765
      %1767 = vmatmul.bf16.gmra.mxu0 %v1655
      %v1768 = vpop.f32.mrf.mxu0
      %v1769 = vadd.f32 %v1536, %v1768
      %v1770 = vpop.f32.mrf.mxu0
      %v1771 = vadd.f32 %v1538, %v1770
      %1772 = vmatmul.bf16.gmra.mxu0 %v1656
      %v1773 = vpop.f32.mrf.mxu0
      %v1774 = vadd.f32 %v1541, %v1773
      %v1775 = vpop.f32.mrf.mxu0
      %v1776 = vadd.f32 %v1543, %v1775
      %1777 = vmatmul.bf16.gmra.mxu0 %v1657
      %v1778 = vpop.f32.mrf.mxu0
      %v1779 = vadd.f32 %v1546, %v1778
      %v1780 = vpop.f32.mrf.mxu0
      %v1781 = vadd.f32 %v1548, %v1780
      %1782 = vmatmul.bf16.gmra.mxu0 %v1658
      %v1783 = vpop.f32.mrf.mxu0
      %v1784 = vadd.f32 %v1551, %v1783
      %v1785 = vpop.f32.mrf.mxu0
      %v1786 = vadd.f32 %v1553, %v1785
      %1787 = vmatmul.bf16.gmra.mxu0 %v1659
      %v1788 = vpop.f32.mrf.mxu0
      %v1789 = vadd.f32 %v1556, %v1788
      %v1790 = vpop.f32.mrf.mxu0
      %v1791 = vadd.f32 %v1558, %v1790
      %1792 = vmatmul.bf16.gmra.mxu0 %v1660
      %v1793 = vpop.f32.mrf.mxu0
      %v1794 = vadd.f32 %v1561, %v1793
      %v1795 = vpop.f32.mrf.mxu0
      %v1796 = vadd.f32 %v1563, %v1795
      %1797 = vmatmul.bf16.gmra.mxu0 %v1661
      %v1798 = vpop.f32.mrf.mxu0
      %v1799 = vadd.f32 %v1566, %v1798
      %v1800 = vpop.f32.mrf.mxu0
      %v1801 = vadd.f32 %v1568, %v1800
      %1802 = vmatmul.bf16.gmra.mxu0 %v1662
      %v1803 = vpop.f32.mrf.mxu0
      %v1804 = vadd.f32 %v1571, %v1803
      %v1805 = vpop.f32.mrf.mxu0
      %v1806 = vadd.f32 %v1573, %v1805
      %1807 = vmatmul.bf16.gmra.mxu0 %v1663
      %v1808 = vpop.f32.mrf.mxu0
      %v1809 = vadd.f32 %v1576, %v1808
      %v1810 = vpop.f32.mrf.mxu0
      %v1811 = vadd.f32 %v1578, %v1810
      %1812 = vmatmul.bf16.gmra.mxu0 %v1664
      %v1813 = vpop.f32.mrf.mxu0
      %v1814 = vadd.f32 %v1581, %v1813
      %v1815 = vpop.f32.mrf.mxu0
      %v1816 = vadd.f32 %v1583, %v1815
      %1817 = vdwg.mxu0
      %v1818 = vld [vmem:[#allocation2] sm:$0xe]
      %v1819 = vld [vmem:[#allocation2 + $0xc] sm:$0xe]
      %v1820 = vld [vmem:[#allocation2 + $0x18] sm:$0xe]
      %v1821 = vld [vmem:[#allocation2 + $0x24] sm:$0xe]
      %v1822 = vld [vmem:[#allocation2 + $0x30] sm:$0xe]
      %v1823 = vld [vmem:[#allocation2 + $0x3c] sm:$0xe]
      %v1824 = vld [vmem:[#allocation2 + $0x48] sm:$0xe]
      %v1825 = vld [vmem:[#allocation2 + $0x54] sm:$0xe]
      %v1826 = vld [vmem:[#allocation2 + $0x60] sm:$0xe]
      %v1827 = vld [vmem:[#allocation2 + $0x6c] sm:$0xe]
      %v1828 = vld [vmem:[#allocation2 + $0x78] sm:$0xe]
      %v1829 = vld [vmem:[#allocation2 + $0x84] sm:$0xe]
      %v1830 = vld [vmem:[#allocation2 + $0x90] sm:$0xe]
      %v1831 = vld [vmem:[#allocation2 + $0x9c] sm:$0xe]
      %v1832 = vld [vmem:[#allocation2 + $0xa8] sm:$0xe]
      %v1833 = vld [vmem:[#allocation2 + $0xb4] sm:$0xe]
      %vm1866 = vcmask 1042432
      %vm1867 = vcmask 1046532
      %vm1868 = vmor %vm1866, %vm1867
      %v1869 = vrot.slane %v1818, 5
      %v1870 = vrot.slane %v1869, 4
      %v1871 = vrot.slane %v917, 5
      %v1872 = vsel %vm1868, %v1870, %v1871
      %v1873 = vrot.slane %v1871, 4
      %v1874 = vrot.slane %v964, 5
      %v1875 = vsel %vm1868, %v1873, %v1874
      %v1876 = vrot.slane %v1819, 5
      %v1877 = vrot.slane %v1876, 4
      %v1878 = vrot.slane %v919, 5
      %v1879 = vsel %vm1868, %v1877, %v1878
      %v1880 = vrot.slane %v1878, 4
      %v1881 = vrot.slane %v965, 5
      %v1882 = vsel %vm1868, %v1880, %v1881
      %v1883 = vrot.slane %v1820, 5
      %v1884 = vrot.slane %v1883, 4
      %v1885 = vrot.slane %v921, 5
      %v1886 = vsel %vm1868, %v1884, %v1885
      %v1887 = vrot.slane %v1885, 4
      %v1888 = vrot.slane %v966, 5
      %v1889 = vsel %vm1868, %v1887, %v1888
      %v1890 = vrot.slane %v1821, 5
      %v1891 = vrot.slane %v1890, 4
      %v1892 = vrot.slane %v923, 5
      %v1893 = vsel %vm1868, %v1891, %v1892
      %v1894 = vrot.slane %v1892, 4
      %v1895 = vrot.slane %v967, 5
      %v1896 = vsel %vm1868, %v1894, %v1895
      %v1897 = vrot.slane %v1822, 5
      %v1898 = vrot.slane %v1897, 4
      %v1899 = vrot.slane %v925, 5
      %v1900 = vsel %vm1868, %v1898, %v1899
      %v1901 = vrot.slane %v1899, 4
      %v1902 = vrot.slane %v968, 5
      %v1903 = vsel %vm1868, %v1901, %v1902
      %v1904 = vrot.slane %v1823, 5
      %v1905 = vrot.slane %v1904, 4
      %v1906 = vrot.slane %v927, 5
      %v1907 = vsel %vm1868, %v1905, %v1906
      %v1908 = vrot.slane %v1906, 4
      %v1909 = vrot.slane %v969, 5
      %v1910 = vsel %vm1868, %v1908, %v1909
      %v1911 = vrot.slane %v1824, 5
      %v1912 = vrot.slane %v1911, 4
      %v1913 = vrot.slane %v929, 5
      %v1914 = vsel %vm1868, %v1912, %v1913
      %v1915 = vrot.slane %v1913, 4
      %v1916 = vrot.slane %v970, 5
      %v1917 = vsel %vm1868, %v1915, %v1916
      %v1918 = vrot.slane %v1825, 5
      %v1919 = vrot.slane %v1918, 4
      %v1920 = vrot.slane %v931, 5
      %v1921 = vsel %vm1868, %v1919, %v1920
      %v1922 = vrot.slane %v1920, 4
      %v1923 = vrot.slane %v971, 5
      %v1924 = vsel %vm1868, %v1922, %v1923
      %v1925 = vrot.slane %v1826, 5
      %v1926 = vrot.slane %v1925, 4
      %v1927 = vrot.slane %v933, 5
      %v1928 = vsel %vm1868, %v1926, %v1927
      %v1929 = vrot.slane %v1927, 4
      %v1930 = vrot.slane %v972, 5
      %v1931 = vsel %vm1868, %v1929, %v1930
      %v1932 = vrot.slane %v1827, 5
      %v1933 = vrot.slane %v1932, 4
      %v1934 = vrot.slane %v935, 5
      %v1935 = vsel %vm1868, %v1933, %v1934
      %v1936 = vrot.slane %v1934, 4
      %v1937 = vrot.slane %v973, 5
      %v1938 = vsel %vm1868, %v1936, %v1937
      %v1939 = vrot.slane %v1828, 5
      %v1940 = vrot.slane %v1939, 4
      %v1941 = vrot.slane %v937, 5
      %v1942 = vsel %vm1868, %v1940, %v1941
      %v1943 = vrot.slane %v1941, 4
      %v1944 = vrot.slane %v974, 5
      %v1945 = vsel %vm1868, %v1943, %v1944
      %v1946 = vrot.slane %v1829, 5
      %v1947 = vrot.slane %v1946, 4
      %v1948 = vrot.slane %v939, 5
      %v1949 = vsel %vm1868, %v1947, %v1948
      %v1950 = vrot.slane %v1948, 4
      %v1951 = vrot.slane %v975, 5
      %v1952 = vsel %vm1868, %v1950, %v1951
      %v1953 = vrot.slane %v1830, 5
      %v1954 = vrot.slane %v1953, 4
      %v1955 = vrot.slane %v941, 5
      %v1956 = vsel %vm1868, %v1954, %v1955
      %v1957 = vrot.slane %v1955, 4
      %v1958 = vrot.slane %v976, 5
      %v1959 = vsel %vm1868, %v1957, %v1958
      %v1960 = vrot.slane %v1831, 5
      %v1961 = vrot.slane %v1960, 4
      %v1962 = vrot.slane %v943, 5
      %v1963 = vsel %vm1868, %v1961, %v1962
      %v1964 = vrot.slane %v1962, 4
      %v1965 = vrot.slane %v977, 5
      %v1966 = vsel %vm1868, %v1964, %v1965
      %v1967 = vrot.slane %v1832, 5
      %v1968 = vrot.slane %v1967, 4
      %v1969 = vrot.slane %v945, 5
      %v1970 = vsel %vm1868, %v1968, %v1969
      %v1971 = vrot.slane %v1969, 4
      %v1972 = vrot.slane %v978, 5
      %v1973 = vsel %vm1868, %v1971, %v1972
      %v1974 = vrot.slane %v1833, 5
      %v1975 = vrot.slane %v1974, 4
      %v1976 = vrot.slane %v947, 5
      %v1977 = vsel %vm1868, %v1975, %v1976
      %v1978 = vrot.slane %v1976, 4
      %v1979 = vrot.slane %v979, 5
      %v1980 = vsel %vm1868, %v1978, %v1979
      %s1981 = scalar_lea.vmem %s3, 128
      %v1982 = vld [vmem:[%s1981] sm:$0xf]
      %v1983 = vld [vmem:[%s1981 + $0x4] sm:$0xf]
      %v1984 = vld [vmem:[%s1981 + $0x8] sm:$0xf]
      %v1985 = vld [vmem:[%s1981 + $0xc] sm:$0xf]
      %v1986 = vld [vmem:[%s1981 + $0x10] sm:$0xf]
      %v1987 = vld [vmem:[%s1981 + $0x14] sm:$0xf]
      %v1988 = vld [vmem:[%s1981 + $0x18] sm:$0xf]
      %v1989 = vld [vmem:[%s1981 + $0x1c] sm:$0xf]
      %v1990 = vld [vmem:[%s1981 + $0x20] sm:$0xf]
      %v1991 = vld [vmem:[%s1981 + $0x24] sm:$0xf]
      %v1992 = vld [vmem:[%s1981 + $0x28] sm:$0xf]
      %v1993 = vld [vmem:[%s1981 + $0x2c] sm:$0xf]
      %v1994 = vld [vmem:[%s1981 + $0x30] sm:$0xf]
      %v1995 = vld [vmem:[%s1981 + $0x34] sm:$0xf]
      %v1996 = vld [vmem:[%s1981 + $0x38] sm:$0xf]
      %v1997 = vld [vmem:[%s1981 + $0x3c] sm:$0xf]
      %v1998 = vunpack.c.l.b16 %v1872
      %v1999 = vunpack.c.l.b16 %v1875
      %v2000 = vunpack.c.l.b16 %v1879
      %v2001 = vunpack.c.l.b16 %v1882
      %v2002 = vunpack.c.l.b16 %v1886
      %v2003 = vunpack.c.l.b16 %v1889
      %v2004 = vunpack.c.l.b16 %v1893
      %v2005 = vunpack.c.l.b16 %v1896
      %v2006 = vunpack.c.l.b16 %v1900
      %v2007 = vunpack.c.l.b16 %v1903
      %v2008 = vunpack.c.l.b16 %v1907
      %v2009 = vunpack.c.l.b16 %v1910
      %v2010 = vunpack.c.l.b16 %v1914
      %v2011 = vunpack.c.l.b16 %v1917
      %v2012 = vunpack.c.l.b16 %v1921
      %v2013 = vunpack.c.l.b16 %v1924
      %v2014 = vunpack.c.l.b16 %v1928
      %v2015 = vunpack.c.l.b16 %v1931
      %v2016 = vunpack.c.l.b16 %v1935
      %v2017 = vunpack.c.l.b16 %v1938
      %v2018 = vunpack.c.l.b16 %v1942
      %v2019 = vunpack.c.l.b16 %v1945
      %v2020 = vunpack.c.l.b16 %v1949
      %v2021 = vunpack.c.l.b16 %v1952
      %v2022 = vunpack.c.l.b16 %v1956
      %v2023 = vunpack.c.l.b16 %v1959
      %v2024 = vunpack.c.l.b16 %v1963
      %v2025 = vunpack.c.l.b16 %v1966
      %v2026 = vunpack.c.l.b16 %v1970
      %v2027 = vunpack.c.l.b16 %v1973
      %v2028 = vunpack.c.l.b16 %v1977
      %v2029 = vunpack.c.l.b16 %v1980
      %v2030 = vpack.c.b16 %v1999, %v1998
      %v2031 = vpack.c.b16 %v2001, %v2000
      %v2032 = vpack.c.b16 %v2003, %v2002
      %v2033 = vpack.c.b16 %v2005, %v2004
      %v2034 = vpack.c.b16 %v2007, %v2006
      %v2035 = vpack.c.b16 %v2009, %v2008
      %v2036 = vpack.c.b16 %v2011, %v2010
      %v2037 = vpack.c.b16 %v2013, %v2012
      %v2038 = vpack.c.b16 %v2015, %v2014
      %v2039 = vpack.c.b16 %v2017, %v2016
      %v2040 = vpack.c.b16 %v2019, %v2018
      %v2041 = vpack.c.b16 %v2021, %v2020
      %v2042 = vpack.c.b16 %v2023, %v2022
      %v2043 = vpack.c.b16 %v2025, %v2024
      %v2044 = vpack.c.b16 %v2027, %v2026
      %v2045 = vpack.c.b16 %v2029, %v2028
      %v2078 = vunpack.c.l.b16 %v1982
      %v2079 = vunpack.c.l.b16 %v1983
      %v2080 = vunpack.c.l.b16 %v1984
      %v2081 = vunpack.c.l.b16 %v1985
      %v2082 = vunpack.c.l.b16 %v1986
      %v2083 = vunpack.c.l.b16 %v1987
      %v2084 = vunpack.c.l.b16 %v1988
      %v2085 = vunpack.c.l.b16 %v1989
      %v2086 = vunpack.c.l.b16 %v1990
      %v2087 = vunpack.c.l.b16 %v1991
      %v2088 = vunpack.c.l.b16 %v1992
      %v2089 = vunpack.c.l.b16 %v1993
      %v2090 = vunpack.c.l.b16 %v1994
      %v2091 = vunpack.c.l.b16 %v1995
      %v2092 = vunpack.c.l.b16 %v1996
      %v2093 = vunpack.c.l.b16 %v1997
      %v2094 = vpack.c.b16 %v2079, %v2078
      %v2095 = vpack.c.b16 %v2081, %v2080
      %v2096 = vpack.c.b16 %v2083, %v2082
      %v2097 = vpack.c.b16 %v2085, %v2084
      %v2098 = vpack.c.b16 %v2087, %v2086
      %v2099 = vpack.c.b16 %v2089, %v2088
      %v2100 = vpack.c.b16 %v2091, %v2090
      %v2101 = vpack.c.b16 %v2093, %v2092
      %2110 = vmatpush.bf16.msra.mxu0 %v2101
      %2111 = vmatpush.bf16.msra.mxu0 %v2100
      %2112 = vmatpush.bf16.msra.mxu0 %v2099
      %2113 = vmatpush.bf16.msra.mxu0 %v2098
      %2114 = vmatpush.bf16.msra.mxu0 %v2097
      %2115 = vmatpush.bf16.msra.mxu0 %v2096
      %2116 = vmatpush.bf16.msra.mxu0 %v2095
      %2117 = vmatpush.bf16.msra.mxu0 %v2094
      %2118 = vmatmul.bf16.gmra.mxu0 %v2030
      %v2119 = vpop.f32.mrf.mxu0
      %v2120 = vadd.f32 0.0, %v2119
      %v2121 = vpop.f32.mrf.mxu0
      %v2122 = vadd.f32 0.0, %v2121
      %2123 = vmatmul.bf16.gmra.mxu0 %v2031
      %v2124 = vpop.f32.mrf.mxu0
      %v2125 = vadd.f32 0.0, %v2124
      %v2126 = vpop.f32.mrf.mxu0
      %v2127 = vadd.f32 0.0, %v2126
      %2128 = vmatmul.bf16.gmra.mxu0 %v2032
      %v2129 = vpop.f32.mrf.mxu0
      %v2130 = vadd.f32 0.0, %v2129
      %v2131 = vpop.f32.mrf.mxu0
      %v2132 = vadd.f32 0.0, %v2131
      %2133 = vmatmul.bf16.gmra.mxu0 %v2033
      %v2134 = vpop.f32.mrf.mxu0
      %v2135 = vadd.f32 0.0, %v2134
      %v2136 = vpop.f32.mrf.mxu0
      %v2137 = vadd.f32 0.0, %v2136
      %2138 = vmatmul.bf16.gmra.mxu0 %v2034
      %v2139 = vpop.f32.mrf.mxu0
      %v2140 = vadd.f32 0.0, %v2139
      %v2141 = vpop.f32.mrf.mxu0
      %v2142 = vadd.f32 0.0, %v2141
      %2143 = vmatmul.bf16.gmra.mxu0 %v2035
      %v2144 = vpop.f32.mrf.mxu0
      %v2145 = vadd.f32 0.0, %v2144
      %v2146 = vpop.f32.mrf.mxu0
      %v2147 = vadd.f32 0.0, %v2146
      %2148 = vmatmul.bf16.gmra.mxu0 %v2036
      %v2149 = vpop.f32.mrf.mxu0
      %v2150 = vadd.f32 0.0, %v2149
      %v2151 = vpop.f32.mrf.mxu0
      %v2152 = vadd.f32 0.0, %v2151
      %2153 = vmatmul.bf16.gmra.mxu0 %v2037
      %v2154 = vpop.f32.mrf.mxu0
      %v2155 = vadd.f32 0.0, %v2154
      %v2156 = vpop.f32.mrf.mxu0
      %v2157 = vadd.f32 0.0, %v2156
      %2158 = vmatmul.bf16.gmra.mxu0 %v2038
      %v2159 = vpop.f32.mrf.mxu0
      %v2160 = vadd.f32 0.0, %v2159
      %v2161 = vpop.f32.mrf.mxu0
      %v2162 = vadd.f32 0.0, %v2161
      %2163 = vmatmul.bf16.gmra.mxu0 %v2039
      %v2164 = vpop.f32.mrf.mxu0
      %v2165 = vadd.f32 0.0, %v2164
      %v2166 = vpop.f32.mrf.mxu0
      %v2167 = vadd.f32 0.0, %v2166
      %2168 = vmatmul.bf16.gmra.mxu0 %v2040
      %v2169 = vpop.f32.mrf.mxu0
      %v2170 = vadd.f32 0.0, %v2169
      %v2171 = vpop.f32.mrf.mxu0
      %v2172 = vadd.f32 0.0, %v2171
      %2173 = vmatmul.bf16.gmra.mxu0 %v2041
      %v2174 = vpop.f32.mrf.mxu0
      %v2175 = vadd.f32 0.0, %v2174
      %v2176 = vpop.f32.mrf.mxu0
      %v2177 = vadd.f32 0.0, %v2176
      %2178 = vmatmul.bf16.gmra.mxu0 %v2042
      %v2179 = vpop.f32.mrf.mxu0
      %v2180 = vadd.f32 0.0, %v2179
      %v2181 = vpop.f32.mrf.mxu0
      %v2182 = vadd.f32 0.0, %v2181
      %2183 = vmatmul.bf16.gmra.mxu0 %v2043
      %v2184 = vpop.f32.mrf.mxu0
      %v2185 = vadd.f32 0.0, %v2184
      %v2186 = vpop.f32.mrf.mxu0
      %v2187 = vadd.f32 0.0, %v2186
      %2188 = vmatmul.bf16.gmra.mxu0 %v2044
      %v2189 = vpop.f32.mrf.mxu0
      %v2190 = vadd.f32 0.0, %v2189
      %v2191 = vpop.f32.mrf.mxu0
      %v2192 = vadd.f32 0.0, %v2191
      %2193 = vmatmul.bf16.gmra.mxu0 %v2045
      %v2194 = vpop.f32.mrf.mxu0
      %v2195 = vadd.f32 0.0, %v2194
      %v2196 = vpop.f32.mrf.mxu0
      %v2197 = vadd.f32 0.0, %v2196
      %2198 = vdwg.mxu0
      %v2199 = vadd.f32 %v1739, %v2120
      %v2200 = vadd.f32 %v1741, %v2122
      %v2201 = vadd.f32 %v1744, %v2125
      %v2202 = vadd.f32 %v1746, %v2127
      %v2203 = vadd.f32 %v1749, %v2130
      %v2204 = vadd.f32 %v1751, %v2132
      %v2205 = vadd.f32 %v1754, %v2135
      %v2206 = vadd.f32 %v1756, %v2137
      %v2207 = vadd.f32 %v1759, %v2140
      %v2208 = vadd.f32 %v1761, %v2142
      %v2209 = vadd.f32 %v1764, %v2145
      %v2210 = vadd.f32 %v1766, %v2147
      %v2211 = vadd.f32 %v1769, %v2150
      %v2212 = vadd.f32 %v1771, %v2152
      %v2213 = vadd.f32 %v1774, %v2155
      %v2214 = vadd.f32 %v1776, %v2157
      %v2215 = vadd.f32 %v1779, %v2160
      %v2216 = vadd.f32 %v1781, %v2162
      %v2217 = vadd.f32 %v1784, %v2165
      %v2218 = vadd.f32 %v1786, %v2167
      %v2219 = vadd.f32 %v1789, %v2170
      %v2220 = vadd.f32 %v1791, %v2172
      %v2221 = vadd.f32 %v1794, %v2175
      %v2222 = vadd.f32 %v1796, %v2177
      %v2223 = vadd.f32 %v1799, %v2180
      %v2224 = vadd.f32 %v1801, %v2182
      %v2225 = vadd.f32 %v1804, %v2185
      %v2226 = vadd.f32 %v1806, %v2187
      %v2227 = vadd.f32 %v1809, %v2190
      %v2228 = vadd.f32 %v1811, %v2192
      %v2229 = vadd.f32 %v1814, %v2195
      %v2230 = vadd.f32 %v1816, %v2197
      %v2231 = vld [vmem:[%s798] sm:$0xf]
      %v2232 = vld [vmem:[%s798 + $0x4] sm:$0xf]
      %v2233 = vld [vmem:[%s798 + $0xc] sm:$0xf]
      %v2234 = vld [vmem:[%s798 + $0x10] sm:$0xf]
      %v2235 = vld [vmem:[%s798 + $0x18] sm:$0xf]
      %v2236 = vld [vmem:[%s798 + $0x1c] sm:$0xf]
      %v2237 = vld [vmem:[%s798 + $0x24] sm:$0xf]
      %v2238 = vld [vmem:[%s798 + $0x28] sm:$0xf]
      %v2239 = vld [vmem:[%s798 + $0x30] sm:$0xf]
      %v2240 = vld [vmem:[%s798 + $0x34] sm:$0xf]
      %v2241 = vld [vmem:[%s798 + $0x3c] sm:$0xf]
      %v2242 = vld [vmem:[%s798 + $0x40] sm:$0xf]
      %v2243 = vld [vmem:[%s798 + $0x48] sm:$0xf]
      %v2244 = vld [vmem:[%s798 + $0x4c] sm:$0xf]
      %v2245 = vld [vmem:[%s798 + $0x54] sm:$0xf]
      %v2246 = vld [vmem:[%s798 + $0x58] sm:$0xf]
      %v2247 = vld [vmem:[%s798 + $0x60] sm:$0xf]
      %v2248 = vld [vmem:[%s798 + $0x64] sm:$0xf]
      %v2249 = vld [vmem:[%s798 + $0x6c] sm:$0xf]
      %v2250 = vld [vmem:[%s798 + $0x70] sm:$0xf]
      %v2251 = vld [vmem:[%s798 + $0x78] sm:$0xf]
      %v2252 = vld [vmem:[%s798 + $0x7c] sm:$0xf]
      %v2253 = vld [vmem:[%s798 + $0x84] sm:$0xf]
      %v2254 = vld [vmem:[%s798 + $0x88] sm:$0xf]
      %v2255 = vld [vmem:[%s798 + $0x90] sm:$0xf]
      %v2256 = vld [vmem:[%s798 + $0x94] sm:$0xf]
      %v2257 = vld [vmem:[%s798 + $0x9c] sm:$0xf]
      %v2258 = vld [vmem:[%s798 + $0xa0] sm:$0xf]
      %v2259 = vld [vmem:[%s798 + $0xa8] sm:$0xf]
      %v2260 = vld [vmem:[%s798 + $0xac] sm:$0xf]
      %v2261 = vld [vmem:[%s798 + $0xb4] sm:$0xf]
      %v2262 = vld [vmem:[%s798 + $0xb8] sm:$0xf]
      %s2263 = scalar_lea.vmem %s3, 192
      %v2264 = vld [vmem:[%s2263] sm:$0xf]
      %v2265 = vld [vmem:[%s2263 + $0x4] sm:$0xf]
      %v2266 = vld [vmem:[%s2263 + $0x8] sm:$0xf]
      %v2267 = vld [vmem:[%s2263 + $0xc] sm:$0xf]
      %v2268 = vld [vmem:[%s2263 + $0x10] sm:$0xf]
      %v2269 = vld [vmem:[%s2263 + $0x14] sm:$0xf]
      %v2270 = vld [vmem:[%s2263 + $0x18] sm:$0xf]
      %v2271 = vld [vmem:[%s2263 + $0x1c] sm:$0xf]
      %v2272 = vld [vmem:[%s2263 + $0x20] sm:$0xf]
      %v2273 = vld [vmem:[%s2263 + $0x24] sm:$0xf]
      %v2274 = vld [vmem:[%s2263 + $0x28] sm:$0xf]
      %v2275 = vld [vmem:[%s2263 + $0x2c] sm:$0xf]
      %v2276 = vld [vmem:[%s2263 + $0x30] sm:$0xf]
      %v2277 = vld [vmem:[%s2263 + $0x34] sm:$0xf]
      %v2278 = vld [vmem:[%s2263 + $0x38] sm:$0xf]
      %v2279 = vld [vmem:[%s2263 + $0x3c] sm:$0xf]
      %v2312 = vunpack.c.l.b16 %v2231
      %v2313 = vunpack.c.l.b16 %v2232
      %v2314 = vunpack.c.l.b16 %v2233
      %v2315 = vunpack.c.l.b16 %v2234
      %v2316 = vunpack.c.l.b16 %v2235
      %v2317 = vunpack.c.l.b16 %v2236
      %v2318 = vunpack.c.l.b16 %v2237
      %v2319 = vunpack.c.l.b16 %v2238
      %v2320 = vunpack.c.l.b16 %v2239
      %v2321 = vunpack.c.l.b16 %v2240
      %v2322 = vunpack.c.l.b16 %v2241
      %v2323 = vunpack.c.l.b16 %v2242
      %v2324 = vunpack.c.l.b16 %v2243
      %v2325 = vunpack.c.l.b16 %v2244
      %v2326 = vunpack.c.l.b16 %v2245
      %v2327 = vunpack.c.l.b16 %v2246
      %v2328 = vunpack.c.l.b16 %v2247
      %v2329 = vunpack.c.l.b16 %v2248
      %v2330 = vunpack.c.l.b16 %v2249
      %v2331 = vunpack.c.l.b16 %v2250
      %v2332 = vunpack.c.l.b16 %v2251
      %v2333 = vunpack.c.l.b16 %v2252
      %v2334 = vunpack.c.l.b16 %v2253
      %v2335 = vunpack.c.l.b16 %v2254
      %v2336 = vunpack.c.l.b16 %v2255
      %v2337 = vunpack.c.l.b16 %v2256
      %v2338 = vunpack.c.l.b16 %v2257
      %v2339 = vunpack.c.l.b16 %v2258
      %v2340 = vunpack.c.l.b16 %v2259
      %v2341 = vunpack.c.l.b16 %v2260
      %v2342 = vunpack.c.l.b16 %v2261
      %v2343 = vunpack.c.l.b16 %v2262
      %v2344 = vpack.c.b16 %v2313, %v2312
      %v2345 = vpack.c.b16 %v2315, %v2314
      %v2346 = vpack.c.b16 %v2317, %v2316
      %v2347 = vpack.c.b16 %v2319, %v2318
      %v2348 = vpack.c.b16 %v2321, %v2320
      %v2349 = vpack.c.b16 %v2323, %v2322
      %v2350 = vpack.c.b16 %v2325, %v2324
      %v2351 = vpack.c.b16 %v2327, %v2326
      %v2352 = vpack.c.b16 %v2329, %v2328
      %v2353 = vpack.c.b16 %v2331, %v2330
      %v2354 = vpack.c.b16 %v2333, %v2332
      %v2355 = vpack.c.b16 %v2335, %v2334
      %v2356 = vpack.c.b16 %v2337, %v2336
      %v2357 = vpack.c.b16 %v2339, %v2338
      %v2358 = vpack.c.b16 %v2341, %v2340
      %v2359 = vpack.c.b16 %v2343, %v2342
      %v2392 = vunpack.c.l.b16 %v2264
      %v2393 = vunpack.c.l.b16 %v2265
      %v2394 = vunpack.c.l.b16 %v2266
      %v2395 = vunpack.c.l.b16 %v2267
      %v2396 = vunpack.c.l.b16 %v2268
      %v2397 = vunpack.c.l.b16 %v2269
      %v2398 = vunpack.c.l.b16 %v2270
      %v2399 = vunpack.c.l.b16 %v2271
      %v2400 = vunpack.c.l.b16 %v2272
      %v2401 = vunpack.c.l.b16 %v2273
      %v2402 = vunpack.c.l.b16 %v2274
      %v2403 = vunpack.c.l.b16 %v2275
      %v2404 = vunpack.c.l.b16 %v2276
      %v2405 = vunpack.c.l.b16 %v2277
      %v2406 = vunpack.c.l.b16 %v2278
      %v2407 = vunpack.c.l.b16 %v2279
      %v2408 = vpack.c.b16 %v2393, %v2392
      %v2409 = vpack.c.b16 %v2395, %v2394
      %v2410 = vpack.c.b16 %v2397, %v2396
      %v2411 = vpack.c.b16 %v2399, %v2398
      %v2412 = vpack.c.b16 %v2401, %v2400
      %v2413 = vpack.c.b16 %v2403, %v2402
      %v2414 = vpack.c.b16 %v2405, %v2404
      %v2415 = vpack.c.b16 %v2407, %v2406
      %2424 = vmatpush.bf16.msra.mxu0 %v2415
      %2425 = vmatpush.bf16.msra.mxu0 %v2414
      %2426 = vmatpush.bf16.msra.mxu0 %v2413
      %2427 = vmatpush.bf16.msra.mxu0 %v2412
      %2428 = vmatpush.bf16.msra.mxu0 %v2411
      %2429 = vmatpush.bf16.msra.mxu0 %v2410
      %2430 = vmatpush.bf16.msra.mxu0 %v2409
      %2431 = vmatpush.bf16.msra.mxu0 %v2408
      %2432 = vmatmul.bf16.gmra.mxu0 %v2344
      %v2433 = vpop.f32.mrf.mxu0
      %v2434 = vadd.f32 0.0, %v2433
      %v2435 = vpop.f32.mrf.mxu0
      %v2436 = vadd.f32 0.0, %v2435
      %2437 = vmatmul.bf16.gmra.mxu0 %v2345
      %v2438 = vpop.f32.mrf.mxu0
      %v2439 = vadd.f32 0.0, %v2438
      %v2440 = vpop.f32.mrf.mxu0
      %v2441 = vadd.f32 0.0, %v2440
      %2442 = vmatmul.bf16.gmra.mxu0 %v2346
      %v2443 = vpop.f32.mrf.mxu0
      %v2444 = vadd.f32 0.0, %v2443
      %v2445 = vpop.f32.mrf.mxu0
      %v2446 = vadd.f32 0.0, %v2445
      %2447 = vmatmul.bf16.gmra.mxu0 %v2347
      %v2448 = vpop.f32.mrf.mxu0
      %v2449 = vadd.f32 0.0, %v2448
      %v2450 = vpop.f32.mrf.mxu0
      %v2451 = vadd.f32 0.0, %v2450
      %2452 = vmatmul.bf16.gmra.mxu0 %v2348
      %v2453 = vpop.f32.mrf.mxu0
      %v2454 = vadd.f32 0.0, %v2453
      %v2455 = vpop.f32.mrf.mxu0
      %v2456 = vadd.f32 0.0, %v2455
      %2457 = vmatmul.bf16.gmra.mxu0 %v2349
      %v2458 = vpop.f32.mrf.mxu0
      %v2459 = vadd.f32 0.0, %v2458
      %v2460 = vpop.f32.mrf.mxu0
      %v2461 = vadd.f32 0.0, %v2460
      %2462 = vmatmul.bf16.gmra.mxu0 %v2350
      %v2463 = vpop.f32.mrf.mxu0
      %v2464 = vadd.f32 0.0, %v2463
      %v2465 = vpop.f32.mrf.mxu0
      %v2466 = vadd.f32 0.0, %v2465
      %2467 = vmatmul.bf16.gmra.mxu0 %v2351
      %v2468 = vpop.f32.mrf.mxu0
      %v2469 = vadd.f32 0.0, %v2468
      %v2470 = vpop.f32.mrf.mxu0
      %v2471 = vadd.f32 0.0, %v2470
      %2472 = vmatmul.bf16.gmra.mxu0 %v2352
      %v2473 = vpop.f32.mrf.mxu0
      %v2474 = vadd.f32 0.0, %v2473
      %v2475 = vpop.f32.mrf.mxu0
      %v2476 = vadd.f32 0.0, %v2475
      %2477 = vmatmul.bf16.gmra.mxu0 %v2353
      %v2478 = vpop.f32.mrf.mxu0
      %v2479 = vadd.f32 0.0, %v2478
      %v2480 = vpop.f32.mrf.mxu0
      %v2481 = vadd.f32 0.0, %v2480
      %2482 = vmatmul.bf16.gmra.mxu0 %v2354
      %v2483 = vpop.f32.mrf.mxu0
      %v2484 = vadd.f32 0.0, %v2483
      %v2485 = vpop.f32.mrf.mxu0
      %v2486 = vadd.f32 0.0, %v2485
      %2487 = vmatmul.bf16.gmra.mxu0 %v2355
      %v2488 = vpop.f32.mrf.mxu0
      %v2489 = vadd.f32 0.0, %v2488
      %v2490 = vpop.f32.mrf.mxu0
      %v2491 = vadd.f32 0.0, %v2490
      %2492 = vmatmul.bf16.gmra.mxu0 %v2356
      %v2493 = vpop.f32.mrf.mxu0
      %v2494 = vadd.f32 0.0, %v2493
      %v2495 = vpop.f32.mrf.mxu0
      %v2496 = vadd.f32 0.0, %v2495
      %2497 = vmatmul.bf16.gmra.mxu0 %v2357
      %v2498 = vpop.f32.mrf.mxu0
      %v2499 = vadd.f32 0.0, %v2498
      %v2500 = vpop.f32.mrf.mxu0
      %v2501 = vadd.f32 0.0, %v2500
      %2502 = vmatmul.bf16.gmra.mxu0 %v2358
      %v2503 = vpop.f32.mrf.mxu0
      %v2504 = vadd.f32 0.0, %v2503
      %v2505 = vpop.f32.mrf.mxu0
      %v2506 = vadd.f32 0.0, %v2505
      %2507 = vmatmul.bf16.gmra.mxu0 %v2359
      %v2508 = vpop.f32.mrf.mxu0
      %v2509 = vadd.f32 0.0, %v2508
      %v2510 = vpop.f32.mrf.mxu0
      %v2511 = vadd.f32 0.0, %v2510
      %2512 = vdwg.mxu0
      %v2513 = vadd.f32 %v2199, %v2434
      %v2514 = vadd.f32 %v2200, %v2436
      %v2515 = vadd.f32 %v2201, %v2439
      %v2516 = vadd.f32 %v2202, %v2441
      %v2517 = vadd.f32 %v2203, %v2444
      %v2518 = vadd.f32 %v2204, %v2446
      %v2519 = vadd.f32 %v2205, %v2449
      %v2520 = vadd.f32 %v2206, %v2451
      %v2521 = vadd.f32 %v2207, %v2454
      %v2522 = vadd.f32 %v2208, %v2456
      %v2523 = vadd.f32 %v2209, %v2459
      %v2524 = vadd.f32 %v2210, %v2461
      %v2525 = vadd.f32 %v2211, %v2464
      %v2526 = vadd.f32 %v2212, %v2466
      %v2527 = vadd.f32 %v2213, %v2469
      %v2528 = vadd.f32 %v2214, %v2471
      %v2529 = vadd.f32 %v2215, %v2474
      %v2530 = vadd.f32 %v2216, %v2476
      %v2531 = vadd.f32 %v2217, %v2479
      %v2532 = vadd.f32 %v2218, %v2481
      %v2533 = vadd.f32 %v2219, %v2484
      %v2534 = vadd.f32 %v2220, %v2486
      %v2535 = vadd.f32 %v2221, %v2489
      %v2536 = vadd.f32 %v2222, %v2491
      %v2537 = vadd.f32 %v2223, %v2494
      %v2538 = vadd.f32 %v2224, %v2496
      %v2539 = vadd.f32 %v2225, %v2499
      %v2540 = vadd.f32 %v2226, %v2501
      %v2541 = vadd.f32 %v2227, %v2504
      %v2542 = vadd.f32 %v2228, %v2506
      %v2543 = vadd.f32 %v2229, %v2509
      %v2544 = vadd.f32 %v2230, %v2511
      %v2545 = vld [vmem:[%s798] sm:$0xf]
      %v2546 = vld [vmem:[%s798 + $0x4] sm:$0xf]
      %v2547 = vld [vmem:[%s798 + $0x8] sm:$0x1]
      %v2548 = vld [vmem:[%s798 + $0xc] sm:$0xf]
      %v2549 = vld [vmem:[%s798 + $0x10] sm:$0xf]
      %v2550 = vld [vmem:[%s798 + $0x14] sm:$0x1]
      %v2551 = vld [vmem:[%s798 + $0x18] sm:$0xf]
      %v2552 = vld [vmem:[%s798 + $0x1c] sm:$0xf]
      %v2553 = vld [vmem:[%s798 + $0x20] sm:$0x1]
      %v2554 = vld [vmem:[%s798 + $0x24] sm:$0xf]
      %v2555 = vld [vmem:[%s798 + $0x28] sm:$0xf]
      %v2556 = vld [vmem:[%s798 + $0x2c] sm:$0x1]
      %v2557 = vld [vmem:[%s798 + $0x30] sm:$0xf]
      %v2558 = vld [vmem:[%s798 + $0x34] sm:$0xf]
      %v2559 = vld [vmem:[%s798 + $0x38] sm:$0x1]
      %v2560 = vld [vmem:[%s798 + $0x3c] sm:$0xf]
      %v2561 = vld [vmem:[%s798 + $0x40] sm:$0xf]
      %v2562 = vld [vmem:[%s798 + $0x44] sm:$0x1]
      %v2563 = vld [vmem:[%s798 + $0x48] sm:$0xf]
      %v2564 = vld [vmem:[%s798 + $0x4c] sm:$0xf]
      %v2565 = vld [vmem:[%s798 + $0x50] sm:$0x1]
      %v2566 = vld [vmem:[%s798 + $0x54] sm:$0xf]
      %v2567 = vld [vmem:[%s798 + $0x58] sm:$0xf]
      %v2568 = vld [vmem:[%s798 + $0x5c] sm:$0x1]
      %v2569 = vld [vmem:[%s798 + $0x60] sm:$0xf]
      %v2570 = vld [vmem:[%s798 + $0x64] sm:$0xf]
      %v2571 = vld [vmem:[%s798 + $0x68] sm:$0x1]
      %v2572 = vld [vmem:[%s798 + $0x6c] sm:$0xf]
      %v2573 = vld [vmem:[%s798 + $0x70] sm:$0xf]
      %v2574 = vld [vmem:[%s798 + $0x74] sm:$0x1]
      %v2575 = vld [vmem:[%s798 + $0x78] sm:$0xf]
      %v2576 = vld [vmem:[%s798 + $0x7c] sm:$0xf]
      %v2577 = vld [vmem:[%s798 + $0x80] sm:$0x1]
      %v2578 = vld [vmem:[%s798 + $0x84] sm:$0xf]
      %v2579 = vld [vmem:[%s798 + $0x88] sm:$0xf]
      %v2580 = vld [vmem:[%s798 + $0x8c] sm:$0x1]
      %v2581 = vld [vmem:[%s798 + $0x90] sm:$0xf]
      %v2582 = vld [vmem:[%s798 + $0x94] sm:$0xf]
      %v2583 = vld [vmem:[%s798 + $0x98] sm:$0x1]
      %v2584 = vld [vmem:[%s798 + $0x9c] sm:$0xf]
      %v2585 = vld [vmem:[%s798 + $0xa0] sm:$0xf]
      %v2586 = vld [vmem:[%s798 + $0xa4] sm:$0x1]
      %v2587 = vld [vmem:[%s798 + $0xa8] sm:$0xf]
      %v2588 = vld [vmem:[%s798 + $0xac] sm:$0xf]
      %v2589 = vld [vmem:[%s798 + $0xb0] sm:$0x1]
      %v2590 = vld [vmem:[%s798 + $0xb4] sm:$0xf]
      %v2591 = vld [vmem:[%s798 + $0xb8] sm:$0xf]
      %v2592 = vld [vmem:[%s798 + $0xbc] sm:$0x1]
      %v2594 = vshrl.u32 %v2545, 16
      %v2596 = vrot.slane %v2594, 4
      %v2597 = vshll.u32 %v2545, 16
      %v2599 = vrot.slane %v2597, 5
      %v2600 = vor.u32 %v2596, %v2599
      %v2601 = vrot.slane %v2600, 4
      %v2603 = vshll.u32 %v2546, 16
      %v2605 = vrot.slane %v2603, 5
      %v2606 = vsel %vm982, %v2601, %v2605
      %v2607 = vshrl.u32 %v2546, 16
      %v2609 = vrot.slane %v2607, 4
      %v2610 = vor.u32 %v2609, %v2605
      %v2611 = vrot.slane %v2610, 4
      %v2613 = vshll.u32 %v2547, 16
      %v2615 = vrot.slane %v2613, 5
      %v2616 = vsel %vm982, %v2611, %v2615
      %v2618 = vshrl.u32 %v2548, 16
      %v2620 = vrot.slane %v2618, 4
      %v2621 = vshll.u32 %v2548, 16
      %v2623 = vrot.slane %v2621, 5
      %v2624 = vor.u32 %v2620, %v2623
      %v2625 = vrot.slane %v2624, 4
      %v2627 = vshll.u32 %v2549, 16
      %v2629 = vrot.slane %v2627, 5
      %v2630 = vsel %vm982, %v2625, %v2629
      %v2631 = vshrl.u32 %v2549, 16
      %v2633 = vrot.slane %v2631, 4
      %v2634 = vor.u32 %v2633, %v2629
      %v2635 = vrot.slane %v2634, 4
      %v2637 = vshll.u32 %v2550, 16
      %v2639 = vrot.slane %v2637, 5
      %v2640 = vsel %vm982, %v2635, %v2639
      %v2642 = vshrl.u32 %v2551, 16
      %v2644 = vrot.slane %v2642, 4
      %v2645 = vshll.u32 %v2551, 16
      %v2647 = vrot.slane %v2645, 5
      %v2648 = vor.u32 %v2644, %v2647
      %v2649 = vrot.slane %v2648, 4
      %v2651 = vshll.u32 %v2552, 16
      %v2653 = vrot.slane %v2651, 5
      %v2654 = vsel %vm982, %v2649, %v2653
      %v2655 = vshrl.u32 %v2552, 16
      %v2657 = vrot.slane %v2655, 4
      %v2658 = vor.u32 %v2657, %v2653
      %v2659 = vrot.slane %v2658, 4
      %v2661 = vshll.u32 %v2553, 16
      %v2663 = vrot.slane %v2661, 5
      %v2664 = vsel %vm982, %v2659, %v2663
      %v2666 = vshrl.u32 %v2554, 16
      %v2668 = vrot.slane %v2666, 4
      %v2669 = vshll.u32 %v2554, 16
      %v2671 = vrot.slane %v2669, 5
      %v2672 = vor.u32 %v2668, %v2671
      %v2673 = vrot.slane %v2672, 4
      %v2675 = vshll.u32 %v2555, 16
      %v2677 = vrot.slane %v2675, 5
      %v2678 = vsel %vm982, %v2673, %v2677
      %v2679 = vshrl.u32 %v2555, 16
      %v2681 = vrot.slane %v2679, 4
      %v2682 = vor.u32 %v2681, %v2677
      %v2683 = vrot.slane %v2682, 4
      %v2685 = vshll.u32 %v2556, 16
      %v2687 = vrot.slane %v2685, 5
      %v2688 = vsel %vm982, %v2683, %v2687
      %v2690 = vshrl.u32 %v2557, 16
      %v2692 = vrot.slane %v2690, 4
      %v2693 = vshll.u32 %v2557, 16
      %v2695 = vrot.slane %v2693, 5
      %v2696 = vor.u32 %v2692, %v2695
      %v2697 = vrot.slane %v2696, 4
      %v2699 = vshll.u32 %v2558, 16
      %v2701 = vrot.slane %v2699, 5
      %v2702 = vsel %vm982, %v2697, %v2701
      %v2703 = vshrl.u32 %v2558, 16
      %v2705 = vrot.slane %v2703, 4
      %v2706 = vor.u32 %v2705, %v2701
      %v2707 = vrot.slane %v2706, 4
      %v2709 = vshll.u32 %v2559, 16
      %v2711 = vrot.slane %v2709, 5
      %v2712 = vsel %vm982, %v2707, %v2711
      %v2714 = vshrl.u32 %v2560, 16
      %v2716 = vrot.slane %v2714, 4
      %v2717 = vshll.u32 %v2560, 16
      %v2719 = vrot.slane %v2717, 5
      %v2720 = vor.u32 %v2716, %v2719
      %v2721 = vrot.slane %v2720, 4
      %v2723 = vshll.u32 %v2561, 16
      %v2725 = vrot.slane %v2723, 5
      %v2726 = vsel %vm982, %v2721, %v2725
      %v2727 = vshrl.u32 %v2561, 16
      %v2729 = vrot.slane %v2727, 4
      %v2730 = vor.u32 %v2729, %v2725
      %v2731 = vrot.slane %v2730, 4
      %v2733 = vshll.u32 %v2562, 16
      %v2735 = vrot.slane %v2733, 5
      %v2736 = vsel %vm982, %v2731, %v2735
      %v2738 = vshrl.u32 %v2563, 16
      %v2740 = vrot.slane %v2738, 4
      %v2741 = vshll.u32 %v2563, 16
      %v2743 = vrot.slane %v2741, 5
      %v2744 = vor.u32 %v2740, %v2743
      %v2745 = vrot.slane %v2744, 4
      %v2747 = vshll.u32 %v2564, 16
      %v2749 = vrot.slane %v2747, 5
      %v2750 = vsel %vm982, %v2745, %v2749
      %v2751 = vshrl.u32 %v2564, 16
      %v2753 = vrot.slane %v2751, 4
      %v2754 = vor.u32 %v2753, %v2749
      %v2755 = vrot.slane %v2754, 4
      %v2757 = vshll.u32 %v2565, 16
      %v2759 = vrot.slane %v2757, 5
      %v2760 = vsel %vm982, %v2755, %v2759
      %v2762 = vshrl.u32 %v2566, 16
      %v2764 = vrot.slane %v2762, 4
      %v2765 = vshll.u32 %v2566, 16
      %v2767 = vrot.slane %v2765, 5
      %v2768 = vor.u32 %v2764, %v2767
      %v2769 = vrot.slane %v2768, 4
      %v2771 = vshll.u32 %v2567, 16
      %v2773 = vrot.slane %v2771, 5
      %v2774 = vsel %vm982, %v2769, %v2773
      %v2775 = vshrl.u32 %v2567, 16
      %v2777 = vrot.slane %v2775, 4
      %v2778 = vor.u32 %v2777, %v2773
      %v2779 = vrot.slane %v2778, 4
      %v2781 = vshll.u32 %v2568, 16
      %v2783 = vrot.slane %v2781, 5
      %v2784 = vsel %vm982, %v2779, %v2783
      %v2786 = vshrl.u32 %v2569, 16
      %v2788 = vrot.slane %v2786, 4
      %v2789 = vshll.u32 %v2569, 16
      %v2791 = vrot.slane %v2789, 5
      %v2792 = vor.u32 %v2788, %v2791
      %v2793 = vrot.slane %v2792, 4
      %v2795 = vshll.u32 %v2570, 16
      %v2797 = vrot.slane %v2795, 5
      %v2798 = vsel %vm982, %v2793, %v2797
      %v2799 = vshrl.u32 %v2570, 16
      %v2801 = vrot.slane %v2799, 4
      %v2802 = vor.u32 %v2801, %v2797
      %v2803 = vrot.slane %v2802, 4
      %v2805 = vshll.u32 %v2571, 16
      %v2807 = vrot.slane %v2805, 5
      %v2808 = vsel %vm982, %v2803, %v2807
      %v2810 = vshrl.u32 %v2572, 16
      %v2812 = vrot.slane %v2810, 4
      %v2813 = vshll.u32 %v2572, 16
      %v2815 = vrot.slane %v2813, 5
      %v2816 = vor.u32 %v2812, %v2815
      %v2817 = vrot.slane %v2816, 4
      %v2819 = vshll.u32 %v2573, 16
      %v2821 = vrot.slane %v2819, 5
      %v2822 = vsel %vm982, %v2817, %v2821
      %v2823 = vshrl.u32 %v2573, 16
      %v2825 = vrot.slane %v2823, 4
      %v2826 = vor.u32 %v2825, %v2821
      %v2827 = vrot.slane %v2826, 4
      %v2829 = vshll.u32 %v2574, 16
      %v2831 = vrot.slane %v2829, 5
      %v2832 = vsel %vm982, %v2827, %v2831
      %v2834 = vshrl.u32 %v2575, 16
      %v2836 = vrot.slane %v2834, 4
      %v2837 = vshll.u32 %v2575, 16
      %v2839 = vrot.slane %v2837, 5
      %v2840 = vor.u32 %v2836, %v2839
      %v2841 = vrot.slane %v2840, 4
      %v2843 = vshll.u32 %v2576, 16
      %v2845 = vrot.slane %v2843, 5
      %v2846 = vsel %vm982, %v2841, %v2845
      %v2847 = vshrl.u32 %v2576, 16
      %v2849 = vrot.slane %v2847, 4
      %v2850 = vor.u32 %v2849, %v2845
      %v2851 = vrot.slane %v2850, 4
      %v2853 = vshll.u32 %v2577, 16
      %v2855 = vrot.slane %v2853, 5
      %v2856 = vsel %vm982, %v2851, %v2855
      %v2858 = vshrl.u32 %v2578, 16
      %v2860 = vrot.slane %v2858, 4
      %v2861 = vshll.u32 %v2578, 16
      %v2863 = vrot.slane %v2861, 5
      %v2864 = vor.u32 %v2860, %v2863
      %v2865 = vrot.slane %v2864, 4
      %v2867 = vshll.u32 %v2579, 16
      %v2869 = vrot.slane %v2867, 5
      %v2870 = vsel %vm982, %v2865, %v2869
      %v2871 = vshrl.u32 %v2579, 16
      %v2873 = vrot.slane %v2871, 4
      %v2874 = vor.u32 %v2873, %v2869
      %v2875 = vrot.slane %v2874, 4
      %v2877 = vshll.u32 %v2580, 16
      %v2879 = vrot.slane %v2877, 5
      %v2880 = vsel %vm982, %v2875, %v2879
      %v2882 = vshrl.u32 %v2581, 16
      %v2884 = vrot.slane %v2882, 4
      %v2885 = vshll.u32 %v2581, 16
      %v2887 = vrot.slane %v2885, 5
      %v2888 = vor.u32 %v2884, %v2887
      %v2889 = vrot.slane %v2888, 4
      %v2891 = vshll.u32 %v2582, 16
      %v2893 = vrot.slane %v2891, 5
      %v2894 = vsel %vm982, %v2889, %v2893
      %v2895 = vshrl.u32 %v2582, 16
      %v2897 = vrot.slane %v2895, 4
      %v2898 = vor.u32 %v2897, %v2893
      %v2899 = vrot.slane %v2898, 4
      %v2901 = vshll.u32 %v2583, 16
      %v2903 = vrot.slane %v2901, 5
      %v2904 = vsel %vm982, %v2899, %v2903
      %v2906 = vshrl.u32 %v2584, 16
      %v2908 = vrot.slane %v2906, 4
      %v2909 = vshll.u32 %v2584, 16
      %v2911 = vrot.slane %v2909, 5
      %v2912 = vor.u32 %v2908, %v2911
      %v2913 = vrot.slane %v2912, 4
      %v2915 = vshll.u32 %v2585, 16
      %v2917 = vrot.slane %v2915, 5
      %v2918 = vsel %vm982, %v2913, %v2917
      %v2919 = vshrl.u32 %v2585, 16
      %v2921 = vrot.slane %v2919, 4
      %v2922 = vor.u32 %v2921, %v2917
      %v2923 = vrot.slane %v2922, 4
      %v2925 = vshll.u32 %v2586, 16
      %v2927 = vrot.slane %v2925, 5
      %v2928 = vsel %vm982, %v2923, %v2927
      %v2930 = vshrl.u32 %v2587, 16
      %v2932 = vrot.slane %v2930, 4
      %v2933 = vshll.u32 %v2587, 16
      %v2935 = vrot.slane %v2933, 5
      %v2936 = vor.u32 %v2932, %v2935
      %v2937 = vrot.slane %v2936, 4
      %v2939 = vshll.u32 %v2588, 16
      %v2941 = vrot.slane %v2939, 5
      %v2942 = vsel %vm982, %v2937, %v2941
      %v2943 = vshrl.u32 %v2588, 16
      %v2945 = vrot.slane %v2943, 4
      %v2946 = vor.u32 %v2945, %v2941
      %v2947 = vrot.slane %v2946, 4
      %v2949 = vshll.u32 %v2589, 16
      %v2951 = vrot.slane %v2949, 5
      %v2952 = vsel %vm982, %v2947, %v2951
      %v2954 = vshrl.u32 %v2590, 16
      %v2956 = vrot.slane %v2954, 4
      %v2957 = vshll.u32 %v2590, 16
      %v2959 = vrot.slane %v2957, 5
      %v2960 = vor.u32 %v2956, %v2959
      %v2961 = vrot.slane %v2960, 4
      %v2963 = vshll.u32 %v2591, 16
      %v2965 = vrot.slane %v2963, 5
      %v2966 = vsel %vm982, %v2961, %v2965
      %v2967 = vshrl.u32 %v2591, 16
      %v2969 = vrot.slane %v2967, 4
      %v2970 = vor.u32 %v2969, %v2965
      %v2971 = vrot.slane %v2970, 4
      %v2973 = vshll.u32 %v2592, 16
      %v2975 = vrot.slane %v2973, 5
      %v2976 = vsel %vm982, %v2971, %v2975
      %s2977 = scalar_lea.vmem %s3, 256
      %v2978 = vld [vmem:[%s2977] sm:$0xf]
      %v2979 = vld [vmem:[%s2977 + $0x4] sm:$0xf]
      %v2980 = vld [vmem:[%s2977 + $0x8] sm:$0xf]
      %v2981 = vld [vmem:[%s2977 + $0xc] sm:$0xf]
      %v2982 = vld [vmem:[%s2977 + $0x10] sm:$0xf]
      %v2983 = vld [vmem:[%s2977 + $0x14] sm:$0xf]
      %v2984 = vld [vmem:[%s2977 + $0x18] sm:$0xf]
      %v2985 = vld [vmem:[%s2977 + $0x1c] sm:$0xf]
      %v2986 = vld [vmem:[%s2977 + $0x20] sm:$0xf]
      %v2987 = vld [vmem:[%s2977 + $0x24] sm:$0xf]
      %v2988 = vld [vmem:[%s2977 + $0x28] sm:$0xf]
      %v2989 = vld [vmem:[%s2977 + $0x2c] sm:$0xf]
      %v2990 = vld [vmem:[%s2977 + $0x30] sm:$0xf]
      %v2991 = vld [vmem:[%s2977 + $0x34] sm:$0xf]
      %v2992 = vld [vmem:[%s2977 + $0x38] sm:$0xf]
      %v2993 = vld [vmem:[%s2977 + $0x3c] sm:$0xf]
      %v2994 = vunpack.c.l.b16 %v2606
      %v2995 = vunpack.c.l.b16 %v2616
      %v2996 = vunpack.c.l.b16 %v2630
      %v2997 = vunpack.c.l.b16 %v2640
      %v2998 = vunpack.c.l.b16 %v2654
      %v2999 = vunpack.c.l.b16 %v2664
      %v3000 = vunpack.c.l.b16 %v2678
      %v3001 = vunpack.c.l.b16 %v2688
      %v3002 = vunpack.c.l.b16 %v2702
      %v3003 = vunpack.c.l.b16 %v2712
      %v3004 = vunpack.c.l.b16 %v2726
      %v3005 = vunpack.c.l.b16 %v2736
      %v3006 = vunpack.c.l.b16 %v2750
      %v3007 = vunpack.c.l.b16 %v2760
      %v3008 = vunpack.c.l.b16 %v2774
      %v3009 = vunpack.c.l.b16 %v2784
      %v3010 = vunpack.c.l.b16 %v2798
      %v3011 = vunpack.c.l.b16 %v2808
      %v3012 = vunpack.c.l.b16 %v2822
      %v3013 = vunpack.c.l.b16 %v2832
      %v3014 = vunpack.c.l.b16 %v2846
      %v3015 = vunpack.c.l.b16 %v2856
      %v3016 = vunpack.c.l.b16 %v2870
      %v3017 = vunpack.c.l.b16 %v2880
      %v3018 = vunpack.c.l.b16 %v2894
      %v3019 = vunpack.c.l.b16 %v2904
      %v3020 = vunpack.c.l.b16 %v2918
      %v3021 = vunpack.c.l.b16 %v2928
      %v3022 = vunpack.c.l.b16 %v2942
      %v3023 = vunpack.c.l.b16 %v2952
      %v3024 = vunpack.c.l.b16 %v2966
      %v3025 = vunpack.c.l.b16 %v2976
      %v3026 = vpack.c.b16 %v2995, %v2994
      %v3027 = vpack.c.b16 %v2997, %v2996
      %v3028 = vpack.c.b16 %v2999, %v2998
      %v3029 = vpack.c.b16 %v3001, %v3000
      %v3030 = vpack.c.b16 %v3003, %v3002
      %v3031 = vpack.c.b16 %v3005, %v3004
      %v3032 = vpack.c.b16 %v3007, %v3006
      %v3033 = vpack.c.b16 %v3009, %v3008
      %v3034 = vpack.c.b16 %v3011, %v3010
      %v3035 = vpack.c.b16 %v3013, %v3012
      %v3036 = vpack.c.b16 %v3015, %v3014
      %v3037 = vpack.c.b16 %v3017, %v3016
      %v3038 = vpack.c.b16 %v3019, %v3018
      %v3039 = vpack.c.b16 %v3021, %v3020
      %v3040 = vpack.c.b16 %v3023, %v3022
      %v3041 = vpack.c.b16 %v3025, %v3024
      %v3074 = vunpack.c.l.b16 %v2978
      %v3075 = vunpack.c.l.b16 %v2979
      %v3076 = vunpack.c.l.b16 %v2980
      %v3077 = vunpack.c.l.b16 %v2981
      %v3078 = vunpack.c.l.b16 %v2982
      %v3079 = vunpack.c.l.b16 %v2983
      %v3080 = vunpack.c.l.b16 %v2984
      %v3081 = vunpack.c.l.b16 %v2985
      %v3082 = vunpack.c.l.b16 %v2986
      %v3083 = vunpack.c.l.b16 %v2987
      %v3084 = vunpack.c.l.b16 %v2988
      %v3085 = vunpack.c.l.b16 %v2989
      %v3086 = vunpack.c.l.b16 %v2990
      %v3087 = vunpack.c.l.b16 %v2991
      %v3088 = vunpack.c.l.b16 %v2992
      %v3089 = vunpack.c.l.b16 %v2993
      %v3090 = vpack.c.b16 %v3075, %v3074
      %v3091 = vpack.c.b16 %v3077, %v3076
      %v3092 = vpack.c.b16 %v3079, %v3078
      %v3093 = vpack.c.b16 %v3081, %v3080
      %v3094 = vpack.c.b16 %v3083, %v3082
      %v3095 = vpack.c.b16 %v3085, %v3084
      %v3096 = vpack.c.b16 %v3087, %v3086
      %v3097 = vpack.c.b16 %v3089, %v3088
      %3106 = vmatpush.bf16.msra.mxu0 %v3097
      %3107 = vmatpush.bf16.msra.mxu0 %v3096
      %3108 = vmatpush.bf16.msra.mxu0 %v3095
      %3109 = vmatpush.bf16.msra.mxu0 %v3094
      %3110 = vmatpush.bf16.msra.mxu0 %v3093
      %3111 = vmatpush.bf16.msra.mxu0 %v3092
      %3112 = vmatpush.bf16.msra.mxu0 %v3091
      %3113 = vmatpush.bf16.msra.mxu0 %v3090
      %3114 = vmatmul.bf16.gmra.mxu0 %v3026
      %v3115 = vpop.f32.mrf.mxu0
      %v3116 = vadd.f32 0.0, %v3115
      %v3117 = vpop.f32.mrf.mxu0
      %v3118 = vadd.f32 0.0, %v3117
      %3119 = vmatmul.bf16.gmra.mxu0 %v3027
      %v3120 = vpop.f32.mrf.mxu0
      %v3121 = vadd.f32 0.0, %v3120
      %v3122 = vpop.f32.mrf.mxu0
      %v3123 = vadd.f32 0.0, %v3122
      %3124 = vmatmul.bf16.gmra.mxu0 %v3028
      %v3125 = vpop.f32.mrf.mxu0
      %v3126 = vadd.f32 0.0, %v3125
      %v3127 = vpop.f32.mrf.mxu0
      %v3128 = vadd.f32 0.0, %v3127
      %3129 = vmatmul.bf16.gmra.mxu0 %v3029
      %v3130 = vpop.f32.mrf.mxu0
      %v3131 = vadd.f32 0.0, %v3130
      %v3132 = vpop.f32.mrf.mxu0
      %v3133 = vadd.f32 0.0, %v3132
      %3134 = vmatmul.bf16.gmra.mxu0 %v3030
      %v3135 = vpop.f32.mrf.mxu0
      %v3136 = vadd.f32 0.0, %v3135
      %v3137 = vpop.f32.mrf.mxu0
      %v3138 = vadd.f32 0.0, %v3137
      %3139 = vmatmul.bf16.gmra.mxu0 %v3031
      %v3140 = vpop.f32.mrf.mxu0
      %v3141 = vadd.f32 0.0, %v3140
      %v3142 = vpop.f32.mrf.mxu0
      %v3143 = vadd.f32 0.0, %v3142
      %3144 = vmatmul.bf16.gmra.mxu0 %v3032
      %v3145 = vpop.f32.mrf.mxu0
      %v3146 = vadd.f32 0.0, %v3145
      %v3147 = vpop.f32.mrf.mxu0
      %v3148 = vadd.f32 0.0, %v3147
      %3149 = vmatmul.bf16.gmra.mxu0 %v3033
      %v3150 = vpop.f32.mrf.mxu0
      %v3151 = vadd.f32 0.0, %v3150
      %v3152 = vpop.f32.mrf.mxu0
      %v3153 = vadd.f32 0.0, %v3152
      %3154 = vmatmul.bf16.gmra.mxu0 %v3034
      %v3155 = vpop.f32.mrf.mxu0
      %v3156 = vadd.f32 0.0, %v3155
      %v3157 = vpop.f32.mrf.mxu0
      %v3158 = vadd.f32 0.0, %v3157
      %3159 = vmatmul.bf16.gmra.mxu0 %v3035
      %v3160 = vpop.f32.mrf.mxu0
      %v3161 = vadd.f32 0.0, %v3160
      %v3162 = vpop.f32.mrf.mxu0
      %v3163 = vadd.f32 0.0, %v3162
      %3164 = vmatmul.bf16.gmra.mxu0 %v3036
      %v3165 = vpop.f32.mrf.mxu0
      %v3166 = vadd.f32 0.0, %v3165
      %v3167 = vpop.f32.mrf.mxu0
      %v3168 = vadd.f32 0.0, %v3167
      %3169 = vmatmul.bf16.gmra.mxu0 %v3037
      %v3170 = vpop.f32.mrf.mxu0
      %v3171 = vadd.f32 0.0, %v3170
      %v3172 = vpop.f32.mrf.mxu0
      %v3173 = vadd.f32 0.0, %v3172
      %3174 = vmatmul.bf16.gmra.mxu0 %v3038
      %v3175 = vpop.f32.mrf.mxu0
      %v3176 = vadd.f32 0.0, %v3175
      %v3177 = vpop.f32.mrf.mxu0
      %v3178 = vadd.f32 0.0, %v3177
      %3179 = vmatmul.bf16.gmra.mxu0 %v3039
      %v3180 = vpop.f32.mrf.mxu0
      %v3181 = vadd.f32 0.0, %v3180
      %v3182 = vpop.f32.mrf.mxu0
      %v3183 = vadd.f32 0.0, %v3182
      %3184 = vmatmul.bf16.gmra.mxu0 %v3040
      %v3185 = vpop.f32.mrf.mxu0
      %v3186 = vadd.f32 0.0, %v3185
      %v3187 = vpop.f32.mrf.mxu0
      %v3188 = vadd.f32 0.0, %v3187
      %3189 = vmatmul.bf16.gmra.mxu0 %v3041
      %v3190 = vpop.f32.mrf.mxu0
      %v3191 = vadd.f32 0.0, %v3190
      %v3192 = vpop.f32.mrf.mxu0
      %v3193 = vadd.f32 0.0, %v3192
      %3194 = vdwg.mxu0
      %v3195 = vadd.f32 %v2513, %v3116
      %v3196 = vadd.f32 %v2514, %v3118
      %v3197 = vadd.f32 %v2515, %v3121
      %v3198 = vadd.f32 %v2516, %v3123
      %v3199 = vadd.f32 %v2517, %v3126
      %v3200 = vadd.f32 %v2518, %v3128
      %v3201 = vadd.f32 %v2519, %v3131
      %v3202 = vadd.f32 %v2520, %v3133
      %v3203 = vadd.f32 %v2521, %v3136
      %v3204 = vadd.f32 %v2522, %v3138
      %v3205 = vadd.f32 %v2523, %v3141
      %v3206 = vadd.f32 %v2524, %v3143
      %v3207 = vadd.f32 %v2525, %v3146
      %v3208 = vadd.f32 %v2526, %v3148
      %v3209 = vadd.f32 %v2527, %v3151
      %v3210 = vadd.f32 %v2528, %v3153
      %v3211 = vadd.f32 %v2529, %v3156
      %v3212 = vadd.f32 %v2530, %v3158
      %v3213 = vadd.f32 %v2531, %v3161
      %v3214 = vadd.f32 %v2532, %v3163
      %v3215 = vadd.f32 %v2533, %v3166
      %v3216 = vadd.f32 %v2534, %v3168
      %v3217 = vadd.f32 %v2535, %v3171
      %v3218 = vadd.f32 %v2536, %v3173
      %v3219 = vadd.f32 %v2537, %v3176
      %v3220 = vadd.f32 %v2538, %v3178
      %v3221 = vadd.f32 %v2539, %v3181
      %v3222 = vadd.f32 %v2540, %v3183
      %v3223 = vadd.f32 %v2541, %v3186
      %v3224 = vadd.f32 %v2542, %v3188
      %v3225 = vadd.f32 %v2543, %v3191
      %v3226 = vadd.f32 %v2544, %v3193
      %v3227 = vld [vmem:[%s798] sm:$0xe]
      %v3228 = vld [vmem:[%s798 + $0xc] sm:$0xe]
      %v3229 = vld [vmem:[%s798 + $0x18] sm:$0xe]
      %v3230 = vld [vmem:[%s798 + $0x24] sm:$0xe]
      %v3231 = vld [vmem:[%s798 + $0x30] sm:$0xe]
      %v3232 = vld [vmem:[%s798 + $0x3c] sm:$0xe]
      %v3233 = vld [vmem:[%s798 + $0x48] sm:$0xe]
      %v3234 = vld [vmem:[%s798 + $0x54] sm:$0xe]
      %v3235 = vld [vmem:[%s798 + $0x60] sm:$0xe]
      %v3236 = vld [vmem:[%s798 + $0x6c] sm:$0xe]
      %v3237 = vld [vmem:[%s798 + $0x78] sm:$0xe]
      %v3238 = vld [vmem:[%s798 + $0x84] sm:$0xe]
      %v3239 = vld [vmem:[%s798 + $0x90] sm:$0xe]
      %v3240 = vld [vmem:[%s798 + $0x9c] sm:$0xe]
      %v3241 = vld [vmem:[%s798 + $0xa8] sm:$0xe]
      %v3242 = vld [vmem:[%s798 + $0xb4] sm:$0xe]
      %v3291 = vrot.slane %v3227, 5
      %v3292 = vrot.slane %v3291, 4
      %v3293 = vrot.slane %v2546, 5
      %v3294 = vsel %vm1868, %v3292, %v3293
      %v3295 = vrot.slane %v3293, 4
      %v3296 = vrot.slane %v2547, 5
      %v3297 = vsel %vm1868, %v3295, %v3296
      %v3298 = vrot.slane %v3228, 5
      %v3299 = vrot.slane %v3298, 4
      %v3300 = vrot.slane %v2549, 5
      %v3301 = vsel %vm1868, %v3299, %v3300
      %v3302 = vrot.slane %v3300, 4
      %v3303 = vrot.slane %v2550, 5
      %v3304 = vsel %vm1868, %v3302, %v3303
      %v3305 = vrot.slane %v3229, 5
      %v3306 = vrot.slane %v3305, 4
      %v3307 = vrot.slane %v2552, 5
      %v3308 = vsel %vm1868, %v3306, %v3307
      %v3309 = vrot.slane %v3307, 4
      %v3310 = vrot.slane %v2553, 5
      %v3311 = vsel %vm1868, %v3309, %v3310
      %v3312 = vrot.slane %v3230, 5
      %v3313 = vrot.slane %v3312, 4
      %v3314 = vrot.slane %v2555, 5
      %v3315 = vsel %vm1868, %v3313, %v3314
      %v3316 = vrot.slane %v3314, 4
      %v3317 = vrot.slane %v2556, 5
      %v3318 = vsel %vm1868, %v3316, %v3317
      %v3319 = vrot.slane %v3231, 5
      %v3320 = vrot.slane %v3319, 4
      %v3321 = vrot.slane %v2558, 5
      %v3322 = vsel %vm1868, %v3320, %v3321
      %v3323 = vrot.slane %v3321, 4
      %v3324 = vrot.slane %v2559, 5
      %v3325 = vsel %vm1868, %v3323, %v3324
      %v3326 = vrot.slane %v3232, 5
      %v3327 = vrot.slane %v3326, 4
      %v3328 = vrot.slane %v2561, 5
      %v3329 = vsel %vm1868, %v3327, %v3328
      %v3330 = vrot.slane %v3328, 4
      %v3331 = vrot.slane %v2562, 5
      %v3332 = vsel %vm1868, %v3330, %v3331
      %v3333 = vrot.slane %v3233, 5
      %v3334 = vrot.slane %v3333, 4
      %v3335 = vrot.slane %v2564, 5
      %v3336 = vsel %vm1868, %v3334, %v3335
      %v3337 = vrot.slane %v3335, 4
      %v3338 = vrot.slane %v2565, 5
      %v3339 = vsel %vm1868, %v3337, %v3338
      %v3340 = vrot.slane %v3234, 5
      %v3341 = vrot.slane %v3340, 4
      %v3342 = vrot.slane %v2567, 5
      %v3343 = vsel %vm1868, %v3341, %v3342
      %v3344 = vrot.slane %v3342, 4
      %v3345 = vrot.slane %v2568, 5
      %v3346 = vsel %vm1868, %v3344, %v3345
      %v3347 = vrot.slane %v3235, 5
      %v3348 = vrot.slane %v3347, 4
      %v3349 = vrot.slane %v2570, 5
      %v3350 = vsel %vm1868, %v3348, %v3349
      %v3351 = vrot.slane %v3349, 4
      %v3352 = vrot.slane %v2571, 5
      %v3353 = vsel %vm1868, %v3351, %v3352
      %v3354 = vrot.slane %v3236, 5
      %v3355 = vrot.slane %v3354, 4
      %v3356 = vrot.slane %v2573, 5
      %v3357 = vsel %vm1868, %v3355, %v3356
      %v3358 = vrot.slane %v3356, 4
      %v3359 = vrot.slane %v2574, 5
      %v3360 = vsel %vm1868, %v3358, %v3359
      %v3361 = vrot.slane %v3237, 5
      %v3362 = vrot.slane %v3361, 4
      %v3363 = vrot.slane %v2576, 5
      %v3364 = vsel %vm1868, %v3362, %v3363
      %v3365 = vrot.slane %v3363, 4
      %v3366 = vrot.slane %v2577, 5
      %v3367 = vsel %vm1868, %v3365, %v3366
      %v3368 = vrot.slane %v3238, 5
      %v3369 = vrot.slane %v3368, 4
      %v3370 = vrot.slane %v2579, 5
      %v3371 = vsel %vm1868, %v3369, %v3370
      %v3372 = vrot.slane %v3370, 4
      %v3373 = vrot.slane %v2580, 5
      %v3374 = vsel %vm1868, %v3372, %v3373
      %v3375 = vrot.slane %v3239, 5
      %v3376 = vrot.slane %v3375, 4
      %v3377 = vrot.slane %v2582, 5
      %v3378 = vsel %vm1868, %v3376, %v3377
      %v3379 = vrot.slane %v3377, 4
      %v3380 = vrot.slane %v2583, 5
      %v3381 = vsel %vm1868, %v3379, %v3380
      %v3382 = vrot.slane %v3240, 5
      %v3383 = vrot.slane %v3382, 4
      %v3384 = vrot.slane %v2585, 5
      %v3385 = vsel %vm1868, %v3383, %v3384
      %v3386 = vrot.slane %v3384, 4
      %v3387 = vrot.slane %v2586, 5
      %v3388 = vsel %vm1868, %v3386, %v3387
      %v3389 = vrot.slane %v3241, 5
      %v3390 = vrot.slane %v3389, 4
      %v3391 = vrot.slane %v2588, 5
      %v3392 = vsel %vm1868, %v3390, %v3391
      %v3393 = vrot.slane %v3391, 4
      %v3394 = vrot.slane %v2589, 5
      %v3395 = vsel %vm1868, %v3393, %v3394
      %v3396 = vrot.slane %v3242, 5
      %v3397 = vrot.slane %v3396, 4
      %v3398 = vrot.slane %v2591, 5
      %v3399 = vsel %vm1868, %v3397, %v3398
      %v3400 = vrot.slane %v3398, 4
      %v3401 = vrot.slane %v2592, 5
      %v3402 = vsel %vm1868, %v3400, %v3401
      %s3403 = scalar_lea.vmem %s3, 320
      %v3404 = vld [vmem:[%s3403] sm:$0xf]
      %v3405 = vld [vmem:[%s3403 + $0x4] sm:$0xf]
      %v3406 = vld [vmem:[%s3403 + $0x8] sm:$0xf]
      %v3407 = vld [vmem:[%s3403 + $0xc] sm:$0xf]
      %v3408 = vld [vmem:[%s3403 + $0x10] sm:$0xf]
      %v3409 = vld [vmem:[%s3403 + $0x14] sm:$0xf]
      %v3410 = vld [vmem:[%s3403 + $0x18] sm:$0xf]
      %v3411 = vld [vmem:[%s3403 + $0x1c] sm:$0xf]
      %v3412 = vld [vmem:[%s3403 + $0x20] sm:$0xf]
      %v3413 = vld [vmem:[%s3403 + $0x24] sm:$0xf]
      %v3414 = vld [vmem:[%s3403 + $0x28] sm:$0xf]
      %v3415 = vld [vmem:[%s3403 + $0x2c] sm:$0xf]
      %v3416 = vld [vmem:[%s3403 + $0x30] sm:$0xf]
      %v3417 = vld [vmem:[%s3403 + $0x34] sm:$0xf]
      %v3418 = vld [vmem:[%s3403 + $0x38] sm:$0xf]
      %v3419 = vld [vmem:[%s3403 + $0x3c] sm:$0xf]
      %v3420 = vunpack.c.l.b16 %v3294
      %v3421 = vunpack.c.l.b16 %v3297
      %v3422 = vunpack.c.l.b16 %v3301
      %v3423 = vunpack.c.l.b16 %v3304
      %v3424 = vunpack.c.l.b16 %v3308
      %v3425 = vunpack.c.l.b16 %v3311
      %v3426 = vunpack.c.l.b16 %v3315
      %v3427 = vunpack.c.l.b16 %v3318
      %v3428 = vunpack.c.l.b16 %v3322
      %v3429 = vunpack.c.l.b16 %v3325
      %v3430 = vunpack.c.l.b16 %v3329
      %v3431 = vunpack.c.l.b16 %v3332
      %v3432 = vunpack.c.l.b16 %v3336
      %v3433 = vunpack.c.l.b16 %v3339
      %v3434 = vunpack.c.l.b16 %v3343
      %v3435 = vunpack.c.l.b16 %v3346
      %v3436 = vunpack.c.l.b16 %v3350
      %v3437 = vunpack.c.l.b16 %v3353
      %v3438 = vunpack.c.l.b16 %v3357
      %v3439 = vunpack.c.l.b16 %v3360
      %v3440 = vunpack.c.l.b16 %v3364
      %v3441 = vunpack.c.l.b16 %v3367
      %v3442 = vunpack.c.l.b16 %v3371
      %v3443 = vunpack.c.l.b16 %v3374
      %v3444 = vunpack.c.l.b16 %v3378
      %v3445 = vunpack.c.l.b16 %v3381
      %v3446 = vunpack.c.l.b16 %v3385
      %v3447 = vunpack.c.l.b16 %v3388
      %v3448 = vunpack.c.l.b16 %v3392
      %v3449 = vunpack.c.l.b16 %v3395
      %v3450 = vunpack.c.l.b16 %v3399
      %v3451 = vunpack.c.l.b16 %v3402
      %v3452 = vpack.c.b16 %v3421, %v3420
      %v3453 = vpack.c.b16 %v3423, %v3422
      %v3454 = vpack.c.b16 %v3425, %v3424
      %v3455 = vpack.c.b16 %v3427, %v3426
      %v3456 = vpack.c.b16 %v3429, %v3428
      %v3457 = vpack.c.b16 %v3431, %v3430
      %v3458 = vpack.c.b16 %v3433, %v3432
      %v3459 = vpack.c.b16 %v3435, %v3434
      %v3460 = vpack.c.b16 %v3437, %v3436
      %v3461 = vpack.c.b16 %v3439, %v3438
      %v3462 = vpack.c.b16 %v3441, %v3440
      %v3463 = vpack.c.b16 %v3443, %v3442
      %v3464 = vpack.c.b16 %v3445, %v3444
      %v3465 = vpack.c.b16 %v3447, %v3446
      %v3466 = vpack.c.b16 %v3449, %v3448
      %v3467 = vpack.c.b16 %v3451, %v3450
      %v3500 = vunpack.c.l.b16 %v3404
      %v3501 = vunpack.c.l.b16 %v3405
      %v3502 = vunpack.c.l.b16 %v3406
      %v3503 = vunpack.c.l.b16 %v3407
      %v3504 = vunpack.c.l.b16 %v3408
      %v3505 = vunpack.c.l.b16 %v3409
      %v3506 = vunpack.c.l.b16 %v3410
      %v3507 = vunpack.c.l.b16 %v3411
      %v3508 = vunpack.c.l.b16 %v3412
      %v3509 = vunpack.c.l.b16 %v3413
      %v3510 = vunpack.c.l.b16 %v3414
      %v3511 = vunpack.c.l.b16 %v3415
      %v3512 = vunpack.c.l.b16 %v3416
      %v3513 = vunpack.c.l.b16 %v3417
      %v3514 = vunpack.c.l.b16 %v3418
      %v3515 = vunpack.c.l.b16 %v3419
      %v3516 = vpack.c.b16 %v3501, %v3500
      %v3517 = vpack.c.b16 %v3503, %v3502
      %v3518 = vpack.c.b16 %v3505, %v3504
      %v3519 = vpack.c.b16 %v3507, %v3506
      %v3520 = vpack.c.b16 %v3509, %v3508
      %v3521 = vpack.c.b16 %v3511, %v3510
      %v3522 = vpack.c.b16 %v3513, %v3512
      %v3523 = vpack.c.b16 %v3515, %v3514
      %3532 = vmatpush.bf16.msra.mxu0 %v3523
      %3533 = vmatpush.bf16.msra.mxu0 %v3522
      %3534 = vmatpush.bf16.msra.mxu0 %v3521
      %3535 = vmatpush.bf16.msra.mxu0 %v3520
      %3536 = vmatpush.bf16.msra.mxu0 %v3519
      %3537 = vmatpush.bf16.msra.mxu0 %v3518
      %3538 = vmatpush.bf16.msra.mxu0 %v3517
      %3539 = vmatpush.bf16.msra.mxu0 %v3516
      %3540 = vmatmul.bf16.gmra.mxu0 %v3452
      %v3541 = vpop.f32.mrf.mxu0
      %v3542 = vadd.f32 0.0, %v3541
      %v3543 = vpop.f32.mrf.mxu0
      %v3544 = vadd.f32 0.0, %v3543
      %3545 = vmatmul.bf16.gmra.mxu0 %v3453
      %v3546 = vpop.f32.mrf.mxu0
      %v3547 = vadd.f32 0.0, %v3546
      %v3548 = vpop.f32.mrf.mxu0
      %v3549 = vadd.f32 0.0, %v3548
      %3550 = vmatmul.bf16.gmra.mxu0 %v3454
      %v3551 = vpop.f32.mrf.mxu0
      %v3552 = vadd.f32 0.0, %v3551
      %v3553 = vpop.f32.mrf.mxu0
      %v3554 = vadd.f32 0.0, %v3553
      %3555 = vmatmul.bf16.gmra.mxu0 %v3455
      %v3556 = vpop.f32.mrf.mxu0
      %v3557 = vadd.f32 0.0, %v3556
      %v3558 = vpop.f32.mrf.mxu0
      %v3559 = vadd.f32 0.0, %v3558
      %3560 = vmatmul.bf16.gmra.mxu0 %v3456
      %v3561 = vpop.f32.mrf.mxu0
      %v3562 = vadd.f32 0.0, %v3561
      %v3563 = vpop.f32.mrf.mxu0
      %v3564 = vadd.f32 0.0, %v3563
      %3565 = vmatmul.bf16.gmra.mxu0 %v3457
      %v3566 = vpop.f32.mrf.mxu0
      %v3567 = vadd.f32 0.0, %v3566
      %v3568 = vpop.f32.mrf.mxu0
      %v3569 = vadd.f32 0.0, %v3568
      %3570 = vmatmul.bf16.gmra.mxu0 %v3458
      %v3571 = vpop.f32.mrf.mxu0
      %v3572 = vadd.f32 0.0, %v3571
      %v3573 = vpop.f32.mrf.mxu0
      %v3574 = vadd.f32 0.0, %v3573
      %3575 = vmatmul.bf16.gmra.mxu0 %v3459
      %v3576 = vpop.f32.mrf.mxu0
      %v3577 = vadd.f32 0.0, %v3576
      %v3578 = vpop.f32.mrf.mxu0
      %v3579 = vadd.f32 0.0, %v3578
      %3580 = vmatmul.bf16.gmra.mxu0 %v3460
      %v3581 = vpop.f32.mrf.mxu0
      %v3582 = vadd.f32 0.0, %v3581
      %v3583 = vpop.f32.mrf.mxu0
      %v3584 = vadd.f32 0.0, %v3583
      %3585 = vmatmul.bf16.gmra.mxu0 %v3461
      %v3586 = vpop.f32.mrf.mxu0
      %v3587 = vadd.f32 0.0, %v3586
      %v3588 = vpop.f32.mrf.mxu0
      %v3589 = vadd.f32 0.0, %v3588
      %3590 = vmatmul.bf16.gmra.mxu0 %v3462
      %v3591 = vpop.f32.mrf.mxu0
      %v3592 = vadd.f32 0.0, %v3591
      %v3593 = vpop.f32.mrf.mxu0
      %v3594 = vadd.f32 0.0, %v3593
      %3595 = vmatmul.bf16.gmra.mxu0 %v3463
      %v3596 = vpop.f32.mrf.mxu0
      %v3597 = vadd.f32 0.0, %v3596
      %v3598 = vpop.f32.mrf.mxu0
      %v3599 = vadd.f32 0.0, %v3598
      %3600 = vmatmul.bf16.gmra.mxu0 %v3464
      %v3601 = vpop.f32.mrf.mxu0
      %v3602 = vadd.f32 0.0, %v3601
      %v3603 = vpop.f32.mrf.mxu0
      %v3604 = vadd.f32 0.0, %v3603
      %3605 = vmatmul.bf16.gmra.mxu0 %v3465
      %v3606 = vpop.f32.mrf.mxu0
      %v3607 = vadd.f32 0.0, %v3606
      %v3608 = vpop.f32.mrf.mxu0
      %v3609 = vadd.f32 0.0, %v3608
      %3610 = vmatmul.bf16.gmra.mxu0 %v3466
      %v3611 = vpop.f32.mrf.mxu0
      %v3612 = vadd.f32 0.0, %v3611
      %v3613 = vpop.f32.mrf.mxu0
      %v3614 = vadd.f32 0.0, %v3613
      %3615 = vmatmul.bf16.gmra.mxu0 %v3467
      %v3616 = vpop.f32.mrf.mxu0
      %v3617 = vadd.f32 0.0, %v3616
      %v3618 = vpop.f32.mrf.mxu0
      %v3619 = vadd.f32 0.0, %v3618
      %3620 = vdwg.mxu0
      %v3621 = vadd.f32 %v3195, %v3542
      %v3622 = vadd.f32 %v3196, %v3544
      %v3623 = vadd.f32 %v3197, %v3547
      %v3624 = vadd.f32 %v3198, %v3549
      %v3625 = vadd.f32 %v3199, %v3552
      %v3626 = vadd.f32 %v3200, %v3554
      %v3627 = vadd.f32 %v3201, %v3557
      %v3628 = vadd.f32 %v3202, %v3559
      %v3629 = vadd.f32 %v3203, %v3562
      %v3630 = vadd.f32 %v3204, %v3564
      %v3631 = vadd.f32 %v3205, %v3567
      %v3632 = vadd.f32 %v3206, %v3569
      %v3633 = vadd.f32 %v3207, %v3572
      %v3634 = vadd.f32 %v3208, %v3574
      %v3635 = vadd.f32 %v3209, %v3577
      %v3636 = vadd.f32 %v3210, %v3579
      %v3637 = vadd.f32 %v3211, %v3582
      %v3638 = vadd.f32 %v3212, %v3584
      %v3639 = vadd.f32 %v3213, %v3587
      %v3640 = vadd.f32 %v3214, %v3589
      %v3641 = vadd.f32 %v3215, %v3592
      %v3642 = vadd.f32 %v3216, %v3594
      %v3643 = vadd.f32 %v3217, %v3597
      %v3644 = vadd.f32 %v3218, %v3599
      %v3645 = vadd.f32 %v3219, %v3602
      %v3646 = vadd.f32 %v3220, %v3604
      %v3647 = vadd.f32 %v3221, %v3607
      %v3648 = vadd.f32 %v3222, %v3609
      %v3649 = vadd.f32 %v3223, %v3612
      %v3650 = vadd.f32 %v3224, %v3614
      %v3651 = vadd.f32 %v3225, %v3617
      %v3652 = vadd.f32 %v3226, %v3619
      %s3653 = scalar_lea.vmem [#allocation2], 24
      %v3654 = vld [vmem:[%s3653] sm:$0xf]
      %v3655 = vld [vmem:[%s3653 + $0x4] sm:$0xf]
      %v3656 = vld [vmem:[%s3653 + $0xc] sm:$0xf]
      %v3657 = vld [vmem:[%s3653 + $0x10] sm:$0xf]
      %v3658 = vld [vmem:[%s3653 + $0x18] sm:$0xf]
      %v3659 = vld [vmem:[%s3653 + $0x1c] sm:$0xf]
      %v3660 = vld [vmem:[%s3653 + $0x24] sm:$0xf]
      %v3661 = vld [vmem:[%s3653 + $0x28] sm:$0xf]
      %v3662 = vld [vmem:[%s3653 + $0x30] sm:$0xf]
      %v3663 = vld [vmem:[%s3653 + $0x34] sm:$0xf]
      %v3664 = vld [vmem:[%s3653 + $0x3c] sm:$0xf]
      %v3665 = vld [vmem:[%s3653 + $0x40] sm:$0xf]
      %v3666 = vld [vmem:[%s3653 + $0x48] sm:$0xf]
      %v3667 = vld [vmem:[%s3653 + $0x4c] sm:$0xf]
      %v3668 = vld [vmem:[%s3653 + $0x54] sm:$0xf]
      %v3669 = vld [vmem:[%s3653 + $0x58] sm:$0xf]
      %v3670 = vld [vmem:[%s3653 + $0x60] sm:$0xf]
      %v3671 = vld [vmem:[%s3653 + $0x64] sm:$0xf]
      %v3672 = vld [vmem:[%s3653 + $0x6c] sm:$0xf]
      %v3673 = vld [vmem:[%s3653 + $0x70] sm:$0xf]
      %v3674 = vld [vmem:[%s3653 + $0x78] sm:$0xf]
      %v3675 = vld [vmem:[%s3653 + $0x7c] sm:$0xf]
      %v3676 = vld [vmem:[%s3653 + $0x84] sm:$0xf]
      %v3677 = vld [vmem:[%s3653 + $0x88] sm:$0xf]
      %v3678 = vld [vmem:[%s3653 + $0x90] sm:$0xf]
      %v3679 = vld [vmem:[%s3653 + $0x94] sm:$0xf]
      %v3680 = vld [vmem:[%s3653 + $0x9c] sm:$0xf]
      %v3681 = vld [vmem:[%s3653 + $0xa0] sm:$0xf]
      %v3682 = vld [vmem:[%s3653 + $0xa8] sm:$0xf]
      %v3683 = vld [vmem:[%s3653 + $0xac] sm:$0xf]
      %v3684 = vld [vmem:[%s3653 + $0xb4] sm:$0xf]
      %v3685 = vld [vmem:[%s3653 + $0xb8] sm:$0xf]
      %s3686 = scalar_lea.vmem %s3, 384
      %v3687 = vld [vmem:[%s3686] sm:$0xf]
      %v3688 = vld [vmem:[%s3686 + $0x4] sm:$0xf]
      %v3689 = vld [vmem:[%s3686 + $0x8] sm:$0xf]
      %v3690 = vld [vmem:[%s3686 + $0xc] sm:$0xf]
      %v3691 = vld [vmem:[%s3686 + $0x10] sm:$0xf]
      %v3692 = vld [vmem:[%s3686 + $0x14] sm:$0xf]
      %v3693 = vld [vmem:[%s3686 + $0x18] sm:$0xf]
      %v3694 = vld [vmem:[%s3686 + $0x1c] sm:$0xf]
      %v3695 = vld [vmem:[%s3686 + $0x20] sm:$0xf]
      %v3696 = vld [vmem:[%s3686 + $0x24] sm:$0xf]
      %v3697 = vld [vmem:[%s3686 + $0x28] sm:$0xf]
      %v3698 = vld [vmem:[%s3686 + $0x2c] sm:$0xf]
      %v3699 = vld [vmem:[%s3686 + $0x30] sm:$0xf]
      %v3700 = vld [vmem:[%s3686 + $0x34] sm:$0xf]
      %v3701 = vld [vmem:[%s3686 + $0x38] sm:$0xf]
      %v3702 = vld [vmem:[%s3686 + $0x3c] sm:$0xf]
      %v3735 = vunpack.c.l.b16 %v3654
      %v3736 = vunpack.c.l.b16 %v3655
      %v3737 = vunpack.c.l.b16 %v3656
      %v3738 = vunpack.c.l.b16 %v3657
      %v3739 = vunpack.c.l.b16 %v3658
      %v3740 = vunpack.c.l.b16 %v3659
      %v3741 = vunpack.c.l.b16 %v3660
      %v3742 = vunpack.c.l.b16 %v3661
      %v3743 = vunpack.c.l.b16 %v3662
      %v3744 = vunpack.c.l.b16 %v3663
      %v3745 = vunpack.c.l.b16 %v3664
      %v3746 = vunpack.c.l.b16 %v3665
      %v3747 = vunpack.c.l.b16 %v3666
      %v3748 = vunpack.c.l.b16 %v3667
      %v3749 = vunpack.c.l.b16 %v3668
      %v3750 = vunpack.c.l.b16 %v3669
      %v3751 = vunpack.c.l.b16 %v3670
      %v3752 = vunpack.c.l.b16 %v3671
      %v3753 = vunpack.c.l.b16 %v3672
      %v3754 = vunpack.c.l.b16 %v3673
      %v3755 = vunpack.c.l.b16 %v3674
      %v3756 = vunpack.c.l.b16 %v3675
      %v3757 = vunpack.c.l.b16 %v3676
      %v3758 = vunpack.c.l.b16 %v3677
      %v3759 = vunpack.c.l.b16 %v3678
      %v3760 = vunpack.c.l.b16 %v3679
      %v3761 = vunpack.c.l.b16 %v3680
      %v3762 = vunpack.c.l.b16 %v3681
      %v3763 = vunpack.c.l.b16 %v3682
      %v3764 = vunpack.c.l.b16 %v3683
      %v3765 = vunpack.c.l.b16 %v3684
      %v3766 = vunpack.c.l.b16 %v3685
      %v3767 = vpack.c.b16 %v3736, %v3735
      %v3768 = vpack.c.b16 %v3738, %v3737
      %v3769 = vpack.c.b16 %v3740, %v3739
      %v3770 = vpack.c.b16 %v3742, %v3741
      %v3771 = vpack.c.b16 %v3744, %v3743
      %v3772 = vpack.c.b16 %v3746, %v3745
      %v3773 = vpack.c.b16 %v3748, %v3747
      %v3774 = vpack.c.b16 %v3750, %v3749
      %v3775 = vpack.c.b16 %v3752, %v3751
      %v3776 = vpack.c.b16 %v3754, %v3753
      %v3777 = vpack.c.b16 %v3756, %v3755
      %v3778 = vpack.c.b16 %v3758, %v3757
      %v3779 = vpack.c.b16 %v3760, %v3759
      %v3780 = vpack.c.b16 %v3762, %v3761
      %v3781 = vpack.c.b16 %v3764, %v3763
      %v3782 = vpack.c.b16 %v3766, %v3765
      %v3815 = vunpack.c.l.b16 %v3687
      %v3816 = vunpack.c.l.b16 %v3688
      %v3817 = vunpack.c.l.b16 %v3689
      %v3818 = vunpack.c.l.b16 %v3690
      %v3819 = vunpack.c.l.b16 %v3691
      %v3820 = vunpack.c.l.b16 %v3692
      %v3821 = vunpack.c.l.b16 %v3693
      %v3822 = vunpack.c.l.b16 %v3694
      %v3823 = vunpack.c.l.b16 %v3695
      %v3824 = vunpack.c.l.b16 %v3696
      %v3825 = vunpack.c.l.b16 %v3697
      %v3826 = vunpack.c.l.b16 %v3698
      %v3827 = vunpack.c.l.b16 %v3699
      %v3828 = vunpack.c.l.b16 %v3700
      %v3829 = vunpack.c.l.b16 %v3701
      %v3830 = vunpack.c.l.b16 %v3702
      %v3831 = vpack.c.b16 %v3816, %v3815
      %v3832 = vpack.c.b16 %v3818, %v3817
      %v3833 = vpack.c.b16 %v3820, %v3819
      %v3834 = vpack.c.b16 %v3822, %v3821
      %v3835 = vpack.c.b16 %v3824, %v3823
      %v3836 = vpack.c.b16 %v3826, %v3825
      %v3837 = vpack.c.b16 %v3828, %v3827
      %v3838 = vpack.c.b16 %v3830, %v3829
      %3847 = vmatpush.bf16.msra.mxu0 %v3838
      %3848 = vmatpush.bf16.msra.mxu0 %v3837
      %3849 = vmatpush.bf16.msra.mxu0 %v3836
      %3850 = vmatpush.bf16.msra.mxu0 %v3835
      %3851 = vmatpush.bf16.msra.mxu0 %v3834
      %3852 = vmatpush.bf16.msra.mxu0 %v3833
      %3853 = vmatpush.bf16.msra.mxu0 %v3832
      %3854 = vmatpush.bf16.msra.mxu0 %v3831
      %3855 = vmatmul.bf16.gmra.mxu0 %v3767
      %v3856 = vpop.f32.mrf.mxu0
      %v3857 = vadd.f32 0.0, %v3856
      %v3858 = vpop.f32.mrf.mxu0
      %v3859 = vadd.f32 0.0, %v3858
      %3860 = vmatmul.bf16.gmra.mxu0 %v3768
      %v3861 = vpop.f32.mrf.mxu0
      %v3862 = vadd.f32 0.0, %v3861
      %v3863 = vpop.f32.mrf.mxu0
      %v3864 = vadd.f32 0.0, %v3863
      %3865 = vmatmul.bf16.gmra.mxu0 %v3769
      %v3866 = vpop.f32.mrf.mxu0
      %v3867 = vadd.f32 0.0, %v3866
      %v3868 = vpop.f32.mrf.mxu0
      %v3869 = vadd.f32 0.0, %v3868
      %3870 = vmatmul.bf16.gmra.mxu0 %v3770
      %v3871 = vpop.f32.mrf.mxu0
      %v3872 = vadd.f32 0.0, %v3871
      %v3873 = vpop.f32.mrf.mxu0
      %v3874 = vadd.f32 0.0, %v3873
      %3875 = vmatmul.bf16.gmra.mxu0 %v3771
      %v3876 = vpop.f32.mrf.mxu0
      %v3877 = vadd.f32 0.0, %v3876
      %v3878 = vpop.f32.mrf.mxu0
      %v3879 = vadd.f32 0.0, %v3878
      %3880 = vmatmul.bf16.gmra.mxu0 %v3772
      %v3881 = vpop.f32.mrf.mxu0
      %v3882 = vadd.f32 0.0, %v3881
      %v3883 = vpop.f32.mrf.mxu0
      %v3884 = vadd.f32 0.0, %v3883
      %3885 = vmatmul.bf16.gmra.mxu0 %v3773
      %v3886 = vpop.f32.mrf.mxu0
      %v3887 = vadd.f32 0.0, %v3886
      %v3888 = vpop.f32.mrf.mxu0
      %v3889 = vadd.f32 0.0, %v3888
      %3890 = vmatmul.bf16.gmra.mxu0 %v3774
      %v3891 = vpop.f32.mrf.mxu0
      %v3892 = vadd.f32 0.0, %v3891
      %v3893 = vpop.f32.mrf.mxu0
      %v3894 = vadd.f32 0.0, %v3893
      %3895 = vmatmul.bf16.gmra.mxu0 %v3775
      %v3896 = vpop.f32.mrf.mxu0
      %v3897 = vadd.f32 0.0, %v3896
      %v3898 = vpop.f32.mrf.mxu0
      %v3899 = vadd.f32 0.0, %v3898
      %3900 = vmatmul.bf16.gmra.mxu0 %v3776
      %v3901 = vpop.f32.mrf.mxu0
      %v3902 = vadd.f32 0.0, %v3901
      %v3903 = vpop.f32.mrf.mxu0
      %v3904 = vadd.f32 0.0, %v3903
      %3905 = vmatmul.bf16.gmra.mxu0 %v3777
      %v3906 = vpop.f32.mrf.mxu0
      %v3907 = vadd.f32 0.0, %v3906
      %v3908 = vpop.f32.mrf.mxu0
      %v3909 = vadd.f32 0.0, %v3908
      %3910 = vmatmul.bf16.gmra.mxu0 %v3778
      %v3911 = vpop.f32.mrf.mxu0
      %v3912 = vadd.f32 0.0, %v3911
      %v3913 = vpop.f32.mrf.mxu0
      %v3914 = vadd.f32 0.0, %v3913
      %3915 = vmatmul.bf16.gmra.mxu0 %v3779
      %v3916 = vpop.f32.mrf.mxu0
      %v3917 = vadd.f32 0.0, %v3916
      %v3918 = vpop.f32.mrf.mxu0
      %v3919 = vadd.f32 0.0, %v3918
      %3920 = vmatmul.bf16.gmra.mxu0 %v3780
      %v3921 = vpop.f32.mrf.mxu0
      %v3922 = vadd.f32 0.0, %v3921
      %v3923 = vpop.f32.mrf.mxu0
      %v3924 = vadd.f32 0.0, %v3923
      %3925 = vmatmul.bf16.gmra.mxu0 %v3781
      %v3926 = vpop.f32.mrf.mxu0
      %v3927 = vadd.f32 0.0, %v3926
      %v3928 = vpop.f32.mrf.mxu0
      %v3929 = vadd.f32 0.0, %v3928
      %3930 = vmatmul.bf16.gmra.mxu0 %v3782
      %v3931 = vpop.f32.mrf.mxu0
      %v3932 = vadd.f32 0.0, %v3931
      %v3933 = vpop.f32.mrf.mxu0
      %v3934 = vadd.f32 0.0, %v3933
      %3935 = vdwg.mxu0
      %v3936 = vadd.f32 %v3621, %v3857
      %v3937 = vadd.f32 %v3622, %v3859
      %v3938 = vadd.f32 %v3623, %v3862
      %v3939 = vadd.f32 %v3624, %v3864
      %v3940 = vadd.f32 %v3625, %v3867
      %v3941 = vadd.f32 %v3626, %v3869
      %v3942 = vadd.f32 %v3627, %v3872
      %v3943 = vadd.f32 %v3628, %v3874
      %v3944 = vadd.f32 %v3629, %v3877
      %v3945 = vadd.f32 %v3630, %v3879
      %v3946 = vadd.f32 %v3631, %v3882
      %v3947 = vadd.f32 %v3632, %v3884
      %v3948 = vadd.f32 %v3633, %v3887
      %v3949 = vadd.f32 %v3634, %v3889
      %v3950 = vadd.f32 %v3635, %v3892
      %v3951 = vadd.f32 %v3636, %v3894
      %v3952 = vadd.f32 %v3637, %v3897
      %v3953 = vadd.f32 %v3638, %v3899
      %v3954 = vadd.f32 %v3639, %v3902
      %v3955 = vadd.f32 %v3640, %v3904
      %v3956 = vadd.f32 %v3641, %v3907
      %v3957 = vadd.f32 %v3642, %v3909
      %v3958 = vadd.f32 %v3643, %v3912
      %v3959 = vadd.f32 %v3644, %v3914
      %v3960 = vadd.f32 %v3645, %v3917
      %v3961 = vadd.f32 %v3646, %v3919
      %v3962 = vadd.f32 %v3647, %v3922
      %v3963 = vadd.f32 %v3648, %v3924
      %v3964 = vadd.f32 %v3649, %v3927
      %v3965 = vadd.f32 %v3650, %v3929
      %v3966 = vadd.f32 %v3651, %v3932
      %v3967 = vadd.f32 %v3652, %v3934
      %v3968 = vld [vmem:[%s3653] sm:$0xf]
      %v3969 = vld [vmem:[%s3653 + $0x4] sm:$0xf]
      %v3970 = vld [vmem:[%s3653 + $0x8] sm:$0x1]
      %v3971 = vld [vmem:[%s3653 + $0xc] sm:$0xf]
      %v3972 = vld [vmem:[%s3653 + $0x10] sm:$0xf]
      %v3973 = vld [vmem:[%s3653 + $0x14] sm:$0x1]
      %v3974 = vld [vmem:[%s3653 + $0x18] sm:$0xf]
      %v3975 = vld [vmem:[%s3653 + $0x1c] sm:$0xf]
      %v3976 = vld [vmem:[%s3653 + $0x20] sm:$0x1]
      %v3977 = vld [vmem:[%s3653 + $0x24] sm:$0xf]
      %v3978 = vld [vmem:[%s3653 + $0x28] sm:$0xf]
      %v3979 = vld [vmem:[%s3653 + $0x2c] sm:$0x1]
      %v3980 = vld [vmem:[%s3653 + $0x30] sm:$0xf]
      %v3981 = vld [vmem:[%s3653 + $0x34] sm:$0xf]
      %v3982 = vld [vmem:[%s3653 + $0x38] sm:$0x1]
      %v3983 = vld [vmem:[%s3653 + $0x3c] sm:$0xf]
      %v3984 = vld [vmem:[%s3653 + $0x40] sm:$0xf]
      %v3985 = vld [vmem:[%s3653 + $0x44] sm:$0x1]
      %v3986 = vld [vmem:[%s3653 + $0x48] sm:$0xf]
      %v3987 = vld [vmem:[%s3653 + $0x4c] sm:$0xf]
      %v3988 = vld [vmem:[%s3653 + $0x50] sm:$0x1]
      %v3989 = vld [vmem:[%s3653 + $0x54] sm:$0xf]
      %v3990 = vld [vmem:[%s3653 + $0x58] sm:$0xf]
      %v3991 = vld [vmem:[%s3653 + $0x5c] sm:$0x1]
      %v3992 = vld [vmem:[%s3653 + $0x60] sm:$0xf]
      %v3993 = vld [vmem:[%s3653 + $0x64] sm:$0xf]
      %v3994 = vld [vmem:[%s3653 + $0x68] sm:$0x1]
      %v3995 = vld [vmem:[%s3653 + $0x6c] sm:$0xf]
      %v3996 = vld [vmem:[%s3653 + $0x70] sm:$0xf]
      %v3997 = vld [vmem:[%s3653 + $0x74] sm:$0x1]
      %v3998 = vld [vmem:[%s3653 + $0x78] sm:$0xf]
      %v3999 = vld [vmem:[%s3653 + $0x7c] sm:$0xf]
      %v4000 = vld [vmem:[%s3653 + $0x80] sm:$0x1]
      %v4001 = vld [vmem:[%s3653 + $0x84] sm:$0xf]
      %v4002 = vld [vmem:[%s3653 + $0x88] sm:$0xf]
      %v4003 = vld [vmem:[%s3653 + $0x8c] sm:$0x1]
      %v4004 = vld [vmem:[%s3653 + $0x90] sm:$0xf]
      %v4005 = vld [vmem:[%s3653 + $0x94] sm:$0xf]
      %v4006 = vld [vmem:[%s3653 + $0x98] sm:$0x1]
      %v4007 = vld [vmem:[%s3653 + $0x9c] sm:$0xf]
      %v4008 = vld [vmem:[%s3653 + $0xa0] sm:$0xf]
      %v4009 = vld [vmem:[%s3653 + $0xa4] sm:$0x1]
      %v4010 = vld [vmem:[%s3653 + $0xa8] sm:$0xf]
      %v4011 = vld [vmem:[%s3653 + $0xac] sm:$0xf]
      %v4012 = vld [vmem:[%s3653 + $0xb0] sm:$0x1]
      %v4013 = vld [vmem:[%s3653 + $0xb4] sm:$0xf]
      %v4014 = vld [vmem:[%s3653 + $0xb8] sm:$0xf]
      %v4015 = vld [vmem:[%s3653 + $0xbc] sm:$0x1]
      %v4017 = vshrl.u32 %v3968, 16
      %v4019 = vrot.slane %v4017, 4
      %v4020 = vshll.u32 %v3968, 16
      %v4022 = vrot.slane %v4020, 5
      %v4023 = vor.u32 %v4019, %v4022
      %v4024 = vrot.slane %v4023, 4
      %v4026 = vshll.u32 %v3969, 16
      %v4028 = vrot.slane %v4026, 5
      %v4029 = vsel %vm982, %v4024, %v4028
      %v4030 = vshrl.u32 %v3969, 16
      %v4032 = vrot.slane %v4030, 4
      %v4033 = vor.u32 %v4032, %v4028
      %v4034 = vrot.slane %v4033, 4
      %v4036 = vshll.u32 %v3970, 16
      %v4038 = vrot.slane %v4036, 5
      %v4039 = vsel %vm982, %v4034, %v4038
      %v4041 = vshrl.u32 %v3971, 16
      %v4043 = vrot.slane %v4041, 4
      %v4044 = vshll.u32 %v3971, 16
      %v4046 = vrot.slane %v4044, 5
      %v4047 = vor.u32 %v4043, %v4046
      %v4048 = vrot.slane %v4047, 4
      %v4050 = vshll.u32 %v3972, 16
      %v4052 = vrot.slane %v4050, 5
      %v4053 = vsel %vm982, %v4048, %v4052
      %v4054 = vshrl.u32 %v3972, 16
      %v4056 = vrot.slane %v4054, 4
      %v4057 = vor.u32 %v4056, %v4052
      %v4058 = vrot.slane %v4057, 4
      %v4060 = vshll.u32 %v3973, 16
      %v4062 = vrot.slane %v4060, 5
      %v4063 = vsel %vm982, %v4058, %v4062
      %v4065 = vshrl.u32 %v3974, 16
      %v4067 = vrot.slane %v4065, 4
      %v4068 = vshll.u32 %v3974, 16
      %v4070 = vrot.slane %v4068, 5
      %v4071 = vor.u32 %v4067, %v4070
      %v4072 = vrot.slane %v4071, 4
      %v4074 = vshll.u32 %v3975, 16
      %v4076 = vrot.slane %v4074, 5
      %v4077 = vsel %vm982, %v4072, %v4076
      %v4078 = vshrl.u32 %v3975, 16
      %v4080 = vrot.slane %v4078, 4
      %v4081 = vor.u32 %v4080, %v4076
      %v4082 = vrot.slane %v4081, 4
      %v4084 = vshll.u32 %v3976, 16
      %v4086 = vrot.slane %v4084, 5
      %v4087 = vsel %vm982, %v4082, %v4086
      %v4089 = vshrl.u32 %v3977, 16
      %v4091 = vrot.slane %v4089, 4
      %v4092 = vshll.u32 %v3977, 16
      %v4094 = vrot.slane %v4092, 5
      %v4095 = vor.u32 %v4091, %v4094
      %v4096 = vrot.slane %v4095, 4
      %v4098 = vshll.u32 %v3978, 16
      %v4100 = vrot.slane %v4098, 5
      %v4101 = vsel %vm982, %v4096, %v4100
      %v4102 = vshrl.u32 %v3978, 16
      %v4104 = vrot.slane %v4102, 4
      %v4105 = vor.u32 %v4104, %v4100
      %v4106 = vrot.slane %v4105, 4
      %v4108 = vshll.u32 %v3979, 16
      %v4110 = vrot.slane %v4108, 5
      %v4111 = vsel %vm982, %v4106, %v4110
      %v4113 = vshrl.u32 %v3980, 16
      %v4115 = vrot.slane %v4113, 4
      %v4116 = vshll.u32 %v3980, 16
      %v4118 = vrot.slane %v4116, 5
      %v4119 = vor.u32 %v4115, %v4118
      %v4120 = vrot.slane %v4119, 4
      %v4122 = vshll.u32 %v3981, 16
      %v4124 = vrot.slane %v4122, 5
      %v4125 = vsel %vm982, %v4120, %v4124
      %v4126 = vshrl.u32 %v3981, 16
      %v4128 = vrot.slane %v4126, 4
      %v4129 = vor.u32 %v4128, %v4124
      %v4130 = vrot.slane %v4129, 4
      %v4132 = vshll.u32 %v3982, 16
      %v4134 = vrot.slane %v4132, 5
      %v4135 = vsel %vm982, %v4130, %v4134
      %v4137 = vshrl.u32 %v3983, 16
      %v4139 = vrot.slane %v4137, 4
      %v4140 = vshll.u32 %v3983, 16
      %v4142 = vrot.slane %v4140, 5
      %v4143 = vor.u32 %v4139, %v4142
      %v4144 = vrot.slane %v4143, 4
      %v4146 = vshll.u32 %v3984, 16
      %v4148 = vrot.slane %v4146, 5
      %v4149 = vsel %vm982, %v4144, %v4148
      %v4150 = vshrl.u32 %v3984, 16
      %v4152 = vrot.slane %v4150, 4
      %v4153 = vor.u32 %v4152, %v4148
      %v4154 = vrot.slane %v4153, 4
      %v4156 = vshll.u32 %v3985, 16
      %v4158 = vrot.slane %v4156, 5
      %v4159 = vsel %vm982, %v4154, %v4158
      %v4161 = vshrl.u32 %v3986, 16
      %v4163 = vrot.slane %v4161, 4
      %v4164 = vshll.u32 %v3986, 16
      %v4166 = vrot.slane %v4164, 5
      %v4167 = vor.u32 %v4163, %v4166
      %v4168 = vrot.slane %v4167, 4
      %v4170 = vshll.u32 %v3987, 16
      %v4172 = vrot.slane %v4170, 5
      %v4173 = vsel %vm982, %v4168, %v4172
      %v4174 = vshrl.u32 %v3987, 16
      %v4176 = vrot.slane %v4174, 4
      %v4177 = vor.u32 %v4176, %v4172
      %v4178 = vrot.slane %v4177, 4
      %v4180 = vshll.u32 %v3988, 16
      %v4182 = vrot.slane %v4180, 5
      %v4183 = vsel %vm982, %v4178, %v4182
      %v4185 = vshrl.u32 %v3989, 16
      %v4187 = vrot.slane %v4185, 4
      %v4188 = vshll.u32 %v3989, 16
      %v4190 = vrot.slane %v4188, 5
      %v4191 = vor.u32 %v4187, %v4190
      %v4192 = vrot.slane %v4191, 4
      %v4194 = vshll.u32 %v3990, 16
      %v4196 = vrot.slane %v4194, 5
      %v4197 = vsel %vm982, %v4192, %v4196
      %v4198 = vshrl.u32 %v3990, 16
      %v4200 = vrot.slane %v4198, 4
      %v4201 = vor.u32 %v4200, %v4196
      %v4202 = vrot.slane %v4201, 4
      %v4204 = vshll.u32 %v3991, 16
      %v4206 = vrot.slane %v4204, 5
      %v4207 = vsel %vm982, %v4202, %v4206
      %v4209 = vshrl.u32 %v3992, 16
      %v4211 = vrot.slane %v4209, 4
      %v4212 = vshll.u32 %v3992, 16
      %v4214 = vrot.slane %v4212, 5
      %v4215 = vor.u32 %v4211, %v4214
      %v4216 = vrot.slane %v4215, 4
      %v4218 = vshll.u32 %v3993, 16
      %v4220 = vrot.slane %v4218, 5
      %v4221 = vsel %vm982, %v4216, %v4220
      %v4222 = vshrl.u32 %v3993, 16
      %v4224 = vrot.slane %v4222, 4
      %v4225 = vor.u32 %v4224, %v4220
      %v4226 = vrot.slane %v4225, 4
      %v4228 = vshll.u32 %v3994, 16
      %v4230 = vrot.slane %v4228, 5
      %v4231 = vsel %vm982, %v4226, %v4230
      %v4233 = vshrl.u32 %v3995, 16
      %v4235 = vrot.slane %v4233, 4
      %v4236 = vshll.u32 %v3995, 16
      %v4238 = vrot.slane %v4236, 5
      %v4239 = vor.u32 %v4235, %v4238
      %v4240 = vrot.slane %v4239, 4
      %v4242 = vshll.u32 %v3996, 16
      %v4244 = vrot.slane %v4242, 5
      %v4245 = vsel %vm982, %v4240, %v4244
      %v4246 = vshrl.u32 %v3996, 16
      %v4248 = vrot.slane %v4246, 4
      %v4249 = vor.u32 %v4248, %v4244
      %v4250 = vrot.slane %v4249, 4
      %v4252 = vshll.u32 %v3997, 16
      %v4254 = vrot.slane %v4252, 5
      %v4255 = vsel %vm982, %v4250, %v4254
      %v4257 = vshrl.u32 %v3998, 16
      %v4259 = vrot.slane %v4257, 4
      %v4260 = vshll.u32 %v3998, 16
      %v4262 = vrot.slane %v4260, 5
      %v4263 = vor.u32 %v4259, %v4262
      %v4264 = vrot.slane %v4263, 4
      %v4266 = vshll.u32 %v3999, 16
      %v4268 = vrot.slane %v4266, 5
      %v4269 = vsel %vm982, %v4264, %v4268
      %v4270 = vshrl.u32 %v3999, 16
      %v4272 = vrot.slane %v4270, 4
      %v4273 = vor.u32 %v4272, %v4268
      %v4274 = vrot.slane %v4273, 4
      %v4276 = vshll.u32 %v4000, 16
      %v4278 = vrot.slane %v4276, 5
      %v4279 = vsel %vm982, %v4274, %v4278
      %v4281 = vshrl.u32 %v4001, 16
      %v4283 = vrot.slane %v4281, 4
      %v4284 = vshll.u32 %v4001, 16
      %v4286 = vrot.slane %v4284, 5
      %v4287 = vor.u32 %v4283, %v4286
      %v4288 = vrot.slane %v4287, 4
      %v4290 = vshll.u32 %v4002, 16
      %v4292 = vrot.slane %v4290, 5
      %v4293 = vsel %vm982, %v4288, %v4292
      %v4294 = vshrl.u32 %v4002, 16
      %v4296 = vrot.slane %v4294, 4
      %v4297 = vor.u32 %v4296, %v4292
      %v4298 = vrot.slane %v4297, 4
      %v4300 = vshll.u32 %v4003, 16
      %v4302 = vrot.slane %v4300, 5
      %v4303 = vsel %vm982, %v4298, %v4302
      %v4305 = vshrl.u32 %v4004, 16
      %v4307 = vrot.slane %v4305, 4
      %v4308 = vshll.u32 %v4004, 16
      %v4310 = vrot.slane %v4308, 5
      %v4311 = vor.u32 %v4307, %v4310
      %v4312 = vrot.slane %v4311, 4
      %v4314 = vshll.u32 %v4005, 16
      %v4316 = vrot.slane %v4314, 5
      %v4317 = vsel %vm982, %v4312, %v4316
      %v4318 = vshrl.u32 %v4005, 16
      %v4320 = vrot.slane %v4318, 4
      %v4321 = vor.u32 %v4320, %v4316
      %v4322 = vrot.slane %v4321, 4
      %v4324 = vshll.u32 %v4006, 16
      %v4326 = vrot.slane %v4324, 5
      %v4327 = vsel %vm982, %v4322, %v4326
      %v4329 = vshrl.u32 %v4007, 16
      %v4331 = vrot.slane %v4329, 4
      %v4332 = vshll.u32 %v4007, 16
      %v4334 = vrot.slane %v4332, 5
      %v4335 = vor.u32 %v4331, %v4334
      %v4336 = vrot.slane %v4335, 4
      %v4338 = vshll.u32 %v4008, 16
      %v4340 = vrot.slane %v4338, 5
      %v4341 = vsel %vm982, %v4336, %v4340
      %v4342 = vshrl.u32 %v4008, 16
      %v4344 = vrot.slane %v4342, 4
      %v4345 = vor.u32 %v4344, %v4340
      %v4346 = vrot.slane %v4345, 4
      %v4348 = vshll.u32 %v4009, 16
      %v4350 = vrot.slane %v4348, 5
      %v4351 = vsel %vm982, %v4346, %v4350
      %v4353 = vshrl.u32 %v4010, 16
      %v4355 = vrot.slane %v4353, 4
      %v4356 = vshll.u32 %v4010, 16
      %v4358 = vrot.slane %v4356, 5
      %v4359 = vor.u32 %v4355, %v4358
      %v4360 = vrot.slane %v4359, 4
      %v4362 = vshll.u32 %v4011, 16
      %v4364 = vrot.slane %v4362, 5
      %v4365 = vsel %vm982, %v4360, %v4364
      %v4366 = vshrl.u32 %v4011, 16
      %v4368 = vrot.slane %v4366, 4
      %v4369 = vor.u32 %v4368, %v4364
      %v4370 = vrot.slane %v4369, 4
      %v4372 = vshll.u32 %v4012, 16
      %v4374 = vrot.slane %v4372, 5
      %v4375 = vsel %vm982, %v4370, %v4374
      %v4377 = vshrl.u32 %v4013, 16
      %v4379 = vrot.slane %v4377, 4
      %v4380 = vshll.u32 %v4013, 16
      %v4382 = vrot.slane %v4380, 5
      %v4383 = vor.u32 %v4379, %v4382
      %v4384 = vrot.slane %v4383, 4
      %v4386 = vshll.u32 %v4014, 16
      %v4388 = vrot.slane %v4386, 5
      %v4389 = vsel %vm982, %v4384, %v4388
      %v4390 = vshrl.u32 %v4014, 16
      %v4392 = vrot.slane %v4390, 4
      %v4393 = vor.u32 %v4392, %v4388
      %v4394 = vrot.slane %v4393, 4
      %v4396 = vshll.u32 %v4015, 16
      %v4398 = vrot.slane %v4396, 5
      %v4399 = vsel %vm982, %v4394, %v4398
      %s4400 = scalar_lea.vmem %s3, 448
      %v4401 = vld [vmem:[%s4400] sm:$0xf]
      %v4402 = vld [vmem:[%s4400 + $0x4] sm:$0xf]
      %v4403 = vld [vmem:[%s4400 + $0x8] sm:$0xf]
      %v4404 = vld [vmem:[%s4400 + $0xc] sm:$0xf]
      %v4405 = vld [vmem:[%s4400 + $0x10] sm:$0xf]
      %v4406 = vld [vmem:[%s4400 + $0x14] sm:$0xf]
      %v4407 = vld [vmem:[%s4400 + $0x18] sm:$0xf]
      %v4408 = vld [vmem:[%s4400 + $0x1c] sm:$0xf]
      %v4409 = vld [vmem:[%s4400 + $0x20] sm:$0xf]
      %v4410 = vld [vmem:[%s4400 + $0x24] sm:$0xf]
      %v4411 = vld [vmem:[%s4400 + $0x28] sm:$0xf]
      %v4412 = vld [vmem:[%s4400 + $0x2c] sm:$0xf]
      %v4413 = vld [vmem:[%s4400 + $0x30] sm:$0xf]
      %v4414 = vld [vmem:[%s4400 + $0x34] sm:$0xf]
      %v4415 = vld [vmem:[%s4400 + $0x38] sm:$0xf]
      %v4416 = vld [vmem:[%s4400 + $0x3c] sm:$0xf]
      %v4417 = vunpack.c.l.b16 %v4029
      %v4418 = vunpack.c.l.b16 %v4039
      %v4419 = vunpack.c.l.b16 %v4053
      %v4420 = vunpack.c.l.b16 %v4063
      %v4421 = vunpack.c.l.b16 %v4077
      %v4422 = vunpack.c.l.b16 %v4087
      %v4423 = vunpack.c.l.b16 %v4101
      %v4424 = vunpack.c.l.b16 %v4111
      %v4425 = vunpack.c.l.b16 %v4125
      %v4426 = vunpack.c.l.b16 %v4135
      %v4427 = vunpack.c.l.b16 %v4149
      %v4428 = vunpack.c.l.b16 %v4159
      %v4429 = vunpack.c.l.b16 %v4173
      %v4430 = vunpack.c.l.b16 %v4183
      %v4431 = vunpack.c.l.b16 %v4197
      %v4432 = vunpack.c.l.b16 %v4207
      %v4433 = vunpack.c.l.b16 %v4221
      %v4434 = vunpack.c.l.b16 %v4231
      %v4435 = vunpack.c.l.b16 %v4245
      %v4436 = vunpack.c.l.b16 %v4255
      %v4437 = vunpack.c.l.b16 %v4269
      %v4438 = vunpack.c.l.b16 %v4279
      %v4439 = vunpack.c.l.b16 %v4293
      %v4440 = vunpack.c.l.b16 %v4303
      %v4441 = vunpack.c.l.b16 %v4317
      %v4442 = vunpack.c.l.b16 %v4327
      %v4443 = vunpack.c.l.b16 %v4341
      %v4444 = vunpack.c.l.b16 %v4351
      %v4445 = vunpack.c.l.b16 %v4365
      %v4446 = vunpack.c.l.b16 %v4375
      %v4447 = vunpack.c.l.b16 %v4389
      %v4448 = vunpack.c.l.b16 %v4399
      %v4449 = vpack.c.b16 %v4418, %v4417
      %v4450 = vpack.c.b16 %v4420, %v4419
      %v4451 = vpack.c.b16 %v4422, %v4421
      %v4452 = vpack.c.b16 %v4424, %v4423
      %v4453 = vpack.c.b16 %v4426, %v4425
      %v4454 = vpack.c.b16 %v4428, %v4427
      %v4455 = vpack.c.b16 %v4430, %v4429
      %v4456 = vpack.c.b16 %v4432, %v4431
      %v4457 = vpack.c.b16 %v4434, %v4433
      %v4458 = vpack.c.b16 %v4436, %v4435
      %v4459 = vpack.c.b16 %v4438, %v4437
      %v4460 = vpack.c.b16 %v4440, %v4439
      %v4461 = vpack.c.b16 %v4442, %v4441
      %v4462 = vpack.c.b16 %v4444, %v4443
      %v4463 = vpack.c.b16 %v4446, %v4445
      %v4464 = vpack.c.b16 %v4448, %v4447
      %v4497 = vunpack.c.l.b16 %v4401
      %v4498 = vunpack.c.l.b16 %v4402
      %v4499 = vunpack.c.l.b16 %v4403
      %v4500 = vunpack.c.l.b16 %v4404
      %v4501 = vunpack.c.l.b16 %v4405
      %v4502 = vunpack.c.l.b16 %v4406
      %v4503 = vunpack.c.l.b16 %v4407
      %v4504 = vunpack.c.l.b16 %v4408
      %v4505 = vunpack.c.l.b16 %v4409
      %v4506 = vunpack.c.l.b16 %v4410
      %v4507 = vunpack.c.l.b16 %v4411
      %v4508 = vunpack.c.l.b16 %v4412
      %v4509 = vunpack.c.l.b16 %v4413
      %v4510 = vunpack.c.l.b16 %v4414
      %v4511 = vunpack.c.l.b16 %v4415
      %v4512 = vunpack.c.l.b16 %v4416
      %v4513 = vpack.c.b16 %v4498, %v4497
      %v4514 = vpack.c.b16 %v4500, %v4499
      %v4515 = vpack.c.b16 %v4502, %v4501
      %v4516 = vpack.c.b16 %v4504, %v4503
      %v4517 = vpack.c.b16 %v4506, %v4505
      %v4518 = vpack.c.b16 %v4508, %v4507
      %v4519 = vpack.c.b16 %v4510, %v4509
      %v4520 = vpack.c.b16 %v4512, %v4511
      %4529 = vmatpush.bf16.msra.mxu0 %v4520
      %4530 = vmatpush.bf16.msra.mxu0 %v4519
      %4531 = vmatpush.bf16.msra.mxu0 %v4518
      %4532 = vmatpush.bf16.msra.mxu0 %v4517
      %4533 = vmatpush.bf16.msra.mxu0 %v4516
      %4534 = vmatpush.bf16.msra.mxu0 %v4515
      %4535 = vmatpush.bf16.msra.mxu0 %v4514
      %4536 = vmatpush.bf16.msra.mxu0 %v4513
      %4537 = vmatmul.bf16.gmra.mxu0 %v4449
      %v4538 = vpop.f32.mrf.mxu0
      %v4539 = vadd.f32 0.0, %v4538
      %v4540 = vpop.f32.mrf.mxu0
      %v4541 = vadd.f32 0.0, %v4540
      %4542 = vmatmul.bf16.gmra.mxu0 %v4450
      %v4543 = vpop.f32.mrf.mxu0
      %v4544 = vadd.f32 0.0, %v4543
      %v4545 = vpop.f32.mrf.mxu0
      %v4546 = vadd.f32 0.0, %v4545
      %4547 = vmatmul.bf16.gmra.mxu0 %v4451
      %v4548 = vpop.f32.mrf.mxu0
      %v4549 = vadd.f32 0.0, %v4548
      %v4550 = vpop.f32.mrf.mxu0
      %v4551 = vadd.f32 0.0, %v4550
      %4552 = vmatmul.bf16.gmra.mxu0 %v4452
      %v4553 = vpop.f32.mrf.mxu0
      %v4554 = vadd.f32 0.0, %v4553
      %v4555 = vpop.f32.mrf.mxu0
      %v4556 = vadd.f32 0.0, %v4555
      %4557 = vmatmul.bf16.gmra.mxu0 %v4453
      %v4558 = vpop.f32.mrf.mxu0
      %v4559 = vadd.f32 0.0, %v4558
      %v4560 = vpop.f32.mrf.mxu0
      %v4561 = vadd.f32 0.0, %v4560
      %4562 = vmatmul.bf16.gmra.mxu0 %v4454
      %v4563 = vpop.f32.mrf.mxu0
      %v4564 = vadd.f32 0.0, %v4563
      %v4565 = vpop.f32.mrf.mxu0
      %v4566 = vadd.f32 0.0, %v4565
      %4567 = vmatmul.bf16.gmra.mxu0 %v4455
      %v4568 = vpop.f32.mrf.mxu0
      %v4569 = vadd.f32 0.0, %v4568
      %v4570 = vpop.f32.mrf.mxu0
      %v4571 = vadd.f32 0.0, %v4570
      %4572 = vmatmul.bf16.gmra.mxu0 %v4456
      %v4573 = vpop.f32.mrf.mxu0
      %v4574 = vadd.f32 0.0, %v4573
      %v4575 = vpop.f32.mrf.mxu0
      %v4576 = vadd.f32 0.0, %v4575
      %4577 = vmatmul.bf16.gmra.mxu0 %v4457
      %v4578 = vpop.f32.mrf.mxu0
      %v4579 = vadd.f32 0.0, %v4578
      %v4580 = vpop.f32.mrf.mxu0
      %v4581 = vadd.f32 0.0, %v4580
      %4582 = vmatmul.bf16.gmra.mxu0 %v4458
      %v4583 = vpop.f32.mrf.mxu0
      %v4584 = vadd.f32 0.0, %v4583
      %v4585 = vpop.f32.mrf.mxu0
      %v4586 = vadd.f32 0.0, %v4585
      %4587 = vmatmul.bf16.gmra.mxu0 %v4459
      %v4588 = vpop.f32.mrf.mxu0
      %v4589 = vadd.f32 0.0, %v4588
      %v4590 = vpop.f32.mrf.mxu0
      %v4591 = vadd.f32 0.0, %v4590
      %4592 = vmatmul.bf16.gmra.mxu0 %v4460
      %v4593 = vpop.f32.mrf.mxu0
      %v4594 = vadd.f32 0.0, %v4593
      %v4595 = vpop.f32.mrf.mxu0
      %v4596 = vadd.f32 0.0, %v4595
      %4597 = vmatmul.bf16.gmra.mxu0 %v4461
      %v4598 = vpop.f32.mrf.mxu0
      %v4599 = vadd.f32 0.0, %v4598
      %v4600 = vpop.f32.mrf.mxu0
      %v4601 = vadd.f32 0.0, %v4600
      %4602 = vmatmul.bf16.gmra.mxu0 %v4462
      %v4603 = vpop.f32.mrf.mxu0
      %v4604 = vadd.f32 0.0, %v4603
      %v4605 = vpop.f32.mrf.mxu0
      %v4606 = vadd.f32 0.0, %v4605
      %4607 = vmatmul.bf16.gmra.mxu0 %v4463
      %v4608 = vpop.f32.mrf.mxu0
      %v4609 = vadd.f32 0.0, %v4608
      %v4610 = vpop.f32.mrf.mxu0
      %v4611 = vadd.f32 0.0, %v4610
      %4612 = vmatmul.bf16.gmra.mxu0 %v4464
      %v4613 = vpop.f32.mrf.mxu0
      %v4614 = vadd.f32 0.0, %v4613
      %v4615 = vpop.f32.mrf.mxu0
      %v4616 = vadd.f32 0.0, %v4615
      %4617 = vdwg.mxu0
      %v4618 = vadd.f32 %v3936, %v4539
      %v4619 = vadd.f32 %v3937, %v4541
      %v4620 = vadd.f32 %v3938, %v4544
      %v4621 = vadd.f32 %v3939, %v4546
      %v4622 = vadd.f32 %v3940, %v4549
      %v4623 = vadd.f32 %v3941, %v4551
      %v4624 = vadd.f32 %v3942, %v4554
      %v4625 = vadd.f32 %v3943, %v4556
      %v4626 = vadd.f32 %v3944, %v4559
      %v4627 = vadd.f32 %v3945, %v4561
      %v4628 = vadd.f32 %v3946, %v4564
      %v4629 = vadd.f32 %v3947, %v4566
      %v4630 = vadd.f32 %v3948, %v4569
      %v4631 = vadd.f32 %v3949, %v4571
      %v4632 = vadd.f32 %v3950, %v4574
      %v4633 = vadd.f32 %v3951, %v4576
      %v4634 = vadd.f32 %v3952, %v4579
      %v4635 = vadd.f32 %v3953, %v4581
      %v4636 = vadd.f32 %v3954, %v4584
      %v4637 = vadd.f32 %v3955, %v4586
      %v4638 = vadd.f32 %v3956, %v4589
      %v4639 = vadd.f32 %v3957, %v4591
      %v4640 = vadd.f32 %v3958, %v4594
      %v4641 = vadd.f32 %v3959, %v4596
      %v4642 = vadd.f32 %v3960, %v4599
      %v4643 = vadd.f32 %v3961, %v4601
      %v4644 = vadd.f32 %v3962, %v4604
      %v4645 = vadd.f32 %v3963, %v4606
      %v4646 = vadd.f32 %v3964, %v4609
      %v4647 = vadd.f32 %v3965, %v4611
      %v4648 = vadd.f32 %v3966, %v4614
      %v4649 = vadd.f32 %v3967, %v4616
      %v4650 = vld [vmem:[%s3653] sm:$0xe]
      %v4651 = vld [vmem:[%s3653 + $0xc] sm:$0xe]
      %v4652 = vld [vmem:[%s3653 + $0x18] sm:$0xe]
      %v4653 = vld [vmem:[%s3653 + $0x24] sm:$0xe]
      %v4654 = vld [vmem:[%s3653 + $0x30] sm:$0xe]
      %v4655 = vld [vmem:[%s3653 + $0x3c] sm:$0xe]
      %v4656 = vld [vmem:[%s3653 + $0x48] sm:$0xe]
      %v4657 = vld [vmem:[%s3653 + $0x54] sm:$0xe]
      %v4658 = vld [vmem:[%s3653 + $0x60] sm:$0xe]
      %v4659 = vld [vmem:[%s3653 + $0x6c] sm:$0xe]
      %v4660 = vld [vmem:[%s3653 + $0x78] sm:$0xe]
      %v4661 = vld [vmem:[%s3653 + $0x84] sm:$0xe]
      %v4662 = vld [vmem:[%s3653 + $0x90] sm:$0xe]
      %v4663 = vld [vmem:[%s3653 + $0x9c] sm:$0xe]
      %v4664 = vld [vmem:[%s3653 + $0xa8] sm:$0xe]
      %v4665 = vld [vmem:[%s3653 + $0xb4] sm:$0xe]
      %v4714 = vrot.slane %v4650, 5
      %v4715 = vrot.slane %v4714, 4
      %v4716 = vrot.slane %v3969, 5
      %v4717 = vsel %vm1868, %v4715, %v4716
      %v4718 = vrot.slane %v4716, 4
      %v4719 = vrot.slane %v3970, 5
      %v4720 = vsel %vm1868, %v4718, %v4719
      %v4721 = vrot.slane %v4651, 5
      %v4722 = vrot.slane %v4721, 4
      %v4723 = vrot.slane %v3972, 5
      %v4724 = vsel %vm1868, %v4722, %v4723
      %v4725 = vrot.slane %v4723, 4
      %v4726 = vrot.slane %v3973, 5
      %v4727 = vsel %vm1868, %v4725, %v4726
      %v4728 = vrot.slane %v4652, 5
      %v4729 = vrot.slane %v4728, 4
      %v4730 = vrot.slane %v3975, 5
      %v4731 = vsel %vm1868, %v4729, %v4730
      %v4732 = vrot.slane %v4730, 4
      %v4733 = vrot.slane %v3976, 5
      %v4734 = vsel %vm1868, %v4732, %v4733
      %v4735 = vrot.slane %v4653, 5
      %v4736 = vrot.slane %v4735, 4
      %v4737 = vrot.slane %v3978, 5
      %v4738 = vsel %vm1868, %v4736, %v4737
      %v4739 = vrot.slane %v4737, 4
      %v4740 = vrot.slane %v3979, 5
      %v4741 = vsel %vm1868, %v4739, %v4740
      %v4742 = vrot.slane %v4654, 5
      %v4743 = vrot.slane %v4742, 4
      %v4744 = vrot.slane %v3981, 5
      %v4745 = vsel %vm1868, %v4743, %v4744
      %v4746 = vrot.slane %v4744, 4
      %v4747 = vrot.slane %v3982, 5
      %v4748 = vsel %vm1868, %v4746, %v4747
      %v4749 = vrot.slane %v4655, 5
      %v4750 = vrot.slane %v4749, 4
      %v4751 = vrot.slane %v3984, 5
      %v4752 = vsel %vm1868, %v4750, %v4751
      %v4753 = vrot.slane %v4751, 4
      %v4754 = vrot.slane %v3985, 5
      %v4755 = vsel %vm1868, %v4753, %v4754
      %v4756 = vrot.slane %v4656, 5
      %v4757 = vrot.slane %v4756, 4
      %v4758 = vrot.slane %v3987, 5
      %v4759 = vsel %vm1868, %v4757, %v4758
      %v4760 = vrot.slane %v4758, 4
      %v4761 = vrot.slane %v3988, 5
      %v4762 = vsel %vm1868, %v4760, %v4761
      %v4763 = vrot.slane %v4657, 5
      %v4764 = vrot.slane %v4763, 4
      %v4765 = vrot.slane %v3990, 5
      %v4766 = vsel %vm1868, %v4764, %v4765
      %v4767 = vrot.slane %v4765, 4
      %v4768 = vrot.slane %v3991, 5
      %v4769 = vsel %vm1868, %v4767, %v4768
      %v4770 = vrot.slane %v4658, 5
      %v4771 = vrot.slane %v4770, 4
      %v4772 = vrot.slane %v3993, 5
      %v4773 = vsel %vm1868, %v4771, %v4772
      %v4774 = vrot.slane %v4772, 4
      %v4775 = vrot.slane %v3994, 5
      %v4776 = vsel %vm1868, %v4774, %v4775
      %v4777 = vrot.slane %v4659, 5
      %v4778 = vrot.slane %v4777, 4
      %v4779 = vrot.slane %v3996, 5
      %v4780 = vsel %vm1868, %v4778, %v4779
      %v4781 = vrot.slane %v4779, 4
      %v4782 = vrot.slane %v3997, 5
      %v4783 = vsel %vm1868, %v4781, %v4782
      %v4784 = vrot.slane %v4660, 5
      %v4785 = vrot.slane %v4784, 4
      %v4786 = vrot.slane %v3999, 5
      %v4787 = vsel %vm1868, %v4785, %v4786
      %v4788 = vrot.slane %v4786, 4
      %v4789 = vrot.slane %v4000, 5
      %v4790 = vsel %vm1868, %v4788, %v4789
      %v4791 = vrot.slane %v4661, 5
      %v4792 = vrot.slane %v4791, 4
      %v4793 = vrot.slane %v4002, 5
      %v4794 = vsel %vm1868, %v4792, %v4793
      %v4795 = vrot.slane %v4793, 4
      %v4796 = vrot.slane %v4003, 5
      %v4797 = vsel %vm1868, %v4795, %v4796
      %v4798 = vrot.slane %v4662, 5
      %v4799 = vrot.slane %v4798, 4
      %v4800 = vrot.slane %v4005, 5
      %v4801 = vsel %vm1868, %v4799, %v4800
      %v4802 = vrot.slane %v4800, 4
      %v4803 = vrot.slane %v4006, 5
      %v4804 = vsel %vm1868, %v4802, %v4803
      %v4805 = vrot.slane %v4663, 5
      %v4806 = vrot.slane %v4805, 4
      %v4807 = vrot.slane %v4008, 5
      %v4808 = vsel %vm1868, %v4806, %v4807
      %v4809 = vrot.slane %v4807, 4
      %v4810 = vrot.slane %v4009, 5
      %v4811 = vsel %vm1868, %v4809, %v4810
      %v4812 = vrot.slane %v4664, 5
      %v4813 = vrot.slane %v4812, 4
      %v4814 = vrot.slane %v4011, 5
      %v4815 = vsel %vm1868, %v4813, %v4814
      %v4816 = vrot.slane %v4814, 4
      %v4817 = vrot.slane %v4012, 5
      %v4818 = vsel %vm1868, %v4816, %v4817
      %v4819 = vrot.slane %v4665, 5
      %v4820 = vrot.slane %v4819, 4
      %v4821 = vrot.slane %v4014, 5
      %v4822 = vsel %vm1868, %v4820, %v4821
      %v4823 = vrot.slane %v4821, 4
      %v4824 = vrot.slane %v4015, 5
      %v4825 = vsel %vm1868, %v4823, %v4824
      %s4826 = scalar_lea.vmem %s3, 512
      %v4827 = vld [vmem:[%s4826] sm:$0xf]
      %v4828 = vld [vmem:[%s4826 + $0x4] sm:$0xf]
      %v4829 = vld [vmem:[%s4826 + $0x8] sm:$0xf]
      %v4830 = vld [vmem:[%s4826 + $0xc] sm:$0xf]
      %v4831 = vld [vmem:[%s4826 + $0x10] sm:$0xf]
      %v4832 = vld [vmem:[%s4826 + $0x14] sm:$0xf]
      %v4833 = vld [vmem:[%s4826 + $0x18] sm:$0xf]
      %v4834 = vld [vmem:[%s4826 + $0x1c] sm:$0xf]
      %v4835 = vld [vmem:[%s4826 + $0x20] sm:$0xf]
      %v4836 = vld [vmem:[%s4826 + $0x24] sm:$0xf]
      %v4837 = vld [vmem:[%s4826 + $0x28] sm:$0xf]
      %v4838 = vld [vmem:[%s4826 + $0x2c] sm:$0xf]
      %v4839 = vld [vmem:[%s4826 + $0x30] sm:$0xf]
      %v4840 = vld [vmem:[%s4826 + $0x34] sm:$0xf]
      %v4841 = vld [vmem:[%s4826 + $0x38] sm:$0xf]
      %v4842 = vld [vmem:[%s4826 + $0x3c] sm:$0xf]
      %v4843 = vunpack.c.l.b16 %v4717
      %v4844 = vunpack.c.l.b16 %v4720
      %v4845 = vunpack.c.l.b16 %v4724
      %v4846 = vunpack.c.l.b16 %v4727
      %v4847 = vunpack.c.l.b16 %v4731
      %v4848 = vunpack.c.l.b16 %v4734
      %v4849 = vunpack.c.l.b16 %v4738
      %v4850 = vunpack.c.l.b16 %v4741
      %v4851 = vunpack.c.l.b16 %v4745
      %v4852 = vunpack.c.l.b16 %v4748
      %v4853 = vunpack.c.l.b16 %v4752
      %v4854 = vunpack.c.l.b16 %v4755
      %v4855 = vunpack.c.l.b16 %v4759
      %v4856 = vunpack.c.l.b16 %v4762
      %v4857 = vunpack.c.l.b16 %v4766
      %v4858 = vunpack.c.l.b16 %v4769
      %v4859 = vunpack.c.l.b16 %v4773
      %v4860 = vunpack.c.l.b16 %v4776
      %v4861 = vunpack.c.l.b16 %v4780
      %v4862 = vunpack.c.l.b16 %v4783
      %v4863 = vunpack.c.l.b16 %v4787
      %v4864 = vunpack.c.l.b16 %v4790
      %v4865 = vunpack.c.l.b16 %v4794
      %v4866 = vunpack.c.l.b16 %v4797
      %v4867 = vunpack.c.l.b16 %v4801
      %v4868 = vunpack.c.l.b16 %v4804
      %v4869 = vunpack.c.l.b16 %v4808
      %v4870 = vunpack.c.l.b16 %v4811
      %v4871 = vunpack.c.l.b16 %v4815
      %v4872 = vunpack.c.l.b16 %v4818
      %v4873 = vunpack.c.l.b16 %v4822
      %v4874 = vunpack.c.l.b16 %v4825
      %v4875 = vpack.c.b16 %v4844, %v4843
      %v4876 = vpack.c.b16 %v4846, %v4845
      %v4877 = vpack.c.b16 %v4848, %v4847
      %v4878 = vpack.c.b16 %v4850, %v4849
      %v4879 = vpack.c.b16 %v4852, %v4851
      %v4880 = vpack.c.b16 %v4854, %v4853
      %v4881 = vpack.c.b16 %v4856, %v4855
      %v4882 = vpack.c.b16 %v4858, %v4857
      %v4883 = vpack.c.b16 %v4860, %v4859
      %v4884 = vpack.c.b16 %v4862, %v4861
      %v4885 = vpack.c.b16 %v4864, %v4863
      %v4886 = vpack.c.b16 %v4866, %v4865
      %v4887 = vpack.c.b16 %v4868, %v4867
      %v4888 = vpack.c.b16 %v4870, %v4869
      %v4889 = vpack.c.b16 %v4872, %v4871
      %v4890 = vpack.c.b16 %v4874, %v4873
      %v4923 = vunpack.c.l.b16 %v4827
      %v4924 = vunpack.c.l.b16 %v4828
      %v4925 = vunpack.c.l.b16 %v4829
      %v4926 = vunpack.c.l.b16 %v4830
      %v4927 = vunpack.c.l.b16 %v4831
      %v4928 = vunpack.c.l.b16 %v4832
      %v4929 = vunpack.c.l.b16 %v4833
      %v4930 = vunpack.c.l.b16 %v4834
      %v4931 = vunpack.c.l.b16 %v4835
      %v4932 = vunpack.c.l.b16 %v4836
      %v4933 = vunpack.c.l.b16 %v4837
      %v4934 = vunpack.c.l.b16 %v4838
      %v4935 = vunpack.c.l.b16 %v4839
      %v4936 = vunpack.c.l.b16 %v4840
      %v4937 = vunpack.c.l.b16 %v4841
      %v4938 = vunpack.c.l.b16 %v4842
      %v4939 = vpack.c.b16 %v4924, %v4923
      %v4940 = vpack.c.b16 %v4926, %v4925
      %v4941 = vpack.c.b16 %v4928, %v4927
      %v4942 = vpack.c.b16 %v4930, %v4929
      %v4943 = vpack.c.b16 %v4932, %v4931
      %v4944 = vpack.c.b16 %v4934, %v4933
      %v4945 = vpack.c.b16 %v4936, %v4935
      %v4946 = vpack.c.b16 %v4938, %v4937
      %4955 = vmatpush.bf16.msra.mxu0 %v4946
      %4956 = vmatpush.bf16.msra.mxu0 %v4945
      %4957 = vmatpush.bf16.msra.mxu0 %v4944
      %4958 = vmatpush.bf16.msra.mxu0 %v4943
      %4959 = vmatpush.bf16.msra.mxu0 %v4942
      %4960 = vmatpush.bf16.msra.mxu0 %v4941
      %4961 = vmatpush.bf16.msra.mxu0 %v4940
      %4962 = vmatpush.bf16.msra.mxu0 %v4939
      %4963 = vmatmul.bf16.gmra.mxu0 %v4875
      %v4964 = vpop.f32.mrf.mxu0
      %v4965 = vadd.f32 0.0, %v4964
      %v4966 = vpop.f32.mrf.mxu0
      %v4967 = vadd.f32 0.0, %v4966
      %4968 = vmatmul.bf16.gmra.mxu0 %v4876
      %v4969 = vpop.f32.mrf.mxu0
      %v4970 = vadd.f32 0.0, %v4969
      %v4971 = vpop.f32.mrf.mxu0
      %v4972 = vadd.f32 0.0, %v4971
      %4973 = vmatmul.bf16.gmra.mxu0 %v4877
      %v4974 = vpop.f32.mrf.mxu0
      %v4975 = vadd.f32 0.0, %v4974
      %v4976 = vpop.f32.mrf.mxu0
      %v4977 = vadd.f32 0.0, %v4976
      %4978 = vmatmul.bf16.gmra.mxu0 %v4878
      %v4979 = vpop.f32.mrf.mxu0
      %v4980 = vadd.f32 0.0, %v4979
      %v4981 = vpop.f32.mrf.mxu0
      %v4982 = vadd.f32 0.0, %v4981
      %4983 = vmatmul.bf16.gmra.mxu0 %v4879
      %v4984 = vpop.f32.mrf.mxu0
      %v4985 = vadd.f32 0.0, %v4984
      %v4986 = vpop.f32.mrf.mxu0
      %v4987 = vadd.f32 0.0, %v4986
      %4988 = vmatmul.bf16.gmra.mxu0 %v4880
      %v4989 = vpop.f32.mrf.mxu0
      %v4990 = vadd.f32 0.0, %v4989
      %v4991 = vpop.f32.mrf.mxu0
      %v4992 = vadd.f32 0.0, %v4991
      %4993 = vmatmul.bf16.gmra.mxu0 %v4881
      %v4994 = vpop.f32.mrf.mxu0
      %v4995 = vadd.f32 0.0, %v4994
      %v4996 = vpop.f32.mrf.mxu0
      %v4997 = vadd.f32 0.0, %v4996
      %4998 = vmatmul.bf16.gmra.mxu0 %v4882
      %v4999 = vpop.f32.mrf.mxu0
      %v5000 = vadd.f32 0.0, %v4999
      %v5001 = vpop.f32.mrf.mxu0
      %v5002 = vadd.f32 0.0, %v5001
      %5003 = vmatmul.bf16.gmra.mxu0 %v4883
      %v5004 = vpop.f32.mrf.mxu0
      %v5005 = vadd.f32 0.0, %v5004
      %v5006 = vpop.f32.mrf.mxu0
      %v5007 = vadd.f32 0.0, %v5006
      %5008 = vmatmul.bf16.gmra.mxu0 %v4884
      %v5009 = vpop.f32.mrf.mxu0
      %v5010 = vadd.f32 0.0, %v5009
      %v5011 = vpop.f32.mrf.mxu0
      %v5012 = vadd.f32 0.0, %v5011
      %5013 = vmatmul.bf16.gmra.mxu0 %v4885
      %v5014 = vpop.f32.mrf.mxu0
      %v5015 = vadd.f32 0.0, %v5014
      %v5016 = vpop.f32.mrf.mxu0
      %v5017 = vadd.f32 0.0, %v5016
      %5018 = vmatmul.bf16.gmra.mxu0 %v4886
      %v5019 = vpop.f32.mrf.mxu0
      %v5020 = vadd.f32 0.0, %v5019
      %v5021 = vpop.f32.mrf.mxu0
      %v5022 = vadd.f32 0.0, %v5021
      %5023 = vmatmul.bf16.gmra.mxu0 %v4887
      %v5024 = vpop.f32.mrf.mxu0
      %v5025 = vadd.f32 0.0, %v5024
      %v5026 = vpop.f32.mrf.mxu0
      %v5027 = vadd.f32 0.0, %v5026
      %5028 = vmatmul.bf16.gmra.mxu0 %v4888
      %v5029 = vpop.f32.mrf.mxu0
      %v5030 = vadd.f32 0.0, %v5029
      %v5031 = vpop.f32.mrf.mxu0
      %v5032 = vadd.f32 0.0, %v5031
      %5033 = vmatmul.bf16.gmra.mxu0 %v4889
      %v5034 = vpop.f32.mrf.mxu0
      %v5035 = vadd.f32 0.0, %v5034
      %v5036 = vpop.f32.mrf.mxu0
      %v5037 = vadd.f32 0.0, %v5036
      %5038 = vmatmul.bf16.gmra.mxu0 %v4890
      %v5039 = vpop.f32.mrf.mxu0
      %v5040 = vadd.f32 0.0, %v5039
      %v5041 = vpop.f32.mrf.mxu0
      %v5042 = vadd.f32 0.0, %v5041
      %5043 = vdwg.mxu0
      %v5044 = vadd.f32 %v4618, %v4965
      %v5045 = vadd.f32 %v4619, %v4967
      %v5046 = vadd.f32 %v4620, %v4970
      %v5047 = vadd.f32 %v4621, %v4972
      %v5048 = vadd.f32 %v4622, %v4975
      %v5049 = vadd.f32 %v4623, %v4977
      %v5050 = vadd.f32 %v4624, %v4980
      %v5051 = vadd.f32 %v4625, %v4982
      %v5052 = vadd.f32 %v4626, %v4985
      %v5053 = vadd.f32 %v4627, %v4987
      %v5054 = vadd.f32 %v4628, %v4990
      %v5055 = vadd.f32 %v4629, %v4992
      %v5056 = vadd.f32 %v4630, %v4995
      %v5057 = vadd.f32 %v4631, %v4997
      %v5058 = vadd.f32 %v4632, %v5000
      %v5059 = vadd.f32 %v4633, %v5002
      %v5060 = vadd.f32 %v4634, %v5005
      %v5061 = vadd.f32 %v4635, %v5007
      %v5062 = vadd.f32 %v4636, %v5010
      %v5063 = vadd.f32 %v4637, %v5012
      %v5064 = vadd.f32 %v4638, %v5015
      %v5065 = vadd.f32 %v4639, %v5017
      %v5066 = vadd.f32 %v4640, %v5020
      %v5067 = vadd.f32 %v4641, %v5022
      %v5068 = vadd.f32 %v4642, %v5025
      %v5069 = vadd.f32 %v4643, %v5027
      %v5070 = vadd.f32 %v4644, %v5030
      %v5071 = vadd.f32 %v4645, %v5032
      %v5072 = vadd.f32 %v4646, %v5035
      %v5073 = vadd.f32 %v4647, %v5037
      %v5074 = vadd.f32 %v4648, %v5040
      %v5075 = vadd.f32 %v4649, %v5042
      %v5076 = vld [vmem:[%s4] sm:$0x1]
      %v5078 = vperm.slane %v5076, 0
      %v5080 = vadd.f32 %v5044, %v5078
      %v5081 = vadd.f32 %v5045, %v5078
      %v5082 = vadd.f32 %v5046, %v5078
      %v5083 = vadd.f32 %v5047, %v5078
      %v5084 = vadd.f32 %v5048, %v5078
      %v5085 = vadd.f32 %v5049, %v5078
      %v5086 = vadd.f32 %v5050, %v5078
      %v5087 = vadd.f32 %v5051, %v5078
      %v5088 = vadd.f32 %v5052, %v5078
      %v5089 = vadd.f32 %v5053, %v5078
      %v5090 = vadd.f32 %v5054, %v5078
      %v5091 = vadd.f32 %v5055, %v5078
      %v5092 = vadd.f32 %v5056, %v5078
      %v5093 = vadd.f32 %v5057, %v5078
      %v5094 = vadd.f32 %v5058, %v5078
      %v5095 = vadd.f32 %v5059, %v5078
      %v5096 = vadd.f32 %v5060, %v5078
      %v5097 = vadd.f32 %v5061, %v5078
      %v5098 = vadd.f32 %v5062, %v5078
      %v5099 = vadd.f32 %v5063, %v5078
      %v5100 = vadd.f32 %v5064, %v5078
      %v5101 = vadd.f32 %v5065, %v5078
      %v5102 = vadd.f32 %v5066, %v5078
      %v5103 = vadd.f32 %v5067, %v5078
      %v5104 = vadd.f32 %v5068, %v5078
      %v5105 = vadd.f32 %v5069, %v5078
      %v5106 = vadd.f32 %v5070, %v5078
      %v5107 = vadd.f32 %v5071, %v5078
      %v5108 = vadd.f32 %v5072, %v5078
      %v5109 = vadd.f32 %v5073, %v5078
      %v5110 = vadd.f32 %v5074, %v5078
      %v5111 = vadd.f32 %v5075, %v5078
      %v5112 = vmax.f32 %v5080, 0.0
      %v5113 = vmax.f32 %v5081, 0.0
      %v5114 = vmax.f32 %v5082, 0.0
      %v5115 = vmax.f32 %v5083, 0.0
      %v5116 = vmax.f32 %v5084, 0.0
      %v5117 = vmax.f32 %v5085, 0.0
      %v5118 = vmax.f32 %v5086, 0.0
      %v5119 = vmax.f32 %v5087, 0.0
      %v5120 = vmax.f32 %v5088, 0.0
      %v5121 = vmax.f32 %v5089, 0.0
      %v5122 = vmax.f32 %v5090, 0.0
      %v5123 = vmax.f32 %v5091, 0.0
      %v5124 = vmax.f32 %v5092, 0.0
      %v5125 = vmax.f32 %v5093, 0.0
      %v5126 = vmax.f32 %v5094, 0.0
      %v5127 = vmax.f32 %v5095, 0.0
      %v5128 = vmax.f32 %v5096, 0.0
      %v5129 = vmax.f32 %v5097, 0.0
      %v5130 = vmax.f32 %v5098, 0.0
      %v5131 = vmax.f32 %v5099, 0.0
      %v5132 = vmax.f32 %v5100, 0.0
      %v5133 = vmax.f32 %v5101, 0.0
      %v5134 = vmax.f32 %v5102, 0.0
      %v5135 = vmax.f32 %v5103, 0.0
      %v5136 = vmax.f32 %v5104, 0.0
      %v5137 = vmax.f32 %v5105, 0.0
      %v5138 = vmax.f32 %v5106, 0.0
      %v5139 = vmax.f32 %v5107, 0.0
      %v5140 = vmax.f32 %v5108, 0.0
      %v5141 = vmax.f32 %v5109, 0.0
      %v5142 = vmax.f32 %v5110, 0.0
      %v5143 = vmax.f32 %v5111, 0.0
      %5144 = vst [vmem:[#allocation3] sm:$0xf] 0
      %5145 = vst [vmem:[#allocation3 + $0x4] sm:$0xf] 0
      %5146 = vst [vmem:[#allocation3 + $0x8] sm:$0x1] 0
      %5147 = vst [vmem:[#allocation3 + $0xc] sm:$0xf] 0
      %5148 = vst [vmem:[#allocation3 + $0x10] sm:$0xf] 0
      %5149 = vst [vmem:[#allocation3 + $0x14] sm:$0x1] 0
      %5150 = vst [vmem:[#allocation3 + $0x18] sm:$0xf] 0
      %5151 = vst [vmem:[#allocation3 + $0x1c] sm:$0xf] 0
      %5152 = vst [vmem:[#allocation3 + $0x20] sm:$0x1] 0
      %5153 = vst [vmem:[#allocation3 + $0x24] sm:$0xf] 0
      %5154 = vst [vmem:[#allocation3 + $0x28] sm:$0xf] 0
      %5155 = vst [vmem:[#allocation3 + $0x2c] sm:$0x1] 0
      %5156 = vst [vmem:[#allocation3 + $0x30] sm:$0xf] 0
      %5157 = vst [vmem:[#allocation3 + $0x34] sm:$0xf] 0
      %5158 = vst [vmem:[#allocation3 + $0x38] sm:$0x1] 0
      %5159 = vst [vmem:[#allocation3 + $0x3c] sm:$0xf] 0
      %5160 = vst [vmem:[#allocation3 + $0x40] sm:$0xf] 0
      %5161 = vst [vmem:[#allocation3 + $0x44] sm:$0x1] 0
      %5162 = vst [vmem:[#allocation3 + $0x48] sm:$0xf] 0
      %5163 = vst [vmem:[#allocation3 + $0x4c] sm:$0xf] 0
      %5164 = vst [vmem:[#allocation3 + $0x50] sm:$0x1] 0
      %5165 = vst [vmem:[#allocation3 + $0x54] sm:$0xf] 0
      %5166 = vst [vmem:[#allocation3 + $0x58] sm:$0xf] 0
      %5167 = vst [vmem:[#allocation3 + $0x5c] sm:$0x1] 0
      %5168 = vst [vmem:[#allocation3 + $0x60] sm:$0xf] 0
      %5169 = vst [vmem:[#allocation3 + $0x64] sm:$0xf] 0
      %5170 = vst [vmem:[#allocation3 + $0x68] sm:$0x1] 0
      %5171 = vst [vmem:[#allocation3 + $0x6c] sm:$0xf] 0
      %5172 = vst [vmem:[#allocation3 + $0x70] sm:$0xf] 0
      %5173 = vst [vmem:[#allocation3 + $0x74] sm:$0x1] 0
      %5174 = vst [vmem:[#allocation3 + $0x78] sm:$0xf] 0
      %5175 = vst [vmem:[#allocation3 + $0x7c] sm:$0xf] 0
      %5176 = vst [vmem:[#allocation3 + $0x80] sm:$0x1] 0
      %5177 = vst [vmem:[#allocation3 + $0x84] sm:$0xf] 0
      %5178 = vst [vmem:[#allocation3 + $0x88] sm:$0xf] 0
      %5179 = vst [vmem:[#allocation3 + $0x8c] sm:$0x1] 0
      %5180 = vst [vmem:[#allocation3 + $0x90] sm:$0xf] 0
      %5181 = vst [vmem:[#allocation3 + $0x94] sm:$0xf] 0
      %5182 = vst [vmem:[#allocation3 + $0x98] sm:$0x1] 0
      %5183 = vst [vmem:[#allocation3 + $0x9c] sm:$0xf] 0
      %5184 = vst [vmem:[#allocation3 + $0xa0] sm:$0xf] 0
      %5185 = vst [vmem:[#allocation3 + $0xa4] sm:$0x1] 0
      %5186 = vst [vmem:[#allocation3 + $0xa8] sm:$0xf] 0
      %5187 = vst [vmem:[#allocation3 + $0xac] sm:$0xf] 0
      %5188 = vst [vmem:[#allocation3 + $0xb0] sm:$0x1] 0
      %5189 = vst [vmem:[#allocation3 + $0xb4] sm:$0xf] 0
      %5190 = vst [vmem:[#allocation3 + $0xb8] sm:$0xf] 0
      %5191 = vst [vmem:[#allocation3 + $0xbc] sm:$0x1] 0
      %5192 = vst [vmem:[#allocation3 + $0xc0] sm:$0xf] 0
      %5193 = vst [vmem:[#allocation3 + $0xc4] sm:$0xf] 0
      %5194 = vst [vmem:[#allocation3 + $0xc8] sm:$0x1] 0
      %5195 = vst [vmem:[#allocation3 + $0xcc] sm:$0xf] 0
      %5196 = vst [vmem:[#allocation3 + $0xd0] sm:$0xf] 0
      %5197 = vst [vmem:[#allocation3 + $0xd4] sm:$0x1] 0
      %v5198 = vpack.c.bf16 %v5112, %v5112
      %v5199 = vpack.c.bf16 %v5113, %v5113
      %v5200 = vpack.c.bf16 %v5114, %v5114
      %v5201 = vpack.c.bf16 %v5115, %v5115
      %v5202 = vpack.c.bf16 %v5116, %v5116
      %v5203 = vpack.c.bf16 %v5117, %v5117
      %v5204 = vpack.c.bf16 %v5118, %v5118
      %v5205 = vpack.c.bf16 %v5119, %v5119
      %v5206 = vpack.c.bf16 %v5120, %v5120
      %v5207 = vpack.c.bf16 %v5121, %v5121
      %v5208 = vpack.c.bf16 %v5122, %v5122
      %v5209 = vpack.c.bf16 %v5123, %v5123
      %v5210 = vpack.c.bf16 %v5124, %v5124
      %v5211 = vpack.c.bf16 %v5125, %v5125
      %v5212 = vpack.c.bf16 %v5126, %v5126
      %v5213 = vpack.c.bf16 %v5127, %v5127
      %v5214 = vpack.c.bf16 %v5128, %v5128
      %v5215 = vpack.c.bf16 %v5129, %v5129
      %v5216 = vpack.c.bf16 %v5130, %v5130
      %v5217 = vpack.c.bf16 %v5131, %v5131
      %v5218 = vpack.c.bf16 %v5132, %v5132
      %v5219 = vpack.c.bf16 %v5133, %v5133
      %v5220 = vpack.c.bf16 %v5134, %v5134
      %v5221 = vpack.c.bf16 %v5135, %v5135
      %v5222 = vpack.c.bf16 %v5136, %v5136
      %v5223 = vpack.c.bf16 %v5137, %v5137
      %v5224 = vpack.c.bf16 %v5138, %v5138
      %v5225 = vpack.c.bf16 %v5139, %v5139
      %v5226 = vpack.c.bf16 %v5140, %v5140
      %v5227 = vpack.c.bf16 %v5141, %v5141
      %v5228 = vpack.c.bf16 %v5142, %v5142
      %v5229 = vpack.c.bf16 %v5143, %v5143
      %v5231 = vshrl.u32 %v5198, 16
      %v5233 = vrot.slane %v5231, 7
      %v5234 = vshll.u32 %v5198, 16
      %v5236 = vor.u32 %v5233, %v5234
      %v5237 = vrot.slane %v5233, 4
      %v5239 = vshrl.u32 %v5199, 16
      %v5241 = vrot.slane %v5239, 7
      %v5242 = vshll.u32 %v5199, 16
      %v5244 = vor.u32 %v5241, %v5242
      %v5245 = vsel %vm477, %v5237, %v5244
      %v5246 = vrot.slane %v5241, 4
      %v5248 = vshrl.u32 %v5200, 16
      %v5250 = vrot.slane %v5248, 7
      %v5251 = vshll.u32 %v5200, 16
      %v5253 = vor.u32 %v5250, %v5251
      %v5254 = vrot.slane %v5250, 4
      %v5256 = vshrl.u32 %v5201, 16
      %v5258 = vrot.slane %v5256, 7
      %v5259 = vshll.u32 %v5201, 16
      %v5261 = vor.u32 %v5258, %v5259
      %v5262 = vsel %vm477, %v5254, %v5261
      %v5263 = vrot.slane %v5258, 4
      %v5265 = vshrl.u32 %v5202, 16
      %v5267 = vrot.slane %v5265, 7
      %v5268 = vshll.u32 %v5202, 16
      %v5270 = vor.u32 %v5267, %v5268
      %v5271 = vrot.slane %v5267, 4
      %v5273 = vshrl.u32 %v5203, 16
      %v5275 = vrot.slane %v5273, 7
      %v5276 = vshll.u32 %v5203, 16
      %v5278 = vor.u32 %v5275, %v5276
      %v5279 = vsel %vm477, %v5271, %v5278
      %v5280 = vrot.slane %v5275, 4
      %v5282 = vshrl.u32 %v5204, 16
      %v5284 = vrot.slane %v5282, 7
      %v5285 = vshll.u32 %v5204, 16
      %v5287 = vor.u32 %v5284, %v5285
      %v5288 = vrot.slane %v5284, 4
      %v5290 = vshrl.u32 %v5205, 16
      %v5292 = vrot.slane %v5290, 7
      %v5293 = vshll.u32 %v5205, 16
      %v5295 = vor.u32 %v5292, %v5293
      %v5296 = vsel %vm477, %v5288, %v5295
      %v5297 = vrot.slane %v5292, 4
      %v5299 = vshrl.u32 %v5206, 16
      %v5301 = vrot.slane %v5299, 7
      %v5302 = vshll.u32 %v5206, 16
      %v5304 = vor.u32 %v5301, %v5302
      %v5305 = vrot.slane %v5301, 4
      %v5307 = vshrl.u32 %v5207, 16
      %v5309 = vrot.slane %v5307, 7
      %v5310 = vshll.u32 %v5207, 16
      %v5312 = vor.u32 %v5309, %v5310
      %v5313 = vsel %vm477, %v5305, %v5312
      %v5314 = vrot.slane %v5309, 4
      %v5316 = vshrl.u32 %v5208, 16
      %v5318 = vrot.slane %v5316, 7
      %v5319 = vshll.u32 %v5208, 16
      %v5321 = vor.u32 %v5318, %v5319
      %v5322 = vrot.slane %v5318, 4
      %v5324 = vshrl.u32 %v5209, 16
      %v5326 = vrot.slane %v5324, 7
      %v5327 = vshll.u32 %v5209, 16
      %v5329 = vor.u32 %v5326, %v5327
      %v5330 = vsel %vm477, %v5322, %v5329
      %v5331 = vrot.slane %v5326, 4
      %v5333 = vshrl.u32 %v5210, 16
      %v5335 = vrot.slane %v5333, 7
      %v5336 = vshll.u32 %v5210, 16
      %v5338 = vor.u32 %v5335, %v5336
      %v5339 = vrot.slane %v5335, 4
      %v5341 = vshrl.u32 %v5211, 16
      %v5343 = vrot.slane %v5341, 7
      %v5344 = vshll.u32 %v5211, 16
      %v5346 = vor.u32 %v5343, %v5344
      %v5347 = vsel %vm477, %v5339, %v5346
      %v5348 = vrot.slane %v5343, 4
      %v5350 = vshrl.u32 %v5212, 16
      %v5352 = vrot.slane %v5350, 7
      %v5353 = vshll.u32 %v5212, 16
      %v5355 = vor.u32 %v5352, %v5353
      %v5356 = vrot.slane %v5352, 4
      %v5358 = vshrl.u32 %v5213, 16
      %v5360 = vrot.slane %v5358, 7
      %v5361 = vshll.u32 %v5213, 16
      %v5363 = vor.u32 %v5360, %v5361
      %v5364 = vsel %vm477, %v5356, %v5363
      %v5365 = vrot.slane %v5360, 4
      %v5367 = vshrl.u32 %v5214, 16
      %v5369 = vrot.slane %v5367, 7
      %v5370 = vshll.u32 %v5214, 16
      %v5372 = vor.u32 %v5369, %v5370
      %v5373 = vrot.slane %v5369, 4
      %v5375 = vshrl.u32 %v5215, 16
      %v5377 = vrot.slane %v5375, 7
      %v5378 = vshll.u32 %v5215, 16
      %v5380 = vor.u32 %v5377, %v5378
      %v5381 = vsel %vm477, %v5373, %v5380
      %v5382 = vrot.slane %v5377, 4
      %v5384 = vshrl.u32 %v5216, 16
      %v5386 = vrot.slane %v5384, 7
      %v5387 = vshll.u32 %v5216, 16
      %v5389 = vor.u32 %v5386, %v5387
      %v5390 = vrot.slane %v5386, 4
      %v5392 = vshrl.u32 %v5217, 16
      %v5394 = vrot.slane %v5392, 7
      %v5395 = vshll.u32 %v5217, 16
      %v5397 = vor.u32 %v5394, %v5395
      %v5398 = vsel %vm477, %v5390, %v5397
      %v5399 = vrot.slane %v5394, 4
      %v5401 = vshrl.u32 %v5218, 16
      %v5403 = vrot.slane %v5401, 7
      %v5404 = vshll.u32 %v5218, 16
      %v5406 = vor.u32 %v5403, %v5404
      %v5407 = vrot.slane %v5403, 4
      %v5409 = vshrl.u32 %v5219, 16
      %v5411 = vrot.slane %v5409, 7
      %v5412 = vshll.u32 %v5219, 16
      %v5414 = vor.u32 %v5411, %v5412
      %v5415 = vsel %vm477, %v5407, %v5414
      %v5416 = vrot.slane %v5411, 4
      %v5418 = vshrl.u32 %v5220, 16
      %v5420 = vrot.slane %v5418, 7
      %v5421 = vshll.u32 %v5220, 16
      %v5423 = vor.u32 %v5420, %v5421
      %v5424 = vrot.slane %v5420, 4
      %v5426 = vshrl.u32 %v5221, 16
      %v5428 = vrot.slane %v5426, 7
      %v5429 = vshll.u32 %v5221, 16
      %v5431 = vor.u32 %v5428, %v5429
      %v5432 = vsel %vm477, %v5424, %v5431
      %v5433 = vrot.slane %v5428, 4
      %v5435 = vshrl.u32 %v5222, 16
      %v5437 = vrot.slane %v5435, 7
      %v5438 = vshll.u32 %v5222, 16
      %v5440 = vor.u32 %v5437, %v5438
      %v5441 = vrot.slane %v5437, 4
      %v5443 = vshrl.u32 %v5223, 16
      %v5445 = vrot.slane %v5443, 7
      %v5446 = vshll.u32 %v5223, 16
      %v5448 = vor.u32 %v5445, %v5446
      %v5449 = vsel %vm477, %v5441, %v5448
      %v5450 = vrot.slane %v5445, 4
      %v5452 = vshrl.u32 %v5224, 16
      %v5454 = vrot.slane %v5452, 7
      %v5455 = vshll.u32 %v5224, 16
      %v5457 = vor.u32 %v5454, %v5455
      %v5458 = vrot.slane %v5454, 4
      %v5460 = vshrl.u32 %v5225, 16
      %v5462 = vrot.slane %v5460, 7
      %v5463 = vshll.u32 %v5225, 16
      %v5465 = vor.u32 %v5462, %v5463
      %v5466 = vsel %vm477, %v5458, %v5465
      %v5467 = vrot.slane %v5462, 4
      %v5469 = vshrl.u32 %v5226, 16
      %v5471 = vrot.slane %v5469, 7
      %v5472 = vshll.u32 %v5226, 16
      %v5474 = vor.u32 %v5471, %v5472
      %v5475 = vrot.slane %v5471, 4
      %v5477 = vshrl.u32 %v5227, 16
      %v5479 = vrot.slane %v5477, 7
      %v5480 = vshll.u32 %v5227, 16
      %v5482 = vor.u32 %v5479, %v5480
      %v5483 = vsel %vm477, %v5475, %v5482
      %v5484 = vrot.slane %v5479, 4
      %v5486 = vshrl.u32 %v5228, 16
      %v5488 = vrot.slane %v5486, 7
      %v5489 = vshll.u32 %v5228, 16
      %v5491 = vor.u32 %v5488, %v5489
      %v5492 = vrot.slane %v5488, 4
      %v5494 = vshrl.u32 %v5229, 16
      %v5496 = vrot.slane %v5494, 7
      %v5497 = vshll.u32 %v5229, 16
      %v5499 = vor.u32 %v5496, %v5497
      %v5500 = vsel %vm477, %v5492, %v5499
      %v5501 = vrot.slane %v5496, 4
      %s5550 = scalar_lea.vmem [#allocation3], 12
      %v5551 = vld [vmem:[%s5550] sm:$0xf]
      %v5552 = vsel %vm801, %v5236, %v5551
      %5553 = vst [vmem:[%s5550] sm:$0xf] %v5552
      %5554 = vst [vmem:[%s5550 + $0x4] sm:$0xf] %v5245
      %v5555 = vld [vmem:[%s5550 + $0x8] sm:$0x1]
      %v5556 = vsel %vm807, %v5246, %v5555
      %5557 = vst [vmem:[%s5550 + $0x8] sm:$0x1] %v5556
      %v5558 = vld [vmem:[%s5550 + $0xc] sm:$0xf]
      %v5559 = vsel %vm801, %v5253, %v5558
      %5560 = vst [vmem:[%s5550 + $0xc] sm:$0xf] %v5559
      %5561 = vst [vmem:[%s5550 + $0x10] sm:$0xf] %v5262
      %v5562 = vld [vmem:[%s5550 + $0x14] sm:$0x1]
      %v5563 = vsel %vm807, %v5263, %v5562
      %5564 = vst [vmem:[%s5550 + $0x14] sm:$0x1] %v5563
      %v5565 = vld [vmem:[%s5550 + $0x18] sm:$0xf]
      %v5566 = vsel %vm801, %v5270, %v5565
      %5567 = vst [vmem:[%s5550 + $0x18] sm:$0xf] %v5566
      %5568 = vst [vmem:[%s5550 + $0x1c] sm:$0xf] %v5279
      %v5569 = vld [vmem:[%s5550 + $0x20] sm:$0x1]
      %v5570 = vsel %vm807, %v5280, %v5569
      %5571 = vst [vmem:[%s5550 + $0x20] sm:$0x1] %v5570
      %v5572 = vld [vmem:[%s5550 + $0x24] sm:$0xf]
      %v5573 = vsel %vm801, %v5287, %v5572
      %5574 = vst [vmem:[%s5550 + $0x24] sm:$0xf] %v5573
      %5575 = vst [vmem:[%s5550 + $0x28] sm:$0xf] %v5296
      %v5576 = vld [vmem:[%s5550 + $0x2c] sm:$0x1]
      %v5577 = vsel %vm807, %v5297, %v5576
      %5578 = vst [vmem:[%s5550 + $0x2c] sm:$0x1] %v5577
      %v5579 = vld [vmem:[%s5550 + $0x30] sm:$0xf]
      %v5580 = vsel %vm801, %v5304, %v5579
      %5581 = vst [vmem:[%s5550 + $0x30] sm:$0xf] %v5580
      %5582 = vst [vmem:[%s5550 + $0x34] sm:$0xf] %v5313
      %v5583 = vld [vmem:[%s5550 + $0x38] sm:$0x1]
      %v5584 = vsel %vm807, %v5314, %v5583
      %5585 = vst [vmem:[%s5550 + $0x38] sm:$0x1] %v5584
      %v5586 = vld [vmem:[%s5550 + $0x3c] sm:$0xf]
      %v5587 = vsel %vm801, %v5321, %v5586
      %5588 = vst [vmem:[%s5550 + $0x3c] sm:$0xf] %v5587
      %5589 = vst [vmem:[%s5550 + $0x40] sm:$0xf] %v5330
      %v5590 = vld [vmem:[%s5550 + $0x44] sm:$0x1]
      %v5591 = vsel %vm807, %v5331, %v5590
      %5592 = vst [vmem:[%s5550 + $0x44] sm:$0x1] %v5591
      %v5593 = vld [vmem:[%s5550 + $0x48] sm:$0xf]
      %v5594 = vsel %vm801, %v5338, %v5593
      %5595 = vst [vmem:[%s5550 + $0x48] sm:$0xf] %v5594
      %5596 = vst [vmem:[%s5550 + $0x4c] sm:$0xf] %v5347
      %v5597 = vld [vmem:[%s5550 + $0x50] sm:$0x1]
      %v5598 = vsel %vm807, %v5348, %v5597
      %5599 = vst [vmem:[%s5550 + $0x50] sm:$0x1] %v5598
      %v5600 = vld [vmem:[%s5550 + $0x54] sm:$0xf]
      %v5601 = vsel %vm801, %v5355, %v5600
      %5602 = vst [vmem:[%s5550 + $0x54] sm:$0xf] %v5601
      %5603 = vst [vmem:[%s5550 + $0x58] sm:$0xf] %v5364
      %v5604 = vld [vmem:[%s5550 + $0x5c] sm:$0x1]
      %v5605 = vsel %vm807, %v5365, %v5604
      %5606 = vst [vmem:[%s5550 + $0x5c] sm:$0x1] %v5605
      %v5607 = vld [vmem:[%s5550 + $0x60] sm:$0xf]
      %v5608 = vsel %vm801, %v5372, %v5607
      %5609 = vst [vmem:[%s5550 + $0x60] sm:$0xf] %v5608
      %5610 = vst [vmem:[%s5550 + $0x64] sm:$0xf] %v5381
      %v5611 = vld [vmem:[%s5550 + $0x68] sm:$0x1]
      %v5612 = vsel %vm807, %v5382, %v5611
      %5613 = vst [vmem:[%s5550 + $0x68] sm:$0x1] %v5612
      %v5614 = vld [vmem:[%s5550 + $0x6c] sm:$0xf]
      %v5615 = vsel %vm801, %v5389, %v5614
      %5616 = vst [vmem:[%s5550 + $0x6c] sm:$0xf] %v5615
      %5617 = vst [vmem:[%s5550 + $0x70] sm:$0xf] %v5398
      %v5618 = vld [vmem:[%s5550 + $0x74] sm:$0x1]
      %v5619 = vsel %vm807, %v5399, %v5618
      %5620 = vst [vmem:[%s5550 + $0x74] sm:$0x1] %v5619
      %v5621 = vld [vmem:[%s5550 + $0x78] sm:$0xf]
      %v5622 = vsel %vm801, %v5406, %v5621
      %5623 = vst [vmem:[%s5550 + $0x78] sm:$0xf] %v5622
      %5624 = vst [vmem:[%s5550 + $0x7c] sm:$0xf] %v5415
      %v5625 = vld [vmem:[%s5550 + $0x80] sm:$0x1]
      %v5626 = vsel %vm807, %v5416, %v5625
      %5627 = vst [vmem:[%s5550 + $0x80] sm:$0x1] %v5626
      %v5628 = vld [vmem:[%s5550 + $0x84] sm:$0xf]
      %v5629 = vsel %vm801, %v5423, %v5628
      %5630 = vst [vmem:[%s5550 + $0x84] sm:$0xf] %v5629
      %5631 = vst [vmem:[%s5550 + $0x88] sm:$0xf] %v5432
      %v5632 = vld [vmem:[%s5550 + $0x8c] sm:$0x1]
      %v5633 = vsel %vm807, %v5433, %v5632
      %5634 = vst [vmem:[%s5550 + $0x8c] sm:$0x1] %v5633
      %v5635 = vld [vmem:[%s5550 + $0x90] sm:$0xf]
      %v5636 = vsel %vm801, %v5440, %v5635
      %5637 = vst [vmem:[%s5550 + $0x90] sm:$0xf] %v5636
      %5638 = vst [vmem:[%s5550 + $0x94] sm:$0xf] %v5449
      %v5639 = vld [vmem:[%s5550 + $0x98] sm:$0x1]
      %v5640 = vsel %vm807, %v5450, %v5639
      %5641 = vst [vmem:[%s5550 + $0x98] sm:$0x1] %v5640
      %v5642 = vld [vmem:[%s5550 + $0x9c] sm:$0xf]
      %v5643 = vsel %vm801, %v5457, %v5642
      %5644 = vst [vmem:[%s5550 + $0x9c] sm:$0xf] %v5643
      %5645 = vst [vmem:[%s5550 + $0xa0] sm:$0xf] %v5466
      %v5646 = vld [vmem:[%s5550 + $0xa4] sm:$0x1]
      %v5647 = vsel %vm807, %v5467, %v5646
      %5648 = vst [vmem:[%s5550 + $0xa4] sm:$0x1] %v5647
      %v5649 = vld [vmem:[%s5550 + $0xa8] sm:$0xf]
      %v5650 = vsel %vm801, %v5474, %v5649
      %5651 = vst [vmem:[%s5550 + $0xa8] sm:$0xf] %v5650
      %5652 = vst [vmem:[%s5550 + $0xac] sm:$0xf] %v5483
      %v5653 = vld [vmem:[%s5550 + $0xb0] sm:$0x1]
      %v5654 = vsel %vm807, %v5484, %v5653
      %5655 = vst [vmem:[%s5550 + $0xb0] sm:$0x1] %v5654
      %v5656 = vld [vmem:[%s5550 + $0xb4] sm:$0xf]
      %v5657 = vsel %vm801, %v5491, %v5656
      %5658 = vst [vmem:[%s5550 + $0xb4] sm:$0xf] %v5657
      %5659 = vst [vmem:[%s5550 + $0xb8] sm:$0xf] %v5500
      %v5660 = vld [vmem:[%s5550 + $0xbc] sm:$0x1]
      %v5661 = vsel %vm807, %v5501, %v5660
      %5662 = vst [vmem:[%s5550 + $0xbc] sm:$0x1] %v5661
      %v5663 = vld [vmem:[#allocation3] sm:$0xf]
      %v5664 = vld [vmem:[#allocation3 + $0x4] sm:$0xf]
      %v5665 = vld [vmem:[#allocation3 + $0xc] sm:$0xf]
      %v5666 = vld [vmem:[#allocation3 + $0x10] sm:$0xf]
      %v5667 = vld [vmem:[#allocation3 + $0x18] sm:$0xf]
      %v5668 = vld [vmem:[#allocation3 + $0x1c] sm:$0xf]
      %v5669 = vld [vmem:[#allocation3 + $0x24] sm:$0xf]
      %v5670 = vld [vmem:[#allocation3 + $0x28] sm:$0xf]
      %v5671 = vld [vmem:[#allocation3 + $0x30] sm:$0xf]
      %v5672 = vld [vmem:[#allocation3 + $0x34] sm:$0xf]
      %v5673 = vld [vmem:[#allocation3 + $0x3c] sm:$0xf]
      %v5674 = vld [vmem:[#allocation3 + $0x40] sm:$0xf]
      %v5675 = vld [vmem:[#allocation3 + $0x48] sm:$0xf]
      %v5676 = vld [vmem:[#allocation3 + $0x4c] sm:$0xf]
      %v5677 = vld [vmem:[#allocation3 + $0x54] sm:$0xf]
      %v5678 = vld [vmem:[#allocation3 + $0x58] sm:$0xf]
      %v5679 = vld [vmem:[#allocation3 + $0x60] sm:$0xf]
      %v5680 = vld [vmem:[#allocation3 + $0x64] sm:$0xf]
      %v5681 = vld [vmem:[#allocation3 + $0x6c] sm:$0xf]
      %v5682 = vld [vmem:[#allocation3 + $0x70] sm:$0xf]
      %v5683 = vld [vmem:[#allocation3 + $0x78] sm:$0xf]
      %v5684 = vld [vmem:[#allocation3 + $0x7c] sm:$0xf]
      %v5685 = vld [vmem:[#allocation3 + $0x84] sm:$0xf]
      %v5686 = vld [vmem:[#allocation3 + $0x88] sm:$0xf]
      %v5687 = vld [vmem:[#allocation3 + $0x90] sm:$0xf]
      %v5688 = vld [vmem:[#allocation3 + $0x94] sm:$0xf]
      %v5689 = vld [vmem:[#allocation3 + $0x9c] sm:$0xf]
      %v5690 = vld [vmem:[#allocation3 + $0xa0] sm:$0xf]
      %v5691 = vld [vmem:[#allocation3 + $0xa8] sm:$0xf]
      %v5692 = vld [vmem:[#allocation3 + $0xac] sm:$0xf]
      %v5693 = vld [vmem:[#allocation3 + $0xb4] sm:$0xf]
      %v5694 = vld [vmem:[#allocation3 + $0xb8] sm:$0xf]
      %v5695 = vld [vmem:[%s5] sm:$0xf]
      %v5696 = vld [vmem:[%s5 + $0x4] sm:$0xf]
      %v5697 = vld [vmem:[%s5 + $0x8] sm:$0xf]
      %v5698 = vld [vmem:[%s5 + $0xc] sm:$0xf]
      %v5699 = vld [vmem:[%s5 + $0x10] sm:$0xf]
      %v5700 = vld [vmem:[%s5 + $0x14] sm:$0xf]
      %v5701 = vld [vmem:[%s5 + $0x18] sm:$0xf]
      %v5702 = vld [vmem:[%s5 + $0x1c] sm:$0xf]
      %v5703 = vld [vmem:[%s5 + $0x20] sm:$0xf]
      %v5704 = vld [vmem:[%s5 + $0x24] sm:$0xf]
      %v5705 = vld [vmem:[%s5 + $0x28] sm:$0xf]
      %v5706 = vld [vmem:[%s5 + $0x2c] sm:$0xf]
      %v5707 = vld [vmem:[%s5 + $0x30] sm:$0xf]
      %v5708 = vld [vmem:[%s5 + $0x34] sm:$0xf]
      %v5709 = vld [vmem:[%s5 + $0x38] sm:$0xf]
      %v5710 = vld [vmem:[%s5 + $0x3c] sm:$0xf]
      %v5711 = vld [vmem:[#allocation3 + $0x8] sm:$0x1]
      %v5712 = vld [vmem:[#allocation3 + $0x14] sm:$0x1]
      %v5713 = vld [vmem:[#allocation3 + $0x20] sm:$0x1]
      %v5714 = vld [vmem:[#allocation3 + $0x2c] sm:$0x1]
      %v5715 = vld [vmem:[#allocation3 + $0x38] sm:$0x1]
      %v5716 = vld [vmem:[#allocation3 + $0x44] sm:$0x1]
      %v5717 = vld [vmem:[#allocation3 + $0x50] sm:$0x1]
      %v5718 = vld [vmem:[#allocation3 + $0x5c] sm:$0x1]
      %v5719 = vld [vmem:[#allocation3 + $0x68] sm:$0x1]
      %v5720 = vld [vmem:[#allocation3 + $0x74] sm:$0x1]
      %v5721 = vld [vmem:[#allocation3 + $0x80] sm:$0x1]
      %v5722 = vld [vmem:[#allocation3 + $0x8c] sm:$0x1]
      %v5723 = vld [vmem:[#allocation3 + $0x98] sm:$0x1]
      %v5724 = vld [vmem:[#allocation3 + $0xa4] sm:$0x1]
      %v5725 = vld [vmem:[#allocation3 + $0xb0] sm:$0x1]
      %v5726 = vld [vmem:[#allocation3 + $0xbc] sm:$0x1]
      %v5728 = vshrl.u32 %v5663, 16
      %v5730 = vrot.slane %v5728, 4
      %v5731 = vshll.u32 %v5663, 16
      %v5733 = vrot.slane %v5731, 5
      %v5734 = vor.u32 %v5730, %v5733
      %v5735 = vrot.slane %v5734, 4
      %v5737 = vshll.u32 %v5664, 16
      %v5739 = vrot.slane %v5737, 5
      %v5740 = vsel %vm982, %v5735, %v5739
      %v5741 = vshrl.u32 %v5664, 16
      %v5743 = vrot.slane %v5741, 4
      %v5744 = vor.u32 %v5743, %v5739
      %v5745 = vrot.slane %v5744, 4
      %v5747 = vshll.u32 %v5711, 16
      %v5749 = vrot.slane %v5747, 5
      %v5750 = vsel %vm982, %v5745, %v5749
      %v5752 = vshrl.u32 %v5665, 16
      %v5754 = vrot.slane %v5752, 4
      %v5755 = vshll.u32 %v5665, 16
      %v5757 = vrot.slane %v5755, 5
      %v5758 = vor.u32 %v5754, %v5757
      %v5759 = vrot.slane %v5758, 4
      %v5761 = vshll.u32 %v5666, 16
      %v5763 = vrot.slane %v5761, 5
      %v5764 = vsel %vm982, %v5759, %v5763
      %v5765 = vshrl.u32 %v5666, 16
      %v5767 = vrot.slane %v5765, 4
      %v5768 = vor.u32 %v5767, %v5763
      %v5769 = vrot.slane %v5768, 4
      %v5771 = vshll.u32 %v5712, 16
      %v5773 = vrot.slane %v5771, 5
      %v5774 = vsel %vm982, %v5769, %v5773
      %v5776 = vshrl.u32 %v5667, 16
      %v5778 = vrot.slane %v5776, 4
      %v5779 = vshll.u32 %v5667, 16
      %v5781 = vrot.slane %v5779, 5
      %v5782 = vor.u32 %v5778, %v5781
      %v5783 = vrot.slane %v5782, 4
      %v5785 = vshll.u32 %v5668, 16
      %v5787 = vrot.slane %v5785, 5
      %v5788 = vsel %vm982, %v5783, %v5787
      %v5789 = vshrl.u32 %v5668, 16
      %v5791 = vrot.slane %v5789, 4
      %v5792 = vor.u32 %v5791, %v5787
      %v5793 = vrot.slane %v5792, 4
      %v5795 = vshll.u32 %v5713, 16
      %v5797 = vrot.slane %v5795, 5
      %v5798 = vsel %vm982, %v5793, %v5797
      %v5800 = vshrl.u32 %v5669, 16
      %v5802 = vrot.slane %v5800, 4
      %v5803 = vshll.u32 %v5669, 16
      %v5805 = vrot.slane %v5803, 5
      %v5806 = vor.u32 %v5802, %v5805
      %v5807 = vrot.slane %v5806, 4
      %v5809 = vshll.u32 %v5670, 16
      %v5811 = vrot.slane %v5809, 5
      %v5812 = vsel %vm982, %v5807, %v5811
      %v5813 = vshrl.u32 %v5670, 16
      %v5815 = vrot.slane %v5813, 4
      %v5816 = vor.u32 %v5815, %v5811
      %v5817 = vrot.slane %v5816, 4
      %v5819 = vshll.u32 %v5714, 16
      %v5821 = vrot.slane %v5819, 5
      %v5822 = vsel %vm982, %v5817, %v5821
      %v5824 = vshrl.u32 %v5671, 16
      %v5826 = vrot.slane %v5824, 4
      %v5827 = vshll.u32 %v5671, 16
      %v5829 = vrot.slane %v5827, 5
      %v5830 = vor.u32 %v5826, %v5829
      %v5831 = vrot.slane %v5830, 4
      %v5833 = vshll.u32 %v5672, 16
      %v5835 = vrot.slane %v5833, 5
      %v5836 = vsel %vm982, %v5831, %v5835
      %v5837 = vshrl.u32 %v5672, 16
      %v5839 = vrot.slane %v5837, 4
      %v5840 = vor.u32 %v5839, %v5835
      %v5841 = vrot.slane %v5840, 4
      %v5843 = vshll.u32 %v5715, 16
      %v5845 = vrot.slane %v5843, 5
      %v5846 = vsel %vm982, %v5841, %v5845
      %v5848 = vshrl.u32 %v5673, 16
      %v5850 = vrot.slane %v5848, 4
      %v5851 = vshll.u32 %v5673, 16
      %v5853 = vrot.slane %v5851, 5
      %v5854 = vor.u32 %v5850, %v5853
      %v5855 = vrot.slane %v5854, 4
      %v5857 = vshll.u32 %v5674, 16
      %v5859 = vrot.slane %v5857, 5
      %v5860 = vsel %vm982, %v5855, %v5859
      %v5861 = vshrl.u32 %v5674, 16
      %v5863 = vrot.slane %v5861, 4
      %v5864 = vor.u32 %v5863, %v5859
      %v5865 = vrot.slane %v5864, 4
      %v5867 = vshll.u32 %v5716, 16
      %v5869 = vrot.slane %v5867, 5
      %v5870 = vsel %vm982, %v5865, %v5869
      %v5872 = vshrl.u32 %v5675, 16
      %v5874 = vrot.slane %v5872, 4
      %v5875 = vshll.u32 %v5675, 16
      %v5877 = vrot.slane %v5875, 5
      %v5878 = vor.u32 %v5874, %v5877
      %v5879 = vrot.slane %v5878, 4
      %v5881 = vshll.u32 %v5676, 16
      %v5883 = vrot.slane %v5881, 5
      %v5884 = vsel %vm982, %v5879, %v5883
      %v5885 = vshrl.u32 %v5676, 16
      %v5887 = vrot.slane %v5885, 4
      %v5888 = vor.u32 %v5887, %v5883
      %v5889 = vrot.slane %v5888, 4
      %v5891 = vshll.u32 %v5717, 16
      %v5893 = vrot.slane %v5891, 5
      %v5894 = vsel %vm982, %v5889, %v5893
      %v5896 = vshrl.u32 %v5677, 16
      %v5898 = vrot.slane %v5896, 4
      %v5899 = vshll.u32 %v5677, 16
      %v5901 = vrot.slane %v5899, 5
      %v5902 = vor.u32 %v5898, %v5901
      %v5903 = vrot.slane %v5902, 4
      %v5905 = vshll.u32 %v5678, 16
      %v5907 = vrot.slane %v5905, 5
      %v5908 = vsel %vm982, %v5903, %v5907
      %v5909 = vshrl.u32 %v5678, 16
      %v5911 = vrot.slane %v5909, 4
      %v5912 = vor.u32 %v5911, %v5907
      %v5913 = vrot.slane %v5912, 4
      %v5915 = vshll.u32 %v5718, 16
      %v5917 = vrot.slane %v5915, 5
      %v5918 = vsel %vm982, %v5913, %v5917
      %v5920 = vshrl.u32 %v5679, 16
      %v5922 = vrot.slane %v5920, 4
      %v5923 = vshll.u32 %v5679, 16
      %v5925 = vrot.slane %v5923, 5
      %v5926 = vor.u32 %v5922, %v5925
      %v5927 = vrot.slane %v5926, 4
      %v5929 = vshll.u32 %v5680, 16
      %v5931 = vrot.slane %v5929, 5
      %v5932 = vsel %vm982, %v5927, %v5931
      %v5933 = vshrl.u32 %v5680, 16
      %v5935 = vrot.slane %v5933, 4
      %v5936 = vor.u32 %v5935, %v5931
      %v5937 = vrot.slane %v5936, 4
      %v5939 = vshll.u32 %v5719, 16
      %v5941 = vrot.slane %v5939, 5
      %v5942 = vsel %vm982, %v5937, %v5941
      %v5944 = vshrl.u32 %v5681, 16
      %v5946 = vrot.slane %v5944, 4
      %v5947 = vshll.u32 %v5681, 16
      %v5949 = vrot.slane %v5947, 5
      %v5950 = vor.u32 %v5946, %v5949
      %v5951 = vrot.slane %v5950, 4
      %v5953 = vshll.u32 %v5682, 16
      %v5955 = vrot.slane %v5953, 5
      %v5956 = vsel %vm982, %v5951, %v5955
      %v5957 = vshrl.u32 %v5682, 16
      %v5959 = vrot.slane %v5957, 4
      %v5960 = vor.u32 %v5959, %v5955
      %v5961 = vrot.slane %v5960, 4
      %v5963 = vshll.u32 %v5720, 16
      %v5965 = vrot.slane %v5963, 5
      %v5966 = vsel %vm982, %v5961, %v5965
      %v5968 = vshrl.u32 %v5683, 16
      %v5970 = vrot.slane %v5968, 4
      %v5971 = vshll.u32 %v5683, 16
      %v5973 = vrot.slane %v5971, 5
      %v5974 = vor.u32 %v5970, %v5973
      %v5975 = vrot.slane %v5974, 4
      %v5977 = vshll.u32 %v5684, 16
      %v5979 = vrot.slane %v5977, 5
      %v5980 = vsel %vm982, %v5975, %v5979
      %v5981 = vshrl.u32 %v5684, 16
      %v5983 = vrot.slane %v5981, 4
      %v5984 = vor.u32 %v5983, %v5979
      %v5985 = vrot.slane %v5984, 4
      %v5987 = vshll.u32 %v5721, 16
      %v5989 = vrot.slane %v5987, 5
      %v5990 = vsel %vm982, %v5985, %v5989
      %v5992 = vshrl.u32 %v5685, 16
      %v5994 = vrot.slane %v5992, 4
      %v5995 = vshll.u32 %v5685, 16
      %v5997 = vrot.slane %v5995, 5
      %v5998 = vor.u32 %v5994, %v5997
      %v5999 = vrot.slane %v5998, 4
      %v6001 = vshll.u32 %v5686, 16
      %v6003 = vrot.slane %v6001, 5
      %v6004 = vsel %vm982, %v5999, %v6003
      %v6005 = vshrl.u32 %v5686, 16
      %v6007 = vrot.slane %v6005, 4
      %v6008 = vor.u32 %v6007, %v6003
      %v6009 = vrot.slane %v6008, 4
      %v6011 = vshll.u32 %v5722, 16
      %v6013 = vrot.slane %v6011, 5
      %v6014 = vsel %vm982, %v6009, %v6013
      %v6016 = vshrl.u32 %v5687, 16
      %v6018 = vrot.slane %v6016, 4
      %v6019 = vshll.u32 %v5687, 16
      %v6021 = vrot.slane %v6019, 5
      %v6022 = vor.u32 %v6018, %v6021
      %v6023 = vrot.slane %v6022, 4
      %v6025 = vshll.u32 %v5688, 16
      %v6027 = vrot.slane %v6025, 5
      %v6028 = vsel %vm982, %v6023, %v6027
      %v6029 = vshrl.u32 %v5688, 16
      %v6031 = vrot.slane %v6029, 4
      %v6032 = vor.u32 %v6031, %v6027
      %v6033 = vrot.slane %v6032, 4
      %v6035 = vshll.u32 %v5723, 16
      %v6037 = vrot.slane %v6035, 5
      %v6038 = vsel %vm982, %v6033, %v6037
      %v6040 = vshrl.u32 %v5689, 16
      %v6042 = vrot.slane %v6040, 4
      %v6043 = vshll.u32 %v5689, 16
      %v6045 = vrot.slane %v6043, 5
      %v6046 = vor.u32 %v6042, %v6045
      %v6047 = vrot.slane %v6046, 4
      %v6049 = vshll.u32 %v5690, 16
      %v6051 = vrot.slane %v6049, 5
      %v6052 = vsel %vm982, %v6047, %v6051
      %v6053 = vshrl.u32 %v5690, 16
      %v6055 = vrot.slane %v6053, 4
      %v6056 = vor.u32 %v6055, %v6051
      %v6057 = vrot.slane %v6056, 4
      %v6059 = vshll.u32 %v5724, 16
      %v6061 = vrot.slane %v6059, 5
      %v6062 = vsel %vm982, %v6057, %v6061
      %v6064 = vshrl.u32 %v5691, 16
      %v6066 = vrot.slane %v6064, 4
      %v6067 = vshll.u32 %v5691, 16
      %v6069 = vrot.slane %v6067, 5
      %v6070 = vor.u32 %v6066, %v6069
      %v6071 = vrot.slane %v6070, 4
      %v6073 = vshll.u32 %v5692, 16
      %v6075 = vrot.slane %v6073, 5
      %v6076 = vsel %vm982, %v6071, %v6075
      %v6077 = vshrl.u32 %v5692, 16
      %v6079 = vrot.slane %v6077, 4
      %v6080 = vor.u32 %v6079, %v6075
      %v6081 = vrot.slane %v6080, 4
      %v6083 = vshll.u32 %v5725, 16
      %v6085 = vrot.slane %v6083, 5
      %v6086 = vsel %vm982, %v6081, %v6085
      %v6088 = vshrl.u32 %v5693, 16
      %v6090 = vrot.slane %v6088, 4
      %v6091 = vshll.u32 %v5693, 16
      %v6093 = vrot.slane %v6091, 5
      %v6094 = vor.u32 %v6090, %v6093
      %v6095 = vrot.slane %v6094, 4
      %v6097 = vshll.u32 %v5694, 16
      %v6099 = vrot.slane %v6097, 5
      %v6100 = vsel %vm982, %v6095, %v6099
      %v6101 = vshrl.u32 %v5694, 16
      %v6103 = vrot.slane %v6101, 4
      %v6104 = vor.u32 %v6103, %v6099
      %v6105 = vrot.slane %v6104, 4
      %v6107 = vshll.u32 %v5726, 16
      %v6109 = vrot.slane %v6107, 5
      %v6110 = vsel %vm982, %v6105, %v6109
      %s6111 = scalar_lea.vmem %s5, 64
      %v6112 = vld [vmem:[%s6111] sm:$0xf]
      %v6113 = vld [vmem:[%s6111 + $0x4] sm:$0xf]
      %v6114 = vld [vmem:[%s6111 + $0x8] sm:$0xf]
      %v6115 = vld [vmem:[%s6111 + $0xc] sm:$0xf]
      %v6116 = vld [vmem:[%s6111 + $0x10] sm:$0xf]
      %v6117 = vld [vmem:[%s6111 + $0x14] sm:$0xf]
      %v6118 = vld [vmem:[%s6111 + $0x18] sm:$0xf]
      %v6119 = vld [vmem:[%s6111 + $0x1c] sm:$0xf]
      %v6120 = vld [vmem:[%s6111 + $0x20] sm:$0xf]
      %v6121 = vld [vmem:[%s6111 + $0x24] sm:$0xf]
      %v6122 = vld [vmem:[%s6111 + $0x28] sm:$0xf]
      %v6123 = vld [vmem:[%s6111 + $0x2c] sm:$0xf]
      %v6124 = vld [vmem:[%s6111 + $0x30] sm:$0xf]
      %v6125 = vld [vmem:[%s6111 + $0x34] sm:$0xf]
      %v6126 = vld [vmem:[%s6111 + $0x38] sm:$0xf]
      %v6127 = vld [vmem:[%s6111 + $0x3c] sm:$0xf]
      %v6128 = vunpack.c.l.b16 %v5740
      %v6129 = vunpack.c.l.b16 %v5750
      %v6130 = vunpack.c.l.b16 %v5764
      %v6131 = vunpack.c.l.b16 %v5774
      %v6132 = vunpack.c.l.b16 %v5788
      %v6133 = vunpack.c.l.b16 %v5798
      %v6134 = vunpack.c.l.b16 %v5812
      %v6135 = vunpack.c.l.b16 %v5822
      %v6136 = vunpack.c.l.b16 %v5836
      %v6137 = vunpack.c.l.b16 %v5846
      %v6138 = vunpack.c.l.b16 %v5860
      %v6139 = vunpack.c.l.b16 %v5870
      %v6140 = vunpack.c.l.b16 %v5884
      %v6141 = vunpack.c.l.b16 %v5894
      %v6142 = vunpack.c.l.b16 %v5908
      %v6143 = vunpack.c.l.b16 %v5918
      %v6144 = vunpack.c.l.b16 %v5932
      %v6145 = vunpack.c.l.b16 %v5942
      %v6146 = vunpack.c.l.b16 %v5956
      %v6147 = vunpack.c.l.b16 %v5966
      %v6148 = vunpack.c.l.b16 %v5980
      %v6149 = vunpack.c.l.b16 %v5990
      %v6150 = vunpack.c.l.b16 %v6004
      %v6151 = vunpack.c.l.b16 %v6014
      %v6152 = vunpack.c.l.b16 %v6028
      %v6153 = vunpack.c.l.b16 %v6038
      %v6154 = vunpack.c.l.b16 %v6052
      %v6155 = vunpack.c.l.b16 %v6062
      %v6156 = vunpack.c.l.b16 %v6076
      %v6157 = vunpack.c.l.b16 %v6086
      %v6158 = vunpack.c.l.b16 %v6100
      %v6159 = vunpack.c.l.b16 %v6110
      %v6160 = vpack.c.b16 %v6129, %v6128
      %v6161 = vpack.c.b16 %v6131, %v6130
      %v6162 = vpack.c.b16 %v6133, %v6132
      %v6163 = vpack.c.b16 %v6135, %v6134
      %v6164 = vpack.c.b16 %v6137, %v6136
      %v6165 = vpack.c.b16 %v6139, %v6138
      %v6166 = vpack.c.b16 %v6141, %v6140
      %v6167 = vpack.c.b16 %v6143, %v6142
      %v6168 = vpack.c.b16 %v6145, %v6144
      %v6169 = vpack.c.b16 %v6147, %v6146
      %v6170 = vpack.c.b16 %v6149, %v6148
      %v6171 = vpack.c.b16 %v6151, %v6150
      %v6172 = vpack.c.b16 %v6153, %v6152
      %v6173 = vpack.c.b16 %v6155, %v6154
      %v6174 = vpack.c.b16 %v6157, %v6156
      %v6175 = vpack.c.b16 %v6159, %v6158
      %v6208 = vunpack.c.l.b16 %v6112
      %v6209 = vunpack.c.l.b16 %v6113
      %v6210 = vunpack.c.l.b16 %v6114
      %v6211 = vunpack.c.l.b16 %v6115
      %v6212 = vunpack.c.l.b16 %v6116
      %v6213 = vunpack.c.l.b16 %v6117
      %v6214 = vunpack.c.l.b16 %v6118
      %v6215 = vunpack.c.l.b16 %v6119
      %v6216 = vunpack.c.l.b16 %v6120
      %v6217 = vunpack.c.l.b16 %v6121
      %v6218 = vunpack.c.l.b16 %v6122
      %v6219 = vunpack.c.l.b16 %v6123
      %v6220 = vunpack.c.l.b16 %v6124
      %v6221 = vunpack.c.l.b16 %v6125
      %v6222 = vunpack.c.l.b16 %v6126
      %v6223 = vunpack.c.l.b16 %v6127
      %v6224 = vpack.c.b16 %v6209, %v6208
      %v6225 = vpack.c.b16 %v6211, %v6210
      %v6226 = vpack.c.b16 %v6213, %v6212
      %v6227 = vpack.c.b16 %v6215, %v6214
      %v6228 = vpack.c.b16 %v6217, %v6216
      %v6229 = vpack.c.b16 %v6219, %v6218
      %v6230 = vpack.c.b16 %v6221, %v6220
      %v6231 = vpack.c.b16 %v6223, %v6222
      %6240 = vmatpush.bf16.msra.mxu0 %v6231
      %6241 = vmatpush.bf16.msra.mxu0 %v6230
      %6242 = vmatpush.bf16.msra.mxu0 %v6229
      %6243 = vmatpush.bf16.msra.mxu0 %v6228
      %6244 = vmatpush.bf16.msra.mxu0 %v6227
      %6245 = vmatpush.bf16.msra.mxu0 %v6226
      %6246 = vmatpush.bf16.msra.mxu0 %v6225
      %6247 = vmatpush.bf16.msra.mxu0 %v6224
      %6248 = vmatmul.bf16.gmra.mxu0 %v6160
      %v6249 = vpop.f32.mrf.mxu0
      %v6250 = vadd.f32 0.0, %v6249
      %v6251 = vpop.f32.mrf.mxu0
      %v6252 = vadd.f32 0.0, %v6251
      %6253 = vmatmul.bf16.gmra.mxu0 %v6161
      %v6254 = vpop.f32.mrf.mxu0
      %v6255 = vadd.f32 0.0, %v6254
      %v6256 = vpop.f32.mrf.mxu0
      %v6257 = vadd.f32 0.0, %v6256
      %6258 = vmatmul.bf16.gmra.mxu0 %v6162
      %v6259 = vpop.f32.mrf.mxu0
      %v6260 = vadd.f32 0.0, %v6259
      %v6261 = vpop.f32.mrf.mxu0
      %v6262 = vadd.f32 0.0, %v6261
      %6263 = vmatmul.bf16.gmra.mxu0 %v6163
      %v6264 = vpop.f32.mrf.mxu0
      %v6265 = vadd.f32 0.0, %v6264
      %v6266 = vpop.f32.mrf.mxu0
      %v6267 = vadd.f32 0.0, %v6266
      %6268 = vmatmul.bf16.gmra.mxu0 %v6164
      %v6269 = vpop.f32.mrf.mxu0
      %v6270 = vadd.f32 0.0, %v6269
      %v6271 = vpop.f32.mrf.mxu0
      %v6272 = vadd.f32 0.0, %v6271
      %6273 = vmatmul.bf16.gmra.mxu0 %v6165
      %v6274 = vpop.f32.mrf.mxu0
      %v6275 = vadd.f32 0.0, %v6274
      %v6276 = vpop.f32.mrf.mxu0
      %v6277 = vadd.f32 0.0, %v6276
      %6278 = vmatmul.bf16.gmra.mxu0 %v6166
      %v6279 = vpop.f32.mrf.mxu0
      %v6280 = vadd.f32 0.0, %v6279
      %v6281 = vpop.f32.mrf.mxu0
      %v6282 = vadd.f32 0.0, %v6281
      %6283 = vmatmul.bf16.gmra.mxu0 %v6167
      %v6284 = vpop.f32.mrf.mxu0
      %v6285 = vadd.f32 0.0, %v6284
      %v6286 = vpop.f32.mrf.mxu0
      %v6287 = vadd.f32 0.0, %v6286
      %6288 = vmatmul.bf16.gmra.mxu0 %v6168
      %v6289 = vpop.f32.mrf.mxu0
      %v6290 = vadd.f32 0.0, %v6289
      %v6291 = vpop.f32.mrf.mxu0
      %v6292 = vadd.f32 0.0, %v6291
      %6293 = vmatmul.bf16.gmra.mxu0 %v6169
      %v6294 = vpop.f32.mrf.mxu0
      %v6295 = vadd.f32 0.0, %v6294
      %v6296 = vpop.f32.mrf.mxu0
      %v6297 = vadd.f32 0.0, %v6296
      %6298 = vmatmul.bf16.gmra.mxu0 %v6170
      %v6299 = vpop.f32.mrf.mxu0
      %v6300 = vadd.f32 0.0, %v6299
      %v6301 = vpop.f32.mrf.mxu0
      %v6302 = vadd.f32 0.0, %v6301
      %6303 = vmatmul.bf16.gmra.mxu0 %v6171
      %v6304 = vpop.f32.mrf.mxu0
      %v6305 = vadd.f32 0.0, %v6304
      %v6306 = vpop.f32.mrf.mxu0
      %v6307 = vadd.f32 0.0, %v6306
      %6308 = vmatmul.bf16.gmra.mxu0 %v6172
      %v6309 = vpop.f32.mrf.mxu0
      %v6310 = vadd.f32 0.0, %v6309
      %v6311 = vpop.f32.mrf.mxu0
      %v6312 = vadd.f32 0.0, %v6311
      %6313 = vmatmul.bf16.gmra.mxu0 %v6173
      %v6314 = vpop.f32.mrf.mxu0
      %v6315 = vadd.f32 0.0, %v6314
      %v6316 = vpop.f32.mrf.mxu0
      %v6317 = vadd.f32 0.0, %v6316
      %6318 = vmatmul.bf16.gmra.mxu0 %v6174
      %v6319 = vpop.f32.mrf.mxu0
      %v6320 = vadd.f32 0.0, %v6319
      %v6321 = vpop.f32.mrf.mxu0
      %v6322 = vadd.f32 0.0, %v6321
      %6323 = vmatmul.bf16.gmra.mxu0 %v6175
      %v6324 = vpop.f32.mrf.mxu0
      %v6325 = vadd.f32 0.0, %v6324
      %v6326 = vpop.f32.mrf.mxu0
      %v6327 = vadd.f32 0.0, %v6326
      %6328 = vdwg.mxu0
      %v6361 = vunpack.c.l.b16 %v5663
      %v6362 = vunpack.c.l.b16 %v5664
      %v6363 = vunpack.c.l.b16 %v5665
      %v6364 = vunpack.c.l.b16 %v5666
      %v6365 = vunpack.c.l.b16 %v5667
      %v6366 = vunpack.c.l.b16 %v5668
      %v6367 = vunpack.c.l.b16 %v5669
      %v6368 = vunpack.c.l.b16 %v5670
      %v6369 = vunpack.c.l.b16 %v5671
      %v6370 = vunpack.c.l.b16 %v5672
      %v6371 = vunpack.c.l.b16 %v5673
      %v6372 = vunpack.c.l.b16 %v5674
      %v6373 = vunpack.c.l.b16 %v5675
      %v6374 = vunpack.c.l.b16 %v5676
      %v6375 = vunpack.c.l.b16 %v5677
      %v6376 = vunpack.c.l.b16 %v5678
      %v6377 = vunpack.c.l.b16 %v5679
      %v6378 = vunpack.c.l.b16 %v5680
      %v6379 = vunpack.c.l.b16 %v5681
      %v6380 = vunpack.c.l.b16 %v5682
      %v6381 = vunpack.c.l.b16 %v5683
      %v6382 = vunpack.c.l.b16 %v5684
      %v6383 = vunpack.c.l.b16 %v5685
      %v6384 = vunpack.c.l.b16 %v5686
      %v6385 = vunpack.c.l.b16 %v5687
      %v6386 = vunpack.c.l.b16 %v5688
      %v6387 = vunpack.c.l.b16 %v5689
      %v6388 = vunpack.c.l.b16 %v5690
      %v6389 = vunpack.c.l.b16 %v5691
      %v6390 = vunpack.c.l.b16 %v5692
      %v6391 = vunpack.c.l.b16 %v5693
      %v6392 = vunpack.c.l.b16 %v5694
      %v6393 = vpack.c.b16 %v6362, %v6361
      %v6394 = vpack.c.b16 %v6364, %v6363
      %v6395 = vpack.c.b16 %v6366, %v6365
      %v6396 = vpack.c.b16 %v6368, %v6367
      %v6397 = vpack.c.b16 %v6370, %v6369
      %v6398 = vpack.c.b16 %v6372, %v6371
      %v6399 = vpack.c.b16 %v6374, %v6373
      %v6400 = vpack.c.b16 %v6376, %v6375
      %v6401 = vpack.c.b16 %v6378, %v6377
      %v6402 = vpack.c.b16 %v6380, %v6379
      %v6403 = vpack.c.b16 %v6382, %v6381
      %v6404 = vpack.c.b16 %v6384, %v6383
      %v6405 = vpack.c.b16 %v6386, %v6385
      %v6406 = vpack.c.b16 %v6388, %v6387
      %v6407 = vpack.c.b16 %v6390, %v6389
      %v6408 = vpack.c.b16 %v6392, %v6391
      %v6441 = vunpack.c.l.b16 %v5695
      %v6442 = vunpack.c.l.b16 %v5696
      %v6443 = vunpack.c.l.b16 %v5697
      %v6444 = vunpack.c.l.b16 %v5698
      %v6445 = vunpack.c.l.b16 %v5699
      %v6446 = vunpack.c.l.b16 %v5700
      %v6447 = vunpack.c.l.b16 %v5701
      %v6448 = vunpack.c.l.b16 %v5702
      %v6449 = vunpack.c.l.b16 %v5703
      %v6450 = vunpack.c.l.b16 %v5704
      %v6451 = vunpack.c.l.b16 %v5705
      %v6452 = vunpack.c.l.b16 %v5706
      %v6453 = vunpack.c.l.b16 %v5707
      %v6454 = vunpack.c.l.b16 %v5708
      %v6455 = vunpack.c.l.b16 %v5709
      %v6456 = vunpack.c.l.b16 %v5710
      %v6457 = vpack.c.b16 %v6442, %v6441
      %v6458 = vpack.c.b16 %v6444, %v6443
      %v6459 = vpack.c.b16 %v6446, %v6445
      %v6460 = vpack.c.b16 %v6448, %v6447
      %v6461 = vpack.c.b16 %v6450, %v6449
      %v6462 = vpack.c.b16 %v6452, %v6451
      %v6463 = vpack.c.b16 %v6454, %v6453
      %v6464 = vpack.c.b16 %v6456, %v6455
      %6473 = vmatpush.bf16.msra.mxu0 %v6464
      %6474 = vmatpush.bf16.msra.mxu0 %v6463
      %6475 = vmatpush.bf16.msra.mxu0 %v6462
      %6476 = vmatpush.bf16.msra.mxu0 %v6461
      %6477 = vmatpush.bf16.msra.mxu0 %v6460
      %6478 = vmatpush.bf16.msra.mxu0 %v6459
      %6479 = vmatpush.bf16.msra.mxu0 %v6458
      %6480 = vmatpush.bf16.msra.mxu0 %v6457
      %6481 = vmatmul.bf16.gmra.mxu0 %v6393
      %v6482 = vpop.f32.mrf.mxu0
      %v6483 = vadd.f32 %v6250, %v6482
      %v6484 = vpop.f32.mrf.mxu0
      %v6485 = vadd.f32 %v6252, %v6484
      %6486 = vmatmul.bf16.gmra.mxu0 %v6394
      %v6487 = vpop.f32.mrf.mxu0
      %v6488 = vadd.f32 %v6255, %v6487
      %v6489 = vpop.f32.mrf.mxu0
      %v6490 = vadd.f32 %v6257, %v6489
      %6491 = vmatmul.bf16.gmra.mxu0 %v6395
      %v6492 = vpop.f32.mrf.mxu0
      %v6493 = vadd.f32 %v6260, %v6492
      %v6494 = vpop.f32.mrf.mxu0
      %v6495 = vadd.f32 %v6262, %v6494
      %6496 = vmatmul.bf16.gmra.mxu0 %v6396
      %v6497 = vpop.f32.mrf.mxu0
      %v6498 = vadd.f32 %v6265, %v6497
      %v6499 = vpop.f32.mrf.mxu0
      %v6500 = vadd.f32 %v6267, %v6499
      %6501 = vmatmul.bf16.gmra.mxu0 %v6397
      %v6502 = vpop.f32.mrf.mxu0
      %v6503 = vadd.f32 %v6270, %v6502
      %v6504 = vpop.f32.mrf.mxu0
      %v6505 = vadd.f32 %v6272, %v6504
      %6506 = vmatmul.bf16.gmra.mxu0 %v6398
      %v6507 = vpop.f32.mrf.mxu0
      %v6508 = vadd.f32 %v6275, %v6507
      %v6509 = vpop.f32.mrf.mxu0
      %v6510 = vadd.f32 %v6277, %v6509
      %6511 = vmatmul.bf16.gmra.mxu0 %v6399
      %v6512 = vpop.f32.mrf.mxu0
      %v6513 = vadd.f32 %v6280, %v6512
      %v6514 = vpop.f32.mrf.mxu0
      %v6515 = vadd.f32 %v6282, %v6514
      %6516 = vmatmul.bf16.gmra.mxu0 %v6400
      %v6517 = vpop.f32.mrf.mxu0
      %v6518 = vadd.f32 %v6285, %v6517
      %v6519 = vpop.f32.mrf.mxu0
      %v6520 = vadd.f32 %v6287, %v6519
      %6521 = vmatmul.bf16.gmra.mxu0 %v6401
      %v6522 = vpop.f32.mrf.mxu0
      %v6523 = vadd.f32 %v6290, %v6522
      %v6524 = vpop.f32.mrf.mxu0
      %v6525 = vadd.f32 %v6292, %v6524
      %6526 = vmatmul.bf16.gmra.mxu0 %v6402
      %v6527 = vpop.f32.mrf.mxu0
      %v6528 = vadd.f32 %v6295, %v6527
      %v6529 = vpop.f32.mrf.mxu0
      %v6530 = vadd.f32 %v6297, %v6529
      %6531 = vmatmul.bf16.gmra.mxu0 %v6403
      %v6532 = vpop.f32.mrf.mxu0
      %v6533 = vadd.f32 %v6300, %v6532
      %v6534 = vpop.f32.mrf.mxu0
      %v6535 = vadd.f32 %v6302, %v6534
      %6536 = vmatmul.bf16.gmra.mxu0 %v6404
      %v6537 = vpop.f32.mrf.mxu0
      %v6538 = vadd.f32 %v6305, %v6537
      %v6539 = vpop.f32.mrf.mxu0
      %v6540 = vadd.f32 %v6307, %v6539
      %6541 = vmatmul.bf16.gmra.mxu0 %v6405
      %v6542 = vpop.f32.mrf.mxu0
      %v6543 = vadd.f32 %v6310, %v6542
      %v6544 = vpop.f32.mrf.mxu0
      %v6545 = vadd.f32 %v6312, %v6544
      %6546 = vmatmul.bf16.gmra.mxu0 %v6406
      %v6547 = vpop.f32.mrf.mxu0
      %v6548 = vadd.f32 %v6315, %v6547
      %v6549 = vpop.f32.mrf.mxu0
      %v6550 = vadd.f32 %v6317, %v6549
      %6551 = vmatmul.bf16.gmra.mxu0 %v6407
      %v6552 = vpop.f32.mrf.mxu0
      %v6553 = vadd.f32 %v6320, %v6552
      %v6554 = vpop.f32.mrf.mxu0
      %v6555 = vadd.f32 %v6322, %v6554
      %6556 = vmatmul.bf16.gmra.mxu0 %v6408
      %v6557 = vpop.f32.mrf.mxu0
      %v6558 = vadd.f32 %v6325, %v6557
      %v6559 = vpop.f32.mrf.mxu0
      %v6560 = vadd.f32 %v6327, %v6559
      %6561 = vdwg.mxu0
      %v6562 = vld [vmem:[#allocation3] sm:$0xe]
      %v6563 = vld [vmem:[#allocation3 + $0xc] sm:$0xe]
      %v6564 = vld [vmem:[#allocation3 + $0x18] sm:$0xe]
      %v6565 = vld [vmem:[#allocation3 + $0x24] sm:$0xe]
      %v6566 = vld [vmem:[#allocation3 + $0x30] sm:$0xe]
      %v6567 = vld [vmem:[#allocation3 + $0x3c] sm:$0xe]
      %v6568 = vld [vmem:[#allocation3 + $0x48] sm:$0xe]
      %v6569 = vld [vmem:[#allocation3 + $0x54] sm:$0xe]
      %v6570 = vld [vmem:[#allocation3 + $0x60] sm:$0xe]
      %v6571 = vld [vmem:[#allocation3 + $0x6c] sm:$0xe]
      %v6572 = vld [vmem:[#allocation3 + $0x78] sm:$0xe]
      %v6573 = vld [vmem:[#allocation3 + $0x84] sm:$0xe]
      %v6574 = vld [vmem:[#allocation3 + $0x90] sm:$0xe]
      %v6575 = vld [vmem:[#allocation3 + $0x9c] sm:$0xe]
      %v6576 = vld [vmem:[#allocation3 + $0xa8] sm:$0xe]
      %v6577 = vld [vmem:[#allocation3 + $0xb4] sm:$0xe]
      %v6610 = vrot.slane %v6562, 5
      %v6611 = vrot.slane %v6610, 4
      %v6612 = vrot.slane %v5664, 5
      %v6613 = vsel %vm1868, %v6611, %v6612
      %v6614 = vrot.slane %v6612, 4
      %v6615 = vrot.slane %v5711, 5
      %v6616 = vsel %vm1868, %v6614, %v6615
      %v6617 = vrot.slane %v6563, 5
      %v6618 = vrot.slane %v6617, 4
      %v6619 = vrot.slane %v5666, 5
      %v6620 = vsel %vm1868, %v6618, %v6619
      %v6621 = vrot.slane %v6619, 4
      %v6622 = vrot.slane %v5712, 5
      %v6623 = vsel %vm1868, %v6621, %v6622
      %v6624 = vrot.slane %v6564, 5
      %v6625 = vrot.slane %v6624, 4
      %v6626 = vrot.slane %v5668, 5
      %v6627 = vsel %vm1868, %v6625, %v6626
      %v6628 = vrot.slane %v6626, 4
      %v6629 = vrot.slane %v5713, 5
      %v6630 = vsel %vm1868, %v6628, %v6629
      %v6631 = vrot.slane %v6565, 5
      %v6632 = vrot.slane %v6631, 4
      %v6633 = vrot.slane %v5670, 5
      %v6634 = vsel %vm1868, %v6632, %v6633
      %v6635 = vrot.slane %v6633, 4
      %v6636 = vrot.slane %v5714, 5
      %v6637 = vsel %vm1868, %v6635, %v6636
      %v6638 = vrot.slane %v6566, 5
      %v6639 = vrot.slane %v6638, 4
      %v6640 = vrot.slane %v5672, 5
      %v6641 = vsel %vm1868, %v6639, %v6640
      %v6642 = vrot.slane %v6640, 4
      %v6643 = vrot.slane %v5715, 5
      %v6644 = vsel %vm1868, %v6642, %v6643
      %v6645 = vrot.slane %v6567, 5
      %v6646 = vrot.slane %v6645, 4
      %v6647 = vrot.slane %v5674, 5
      %v6648 = vsel %vm1868, %v6646, %v6647
      %v6649 = vrot.slane %v6647, 4
      %v6650 = vrot.slane %v5716, 5
      %v6651 = vsel %vm1868, %v6649, %v6650
      %v6652 = vrot.slane %v6568, 5
      %v6653 = vrot.slane %v6652, 4
      %v6654 = vrot.slane %v5676, 5
      %v6655 = vsel %vm1868, %v6653, %v6654
      %v6656 = vrot.slane %v6654, 4
      %v6657 = vrot.slane %v5717, 5
      %v6658 = vsel %vm1868, %v6656, %v6657
      %v6659 = vrot.slane %v6569, 5
      %v6660 = vrot.slane %v6659, 4
      %v6661 = vrot.slane %v5678, 5
      %v6662 = vsel %vm1868, %v6660, %v6661
      %v6663 = vrot.slane %v6661, 4
      %v6664 = vrot.slane %v5718, 5
      %v6665 = vsel %vm1868, %v6663, %v6664
      %v6666 = vrot.slane %v6570, 5
      %v6667 = vrot.slane %v6666, 4
      %v6668 = vrot.slane %v5680, 5
      %v6669 = vsel %vm1868, %v6667, %v6668
      %v6670 = vrot.slane %v6668, 4
      %v6671 = vrot.slane %v5719, 5
      %v6672 = vsel %vm1868, %v6670, %v6671
      %v6673 = vrot.slane %v6571, 5
      %v6674 = vrot.slane %v6673, 4
      %v6675 = vrot.slane %v5682, 5
      %v6676 = vsel %vm1868, %v6674, %v6675
      %v6677 = vrot.slane %v6675, 4
      %v6678 = vrot.slane %v5720, 5
      %v6679 = vsel %vm1868, %v6677, %v6678
      %v6680 = vrot.slane %v6572, 5
      %v6681 = vrot.slane %v6680, 4
      %v6682 = vrot.slane %v5684, 5
      %v6683 = vsel %vm1868, %v6681, %v6682
      %v6684 = vrot.slane %v6682, 4
      %v6685 = vrot.slane %v5721, 5
      %v6686 = vsel %vm1868, %v6684, %v6685
      %v6687 = vrot.slane %v6573, 5
      %v6688 = vrot.slane %v6687, 4
      %v6689 = vrot.slane %v5686, 5
      %v6690 = vsel %vm1868, %v6688, %v6689
      %v6691 = vrot.slane %v6689, 4
      %v6692 = vrot.slane %v5722, 5
      %v6693 = vsel %vm1868, %v6691, %v6692
      %v6694 = vrot.slane %v6574, 5
      %v6695 = vrot.slane %v6694, 4
      %v6696 = vrot.slane %v5688, 5
      %v6697 = vsel %vm1868, %v6695, %v6696
      %v6698 = vrot.slane %v6696, 4
      %v6699 = vrot.slane %v5723, 5
      %v6700 = vsel %vm1868, %v6698, %v6699
      %v6701 = vrot.slane %v6575, 5
      %v6702 = vrot.slane %v6701, 4
      %v6703 = vrot.slane %v5690, 5
      %v6704 = vsel %vm1868, %v6702, %v6703
      %v6705 = vrot.slane %v6703, 4
      %v6706 = vrot.slane %v5724, 5
      %v6707 = vsel %vm1868, %v6705, %v6706
      %v6708 = vrot.slane %v6576, 5
      %v6709 = vrot.slane %v6708, 4
      %v6710 = vrot.slane %v5692, 5
      %v6711 = vsel %vm1868, %v6709, %v6710
      %v6712 = vrot.slane %v6710, 4
      %v6713 = vrot.slane %v5725, 5
      %v6714 = vsel %vm1868, %v6712, %v6713
      %v6715 = vrot.slane %v6577, 5
      %v6716 = vrot.slane %v6715, 4
      %v6717 = vrot.slane %v5694, 5
      %v6718 = vsel %vm1868, %v6716, %v6717
      %v6719 = vrot.slane %v6717, 4
      %v6720 = vrot.slane %v5726, 5
      %v6721 = vsel %vm1868, %v6719, %v6720
      %s6722 = scalar_lea.vmem %s5, 128
      %v6723 = vld [vmem:[%s6722] sm:$0xf]
      %v6724 = vld [vmem:[%s6722 + $0x4] sm:$0xf]
      %v6725 = vld [vmem:[%s6722 + $0x8] sm:$0xf]
      %v6726 = vld [vmem:[%s6722 + $0xc] sm:$0xf]
      %v6727 = vld [vmem:[%s6722 + $0x10] sm:$0xf]
      %v6728 = vld [vmem:[%s6722 + $0x14] sm:$0xf]
      %v6729 = vld [vmem:[%s6722 + $0x18] sm:$0xf]
      %v6730 = vld [vmem:[%s6722 + $0x1c] sm:$0xf]
      %v6731 = vld [vmem:[%s6722 + $0x20] sm:$0xf]
      %v6732 = vld [vmem:[%s6722 + $0x24] sm:$0xf]
      %v6733 = vld [vmem:[%s6722 + $0x28] sm:$0xf]
      %v6734 = vld [vmem:[%s6722 + $0x2c] sm:$0xf]
      %v6735 = vld [vmem:[%s6722 + $0x30] sm:$0xf]
      %v6736 = vld [vmem:[%s6722 + $0x34] sm:$0xf]
      %v6737 = vld [vmem:[%s6722 + $0x38] sm:$0xf]
      %v6738 = vld [vmem:[%s6722 + $0x3c] sm:$0xf]
      %v6739 = vunpack.c.l.b16 %v6613
      %v6740 = vunpack.c.l.b16 %v6616
      %v6741 = vunpack.c.l.b16 %v6620
      %v6742 = vunpack.c.l.b16 %v6623
      %v6743 = vunpack.c.l.b16 %v6627
      %v6744 = vunpack.c.l.b16 %v6630
      %v6745 = vunpack.c.l.b16 %v6634
      %v6746 = vunpack.c.l.b16 %v6637
      %v6747 = vunpack.c.l.b16 %v6641
      %v6748 = vunpack.c.l.b16 %v6644
      %v6749 = vunpack.c.l.b16 %v6648
      %v6750 = vunpack.c.l.b16 %v6651
      %v6751 = vunpack.c.l.b16 %v6655
      %v6752 = vunpack.c.l.b16 %v6658
      %v6753 = vunpack.c.l.b16 %v6662
      %v6754 = vunpack.c.l.b16 %v6665
      %v6755 = vunpack.c.l.b16 %v6669
      %v6756 = vunpack.c.l.b16 %v6672
      %v6757 = vunpack.c.l.b16 %v6676
      %v6758 = vunpack.c.l.b16 %v6679
      %v6759 = vunpack.c.l.b16 %v6683
      %v6760 = vunpack.c.l.b16 %v6686
      %v6761 = vunpack.c.l.b16 %v6690
      %v6762 = vunpack.c.l.b16 %v6693
      %v6763 = vunpack.c.l.b16 %v6697
      %v6764 = vunpack.c.l.b16 %v6700
      %v6765 = vunpack.c.l.b16 %v6704
      %v6766 = vunpack.c.l.b16 %v6707
      %v6767 = vunpack.c.l.b16 %v6711
      %v6768 = vunpack.c.l.b16 %v6714
      %v6769 = vunpack.c.l.b16 %v6718
      %v6770 = vunpack.c.l.b16 %v6721
      %v6771 = vpack.c.b16 %v6740, %v6739
      %v6772 = vpack.c.b16 %v6742, %v6741
      %v6773 = vpack.c.b16 %v6744, %v6743
      %v6774 = vpack.c.b16 %v6746, %v6745
      %v6775 = vpack.c.b16 %v6748, %v6747
      %v6776 = vpack.c.b16 %v6750, %v6749
      %v6777 = vpack.c.b16 %v6752, %v6751
      %v6778 = vpack.c.b16 %v6754, %v6753
      %v6779 = vpack.c.b16 %v6756, %v6755
      %v6780 = vpack.c.b16 %v6758, %v6757
      %v6781 = vpack.c.b16 %v6760, %v6759
      %v6782 = vpack.c.b16 %v6762, %v6761
      %v6783 = vpack.c.b16 %v6764, %v6763
      %v6784 = vpack.c.b16 %v6766, %v6765
      %v6785 = vpack.c.b16 %v6768, %v6767
      %v6786 = vpack.c.b16 %v6770, %v6769
      %v6819 = vunpack.c.l.b16 %v6723
      %v6820 = vunpack.c.l.b16 %v6724
      %v6821 = vunpack.c.l.b16 %v6725
      %v6822 = vunpack.c.l.b16 %v6726
      %v6823 = vunpack.c.l.b16 %v6727
      %v6824 = vunpack.c.l.b16 %v6728
      %v6825 = vunpack.c.l.b16 %v6729
      %v6826 = vunpack.c.l.b16 %v6730
      %v6827 = vunpack.c.l.b16 %v6731
      %v6828 = vunpack.c.l.b16 %v6732
      %v6829 = vunpack.c.l.b16 %v6733
      %v6830 = vunpack.c.l.b16 %v6734
      %v6831 = vunpack.c.l.b16 %v6735
      %v6832 = vunpack.c.l.b16 %v6736
      %v6833 = vunpack.c.l.b16 %v6737
      %v6834 = vunpack.c.l.b16 %v6738
      %v6835 = vpack.c.b16 %v6820, %v6819
      %v6836 = vpack.c.b16 %v6822, %v6821
      %v6837 = vpack.c.b16 %v6824, %v6823
      %v6838 = vpack.c.b16 %v6826, %v6825
      %v6839 = vpack.c.b16 %v6828, %v6827
      %v6840 = vpack.c.b16 %v6830, %v6829
      %v6841 = vpack.c.b16 %v6832, %v6831
      %v6842 = vpack.c.b16 %v6834, %v6833
      %6851 = vmatpush.bf16.msra.mxu0 %v6842
      %6852 = vmatpush.bf16.msra.mxu0 %v6841
      %6853 = vmatpush.bf16.msra.mxu0 %v6840
      %6854 = vmatpush.bf16.msra.mxu0 %v6839
      %6855 = vmatpush.bf16.msra.mxu0 %v6838
      %6856 = vmatpush.bf16.msra.mxu0 %v6837
      %6857 = vmatpush.bf16.msra.mxu0 %v6836
      %6858 = vmatpush.bf16.msra.mxu0 %v6835
      %6859 = vmatmul.bf16.gmra.mxu0 %v6771
      %v6860 = vpop.f32.mrf.mxu0
      %v6861 = vadd.f32 0.0, %v6860
      %v6862 = vpop.f32.mrf.mxu0
      %v6863 = vadd.f32 0.0, %v6862
      %6864 = vmatmul.bf16.gmra.mxu0 %v6772
      %v6865 = vpop.f32.mrf.mxu0
      %v6866 = vadd.f32 0.0, %v6865
      %v6867 = vpop.f32.mrf.mxu0
      %v6868 = vadd.f32 0.0, %v6867
      %6869 = vmatmul.bf16.gmra.mxu0 %v6773
      %v6870 = vpop.f32.mrf.mxu0
      %v6871 = vadd.f32 0.0, %v6870
      %v6872 = vpop.f32.mrf.mxu0
      %v6873 = vadd.f32 0.0, %v6872
      %6874 = vmatmul.bf16.gmra.mxu0 %v6774
      %v6875 = vpop.f32.mrf.mxu0
      %v6876 = vadd.f32 0.0, %v6875
      %v6877 = vpop.f32.mrf.mxu0
      %v6878 = vadd.f32 0.0, %v6877
      %6879 = vmatmul.bf16.gmra.mxu0 %v6775
      %v6880 = vpop.f32.mrf.mxu0
      %v6881 = vadd.f32 0.0, %v6880
      %v6882 = vpop.f32.mrf.mxu0
      %v6883 = vadd.f32 0.0, %v6882
      %6884 = vmatmul.bf16.gmra.mxu0 %v6776
      %v6885 = vpop.f32.mrf.mxu0
      %v6886 = vadd.f32 0.0, %v6885
      %v6887 = vpop.f32.mrf.mxu0
      %v6888 = vadd.f32 0.0, %v6887
      %6889 = vmatmul.bf16.gmra.mxu0 %v6777
      %v6890 = vpop.f32.mrf.mxu0
      %v6891 = vadd.f32 0.0, %v6890
      %v6892 = vpop.f32.mrf.mxu0
      %v6893 = vadd.f32 0.0, %v6892
      %6894 = vmatmul.bf16.gmra.mxu0 %v6778
      %v6895 = vpop.f32.mrf.mxu0
      %v6896 = vadd.f32 0.0, %v6895
      %v6897 = vpop.f32.mrf.mxu0
      %v6898 = vadd.f32 0.0, %v6897
      %6899 = vmatmul.bf16.gmra.mxu0 %v6779
      %v6900 = vpop.f32.mrf.mxu0
      %v6901 = vadd.f32 0.0, %v6900
      %v6902 = vpop.f32.mrf.mxu0
      %v6903 = vadd.f32 0.0, %v6902
      %6904 = vmatmul.bf16.gmra.mxu0 %v6780
      %v6905 = vpop.f32.mrf.mxu0
      %v6906 = vadd.f32 0.0, %v6905
      %v6907 = vpop.f32.mrf.mxu0
      %v6908 = vadd.f32 0.0, %v6907
      %6909 = vmatmul.bf16.gmra.mxu0 %v6781
      %v6910 = vpop.f32.mrf.mxu0
      %v6911 = vadd.f32 0.0, %v6910
      %v6912 = vpop.f32.mrf.mxu0
      %v6913 = vadd.f32 0.0, %v6912
      %6914 = vmatmul.bf16.gmra.mxu0 %v6782
      %v6915 = vpop.f32.mrf.mxu0
      %v6916 = vadd.f32 0.0, %v6915
      %v6917 = vpop.f32.mrf.mxu0
      %v6918 = vadd.f32 0.0, %v6917
      %6919 = vmatmul.bf16.gmra.mxu0 %v6783
      %v6920 = vpop.f32.mrf.mxu0
      %v6921 = vadd.f32 0.0, %v6920
      %v6922 = vpop.f32.mrf.mxu0
      %v6923 = vadd.f32 0.0, %v6922
      %6924 = vmatmul.bf16.gmra.mxu0 %v6784
      %v6925 = vpop.f32.mrf.mxu0
      %v6926 = vadd.f32 0.0, %v6925
      %v6927 = vpop.f32.mrf.mxu0
      %v6928 = vadd.f32 0.0, %v6927
      %6929 = vmatmul.bf16.gmra.mxu0 %v6785
      %v6930 = vpop.f32.mrf.mxu0
      %v6931 = vadd.f32 0.0, %v6930
      %v6932 = vpop.f32.mrf.mxu0
      %v6933 = vadd.f32 0.0, %v6932
      %6934 = vmatmul.bf16.gmra.mxu0 %v6786
      %v6935 = vpop.f32.mrf.mxu0
      %v6936 = vadd.f32 0.0, %v6935
      %v6937 = vpop.f32.mrf.mxu0
      %v6938 = vadd.f32 0.0, %v6937
      %6939 = vdwg.mxu0
      %v6940 = vadd.f32 %v6483, %v6861
      %v6941 = vadd.f32 %v6485, %v6863
      %v6942 = vadd.f32 %v6488, %v6866
      %v6943 = vadd.f32 %v6490, %v6868
      %v6944 = vadd.f32 %v6493, %v6871
      %v6945 = vadd.f32 %v6495, %v6873
      %v6946 = vadd.f32 %v6498, %v6876
      %v6947 = vadd.f32 %v6500, %v6878
      %v6948 = vadd.f32 %v6503, %v6881
      %v6949 = vadd.f32 %v6505, %v6883
      %v6950 = vadd.f32 %v6508, %v6886
      %v6951 = vadd.f32 %v6510, %v6888
      %v6952 = vadd.f32 %v6513, %v6891
      %v6953 = vadd.f32 %v6515, %v6893
      %v6954 = vadd.f32 %v6518, %v6896
      %v6955 = vadd.f32 %v6520, %v6898
      %v6956 = vadd.f32 %v6523, %v6901
      %v6957 = vadd.f32 %v6525, %v6903
      %v6958 = vadd.f32 %v6528, %v6906
      %v6959 = vadd.f32 %v6530, %v6908
      %v6960 = vadd.f32 %v6533, %v6911
      %v6961 = vadd.f32 %v6535, %v6913
      %v6962 = vadd.f32 %v6538, %v6916
      %v6963 = vadd.f32 %v6540, %v6918
      %v6964 = vadd.f32 %v6543, %v6921
      %v6965 = vadd.f32 %v6545, %v6923
      %v6966 = vadd.f32 %v6548, %v6926
      %v6967 = vadd.f32 %v6550, %v6928
      %v6968 = vadd.f32 %v6553, %v6931
      %v6969 = vadd.f32 %v6555, %v6933
      %v6970 = vadd.f32 %v6558, %v6936
      %v6971 = vadd.f32 %v6560, %v6938
      %v6972 = vld [vmem:[%s5550] sm:$0xf]
      %v6973 = vld [vmem:[%s5550 + $0x4] sm:$0xf]
      %v6974 = vld [vmem:[%s5550 + $0xc] sm:$0xf]
      %v6975 = vld [vmem:[%s5550 + $0x10] sm:$0xf]
      %v6976 = vld [vmem:[%s5550 + $0x18] sm:$0xf]
      %v6977 = vld [vmem:[%s5550 + $0x1c] sm:$0xf]
      %v6978 = vld [vmem:[%s5550 + $0x24] sm:$0xf]
      %v6979 = vld [vmem:[%s5550 + $0x28] sm:$0xf]
      %v6980 = vld [vmem:[%s5550 + $0x30] sm:$0xf]
      %v6981 = vld [vmem:[%s5550 + $0x34] sm:$0xf]
      %v6982 = vld [vmem:[%s5550 + $0x3c] sm:$0xf]
      %v6983 = vld [vmem:[%s5550 + $0x40] sm:$0xf]
      %v6984 = vld [vmem:[%s5550 + $0x48] sm:$0xf]
      %v6985 = vld [vmem:[%s5550 + $0x4c] sm:$0xf]
      %v6986 = vld [vmem:[%s5550 + $0x54] sm:$0xf]
      %v6987 = vld [vmem:[%s5550 + $0x58] sm:$0xf]
      %v6988 = vld [vmem:[%s5550 + $0x60] sm:$0xf]
      %v6989 = vld [vmem:[%s5550 + $0x64] sm:$0xf]
      %v6990 = vld [vmem:[%s5550 + $0x6c] sm:$0xf]
      %v6991 = vld [vmem:[%s5550 + $0x70] sm:$0xf]
      %v6992 = vld [vmem:[%s5550 + $0x78] sm:$0xf]
      %v6993 = vld [vmem:[%s5550 + $0x7c] sm:$0xf]
      %v6994 = vld [vmem:[%s5550 + $0x84] sm:$0xf]
      %v6995 = vld [vmem:[%s5550 + $0x88] sm:$0xf]
      %v6996 = vld [vmem:[%s5550 + $0x90] sm:$0xf]
      %v6997 = vld [vmem:[%s5550 + $0x94] sm:$0xf]
      %v6998 = vld [vmem:[%s5550 + $0x9c] sm:$0xf]
      %v6999 = vld [vmem:[%s5550 + $0xa0] sm:$0xf]
      %v7000 = vld [vmem:[%s5550 + $0xa8] sm:$0xf]
      %v7001 = vld [vmem:[%s5550 + $0xac] sm:$0xf]
      %v7002 = vld [vmem:[%s5550 + $0xb4] sm:$0xf]
      %v7003 = vld [vmem:[%s5550 + $0xb8] sm:$0xf]
      %s7004 = scalar_lea.vmem %s5, 192
      %v7005 = vld [vmem:[%s7004] sm:$0xf]
      %v7006 = vld [vmem:[%s7004 + $0x4] sm:$0xf]
      %v7007 = vld [vmem:[%s7004 + $0x8] sm:$0xf]
      %v7008 = vld [vmem:[%s7004 + $0xc] sm:$0xf]
      %v7009 = vld [vmem:[%s7004 + $0x10] sm:$0xf]
      %v7010 = vld [vmem:[%s7004 + $0x14] sm:$0xf]
      %v7011 = vld [vmem:[%s7004 + $0x18] sm:$0xf]
      %v7012 = vld [vmem:[%s7004 + $0x1c] sm:$0xf]
      %v7013 = vld [vmem:[%s7004 + $0x20] sm:$0xf]
      %v7014 = vld [vmem:[%s7004 + $0x24] sm:$0xf]
      %v7015 = vld [vmem:[%s7004 + $0x28] sm:$0xf]
      %v7016 = vld [vmem:[%s7004 + $0x2c] sm:$0xf]
      %v7017 = vld [vmem:[%s7004 + $0x30] sm:$0xf]
      %v7018 = vld [vmem:[%s7004 + $0x34] sm:$0xf]
      %v7019 = vld [vmem:[%s7004 + $0x38] sm:$0xf]
      %v7020 = vld [vmem:[%s7004 + $0x3c] sm:$0xf]
      %v7053 = vunpack.c.l.b16 %v6972
      %v7054 = vunpack.c.l.b16 %v6973
      %v7055 = vunpack.c.l.b16 %v6974
      %v7056 = vunpack.c.l.b16 %v6975
      %v7057 = vunpack.c.l.b16 %v6976
      %v7058 = vunpack.c.l.b16 %v6977
      %v7059 = vunpack.c.l.b16 %v6978
      %v7060 = vunpack.c.l.b16 %v6979
      %v7061 = vunpack.c.l.b16 %v6980
      %v7062 = vunpack.c.l.b16 %v6981
      %v7063 = vunpack.c.l.b16 %v6982
      %v7064 = vunpack.c.l.b16 %v6983
      %v7065 = vunpack.c.l.b16 %v6984
      %v7066 = vunpack.c.l.b16 %v6985
      %v7067 = vunpack.c.l.b16 %v6986
      %v7068 = vunpack.c.l.b16 %v6987
      %v7069 = vunpack.c.l.b16 %v6988
      %v7070 = vunpack.c.l.b16 %v6989
      %v7071 = vunpack.c.l.b16 %v6990
      %v7072 = vunpack.c.l.b16 %v6991
      %v7073 = vunpack.c.l.b16 %v6992
      %v7074 = vunpack.c.l.b16 %v6993
      %v7075 = vunpack.c.l.b16 %v6994
      %v7076 = vunpack.c.l.b16 %v6995
      %v7077 = vunpack.c.l.b16 %v6996
      %v7078 = vunpack.c.l.b16 %v6997
      %v7079 = vunpack.c.l.b16 %v6998
      %v7080 = vunpack.c.l.b16 %v6999
      %v7081 = vunpack.c.l.b16 %v7000
      %v7082 = vunpack.c.l.b16 %v7001
      %v7083 = vunpack.c.l.b16 %v7002
      %v7084 = vunpack.c.l.b16 %v7003
      %v7085 = vpack.c.b16 %v7054, %v7053
      %v7086 = vpack.c.b16 %v7056, %v7055
      %v7087 = vpack.c.b16 %v7058, %v7057
      %v7088 = vpack.c.b16 %v7060, %v7059
      %v7089 = vpack.c.b16 %v7062, %v7061
      %v7090 = vpack.c.b16 %v7064, %v7063
      %v7091 = vpack.c.b16 %v7066, %v7065
      %v7092 = vpack.c.b16 %v7068, %v7067
      %v7093 = vpack.c.b16 %v7070, %v7069
      %v7094 = vpack.c.b16 %v7072, %v7071
      %v7095 = vpack.c.b16 %v7074, %v7073
      %v7096 = vpack.c.b16 %v7076, %v7075
      %v7097 = vpack.c.b16 %v7078, %v7077
      %v7098 = vpack.c.b16 %v7080, %v7079
      %v7099 = vpack.c.b16 %v7082, %v7081
      %v7100 = vpack.c.b16 %v7084, %v7083
      %v7133 = vunpack.c.l.b16 %v7005
      %v7134 = vunpack.c.l.b16 %v7006
      %v7135 = vunpack.c.l.b16 %v7007
      %v7136 = vunpack.c.l.b16 %v7008
      %v7137 = vunpack.c.l.b16 %v7009
      %v7138 = vunpack.c.l.b16 %v7010
      %v7139 = vunpack.c.l.b16 %v7011
      %v7140 = vunpack.c.l.b16 %v7012
      %v7141 = vunpack.c.l.b16 %v7013
      %v7142 = vunpack.c.l.b16 %v7014
      %v7143 = vunpack.c.l.b16 %v7015
      %v7144 = vunpack.c.l.b16 %v7016
      %v7145 = vunpack.c.l.b16 %v7017
      %v7146 = vunpack.c.l.b16 %v7018
      %v7147 = vunpack.c.l.b16 %v7019
      %v7148 = vunpack.c.l.b16 %v7020
      %v7149 = vpack.c.b16 %v7134, %v7133
      %v7150 = vpack.c.b16 %v7136, %v7135
      %v7151 = vpack.c.b16 %v7138, %v7137
      %v7152 = vpack.c.b16 %v7140, %v7139
      %v7153 = vpack.c.b16 %v7142, %v7141
      %v7154 = vpack.c.b16 %v7144, %v7143
      %v7155 = vpack.c.b16 %v7146, %v7145
      %v7156 = vpack.c.b16 %v7148, %v7147
      %7165 = vmatpush.bf16.msra.mxu0 %v7156
      %7166 = vmatpush.bf16.msra.mxu0 %v7155
      %7167 = vmatpush.bf16.msra.mxu0 %v7154
      %7168 = vmatpush.bf16.msra.mxu0 %v7153
      %7169 = vmatpush.bf16.msra.mxu0 %v7152
      %7170 = vmatpush.bf16.msra.mxu0 %v7151
      %7171 = vmatpush.bf16.msra.mxu0 %v7150
      %7172 = vmatpush.bf16.msra.mxu0 %v7149
      %7173 = vmatmul.bf16.gmra.mxu0 %v7085
      %v7174 = vpop.f32.mrf.mxu0
      %v7175 = vadd.f32 0.0, %v7174
      %v7176 = vpop.f32.mrf.mxu0
      %v7177 = vadd.f32 0.0, %v7176
      %7178 = vmatmul.bf16.gmra.mxu0 %v7086
      %v7179 = vpop.f32.mrf.mxu0
      %v7180 = vadd.f32 0.0, %v7179
      %v7181 = vpop.f32.mrf.mxu0
      %v7182 = vadd.f32 0.0, %v7181
      %7183 = vmatmul.bf16.gmra.mxu0 %v7087
      %v7184 = vpop.f32.mrf.mxu0
      %v7185 = vadd.f32 0.0, %v7184
      %v7186 = vpop.f32.mrf.mxu0
      %v7187 = vadd.f32 0.0, %v7186
      %7188 = vmatmul.bf16.gmra.mxu0 %v7088
      %v7189 = vpop.f32.mrf.mxu0
      %v7190 = vadd.f32 0.0, %v7189
      %v7191 = vpop.f32.mrf.mxu0
      %v7192 = vadd.f32 0.0, %v7191
      %7193 = vmatmul.bf16.gmra.mxu0 %v7089
      %v7194 = vpop.f32.mrf.mxu0
      %v7195 = vadd.f32 0.0, %v7194
      %v7196 = vpop.f32.mrf.mxu0
      %v7197 = vadd.f32 0.0, %v7196
      %7198 = vmatmul.bf16.gmra.mxu0 %v7090
      %v7199 = vpop.f32.mrf.mxu0
      %v7200 = vadd.f32 0.0, %v7199
      %v7201 = vpop.f32.mrf.mxu0
      %v7202 = vadd.f32 0.0, %v7201
      %7203 = vmatmul.bf16.gmra.mxu0 %v7091
      %v7204 = vpop.f32.mrf.mxu0
      %v7205 = vadd.f32 0.0, %v7204
      %v7206 = vpop.f32.mrf.mxu0
      %v7207 = vadd.f32 0.0, %v7206
      %7208 = vmatmul.bf16.gmra.mxu0 %v7092
      %v7209 = vpop.f32.mrf.mxu0
      %v7210 = vadd.f32 0.0, %v7209
      %v7211 = vpop.f32.mrf.mxu0
      %v7212 = vadd.f32 0.0, %v7211
      %7213 = vmatmul.bf16.gmra.mxu0 %v7093
      %v7214 = vpop.f32.mrf.mxu0
      %v7215 = vadd.f32 0.0, %v7214
      %v7216 = vpop.f32.mrf.mxu0
      %v7217 = vadd.f32 0.0, %v7216
      %7218 = vmatmul.bf16.gmra.mxu0 %v7094
      %v7219 = vpop.f32.mrf.mxu0
      %v7220 = vadd.f32 0.0, %v7219
      %v7221 = vpop.f32.mrf.mxu0
      %v7222 = vadd.f32 0.0, %v7221
      %7223 = vmatmul.bf16.gmra.mxu0 %v7095
      %v7224 = vpop.f32.mrf.mxu0
      %v7225 = vadd.f32 0.0, %v7224
      %v7226 = vpop.f32.mrf.mxu0
      %v7227 = vadd.f32 0.0, %v7226
      %7228 = vmatmul.bf16.gmra.mxu0 %v7096
      %v7229 = vpop.f32.mrf.mxu0
      %v7230 = vadd.f32 0.0, %v7229
      %v7231 = vpop.f32.mrf.mxu0
      %v7232 = vadd.f32 0.0, %v7231
      %7233 = vmatmul.bf16.gmra.mxu0 %v7097
      %v7234 = vpop.f32.mrf.mxu0
      %v7235 = vadd.f32 0.0, %v7234
      %v7236 = vpop.f32.mrf.mxu0
      %v7237 = vadd.f32 0.0, %v7236
      %7238 = vmatmul.bf16.gmra.mxu0 %v7098
      %v7239 = vpop.f32.mrf.mxu0
      %v7240 = vadd.f32 0.0, %v7239
      %v7241 = vpop.f32.mrf.mxu0
      %v7242 = vadd.f32 0.0, %v7241
      %7243 = vmatmul.bf16.gmra.mxu0 %v7099
      %v7244 = vpop.f32.mrf.mxu0
      %v7245 = vadd.f32 0.0, %v7244
      %v7246 = vpop.f32.mrf.mxu0
      %v7247 = vadd.f32 0.0, %v7246
      %7248 = vmatmul.bf16.gmra.mxu0 %v7100
      %v7249 = vpop.f32.mrf.mxu0
      %v7250 = vadd.f32 0.0, %v7249
      %v7251 = vpop.f32.mrf.mxu0
      %v7252 = vadd.f32 0.0, %v7251
      %7253 = vdwg.mxu0
      %v7254 = vadd.f32 %v6940, %v7175
      %v7255 = vadd.f32 %v6941, %v7177
      %v7256 = vadd.f32 %v6942, %v7180
      %v7257 = vadd.f32 %v6943, %v7182
      %v7258 = vadd.f32 %v6944, %v7185
      %v7259 = vadd.f32 %v6945, %v7187
      %v7260 = vadd.f32 %v6946, %v7190
      %v7261 = vadd.f32 %v6947, %v7192
      %v7262 = vadd.f32 %v6948, %v7195
      %v7263 = vadd.f32 %v6949, %v7197
      %v7264 = vadd.f32 %v6950, %v7200
      %v7265 = vadd.f32 %v6951, %v7202
      %v7266 = vadd.f32 %v6952, %v7205
      %v7267 = vadd.f32 %v6953, %v7207
      %v7268 = vadd.f32 %v6954, %v7210
      %v7269 = vadd.f32 %v6955, %v7212
      %v7270 = vadd.f32 %v6956, %v7215
      %v7271 = vadd.f32 %v6957, %v7217
      %v7272 = vadd.f32 %v6958, %v7220
      %v7273 = vadd.f32 %v6959, %v7222
      %v7274 = vadd.f32 %v6960, %v7225
      %v7275 = vadd.f32 %v6961, %v7227
      %v7276 = vadd.f32 %v6962, %v7230
      %v7277 = vadd.f32 %v6963, %v7232
      %v7278 = vadd.f32 %v6964, %v7235
      %v7279 = vadd.f32 %v6965, %v7237
      %v7280 = vadd.f32 %v6966, %v7240
      %v7281 = vadd.f32 %v6967, %v7242
      %v7282 = vadd.f32 %v6968, %v7245
      %v7283 = vadd.f32 %v6969, %v7247
      %v7284 = vadd.f32 %v6970, %v7250
      %v7285 = vadd.f32 %v6971, %v7252
      %v7286 = vld [vmem:[%s5550] sm:$0xf]
      %v7287 = vld [vmem:[%s5550 + $0x4] sm:$0xf]
      %v7288 = vld [vmem:[%s5550 + $0x8] sm:$0x1]
      %v7289 = vld [vmem:[%s5550 + $0xc] sm:$0xf]
      %v7290 = vld [vmem:[%s5550 + $0x10] sm:$0xf]
      %v7291 = vld [vmem:[%s5550 + $0x14] sm:$0x1]
      %v7292 = vld [vmem:[%s5550 + $0x18] sm:$0xf]
      %v7293 = vld [vmem:[%s5550 + $0x1c] sm:$0xf]
      %v7294 = vld [vmem:[%s5550 + $0x20] sm:$0x1]
      %v7295 = vld [vmem:[%s5550 + $0x24] sm:$0xf]
      %v7296 = vld [vmem:[%s5550 + $0x28] sm:$0xf]
      %v7297 = vld [vmem:[%s5550 + $0x2c] sm:$0x1]
      %v7298 = vld [vmem:[%s5550 + $0x30] sm:$0xf]
      %v7299 = vld [vmem:[%s5550 + $0x34] sm:$0xf]
      %v7300 = vld [vmem:[%s5550 + $0x38] sm:$0x1]
      %v7301 = vld [vmem:[%s5550 + $0x3c] sm:$0xf]
      %v7302 = vld [vmem:[%s5550 + $0x40] sm:$0xf]
      %v7303 = vld [vmem:[%s5550 + $0x44] sm:$0x1]
      %v7304 = vld [vmem:[%s5550 + $0x48] sm:$0xf]
      %v7305 = vld [vmem:[%s5550 + $0x4c] sm:$0xf]
      %v7306 = vld [vmem:[%s5550 + $0x50] sm:$0x1]
      %v7307 = vld [vmem:[%s5550 + $0x54] sm:$0xf]
      %v7308 = vld [vmem:[%s5550 + $0x58] sm:$0xf]
      %v7309 = vld [vmem:[%s5550 + $0x5c] sm:$0x1]
      %v7310 = vld [vmem:[%s5550 + $0x60] sm:$0xf]
      %v7311 = vld [vmem:[%s5550 + $0x64] sm:$0xf]
      %v7312 = vld [vmem:[%s5550 + $0x68] sm:$0x1]
      %v7313 = vld [vmem:[%s5550 + $0x6c] sm:$0xf]
      %v7314 = vld [vmem:[%s5550 + $0x70] sm:$0xf]
      %v7315 = vld [vmem:[%s5550 + $0x74] sm:$0x1]
      %v7316 = vld [vmem:[%s5550 + $0x78] sm:$0xf]
      %v7317 = vld [vmem:[%s5550 + $0x7c] sm:$0xf]
      %v7318 = vld [vmem:[%s5550 + $0x80] sm:$0x1]
      %v7319 = vld [vmem:[%s5550 + $0x84] sm:$0xf]
      %v7320 = vld [vmem:[%s5550 + $0x88] sm:$0xf]
      %v7321 = vld [vmem:[%s5550 + $0x8c] sm:$0x1]
      %v7322 = vld [vmem:[%s5550 + $0x90] sm:$0xf]
      %v7323 = vld [vmem:[%s5550 + $0x94] sm:$0xf]
      %v7324 = vld [vmem:[%s5550 + $0x98] sm:$0x1]
      %v7325 = vld [vmem:[%s5550 + $0x9c] sm:$0xf]
      %v7326 = vld [vmem:[%s5550 + $0xa0] sm:$0xf]
      %v7327 = vld [vmem:[%s5550 + $0xa4] sm:$0x1]
      %v7328 = vld [vmem:[%s5550 + $0xa8] sm:$0xf]
      %v7329 = vld [vmem:[%s5550 + $0xac] sm:$0xf]
      %v7330 = vld [vmem:[%s5550 + $0xb0] sm:$0x1]
      %v7331 = vld [vmem:[%s5550 + $0xb4] sm:$0xf]
      %v7332 = vld [vmem:[%s5550 + $0xb8] sm:$0xf]
      %v7333 = vld [vmem:[%s5550 + $0xbc] sm:$0x1]
      %v7335 = vshrl.u32 %v7286, 16
      %v7337 = vrot.slane %v7335, 4
      %v7338 = vshll.u32 %v7286, 16
      %v7340 = vrot.slane %v7338, 5
      %v7341 = vor.u32 %v7337, %v7340
      %v7342 = vrot.slane %v7341, 4
      %v7344 = vshll.u32 %v7287, 16
      %v7346 = vrot.slane %v7344, 5
      %v7347 = vsel %vm982, %v7342, %v7346
      %v7348 = vshrl.u32 %v7287, 16
      %v7350 = vrot.slane %v7348, 4
      %v7351 = vor.u32 %v7350, %v7346
      %v7352 = vrot.slane %v7351, 4
      %v7354 = vshll.u32 %v7288, 16
      %v7356 = vrot.slane %v7354, 5
      %v7357 = vsel %vm982, %v7352, %v7356
      %v7359 = vshrl.u32 %v7289, 16
      %v7361 = vrot.slane %v7359, 4
      %v7362 = vshll.u32 %v7289, 16
      %v7364 = vrot.slane %v7362, 5
      %v7365 = vor.u32 %v7361, %v7364
      %v7366 = vrot.slane %v7365, 4
      %v7368 = vshll.u32 %v7290, 16
      %v7370 = vrot.slane %v7368, 5
      %v7371 = vsel %vm982, %v7366, %v7370
      %v7372 = vshrl.u32 %v7290, 16
      %v7374 = vrot.slane %v7372, 4
      %v7375 = vor.u32 %v7374, %v7370
      %v7376 = vrot.slane %v7375, 4
      %v7378 = vshll.u32 %v7291, 16
      %v7380 = vrot.slane %v7378, 5
      %v7381 = vsel %vm982, %v7376, %v7380
      %v7383 = vshrl.u32 %v7292, 16
      %v7385 = vrot.slane %v7383, 4
      %v7386 = vshll.u32 %v7292, 16
      %v7388 = vrot.slane %v7386, 5
      %v7389 = vor.u32 %v7385, %v7388
      %v7390 = vrot.slane %v7389, 4
      %v7392 = vshll.u32 %v7293, 16
      %v7394 = vrot.slane %v7392, 5
      %v7395 = vsel %vm982, %v7390, %v7394
      %v7396 = vshrl.u32 %v7293, 16
      %v7398 = vrot.slane %v7396, 4
      %v7399 = vor.u32 %v7398, %v7394
      %v7400 = vrot.slane %v7399, 4
      %v7402 = vshll.u32 %v7294, 16
      %v7404 = vrot.slane %v7402, 5
      %v7405 = vsel %vm982, %v7400, %v7404
      %v7407 = vshrl.u32 %v7295, 16
      %v7409 = vrot.slane %v7407, 4
      %v7410 = vshll.u32 %v7295, 16
      %v7412 = vrot.slane %v7410, 5
      %v7413 = vor.u32 %v7409, %v7412
      %v7414 = vrot.slane %v7413, 4
      %v7416 = vshll.u32 %v7296, 16
      %v7418 = vrot.slane %v7416, 5
      %v7419 = vsel %vm982, %v7414, %v7418
      %v7420 = vshrl.u32 %v7296, 16
      %v7422 = vrot.slane %v7420, 4
      %v7423 = vor.u32 %v7422, %v7418
      %v7424 = vrot.slane %v7423, 4
      %v7426 = vshll.u32 %v7297, 16
      %v7428 = vrot.slane %v7426, 5
      %v7429 = vsel %vm982, %v7424, %v7428
      %v7431 = vshrl.u32 %v7298, 16
      %v7433 = vrot.slane %v7431, 4
      %v7434 = vshll.u32 %v7298, 16
      %v7436 = vrot.slane %v7434, 5
      %v7437 = vor.u32 %v7433, %v7436
      %v7438 = vrot.slane %v7437, 4
      %v7440 = vshll.u32 %v7299, 16
      %v7442 = vrot.slane %v7440, 5
      %v7443 = vsel %vm982, %v7438, %v7442
      %v7444 = vshrl.u32 %v7299, 16
      %v7446 = vrot.slane %v7444, 4
      %v7447 = vor.u32 %v7446, %v7442
      %v7448 = vrot.slane %v7447, 4
      %v7450 = vshll.u32 %v7300, 16
      %v7452 = vrot.slane %v7450, 5
      %v7453 = vsel %vm982, %v7448, %v7452
      %v7455 = vshrl.u32 %v7301, 16
      %v7457 = vrot.slane %v7455, 4
      %v7458 = vshll.u32 %v7301, 16
      %v7460 = vrot.slane %v7458, 5
      %v7461 = vor.u32 %v7457, %v7460
      %v7462 = vrot.slane %v7461, 4
      %v7464 = vshll.u32 %v7302, 16
      %v7466 = vrot.slane %v7464, 5
      %v7467 = vsel %vm982, %v7462, %v7466
      %v7468 = vshrl.u32 %v7302, 16
      %v7470 = vrot.slane %v7468, 4
      %v7471 = vor.u32 %v7470, %v7466
      %v7472 = vrot.slane %v7471, 4
      %v7474 = vshll.u32 %v7303, 16
      %v7476 = vrot.slane %v7474, 5
      %v7477 = vsel %vm982, %v7472, %v7476
      %v7479 = vshrl.u32 %v7304, 16
      %v7481 = vrot.slane %v7479, 4
      %v7482 = vshll.u32 %v7304, 16
      %v7484 = vrot.slane %v7482, 5
      %v7485 = vor.u32 %v7481, %v7484
      %v7486 = vrot.slane %v7485, 4
      %v7488 = vshll.u32 %v7305, 16
      %v7490 = vrot.slane %v7488, 5
      %v7491 = vsel %vm982, %v7486, %v7490
      %v7492 = vshrl.u32 %v7305, 16
      %v7494 = vrot.slane %v7492, 4
      %v7495 = vor.u32 %v7494, %v7490
      %v7496 = vrot.slane %v7495, 4
      %v7498 = vshll.u32 %v7306, 16
      %v7500 = vrot.slane %v7498, 5
      %v7501 = vsel %vm982, %v7496, %v7500
      %v7503 = vshrl.u32 %v7307, 16
      %v7505 = vrot.slane %v7503, 4
      %v7506 = vshll.u32 %v7307, 16
      %v7508 = vrot.slane %v7506, 5
      %v7509 = vor.u32 %v7505, %v7508
      %v7510 = vrot.slane %v7509, 4
      %v7512 = vshll.u32 %v7308, 16
      %v7514 = vrot.slane %v7512, 5
      %v7515 = vsel %vm982, %v7510, %v7514
      %v7516 = vshrl.u32 %v7308, 16
      %v7518 = vrot.slane %v7516, 4
      %v7519 = vor.u32 %v7518, %v7514
      %v7520 = vrot.slane %v7519, 4
      %v7522 = vshll.u32 %v7309, 16
      %v7524 = vrot.slane %v7522, 5
      %v7525 = vsel %vm982, %v7520, %v7524
      %v7527 = vshrl.u32 %v7310, 16
      %v7529 = vrot.slane %v7527, 4
      %v7530 = vshll.u32 %v7310, 16
      %v7532 = vrot.slane %v7530, 5
      %v7533 = vor.u32 %v7529, %v7532
      %v7534 = vrot.slane %v7533, 4
      %v7536 = vshll.u32 %v7311, 16
      %v7538 = vrot.slane %v7536, 5
      %v7539 = vsel %vm982, %v7534, %v7538
      %v7540 = vshrl.u32 %v7311, 16
      %v7542 = vrot.slane %v7540, 4
      %v7543 = vor.u32 %v7542, %v7538
      %v7544 = vrot.slane %v7543, 4
      %v7546 = vshll.u32 %v7312, 16
      %v7548 = vrot.slane %v7546, 5
      %v7549 = vsel %vm982, %v7544, %v7548
      %v7551 = vshrl.u32 %v7313, 16
      %v7553 = vrot.slane %v7551, 4
      %v7554 = vshll.u32 %v7313, 16
      %v7556 = vrot.slane %v7554, 5
      %v7557 = vor.u32 %v7553, %v7556
      %v7558 = vrot.slane %v7557, 4
      %v7560 = vshll.u32 %v7314, 16
      %v7562 = vrot.slane %v7560, 5
      %v7563 = vsel %vm982, %v7558, %v7562
      %v7564 = vshrl.u32 %v7314, 16
      %v7566 = vrot.slane %v7564, 4
      %v7567 = vor.u32 %v7566, %v7562
      %v7568 = vrot.slane %v7567, 4
      %v7570 = vshll.u32 %v7315, 16
      %v7572 = vrot.slane %v7570, 5
      %v7573 = vsel %vm982, %v7568, %v7572
      %v7575 = vshrl.u32 %v7316, 16
      %v7577 = vrot.slane %v7575, 4
      %v7578 = vshll.u32 %v7316, 16
      %v7580 = vrot.slane %v7578, 5
      %v7581 = vor.u32 %v7577, %v7580
      %v7582 = vrot.slane %v7581, 4
      %v7584 = vshll.u32 %v7317, 16
      %v7586 = vrot.slane %v7584, 5
      %v7587 = vsel %vm982, %v7582, %v7586
      %v7588 = vshrl.u32 %v7317, 16
      %v7590 = vrot.slane %v7588, 4
      %v7591 = vor.u32 %v7590, %v7586
      %v7592 = vrot.slane %v7591, 4
      %v7594 = vshll.u32 %v7318, 16
      %v7596 = vrot.slane %v7594, 5
      %v7597 = vsel %vm982, %v7592, %v7596
      %v7599 = vshrl.u32 %v7319, 16
      %v7601 = vrot.slane %v7599, 4
      %v7602 = vshll.u32 %v7319, 16
      %v7604 = vrot.slane %v7602, 5
      %v7605 = vor.u32 %v7601, %v7604
      %v7606 = vrot.slane %v7605, 4
      %v7608 = vshll.u32 %v7320, 16
      %v7610 = vrot.slane %v7608, 5
      %v7611 = vsel %vm982, %v7606, %v7610
      %v7612 = vshrl.u32 %v7320, 16
      %v7614 = vrot.slane %v7612, 4
      %v7615 = vor.u32 %v7614, %v7610
      %v7616 = vrot.slane %v7615, 4
      %v7618 = vshll.u32 %v7321, 16
      %v7620 = vrot.slane %v7618, 5
      %v7621 = vsel %vm982, %v7616, %v7620
      %v7623 = vshrl.u32 %v7322, 16
      %v7625 = vrot.slane %v7623, 4
      %v7626 = vshll.u32 %v7322, 16
      %v7628 = vrot.slane %v7626, 5
      %v7629 = vor.u32 %v7625, %v7628
      %v7630 = vrot.slane %v7629, 4
      %v7632 = vshll.u32 %v7323, 16
      %v7634 = vrot.slane %v7632, 5
      %v7635 = vsel %vm982, %v7630, %v7634
      %v7636 = vshrl.u32 %v7323, 16
      %v7638 = vrot.slane %v7636, 4
      %v7639 = vor.u32 %v7638, %v7634
      %v7640 = vrot.slane %v7639, 4
      %v7642 = vshll.u32 %v7324, 16
      %v7644 = vrot.slane %v7642, 5
      %v7645 = vsel %vm982, %v7640, %v7644
      %v7647 = vshrl.u32 %v7325, 16
      %v7649 = vrot.slane %v7647, 4
      %v7650 = vshll.u32 %v7325, 16
      %v7652 = vrot.slane %v7650, 5
      %v7653 = vor.u32 %v7649, %v7652
      %v7654 = vrot.slane %v7653, 4
      %v7656 = vshll.u32 %v7326, 16
      %v7658 = vrot.slane %v7656, 5
      %v7659 = vsel %vm982, %v7654, %v7658
      %v7660 = vshrl.u32 %v7326, 16
      %v7662 = vrot.slane %v7660, 4
      %v7663 = vor.u32 %v7662, %v7658
      %v7664 = vrot.slane %v7663, 4
      %v7666 = vshll.u32 %v7327, 16
      %v7668 = vrot.slane %v7666, 5
      %v7669 = vsel %vm982, %v7664, %v7668
      %v7671 = vshrl.u32 %v7328, 16
      %v7673 = vrot.slane %v7671, 4
      %v7674 = vshll.u32 %v7328, 16
      %v7676 = vrot.slane %v7674, 5
      %v7677 = vor.u32 %v7673, %v7676
      %v7678 = vrot.slane %v7677, 4
      %v7680 = vshll.u32 %v7329, 16
      %v7682 = vrot.slane %v7680, 5
      %v7683 = vsel %vm982, %v7678, %v7682
      %v7684 = vshrl.u32 %v7329, 16
      %v7686 = vrot.slane %v7684, 4
      %v7687 = vor.u32 %v7686, %v7682
      %v7688 = vrot.slane %v7687, 4
      %v7690 = vshll.u32 %v7330, 16
      %v7692 = vrot.slane %v7690, 5
      %v7693 = vsel %vm982, %v7688, %v7692
      %v7695 = vshrl.u32 %v7331, 16
      %v7697 = vrot.slane %v7695, 4
      %v7698 = vshll.u32 %v7331, 16
      %v7700 = vrot.slane %v7698, 5
      %v7701 = vor.u32 %v7697, %v7700
      %v7702 = vrot.slane %v7701, 4
      %v7704 = vshll.u32 %v7332, 16
      %v7706 = vrot.slane %v7704, 5
      %v7707 = vsel %vm982, %v7702, %v7706
      %v7708 = vshrl.u32 %v7332, 16
      %v7710 = vrot.slane %v7708, 4
      %v7711 = vor.u32 %v7710, %v7706
      %v7712 = vrot.slane %v7711, 4
      %v7714 = vshll.u32 %v7333, 16
      %v7716 = vrot.slane %v7714, 5
      %v7717 = vsel %vm982, %v7712, %v7716
      %s7718 = scalar_lea.vmem %s5, 256
      %v7719 = vld [vmem:[%s7718] sm:$0xf]
      %v7720 = vld [vmem:[%s7718 + $0x4] sm:$0xf]
      %v7721 = vld [vmem:[%s7718 + $0x8] sm:$0xf]
      %v7722 = vld [vmem:[%s7718 + $0xc] sm:$0xf]
      %v7723 = vld [vmem:[%s7718 + $0x10] sm:$0xf]
      %v7724 = vld [vmem:[%s7718 + $0x14] sm:$0xf]
      %v7725 = vld [vmem:[%s7718 + $0x18] sm:$0xf]
      %v7726 = vld [vmem:[%s7718 + $0x1c] sm:$0xf]
      %v7727 = vld [vmem:[%s7718 + $0x20] sm:$0xf]
      %v7728 = vld [vmem:[%s7718 + $0x24] sm:$0xf]
      %v7729 = vld [vmem:[%s7718 + $0x28] sm:$0xf]
      %v7730 = vld [vmem:[%s7718 + $0x2c] sm:$0xf]
      %v7731 = vld [vmem:[%s7718 + $0x30] sm:$0xf]
      %v7732 = vld [vmem:[%s7718 + $0x34] sm:$0xf]
      %v7733 = vld [vmem:[%s7718 + $0x38] sm:$0xf]
      %v7734 = vld [vmem:[%s7718 + $0x3c] sm:$0xf]
      %v7735 = vunpack.c.l.b16 %v7347
      %v7736 = vunpack.c.l.b16 %v7357
      %v7737 = vunpack.c.l.b16 %v7371
      %v7738 = vunpack.c.l.b16 %v7381
      %v7739 = vunpack.c.l.b16 %v7395
      %v7740 = vunpack.c.l.b16 %v7405
      %v7741 = vunpack.c.l.b16 %v7419
      %v7742 = vunpack.c.l.b16 %v7429
      %v7743 = vunpack.c.l.b16 %v7443
      %v7744 = vunpack.c.l.b16 %v7453
      %v7745 = vunpack.c.l.b16 %v7467
      %v7746 = vunpack.c.l.b16 %v7477
      %v7747 = vunpack.c.l.b16 %v7491
      %v7748 = vunpack.c.l.b16 %v7501
      %v7749 = vunpack.c.l.b16 %v7515
      %v7750 = vunpack.c.l.b16 %v7525
      %v7751 = vunpack.c.l.b16 %v7539
      %v7752 = vunpack.c.l.b16 %v7549
      %v7753 = vunpack.c.l.b16 %v7563
      %v7754 = vunpack.c.l.b16 %v7573
      %v7755 = vunpack.c.l.b16 %v7587
      %v7756 = vunpack.c.l.b16 %v7597
      %v7757 = vunpack.c.l.b16 %v7611
      %v7758 = vunpack.c.l.b16 %v7621
      %v7759 = vunpack.c.l.b16 %v7635
      %v7760 = vunpack.c.l.b16 %v7645
      %v7761 = vunpack.c.l.b16 %v7659
      %v7762 = vunpack.c.l.b16 %v7669
      %v7763 = vunpack.c.l.b16 %v7683
      %v7764 = vunpack.c.l.b16 %v7693
      %v7765 = vunpack.c.l.b16 %v7707
      %v7766 = vunpack.c.l.b16 %v7717
      %v7767 = vpack.c.b16 %v7736, %v7735
      %v7768 = vpack.c.b16 %v7738, %v7737
      %v7769 = vpack.c.b16 %v7740, %v7739
      %v7770 = vpack.c.b16 %v7742, %v7741
      %v7771 = vpack.c.b16 %v7744, %v7743
      %v7772 = vpack.c.b16 %v7746, %v7745
      %v7773 = vpack.c.b16 %v7748, %v7747
      %v7774 = vpack.c.b16 %v7750, %v7749
      %v7775 = vpack.c.b16 %v7752, %v7751
      %v7776 = vpack.c.b16 %v7754, %v7753
      %v7777 = vpack.c.b16 %v7756, %v7755
      %v7778 = vpack.c.b16 %v7758, %v7757
      %v7779 = vpack.c.b16 %v7760, %v7759
      %v7780 = vpack.c.b16 %v7762, %v7761
      %v7781 = vpack.c.b16 %v7764, %v7763
      %v7782 = vpack.c.b16 %v7766, %v7765
      %v7815 = vunpack.c.l.b16 %v7719
      %v7816 = vunpack.c.l.b16 %v7720
      %v7817 = vunpack.c.l.b16 %v7721
      %v7818 = vunpack.c.l.b16 %v7722
      %v7819 = vunpack.c.l.b16 %v7723
      %v7820 = vunpack.c.l.b16 %v7724
      %v7821 = vunpack.c.l.b16 %v7725
      %v7822 = vunpack.c.l.b16 %v7726
      %v7823 = vunpack.c.l.b16 %v7727
      %v7824 = vunpack.c.l.b16 %v7728
      %v7825 = vunpack.c.l.b16 %v7729
      %v7826 = vunpack.c.l.b16 %v7730
      %v7827 = vunpack.c.l.b16 %v7731
      %v7828 = vunpack.c.l.b16 %v7732
      %v7829 = vunpack.c.l.b16 %v7733
      %v7830 = vunpack.c.l.b16 %v7734
      %v7831 = vpack.c.b16 %v7816, %v7815
      %v7832 = vpack.c.b16 %v7818, %v7817
      %v7833 = vpack.c.b16 %v7820, %v7819
      %v7834 = vpack.c.b16 %v7822, %v7821
      %v7835 = vpack.c.b16 %v7824, %v7823
      %v7836 = vpack.c.b16 %v7826, %v7825
      %v7837 = vpack.c.b16 %v7828, %v7827
      %v7838 = vpack.c.b16 %v7830, %v7829
      %7847 = vmatpush.bf16.msra.mxu0 %v7838
      %7848 = vmatpush.bf16.msra.mxu0 %v7837
      %7849 = vmatpush.bf16.msra.mxu0 %v7836
      %7850 = vmatpush.bf16.msra.mxu0 %v7835
      %7851 = vmatpush.bf16.msra.mxu0 %v7834
      %7852 = vmatpush.bf16.msra.mxu0 %v7833
      %7853 = vmatpush.bf16.msra.mxu0 %v7832
      %7854 = vmatpush.bf16.msra.mxu0 %v7831
      %7855 = vmatmul.bf16.gmra.mxu0 %v7767
      %v7856 = vpop.f32.mrf.mxu0
      %v7857 = vadd.f32 0.0, %v7856
      %v7858 = vpop.f32.mrf.mxu0
      %v7859 = vadd.f32 0.0, %v7858
      %7860 = vmatmul.bf16.gmra.mxu0 %v7768
      %v7861 = vpop.f32.mrf.mxu0
      %v7862 = vadd.f32 0.0, %v7861
      %v7863 = vpop.f32.mrf.mxu0
      %v7864 = vadd.f32 0.0, %v7863
      %7865 = vmatmul.bf16.gmra.mxu0 %v7769
      %v7866 = vpop.f32.mrf.mxu0
      %v7867 = vadd.f32 0.0, %v7866
      %v7868 = vpop.f32.mrf.mxu0
      %v7869 = vadd.f32 0.0, %v7868
      %7870 = vmatmul.bf16.gmra.mxu0 %v7770
      %v7871 = vpop.f32.mrf.mxu0
      %v7872 = vadd.f32 0.0, %v7871
      %v7873 = vpop.f32.mrf.mxu0
      %v7874 = vadd.f32 0.0, %v7873
      %7875 = vmatmul.bf16.gmra.mxu0 %v7771
      %v7876 = vpop.f32.mrf.mxu0
      %v7877 = vadd.f32 0.0, %v7876
      %v7878 = vpop.f32.mrf.mxu0
      %v7879 = vadd.f32 0.0, %v7878
      %7880 = vmatmul.bf16.gmra.mxu0 %v7772
      %v7881 = vpop.f32.mrf.mxu0
      %v7882 = vadd.f32 0.0, %v7881
      %v7883 = vpop.f32.mrf.mxu0
      %v7884 = vadd.f32 0.0, %v7883
      %7885 = vmatmul.bf16.gmra.mxu0 %v7773
      %v7886 = vpop.f32.mrf.mxu0
      %v7887 = vadd.f32 0.0, %v7886
      %v7888 = vpop.f32.mrf.mxu0
      %v7889 = vadd.f32 0.0, %v7888
      %7890 = vmatmul.bf16.gmra.mxu0 %v7774
      %v7891 = vpop.f32.mrf.mxu0
      %v7892 = vadd.f32 0.0, %v7891
      %v7893 = vpop.f32.mrf.mxu0
      %v7894 = vadd.f32 0.0, %v7893
      %7895 = vmatmul.bf16.gmra.mxu0 %v7775
      %v7896 = vpop.f32.mrf.mxu0
      %v7897 = vadd.f32 0.0, %v7896
      %v7898 = vpop.f32.mrf.mxu0
      %v7899 = vadd.f32 0.0, %v7898
      %7900 = vmatmul.bf16.gmra.mxu0 %v7776
      %v7901 = vpop.f32.mrf.mxu0
      %v7902 = vadd.f32 0.0, %v7901
      %v7903 = vpop.f32.mrf.mxu0
      %v7904 = vadd.f32 0.0, %v7903
      %7905 = vmatmul.bf16.gmra.mxu0 %v7777
      %v7906 = vpop.f32.mrf.mxu0
      %v7907 = vadd.f32 0.0, %v7906
      %v7908 = vpop.f32.mrf.mxu0
      %v7909 = vadd.f32 0.0, %v7908
      %7910 = vmatmul.bf16.gmra.mxu0 %v7778
      %v7911 = vpop.f32.mrf.mxu0
      %v7912 = vadd.f32 0.0, %v7911
      %v7913 = vpop.f32.mrf.mxu0
      %v7914 = vadd.f32 0.0, %v7913
      %7915 = vmatmul.bf16.gmra.mxu0 %v7779
      %v7916 = vpop.f32.mrf.mxu0
      %v7917 = vadd.f32 0.0, %v7916
      %v7918 = vpop.f32.mrf.mxu0
      %v7919 = vadd.f32 0.0, %v7918
      %7920 = vmatmul.bf16.gmra.mxu0 %v7780
      %v7921 = vpop.f32.mrf.mxu0
      %v7922 = vadd.f32 0.0, %v7921
      %v7923 = vpop.f32.mrf.mxu0
      %v7924 = vadd.f32 0.0, %v7923
      %7925 = vmatmul.bf16.gmra.mxu0 %v7781
      %v7926 = vpop.f32.mrf.mxu0
      %v7927 = vadd.f32 0.0, %v7926
      %v7928 = vpop.f32.mrf.mxu0
      %v7929 = vadd.f32 0.0, %v7928
      %7930 = vmatmul.bf16.gmra.mxu0 %v7782
      %v7931 = vpop.f32.mrf.mxu0
      %v7932 = vadd.f32 0.0, %v7931
      %v7933 = vpop.f32.mrf.mxu0
      %v7934 = vadd.f32 0.0, %v7933
      %7935 = vdwg.mxu0
      %v7936 = vadd.f32 %v7254, %v7857
      %v7937 = vadd.f32 %v7255, %v7859
      %v7938 = vadd.f32 %v7256, %v7862
      %v7939 = vadd.f32 %v7257, %v7864
      %v7940 = vadd.f32 %v7258, %v7867
      %v7941 = vadd.f32 %v7259, %v7869
      %v7942 = vadd.f32 %v7260, %v7872
      %v7943 = vadd.f32 %v7261, %v7874
      %v7944 = vadd.f32 %v7262, %v7877
      %v7945 = vadd.f32 %v7263, %v7879
      %v7946 = vadd.f32 %v7264, %v7882
      %v7947 = vadd.f32 %v7265, %v7884
      %v7948 = vadd.f32 %v7266, %v7887
      %v7949 = vadd.f32 %v7267, %v7889
      %v7950 = vadd.f32 %v7268, %v7892
      %v7951 = vadd.f32 %v7269, %v7894
      %v7952 = vadd.f32 %v7270, %v7897
      %v7953 = vadd.f32 %v7271, %v7899
      %v7954 = vadd.f32 %v7272, %v7902
      %v7955 = vadd.f32 %v7273, %v7904
      %v7956 = vadd.f32 %v7274, %v7907
      %v7957 = vadd.f32 %v7275, %v7909
      %v7958 = vadd.f32 %v7276, %v7912
      %v7959 = vadd.f32 %v7277, %v7914
      %v7960 = vadd.f32 %v7278, %v7917
      %v7961 = vadd.f32 %v7279, %v7919
      %v7962 = vadd.f32 %v7280, %v7922
      %v7963 = vadd.f32 %v7281, %v7924
      %v7964 = vadd.f32 %v7282, %v7927
      %v7965 = vadd.f32 %v7283, %v7929
      %v7966 = vadd.f32 %v7284, %v7932
      %v7967 = vadd.f32 %v7285, %v7934
      %v7968 = vld [vmem:[%s5550] sm:$0xe]
      %v7969 = vld [vmem:[%s5550 + $0xc] sm:$0xe]
      %v7970 = vld [vmem:[%s5550 + $0x18] sm:$0xe]
      %v7971 = vld [vmem:[%s5550 + $0x24] sm:$0xe]
      %v7972 = vld [vmem:[%s5550 + $0x30] sm:$0xe]
      %v7973 = vld [vmem:[%s5550 + $0x3c] sm:$0xe]
      %v7974 = vld [vmem:[%s5550 + $0x48] sm:$0xe]
      %v7975 = vld [vmem:[%s5550 + $0x54] sm:$0xe]
      %v7976 = vld [vmem:[%s5550 + $0x60] sm:$0xe]
      %v7977 = vld [vmem:[%s5550 + $0x6c] sm:$0xe]
      %v7978 = vld [vmem:[%s5550 + $0x78] sm:$0xe]
      %v7979 = vld [vmem:[%s5550 + $0x84] sm:$0xe]
      %v7980 = vld [vmem:[%s5550 + $0x90] sm:$0xe]
      %v7981 = vld [vmem:[%s5550 + $0x9c] sm:$0xe]
      %v7982 = vld [vmem:[%s5550 + $0xa8] sm:$0xe]
      %v7983 = vld [vmem:[%s5550 + $0xb4] sm:$0xe]
      %v8032 = vrot.slane %v7968, 5
      %v8033 = vrot.slane %v8032, 4
      %v8034 = vrot.slane %v7287, 5
      %v8035 = vsel %vm1868, %v8033, %v8034
      %v8036 = vrot.slane %v8034, 4
      %v8037 = vrot.slane %v7288, 5
      %v8038 = vsel %vm1868, %v8036, %v8037
      %v8039 = vrot.slane %v7969, 5
      %v8040 = vrot.slane %v8039, 4
      %v8041 = vrot.slane %v7290, 5
      %v8042 = vsel %vm1868, %v8040, %v8041
      %v8043 = vrot.slane %v8041, 4
      %v8044 = vrot.slane %v7291, 5
      %v8045 = vsel %vm1868, %v8043, %v8044
      %v8046 = vrot.slane %v7970, 5
      %v8047 = vrot.slane %v8046, 4
      %v8048 = vrot.slane %v7293, 5
      %v8049 = vsel %vm1868, %v8047, %v8048
      %v8050 = vrot.slane %v8048, 4
      %v8051 = vrot.slane %v7294, 5
      %v8052 = vsel %vm1868, %v8050, %v8051
      %v8053 = vrot.slane %v7971, 5
      %v8054 = vrot.slane %v8053, 4
      %v8055 = vrot.slane %v7296, 5
      %v8056 = vsel %vm1868, %v8054, %v8055
      %v8057 = vrot.slane %v8055, 4
      %v8058 = vrot.slane %v7297, 5
      %v8059 = vsel %vm1868, %v8057, %v8058
      %v8060 = vrot.slane %v7972, 5
      %v8061 = vrot.slane %v8060, 4
      %v8062 = vrot.slane %v7299, 5
      %v8063 = vsel %vm1868, %v8061, %v8062
      %v8064 = vrot.slane %v8062, 4
      %v8065 = vrot.slane %v7300, 5
      %v8066 = vsel %vm1868, %v8064, %v8065
      %v8067 = vrot.slane %v7973, 5
      %v8068 = vrot.slane %v8067, 4
      %v8069 = vrot.slane %v7302, 5
      %v8070 = vsel %vm1868, %v8068, %v8069
      %v8071 = vrot.slane %v8069, 4
      %v8072 = vrot.slane %v7303, 5
      %v8073 = vsel %vm1868, %v8071, %v8072
      %v8074 = vrot.slane %v7974, 5
      %v8075 = vrot.slane %v8074, 4
      %v8076 = vrot.slane %v7305, 5
      %v8077 = vsel %vm1868, %v8075, %v8076
      %v8078 = vrot.slane %v8076, 4
      %v8079 = vrot.slane %v7306, 5
      %v8080 = vsel %vm1868, %v8078, %v8079
      %v8081 = vrot.slane %v7975, 5
      %v8082 = vrot.slane %v8081, 4
      %v8083 = vrot.slane %v7308, 5
      %v8084 = vsel %vm1868, %v8082, %v8083
      %v8085 = vrot.slane %v8083, 4
      %v8086 = vrot.slane %v7309, 5
      %v8087 = vsel %vm1868, %v8085, %v8086
      %v8088 = vrot.slane %v7976, 5
      %v8089 = vrot.slane %v8088, 4
      %v8090 = vrot.slane %v7311, 5
      %v8091 = vsel %vm1868, %v8089, %v8090
      %v8092 = vrot.slane %v8090, 4
      %v8093 = vrot.slane %v7312, 5
      %v8094 = vsel %vm1868, %v8092, %v8093
      %v8095 = vrot.slane %v7977, 5
      %v8096 = vrot.slane %v8095, 4
      %v8097 = vrot.slane %v7314, 5
      %v8098 = vsel %vm1868, %v8096, %v8097
      %v8099 = vrot.slane %v8097, 4
      %v8100 = vrot.slane %v7315, 5
      %v8101 = vsel %vm1868, %v8099, %v8100
      %v8102 = vrot.slane %v7978, 5
      %v8103 = vrot.slane %v8102, 4
      %v8104 = vrot.slane %v7317, 5
      %v8105 = vsel %vm1868, %v8103, %v8104
      %v8106 = vrot.slane %v8104, 4
      %v8107 = vrot.slane %v7318, 5
      %v8108 = vsel %vm1868, %v8106, %v8107
      %v8109 = vrot.slane %v7979, 5
      %v8110 = vrot.slane %v8109, 4
      %v8111 = vrot.slane %v7320, 5
      %v8112 = vsel %vm1868, %v8110, %v8111
      %v8113 = vrot.slane %v8111, 4
      %v8114 = vrot.slane %v7321, 5
      %v8115 = vsel %vm1868, %v8113, %v8114
      %v8116 = vrot.slane %v7980, 5
      %v8117 = vrot.slane %v8116, 4
      %v8118 = vrot.slane %v7323, 5
      %v8119 = vsel %vm1868, %v8117, %v8118
      %v8120 = vrot.slane %v8118, 4
      %v8121 = vrot.slane %v7324, 5
      %v8122 = vsel %vm1868, %v8120, %v8121
      %v8123 = vrot.slane %v7981, 5
      %v8124 = vrot.slane %v8123, 4
      %v8125 = vrot.slane %v7326, 5
      %v8126 = vsel %vm1868, %v8124, %v8125
      %v8127 = vrot.slane %v8125, 4
      %v8128 = vrot.slane %v7327, 5
      %v8129 = vsel %vm1868, %v8127, %v8128
      %v8130 = vrot.slane %v7982, 5
      %v8131 = vrot.slane %v8130, 4
      %v8132 = vrot.slane %v7329, 5
      %v8133 = vsel %vm1868, %v8131, %v8132
      %v8134 = vrot.slane %v8132, 4
      %v8135 = vrot.slane %v7330, 5
      %v8136 = vsel %vm1868, %v8134, %v8135
      %v8137 = vrot.slane %v7983, 5
      %v8138 = vrot.slane %v8137, 4
      %v8139 = vrot.slane %v7332, 5
      %v8140 = vsel %vm1868, %v8138, %v8139
      %v8141 = vrot.slane %v8139, 4
      %v8142 = vrot.slane %v7333, 5
      %v8143 = vsel %vm1868, %v8141, %v8142
      %s8144 = scalar_lea.vmem %s5, 320
      %v8145 = vld [vmem:[%s8144] sm:$0xf]
      %v8146 = vld [vmem:[%s8144 + $0x4] sm:$0xf]
      %v8147 = vld [vmem:[%s8144 + $0x8] sm:$0xf]
      %v8148 = vld [vmem:[%s8144 + $0xc] sm:$0xf]
      %v8149 = vld [vmem:[%s8144 + $0x10] sm:$0xf]
      %v8150 = vld [vmem:[%s8144 + $0x14] sm:$0xf]
      %v8151 = vld [vmem:[%s8144 + $0x18] sm:$0xf]
      %v8152 = vld [vmem:[%s8144 + $0x1c] sm:$0xf]
      %v8153 = vld [vmem:[%s8144 + $0x20] sm:$0xf]
      %v8154 = vld [vmem:[%s8144 + $0x24] sm:$0xf]
      %v8155 = vld [vmem:[%s8144 + $0x28] sm:$0xf]
      %v8156 = vld [vmem:[%s8144 + $0x2c] sm:$0xf]
      %v8157 = vld [vmem:[%s8144 + $0x30] sm:$0xf]
      %v8158 = vld [vmem:[%s8144 + $0x34] sm:$0xf]
      %v8159 = vld [vmem:[%s8144 + $0x38] sm:$0xf]
      %v8160 = vld [vmem:[%s8144 + $0x3c] sm:$0xf]
      %v8161 = vunpack.c.l.b16 %v8035
      %v8162 = vunpack.c.l.b16 %v8038
      %v8163 = vunpack.c.l.b16 %v8042
      %v8164 = vunpack.c.l.b16 %v8045
      %v8165 = vunpack.c.l.b16 %v8049
      %v8166 = vunpack.c.l.b16 %v8052
      %v8167 = vunpack.c.l.b16 %v8056
      %v8168 = vunpack.c.l.b16 %v8059
      %v8169 = vunpack.c.l.b16 %v8063
      %v8170 = vunpack.c.l.b16 %v8066
      %v8171 = vunpack.c.l.b16 %v8070
      %v8172 = vunpack.c.l.b16 %v8073
      %v8173 = vunpack.c.l.b16 %v8077
      %v8174 = vunpack.c.l.b16 %v8080
      %v8175 = vunpack.c.l.b16 %v8084
      %v8176 = vunpack.c.l.b16 %v8087
      %v8177 = vunpack.c.l.b16 %v8091
      %v8178 = vunpack.c.l.b16 %v8094
      %v8179 = vunpack.c.l.b16 %v8098
      %v8180 = vunpack.c.l.b16 %v8101
      %v8181 = vunpack.c.l.b16 %v8105
      %v8182 = vunpack.c.l.b16 %v8108
      %v8183 = vunpack.c.l.b16 %v8112
      %v8184 = vunpack.c.l.b16 %v8115
      %v8185 = vunpack.c.l.b16 %v8119
      %v8186 = vunpack.c.l.b16 %v8122
      %v8187 = vunpack.c.l.b16 %v8126
      %v8188 = vunpack.c.l.b16 %v8129
      %v8189 = vunpack.c.l.b16 %v8133
      %v8190 = vunpack.c.l.b16 %v8136
      %v8191 = vunpack.c.l.b16 %v8140
      %v8192 = vunpack.c.l.b16 %v8143
      %v8193 = vpack.c.b16 %v8162, %v8161
      %v8194 = vpack.c.b16 %v8164, %v8163
      %v8195 = vpack.c.b16 %v8166, %v8165
      %v8196 = vpack.c.b16 %v8168, %v8167
      %v8197 = vpack.c.b16 %v8170, %v8169
      %v8198 = vpack.c.b16 %v8172, %v8171
      %v8199 = vpack.c.b16 %v8174, %v8173
      %v8200 = vpack.c.b16 %v8176, %v8175
      %v8201 = vpack.c.b16 %v8178, %v8177
      %v8202 = vpack.c.b16 %v8180, %v8179
      %v8203 = vpack.c.b16 %v8182, %v8181
      %v8204 = vpack.c.b16 %v8184, %v8183
      %v8205 = vpack.c.b16 %v8186, %v8185
      %v8206 = vpack.c.b16 %v8188, %v8187
      %v8207 = vpack.c.b16 %v8190, %v8189
      %v8208 = vpack.c.b16 %v8192, %v8191
      %v8241 = vunpack.c.l.b16 %v8145
      %v8242 = vunpack.c.l.b16 %v8146
      %v8243 = vunpack.c.l.b16 %v8147
      %v8244 = vunpack.c.l.b16 %v8148
      %v8245 = vunpack.c.l.b16 %v8149
      %v8246 = vunpack.c.l.b16 %v8150
      %v8247 = vunpack.c.l.b16 %v8151
      %v8248 = vunpack.c.l.b16 %v8152
      %v8249 = vunpack.c.l.b16 %v8153
      %v8250 = vunpack.c.l.b16 %v8154
      %v8251 = vunpack.c.l.b16 %v8155
      %v8252 = vunpack.c.l.b16 %v8156
      %v8253 = vunpack.c.l.b16 %v8157
      %v8254 = vunpack.c.l.b16 %v8158
      %v8255 = vunpack.c.l.b16 %v8159
      %v8256 = vunpack.c.l.b16 %v8160
      %v8257 = vpack.c.b16 %v8242, %v8241
      %v8258 = vpack.c.b16 %v8244, %v8243
      %v8259 = vpack.c.b16 %v8246, %v8245
      %v8260 = vpack.c.b16 %v8248, %v8247
      %v8261 = vpack.c.b16 %v8250, %v8249
      %v8262 = vpack.c.b16 %v8252, %v8251
      %v8263 = vpack.c.b16 %v8254, %v8253
      %v8264 = vpack.c.b16 %v8256, %v8255
      %8273 = vmatpush.bf16.msra.mxu0 %v8264
      %8274 = vmatpush.bf16.msra.mxu0 %v8263
      %8275 = vmatpush.bf16.msra.mxu0 %v8262
      %8276 = vmatpush.bf16.msra.mxu0 %v8261
      %8277 = vmatpush.bf16.msra.mxu0 %v8260
      %8278 = vmatpush.bf16.msra.mxu0 %v8259
      %8279 = vmatpush.bf16.msra.mxu0 %v8258
      %8280 = vmatpush.bf16.msra.mxu0 %v8257
      %8281 = vmatmul.bf16.gmra.mxu0 %v8193
      %v8282 = vpop.f32.mrf.mxu0
      %v8283 = vadd.f32 0.0, %v8282
      %v8284 = vpop.f32.mrf.mxu0
      %v8285 = vadd.f32 0.0, %v8284
      %8286 = vmatmul.bf16.gmra.mxu0 %v8194
      %v8287 = vpop.f32.mrf.mxu0
      %v8288 = vadd.f32 0.0, %v8287
      %v8289 = vpop.f32.mrf.mxu0
      %v8290 = vadd.f32 0.0, %v8289
      %8291 = vmatmul.bf16.gmra.mxu0 %v8195
      %v8292 = vpop.f32.mrf.mxu0
      %v8293 = vadd.f32 0.0, %v8292
      %v8294 = vpop.f32.mrf.mxu0
      %v8295 = vadd.f32 0.0, %v8294
      %8296 = vmatmul.bf16.gmra.mxu0 %v8196
      %v8297 = vpop.f32.mrf.mxu0
      %v8298 = vadd.f32 0.0, %v8297
      %v8299 = vpop.f32.mrf.mxu0
      %v8300 = vadd.f32 0.0, %v8299
      %8301 = vmatmul.bf16.gmra.mxu0 %v8197
      %v8302 = vpop.f32.mrf.mxu0
      %v8303 = vadd.f32 0.0, %v8302
      %v8304 = vpop.f32.mrf.mxu0
      %v8305 = vadd.f32 0.0, %v8304
      %8306 = vmatmul.bf16.gmra.mxu0 %v8198
      %v8307 = vpop.f32.mrf.mxu0
      %v8308 = vadd.f32 0.0, %v8307
      %v8309 = vpop.f32.mrf.mxu0
      %v8310 = vadd.f32 0.0, %v8309
      %8311 = vmatmul.bf16.gmra.mxu0 %v8199
      %v8312 = vpop.f32.mrf.mxu0
      %v8313 = vadd.f32 0.0, %v8312
      %v8314 = vpop.f32.mrf.mxu0
      %v8315 = vadd.f32 0.0, %v8314
      %8316 = vmatmul.bf16.gmra.mxu0 %v8200
      %v8317 = vpop.f32.mrf.mxu0
      %v8318 = vadd.f32 0.0, %v8317
      %v8319 = vpop.f32.mrf.mxu0
      %v8320 = vadd.f32 0.0, %v8319
      %8321 = vmatmul.bf16.gmra.mxu0 %v8201
      %v8322 = vpop.f32.mrf.mxu0
      %v8323 = vadd.f32 0.0, %v8322
      %v8324 = vpop.f32.mrf.mxu0
      %v8325 = vadd.f32 0.0, %v8324
      %8326 = vmatmul.bf16.gmra.mxu0 %v8202
      %v8327 = vpop.f32.mrf.mxu0
      %v8328 = vadd.f32 0.0, %v8327
      %v8329 = vpop.f32.mrf.mxu0
      %v8330 = vadd.f32 0.0, %v8329
      %8331 = vmatmul.bf16.gmra.mxu0 %v8203
      %v8332 = vpop.f32.mrf.mxu0
      %v8333 = vadd.f32 0.0, %v8332
      %v8334 = vpop.f32.mrf.mxu0
      %v8335 = vadd.f32 0.0, %v8334
      %8336 = vmatmul.bf16.gmra.mxu0 %v8204
      %v8337 = vpop.f32.mrf.mxu0
      %v8338 = vadd.f32 0.0, %v8337
      %v8339 = vpop.f32.mrf.mxu0
      %v8340 = vadd.f32 0.0, %v8339
      %8341 = vmatmul.bf16.gmra.mxu0 %v8205
      %v8342 = vpop.f32.mrf.mxu0
      %v8343 = vadd.f32 0.0, %v8342
      %v8344 = vpop.f32.mrf.mxu0
      %v8345 = vadd.f32 0.0, %v8344
      %8346 = vmatmul.bf16.gmra.mxu0 %v8206
      %v8347 = vpop.f32.mrf.mxu0
      %v8348 = vadd.f32 0.0, %v8347
      %v8349 = vpop.f32.mrf.mxu0
      %v8350 = vadd.f32 0.0, %v8349
      %8351 = vmatmul.bf16.gmra.mxu0 %v8207
      %v8352 = vpop.f32.mrf.mxu0
      %v8353 = vadd.f32 0.0, %v8352
      %v8354 = vpop.f32.mrf.mxu0
      %v8355 = vadd.f32 0.0, %v8354
      %8356 = vmatmul.bf16.gmra.mxu0 %v8208
      %v8357 = vpop.f32.mrf.mxu0
      %v8358 = vadd.f32 0.0, %v8357
      %v8359 = vpop.f32.mrf.mxu0
      %v8360 = vadd.f32 0.0, %v8359
      %8361 = vdwg.mxu0
      %v8362 = vadd.f32 %v7936, %v8283
      %v8363 = vadd.f32 %v7937, %v8285
      %v8364 = vadd.f32 %v7938, %v8288
      %v8365 = vadd.f32 %v7939, %v8290
      %v8366 = vadd.f32 %v7940, %v8293
      %v8367 = vadd.f32 %v7941, %v8295
      %v8368 = vadd.f32 %v7942, %v8298
      %v8369 = vadd.f32 %v7943, %v8300
      %v8370 = vadd.f32 %v7944, %v8303
      %v8371 = vadd.f32 %v7945, %v8305
      %v8372 = vadd.f32 %v7946, %v8308
      %v8373 = vadd.f32 %v7947, %v8310
      %v8374 = vadd.f32 %v7948, %v8313
      %v8375 = vadd.f32 %v7949, %v8315
      %v8376 = vadd.f32 %v7950, %v8318
      %v8377 = vadd.f32 %v7951, %v8320
      %v8378 = vadd.f32 %v7952, %v8323
      %v8379 = vadd.f32 %v7953, %v8325
      %v8380 = vadd.f32 %v7954, %v8328
      %v8381 = vadd.f32 %v7955, %v8330
      %v8382 = vadd.f32 %v7956, %v8333
      %v8383 = vadd.f32 %v7957, %v8335
      %v8384 = vadd.f32 %v7958, %v8338
      %v8385 = vadd.f32 %v7959, %v8340
      %v8386 = vadd.f32 %v7960, %v8343
      %v8387 = vadd.f32 %v7961, %v8345
      %v8388 = vadd.f32 %v7962, %v8348
      %v8389 = vadd.f32 %v7963, %v8350
      %v8390 = vadd.f32 %v7964, %v8353
      %v8391 = vadd.f32 %v7965, %v8355
      %v8392 = vadd.f32 %v7966, %v8358
      %v8393 = vadd.f32 %v7967, %v8360
      %s8394 = scalar_lea.vmem [#allocation3], 24
      %v8395 = vld [vmem:[%s8394] sm:$0xf]
      %v8396 = vld [vmem:[%s8394 + $0x4] sm:$0xf]
      %v8397 = vld [vmem:[%s8394 + $0xc] sm:$0xf]
      %v8398 = vld [vmem:[%s8394 + $0x10] sm:$0xf]
      %v8399 = vld [vmem:[%s8394 + $0x18] sm:$0xf]
      %v8400 = vld [vmem:[%s8394 + $0x1c] sm:$0xf]
      %v8401 = vld [vmem:[%s8394 + $0x24] sm:$0xf]
      %v8402 = vld [vmem:[%s8394 + $0x28] sm:$0xf]
      %v8403 = vld [vmem:[%s8394 + $0x30] sm:$0xf]
      %v8404 = vld [vmem:[%s8394 + $0x34] sm:$0xf]
      %v8405 = vld [vmem:[%s8394 + $0x3c] sm:$0xf]
      %v8406 = vld [vmem:[%s8394 + $0x40] sm:$0xf]
      %v8407 = vld [vmem:[%s8394 + $0x48] sm:$0xf]
      %v8408 = vld [vmem:[%s8394 + $0x4c] sm:$0xf]
      %v8409 = vld [vmem:[%s8394 + $0x54] sm:$0xf]
      %v8410 = vld [vmem:[%s8394 + $0x58] sm:$0xf]
      %v8411 = vld [vmem:[%s8394 + $0x60] sm:$0xf]
      %v8412 = vld [vmem:[%s8394 + $0x64] sm:$0xf]
      %v8413 = vld [vmem:[%s8394 + $0x6c] sm:$0xf]
      %v8414 = vld [vmem:[%s8394 + $0x70] sm:$0xf]
      %v8415 = vld [vmem:[%s8394 + $0x78] sm:$0xf]
      %v8416 = vld [vmem:[%s8394 + $0x7c] sm:$0xf]
      %v8417 = vld [vmem:[%s8394 + $0x84] sm:$0xf]
      %v8418 = vld [vmem:[%s8394 + $0x88] sm:$0xf]
      %v8419 = vld [vmem:[%s8394 + $0x90] sm:$0xf]
      %v8420 = vld [vmem:[%s8394 + $0x94] sm:$0xf]
      %v8421 = vld [vmem:[%s8394 + $0x9c] sm:$0xf]
      %v8422 = vld [vmem:[%s8394 + $0xa0] sm:$0xf]
      %v8423 = vld [vmem:[%s8394 + $0xa8] sm:$0xf]
      %v8424 = vld [vmem:[%s8394 + $0xac] sm:$0xf]
      %v8425 = vld [vmem:[%s8394 + $0xb4] sm:$0xf]
      %v8426 = vld [vmem:[%s8394 + $0xb8] sm:$0xf]
      %s8427 = scalar_lea.vmem %s5, 384
      %v8428 = vld [vmem:[%s8427] sm:$0xf]
      %v8429 = vld [vmem:[%s8427 + $0x4] sm:$0xf]
      %v8430 = vld [vmem:[%s8427 + $0x8] sm:$0xf]
      %v8431 = vld [vmem:[%s8427 + $0xc] sm:$0xf]
      %v8432 = vld [vmem:[%s8427 + $0x10] sm:$0xf]
      %v8433 = vld [vmem:[%s8427 + $0x14] sm:$0xf]
      %v8434 = vld [vmem:[%s8427 + $0x18] sm:$0xf]
      %v8435 = vld [vmem:[%s8427 + $0x1c] sm:$0xf]
      %v8436 = vld [vmem:[%s8427 + $0x20] sm:$0xf]
      %v8437 = vld [vmem:[%s8427 + $0x24] sm:$0xf]
      %v8438 = vld [vmem:[%s8427 + $0x28] sm:$0xf]
      %v8439 = vld [vmem:[%s8427 + $0x2c] sm:$0xf]
      %v8440 = vld [vmem:[%s8427 + $0x30] sm:$0xf]
      %v8441 = vld [vmem:[%s8427 + $0x34] sm:$0xf]
      %v8442 = vld [vmem:[%s8427 + $0x38] sm:$0xf]
      %v8443 = vld [vmem:[%s8427 + $0x3c] sm:$0xf]
      %v8476 = vunpack.c.l.b16 %v8395
      %v8477 = vunpack.c.l.b16 %v8396
      %v8478 = vunpack.c.l.b16 %v8397
      %v8479 = vunpack.c.l.b16 %v8398
      %v8480 = vunpack.c.l.b16 %v8399
      %v8481 = vunpack.c.l.b16 %v8400
      %v8482 = vunpack.c.l.b16 %v8401
      %v8483 = vunpack.c.l.b16 %v8402
      %v8484 = vunpack.c.l.b16 %v8403
      %v8485 = vunpack.c.l.b16 %v8404
      %v8486 = vunpack.c.l.b16 %v8405
      %v8487 = vunpack.c.l.b16 %v8406
      %v8488 = vunpack.c.l.b16 %v8407
      %v8489 = vunpack.c.l.b16 %v8408
      %v8490 = vunpack.c.l.b16 %v8409
      %v8491 = vunpack.c.l.b16 %v8410
      %v8492 = vunpack.c.l.b16 %v8411
      %v8493 = vunpack.c.l.b16 %v8412
      %v8494 = vunpack.c.l.b16 %v8413
      %v8495 = vunpack.c.l.b16 %v8414
      %v8496 = vunpack.c.l.b16 %v8415
      %v8497 = vunpack.c.l.b16 %v8416
      %v8498 = vunpack.c.l.b16 %v8417
      %v8499 = vunpack.c.l.b16 %v8418
      %v8500 = vunpack.c.l.b16 %v8419
      %v8501 = vunpack.c.l.b16 %v8420
      %v8502 = vunpack.c.l.b16 %v8421
      %v8503 = vunpack.c.l.b16 %v8422
      %v8504 = vunpack.c.l.b16 %v8423
      %v8505 = vunpack.c.l.b16 %v8424
      %v8506 = vunpack.c.l.b16 %v8425
      %v8507 = vunpack.c.l.b16 %v8426
      %v8508 = vpack.c.b16 %v8477, %v8476
      %v8509 = vpack.c.b16 %v8479, %v8478
      %v8510 = vpack.c.b16 %v8481, %v8480
      %v8511 = vpack.c.b16 %v8483, %v8482
      %v8512 = vpack.c.b16 %v8485, %v8484
      %v8513 = vpack.c.b16 %v8487, %v8486
      %v8514 = vpack.c.b16 %v8489, %v8488
      %v8515 = vpack.c.b16 %v8491, %v8490
      %v8516 = vpack.c.b16 %v8493, %v8492
      %v8517 = vpack.c.b16 %v8495, %v8494
      %v8518 = vpack.c.b16 %v8497, %v8496
      %v8519 = vpack.c.b16 %v8499, %v8498
      %v8520 = vpack.c.b16 %v8501, %v8500
      %v8521 = vpack.c.b16 %v8503, %v8502
      %v8522 = vpack.c.b16 %v8505, %v8504
      %v8523 = vpack.c.b16 %v8507, %v8506
      %v8556 = vunpack.c.l.b16 %v8428
      %v8557 = vunpack.c.l.b16 %v8429
      %v8558 = vunpack.c.l.b16 %v8430
      %v8559 = vunpack.c.l.b16 %v8431
      %v8560 = vunpack.c.l.b16 %v8432
      %v8561 = vunpack.c.l.b16 %v8433
      %v8562 = vunpack.c.l.b16 %v8434
      %v8563 = vunpack.c.l.b16 %v8435
      %v8564 = vunpack.c.l.b16 %v8436
      %v8565 = vunpack.c.l.b16 %v8437
      %v8566 = vunpack.c.l.b16 %v8438
      %v8567 = vunpack.c.l.b16 %v8439
      %v8568 = vunpack.c.l.b16 %v8440
      %v8569 = vunpack.c.l.b16 %v8441
      %v8570 = vunpack.c.l.b16 %v8442
      %v8571 = vunpack.c.l.b16 %v8443
      %v8572 = vpack.c.b16 %v8557, %v8556
      %v8573 = vpack.c.b16 %v8559, %v8558
      %v8574 = vpack.c.b16 %v8561, %v8560
      %v8575 = vpack.c.b16 %v8563, %v8562
      %v8576 = vpack.c.b16 %v8565, %v8564
      %v8577 = vpack.c.b16 %v8567, %v8566
      %v8578 = vpack.c.b16 %v8569, %v8568
      %v8579 = vpack.c.b16 %v8571, %v8570
      %8588 = vmatpush.bf16.msra.mxu0 %v8579
      %8589 = vmatpush.bf16.msra.mxu0 %v8578
      %8590 = vmatpush.bf16.msra.mxu0 %v8577
      %8591 = vmatpush.bf16.msra.mxu0 %v8576
      %8592 = vmatpush.bf16.msra.mxu0 %v8575
      %8593 = vmatpush.bf16.msra.mxu0 %v8574
      %8594 = vmatpush.bf16.msra.mxu0 %v8573
      %8595 = vmatpush.bf16.msra.mxu0 %v8572
      %8596 = vmatmul.bf16.gmra.mxu0 %v8508
      %v8597 = vpop.f32.mrf.mxu0
      %v8598 = vadd.f32 0.0, %v8597
      %v8599 = vpop.f32.mrf.mxu0
      %v8600 = vadd.f32 0.0, %v8599
      %8601 = vmatmul.bf16.gmra.mxu0 %v8509
      %v8602 = vpop.f32.mrf.mxu0
      %v8603 = vadd.f32 0.0, %v8602
      %v8604 = vpop.f32.mrf.mxu0
      %v8605 = vadd.f32 0.0, %v8604
      %8606 = vmatmul.bf16.gmra.mxu0 %v8510
      %v8607 = vpop.f32.mrf.mxu0
      %v8608 = vadd.f32 0.0, %v8607
      %v8609 = vpop.f32.mrf.mxu0
      %v8610 = vadd.f32 0.0, %v8609
      %8611 = vmatmul.bf16.gmra.mxu0 %v8511
      %v8612 = vpop.f32.mrf.mxu0
      %v8613 = vadd.f32 0.0, %v8612
      %v8614 = vpop.f32.mrf.mxu0
      %v8615 = vadd.f32 0.0, %v8614
      %8616 = vmatmul.bf16.gmra.mxu0 %v8512
      %v8617 = vpop.f32.mrf.mxu0
      %v8618 = vadd.f32 0.0, %v8617
      %v8619 = vpop.f32.mrf.mxu0
      %v8620 = vadd.f32 0.0, %v8619
      %8621 = vmatmul.bf16.gmra.mxu0 %v8513
      %v8622 = vpop.f32.mrf.mxu0
      %v8623 = vadd.f32 0.0, %v8622
      %v8624 = vpop.f32.mrf.mxu0
      %v8625 = vadd.f32 0.0, %v8624
      %8626 = vmatmul.bf16.gmra.mxu0 %v8514
      %v8627 = vpop.f32.mrf.mxu0
      %v8628 = vadd.f32 0.0, %v8627
      %v8629 = vpop.f32.mrf.mxu0
      %v8630 = vadd.f32 0.0, %v8629
      %8631 = vmatmul.bf16.gmra.mxu0 %v8515
      %v8632 = vpop.f32.mrf.mxu0
      %v8633 = vadd.f32 0.0, %v8632
      %v8634 = vpop.f32.mrf.mxu0
      %v8635 = vadd.f32 0.0, %v8634
      %8636 = vmatmul.bf16.gmra.mxu0 %v8516
      %v8637 = vpop.f32.mrf.mxu0
      %v8638 = vadd.f32 0.0, %v8637
      %v8639 = vpop.f32.mrf.mxu0
      %v8640 = vadd.f32 0.0, %v8639
      %8641 = vmatmul.bf16.gmra.mxu0 %v8517
      %v8642 = vpop.f32.mrf.mxu0
      %v8643 = vadd.f32 0.0, %v8642
      %v8644 = vpop.f32.mrf.mxu0
      %v8645 = vadd.f32 0.0, %v8644
      %8646 = vmatmul.bf16.gmra.mxu0 %v8518
      %v8647 = vpop.f32.mrf.mxu0
      %v8648 = vadd.f32 0.0, %v8647
      %v8649 = vpop.f32.mrf.mxu0
      %v8650 = vadd.f32 0.0, %v8649
      %8651 = vmatmul.bf16.gmra.mxu0 %v8519
      %v8652 = vpop.f32.mrf.mxu0
      %v8653 = vadd.f32 0.0, %v8652
      %v8654 = vpop.f32.mrf.mxu0
      %v8655 = vadd.f32 0.0, %v8654
      %8656 = vmatmul.bf16.gmra.mxu0 %v8520
      %v8657 = vpop.f32.mrf.mxu0
      %v8658 = vadd.f32 0.0, %v8657
      %v8659 = vpop.f32.mrf.mxu0
      %v8660 = vadd.f32 0.0, %v8659
      %8661 = vmatmul.bf16.gmra.mxu0 %v8521
      %v8662 = vpop.f32.mrf.mxu0
      %v8663 = vadd.f32 0.0, %v8662
      %v8664 = vpop.f32.mrf.mxu0
      %v8665 = vadd.f32 0.0, %v8664
      %8666 = vmatmul.bf16.gmra.mxu0 %v8522
      %v8667 = vpop.f32.mrf.mxu0
      %v8668 = vadd.f32 0.0, %v8667
      %v8669 = vpop.f32.mrf.mxu0
      %v8670 = vadd.f32 0.0, %v8669
      %8671 = vmatmul.bf16.gmra.mxu0 %v8523
      %v8672 = vpop.f32.mrf.mxu0
      %v8673 = vadd.f32 0.0, %v8672
      %v8674 = vpop.f32.mrf.mxu0
      %v8675 = vadd.f32 0.0, %v8674
      %8676 = vdwg.mxu0
      %v8677 = vadd.f32 %v8362, %v8598
      %v8678 = vadd.f32 %v8363, %v8600
      %v8679 = vadd.f32 %v8364, %v8603
      %v8680 = vadd.f32 %v8365, %v8605
      %v8681 = vadd.f32 %v8366, %v8608
      %v8682 = vadd.f32 %v8367, %v8610
      %v8683 = vadd.f32 %v8368, %v8613
      %v8684 = vadd.f32 %v8369, %v8615
      %v8685 = vadd.f32 %v8370, %v8618
      %v8686 = vadd.f32 %v8371, %v8620
      %v8687 = vadd.f32 %v8372, %v8623
      %v8688 = vadd.f32 %v8373, %v8625
      %v8689 = vadd.f32 %v8374, %v8628
      %v8690 = vadd.f32 %v8375, %v8630
      %v8691 = vadd.f32 %v8376, %v8633
      %v8692 = vadd.f32 %v8377, %v8635
      %v8693 = vadd.f32 %v8378, %v8638
      %v8694 = vadd.f32 %v8379, %v8640
      %v8695 = vadd.f32 %v8380, %v8643
      %v8696 = vadd.f32 %v8381, %v8645
      %v8697 = vadd.f32 %v8382, %v8648
      %v8698 = vadd.f32 %v8383, %v8650
      %v8699 = vadd.f32 %v8384, %v8653
      %v8700 = vadd.f32 %v8385, %v8655
      %v8701 = vadd.f32 %v8386, %v8658
      %v8702 = vadd.f32 %v8387, %v8660
      %v8703 = vadd.f32 %v8388, %v8663
      %v8704 = vadd.f32 %v8389, %v8665
      %v8705 = vadd.f32 %v8390, %v8668
      %v8706 = vadd.f32 %v8391, %v8670
      %v8707 = vadd.f32 %v8392, %v8673
      %v8708 = vadd.f32 %v8393, %v8675
      %v8709 = vld [vmem:[%s8394] sm:$0xf]
      %v8710 = vld [vmem:[%s8394 + $0x4] sm:$0xf]
      %v8711 = vld [vmem:[%s8394 + $0x8] sm:$0x1]
      %v8712 = vld [vmem:[%s8394 + $0xc] sm:$0xf]
      %v8713 = vld [vmem:[%s8394 + $0x10] sm:$0xf]
      %v8714 = vld [vmem:[%s8394 + $0x14] sm:$0x1]
      %v8715 = vld [vmem:[%s8394 + $0x18] sm:$0xf]
      %v8716 = vld [vmem:[%s8394 + $0x1c] sm:$0xf]
      %v8717 = vld [vmem:[%s8394 + $0x20] sm:$0x1]
      %v8718 = vld [vmem:[%s8394 + $0x24] sm:$0xf]
      %v8719 = vld [vmem:[%s8394 + $0x28] sm:$0xf]
      %v8720 = vld [vmem:[%s8394 + $0x2c] sm:$0x1]
      %v8721 = vld [vmem:[%s8394 + $0x30] sm:$0xf]
      %v8722 = vld [vmem:[%s8394 + $0x34] sm:$0xf]
      %v8723 = vld [vmem:[%s8394 + $0x38] sm:$0x1]
      %v8724 = vld [vmem:[%s8394 + $0x3c] sm:$0xf]
      %v8725 = vld [vmem:[%s8394 + $0x40] sm:$0xf]
      %v8726 = vld [vmem:[%s8394 + $0x44] sm:$0x1]
      %v8727 = vld [vmem:[%s8394 + $0x48] sm:$0xf]
      %v8728 = vld [vmem:[%s8394 + $0x4c] sm:$0xf]
      %v8729 = vld [vmem:[%s8394 + $0x50] sm:$0x1]
      %v8730 = vld [vmem:[%s8394 + $0x54] sm:$0xf]
      %v8731 = vld [vmem:[%s8394 + $0x58] sm:$0xf]
      %v8732 = vld [vmem:[%s8394 + $0x5c] sm:$0x1]
      %v8733 = vld [vmem:[%s8394 + $0x60] sm:$0xf]
      %v8734 = vld [vmem:[%s8394 + $0x64] sm:$0xf]
      %v8735 = vld [vmem:[%s8394 + $0x68] sm:$0x1]
      %v8736 = vld [vmem:[%s8394 + $0x6c] sm:$0xf]
      %v8737 = vld [vmem:[%s8394 + $0x70] sm:$0xf]
      %v8738 = vld [vmem:[%s8394 + $0x74] sm:$0x1]
      %v8739 = vld [vmem:[%s8394 + $0x78] sm:$0xf]
      %v8740 = vld [vmem:[%s8394 + $0x7c] sm:$0xf]
      %v8741 = vld [vmem:[%s8394 + $0x80] sm:$0x1]
      %v8742 = vld [vmem:[%s8394 + $0x84] sm:$0xf]
      %v8743 = vld [vmem:[%s8394 + $0x88] sm:$0xf]
      %v8744 = vld [vmem:[%s8394 + $0x8c] sm:$0x1]
      %v8745 = vld [vmem:[%s8394 + $0x90] sm:$0xf]
      %v8746 = vld [vmem:[%s8394 + $0x94] sm:$0xf]
      %v8747 = vld [vmem:[%s8394 + $0x98] sm:$0x1]
      %v8748 = vld [vmem:[%s8394 + $0x9c] sm:$0xf]
      %v8749 = vld [vmem:[%s8394 + $0xa0] sm:$0xf]
      %v8750 = vld [vmem:[%s8394 + $0xa4] sm:$0x1]
      %v8751 = vld [vmem:[%s8394 + $0xa8] sm:$0xf]
      %v8752 = vld [vmem:[%s8394 + $0xac] sm:$0xf]
      %v8753 = vld [vmem:[%s8394 + $0xb0] sm:$0x1]
      %v8754 = vld [vmem:[%s8394 + $0xb4] sm:$0xf]
      %v8755 = vld [vmem:[%s8394 + $0xb8] sm:$0xf]
      %v8756 = vld [vmem:[%s8394 + $0xbc] sm:$0x1]
      %v8758 = vshrl.u32 %v8709, 16
      %v8760 = vrot.slane %v8758, 4
      %v8761 = vshll.u32 %v8709, 16
      %v8763 = vrot.slane %v8761, 5
      %v8764 = vor.u32 %v8760, %v8763
      %v8765 = vrot.slane %v8764, 4
      %v8767 = vshll.u32 %v8710, 16
      %v8769 = vrot.slane %v8767, 5
      %v8770 = vsel %vm982, %v8765, %v8769
      %v8771 = vshrl.u32 %v8710, 16
      %v8773 = vrot.slane %v8771, 4
      %v8774 = vor.u32 %v8773, %v8769
      %v8775 = vrot.slane %v8774, 4
      %v8777 = vshll.u32 %v8711, 16
      %v8779 = vrot.slane %v8777, 5
      %v8780 = vsel %vm982, %v8775, %v8779
      %v8782 = vshrl.u32 %v8712, 16
      %v8784 = vrot.slane %v8782, 4
      %v8785 = vshll.u32 %v8712, 16
      %v8787 = vrot.slane %v8785, 5
      %v8788 = vor.u32 %v8784, %v8787
      %v8789 = vrot.slane %v8788, 4
      %v8791 = vshll.u32 %v8713, 16
      %v8793 = vrot.slane %v8791, 5
      %v8794 = vsel %vm982, %v8789, %v8793
      %v8795 = vshrl.u32 %v8713, 16
      %v8797 = vrot.slane %v8795, 4
      %v8798 = vor.u32 %v8797, %v8793
      %v8799 = vrot.slane %v8798, 4
      %v8801 = vshll.u32 %v8714, 16
      %v8803 = vrot.slane %v8801, 5
      %v8804 = vsel %vm982, %v8799, %v8803
      %v8806 = vshrl.u32 %v8715, 16
      %v8808 = vrot.slane %v8806, 4
      %v8809 = vshll.u32 %v8715, 16
      %v8811 = vrot.slane %v8809, 5
      %v8812 = vor.u32 %v8808, %v8811
      %v8813 = vrot.slane %v8812, 4
      %v8815 = vshll.u32 %v8716, 16
      %v8817 = vrot.slane %v8815, 5
      %v8818 = vsel %vm982, %v8813, %v8817
      %v8819 = vshrl.u32 %v8716, 16
      %v8821 = vrot.slane %v8819, 4
      %v8822 = vor.u32 %v8821, %v8817
      %v8823 = vrot.slane %v8822, 4
      %v8825 = vshll.u32 %v8717, 16
      %v8827 = vrot.slane %v8825, 5
      %v8828 = vsel %vm982, %v8823, %v8827
      %v8830 = vshrl.u32 %v8718, 16
      %v8832 = vrot.slane %v8830, 4
      %v8833 = vshll.u32 %v8718, 16
      %v8835 = vrot.slane %v8833, 5
      %v8836 = vor.u32 %v8832, %v8835
      %v8837 = vrot.slane %v8836, 4
      %v8839 = vshll.u32 %v8719, 16
      %v8841 = vrot.slane %v8839, 5
      %v8842 = vsel %vm982, %v8837, %v8841
      %v8843 = vshrl.u32 %v8719, 16
      %v8845 = vrot.slane %v8843, 4
      %v8846 = vor.u32 %v8845, %v8841
      %v8847 = vrot.slane %v8846, 4
      %v8849 = vshll.u32 %v8720, 16
      %v8851 = vrot.slane %v8849, 5
      %v8852 = vsel %vm982, %v8847, %v8851
      %v8854 = vshrl.u32 %v8721, 16
      %v8856 = vrot.slane %v8854, 4
      %v8857 = vshll.u32 %v8721, 16
      %v8859 = vrot.slane %v8857, 5
      %v8860 = vor.u32 %v8856, %v8859
      %v8861 = vrot.slane %v8860, 4
      %v8863 = vshll.u32 %v8722, 16
      %v8865 = vrot.slane %v8863, 5
      %v8866 = vsel %vm982, %v8861, %v8865
      %v8867 = vshrl.u32 %v8722, 16
      %v8869 = vrot.slane %v8867, 4
      %v8870 = vor.u32 %v8869, %v8865
      %v8871 = vrot.slane %v8870, 4
      %v8873 = vshll.u32 %v8723, 16
      %v8875 = vrot.slane %v8873, 5
      %v8876 = vsel %vm982, %v8871, %v8875
      %v8878 = vshrl.u32 %v8724, 16
      %v8880 = vrot.slane %v8878, 4
      %v8881 = vshll.u32 %v8724, 16
      %v8883 = vrot.slane %v8881, 5
      %v8884 = vor.u32 %v8880, %v8883
      %v8885 = vrot.slane %v8884, 4
      %v8887 = vshll.u32 %v8725, 16
      %v8889 = vrot.slane %v8887, 5
      %v8890 = vsel %vm982, %v8885, %v8889
      %v8891 = vshrl.u32 %v8725, 16
      %v8893 = vrot.slane %v8891, 4
      %v8894 = vor.u32 %v8893, %v8889
      %v8895 = vrot.slane %v8894, 4
      %v8897 = vshll.u32 %v8726, 16
      %v8899 = vrot.slane %v8897, 5
      %v8900 = vsel %vm982, %v8895, %v8899
      %v8902 = vshrl.u32 %v8727, 16
      %v8904 = vrot.slane %v8902, 4
      %v8905 = vshll.u32 %v8727, 16
      %v8907 = vrot.slane %v8905, 5
      %v8908 = vor.u32 %v8904, %v8907
      %v8909 = vrot.slane %v8908, 4
      %v8911 = vshll.u32 %v8728, 16
      %v8913 = vrot.slane %v8911, 5
      %v8914 = vsel %vm982, %v8909, %v8913
      %v8915 = vshrl.u32 %v8728, 16
      %v8917 = vrot.slane %v8915, 4
      %v8918 = vor.u32 %v8917, %v8913
      %v8919 = vrot.slane %v8918, 4
      %v8921 = vshll.u32 %v8729, 16
      %v8923 = vrot.slane %v8921, 5
      %v8924 = vsel %vm982, %v8919, %v8923
      %v8926 = vshrl.u32 %v8730, 16
      %v8928 = vrot.slane %v8926, 4
      %v8929 = vshll.u32 %v8730, 16
      %v8931 = vrot.slane %v8929, 5
      %v8932 = vor.u32 %v8928, %v8931
      %v8933 = vrot.slane %v8932, 4
      %v8935 = vshll.u32 %v8731, 16
      %v8937 = vrot.slane %v8935, 5
      %v8938 = vsel %vm982, %v8933, %v8937
      %v8939 = vshrl.u32 %v8731, 16
      %v8941 = vrot.slane %v8939, 4
      %v8942 = vor.u32 %v8941, %v8937
      %v8943 = vrot.slane %v8942, 4
      %v8945 = vshll.u32 %v8732, 16
      %v8947 = vrot.slane %v8945, 5
      %v8948 = vsel %vm982, %v8943, %v8947
      %v8950 = vshrl.u32 %v8733, 16
      %v8952 = vrot.slane %v8950, 4
      %v8953 = vshll.u32 %v8733, 16
      %v8955 = vrot.slane %v8953, 5
      %v8956 = vor.u32 %v8952, %v8955
      %v8957 = vrot.slane %v8956, 4
      %v8959 = vshll.u32 %v8734, 16
      %v8961 = vrot.slane %v8959, 5
      %v8962 = vsel %vm982, %v8957, %v8961
      %v8963 = vshrl.u32 %v8734, 16
      %v8965 = vrot.slane %v8963, 4
      %v8966 = vor.u32 %v8965, %v8961
      %v8967 = vrot.slane %v8966, 4
      %v8969 = vshll.u32 %v8735, 16
      %v8971 = vrot.slane %v8969, 5
      %v8972 = vsel %vm982, %v8967, %v8971
      %v8974 = vshrl.u32 %v8736, 16
      %v8976 = vrot.slane %v8974, 4
      %v8977 = vshll.u32 %v8736, 16
      %v8979 = vrot.slane %v8977, 5
      %v8980 = vor.u32 %v8976, %v8979
      %v8981 = vrot.slane %v8980, 4
      %v8983 = vshll.u32 %v8737, 16
      %v8985 = vrot.slane %v8983, 5
      %v8986 = vsel %vm982, %v8981, %v8985
      %v8987 = vshrl.u32 %v8737, 16
      %v8989 = vrot.slane %v8987, 4
      %v8990 = vor.u32 %v8989, %v8985
      %v8991 = vrot.slane %v8990, 4
      %v8993 = vshll.u32 %v8738, 16
      %v8995 = vrot.slane %v8993, 5
      %v8996 = vsel %vm982, %v8991, %v8995
      %v8998 = vshrl.u32 %v8739, 16
      %v9000 = vrot.slane %v8998, 4
      %v9001 = vshll.u32 %v8739, 16
      %v9003 = vrot.slane %v9001, 5
      %v9004 = vor.u32 %v9000, %v9003
      %v9005 = vrot.slane %v9004, 4
      %v9007 = vshll.u32 %v8740, 16
      %v9009 = vrot.slane %v9007, 5
      %v9010 = vsel %vm982, %v9005, %v9009
      %v9011 = vshrl.u32 %v8740, 16
      %v9013 = vrot.slane %v9011, 4
      %v9014 = vor.u32 %v9013, %v9009
      %v9015 = vrot.slane %v9014, 4
      %v9017 = vshll.u32 %v8741, 16
      %v9019 = vrot.slane %v9017, 5
      %v9020 = vsel %vm982, %v9015, %v9019
      %v9022 = vshrl.u32 %v8742, 16
      %v9024 = vrot.slane %v9022, 4
      %v9025 = vshll.u32 %v8742, 16
      %v9027 = vrot.slane %v9025, 5
      %v9028 = vor.u32 %v9024, %v9027
      %v9029 = vrot.slane %v9028, 4
      %v9031 = vshll.u32 %v8743, 16
      %v9033 = vrot.slane %v9031, 5
      %v9034 = vsel %vm982, %v9029, %v9033
      %v9035 = vshrl.u32 %v8743, 16
      %v9037 = vrot.slane %v9035, 4
      %v9038 = vor.u32 %v9037, %v9033
      %v9039 = vrot.slane %v9038, 4
      %v9041 = vshll.u32 %v8744, 16
      %v9043 = vrot.slane %v9041, 5
      %v9044 = vsel %vm982, %v9039, %v9043
      %v9046 = vshrl.u32 %v8745, 16
      %v9048 = vrot.slane %v9046, 4
      %v9049 = vshll.u32 %v8745, 16
      %v9051 = vrot.slane %v9049, 5
      %v9052 = vor.u32 %v9048, %v9051
      %v9053 = vrot.slane %v9052, 4
      %v9055 = vshll.u32 %v8746, 16
      %v9057 = vrot.slane %v9055, 5
      %v9058 = vsel %vm982, %v9053, %v9057
      %v9059 = vshrl.u32 %v8746, 16
      %v9061 = vrot.slane %v9059, 4
      %v9062 = vor.u32 %v9061, %v9057
      %v9063 = vrot.slane %v9062, 4
      %v9065 = vshll.u32 %v8747, 16
      %v9067 = vrot.slane %v9065, 5
      %v9068 = vsel %vm982, %v9063, %v9067
      %v9070 = vshrl.u32 %v8748, 16
      %v9072 = vrot.slane %v9070, 4
      %v9073 = vshll.u32 %v8748, 16
      %v9075 = vrot.slane %v9073, 5
      %v9076 = vor.u32 %v9072, %v9075
      %v9077 = vrot.slane %v9076, 4
      %v9079 = vshll.u32 %v8749, 16
      %v9081 = vrot.slane %v9079, 5
      %v9082 = vsel %vm982, %v9077, %v9081
      %v9083 = vshrl.u32 %v8749, 16
      %v9085 = vrot.slane %v9083, 4
      %v9086 = vor.u32 %v9085, %v9081
      %v9087 = vrot.slane %v9086, 4
      %v9089 = vshll.u32 %v8750, 16
      %v9091 = vrot.slane %v9089, 5
      %v9092 = vsel %vm982, %v9087, %v9091
      %v9094 = vshrl.u32 %v8751, 16
      %v9096 = vrot.slane %v9094, 4
      %v9097 = vshll.u32 %v8751, 16
      %v9099 = vrot.slane %v9097, 5
      %v9100 = vor.u32 %v9096, %v9099
      %v9101 = vrot.slane %v9100, 4
      %v9103 = vshll.u32 %v8752, 16
      %v9105 = vrot.slane %v9103, 5
      %v9106 = vsel %vm982, %v9101, %v9105
      %v9107 = vshrl.u32 %v8752, 16
      %v9109 = vrot.slane %v9107, 4
      %v9110 = vor.u32 %v9109, %v9105
      %v9111 = vrot.slane %v9110, 4
      %v9113 = vshll.u32 %v8753, 16
      %v9115 = vrot.slane %v9113, 5
      %v9116 = vsel %vm982, %v9111, %v9115
      %v9118 = vshrl.u32 %v8754, 16
      %v9120 = vrot.slane %v9118, 4
      %v9121 = vshll.u32 %v8754, 16
      %v9123 = vrot.slane %v9121, 5
      %v9124 = vor.u32 %v9120, %v9123
      %v9125 = vrot.slane %v9124, 4
      %v9127 = vshll.u32 %v8755, 16
      %v9129 = vrot.slane %v9127, 5
      %v9130 = vsel %vm982, %v9125, %v9129
      %v9131 = vshrl.u32 %v8755, 16
      %v9133 = vrot.slane %v9131, 4
      %v9134 = vor.u32 %v9133, %v9129
      %v9135 = vrot.slane %v9134, 4
      %v9137 = vshll.u32 %v8756, 16
      %v9139 = vrot.slane %v9137, 5
      %v9140 = vsel %vm982, %v9135, %v9139
      %s9141 = scalar_lea.vmem %s5, 448
      %v9142 = vld [vmem:[%s9141] sm:$0xf]
      %v9143 = vld [vmem:[%s9141 + $0x4] sm:$0xf]
      %v9144 = vld [vmem:[%s9141 + $0x8] sm:$0xf]
      %v9145 = vld [vmem:[%s9141 + $0xc] sm:$0xf]
      %v9146 = vld [vmem:[%s9141 + $0x10] sm:$0xf]
      %v9147 = vld [vmem:[%s9141 + $0x14] sm:$0xf]
      %v9148 = vld [vmem:[%s9141 + $0x18] sm:$0xf]
      %v9149 = vld [vmem:[%s9141 + $0x1c] sm:$0xf]
      %v9150 = vld [vmem:[%s9141 + $0x20] sm:$0xf]
      %v9151 = vld [vmem:[%s9141 + $0x24] sm:$0xf]
      %v9152 = vld [vmem:[%s9141 + $0x28] sm:$0xf]
      %v9153 = vld [vmem:[%s9141 + $0x2c] sm:$0xf]
      %v9154 = vld [vmem:[%s9141 + $0x30] sm:$0xf]
      %v9155 = vld [vmem:[%s9141 + $0x34] sm:$0xf]
      %v9156 = vld [vmem:[%s9141 + $0x38] sm:$0xf]
      %v9157 = vld [vmem:[%s9141 + $0x3c] sm:$0xf]
      %v9158 = vunpack.c.l.b16 %v8770
      %v9159 = vunpack.c.l.b16 %v8780
      %v9160 = vunpack.c.l.b16 %v8794
      %v9161 = vunpack.c.l.b16 %v8804
      %v9162 = vunpack.c.l.b16 %v8818
      %v9163 = vunpack.c.l.b16 %v8828
      %v9164 = vunpack.c.l.b16 %v8842
      %v9165 = vunpack.c.l.b16 %v8852
      %v9166 = vunpack.c.l.b16 %v8866
      %v9167 = vunpack.c.l.b16 %v8876
      %v9168 = vunpack.c.l.b16 %v8890
      %v9169 = vunpack.c.l.b16 %v8900
      %v9170 = vunpack.c.l.b16 %v8914
      %v9171 = vunpack.c.l.b16 %v8924
      %v9172 = vunpack.c.l.b16 %v8938
      %v9173 = vunpack.c.l.b16 %v8948
      %v9174 = vunpack.c.l.b16 %v8962
      %v9175 = vunpack.c.l.b16 %v8972
      %v9176 = vunpack.c.l.b16 %v8986
      %v9177 = vunpack.c.l.b16 %v8996
      %v9178 = vunpack.c.l.b16 %v9010
      %v9179 = vunpack.c.l.b16 %v9020
      %v9180 = vunpack.c.l.b16 %v9034
      %v9181 = vunpack.c.l.b16 %v9044
      %v9182 = vunpack.c.l.b16 %v9058
      %v9183 = vunpack.c.l.b16 %v9068
      %v9184 = vunpack.c.l.b16 %v9082
      %v9185 = vunpack.c.l.b16 %v9092
      %v9186 = vunpack.c.l.b16 %v9106
      %v9187 = vunpack.c.l.b16 %v9116
      %v9188 = vunpack.c.l.b16 %v9130
      %v9189 = vunpack.c.l.b16 %v9140
      %v9190 = vpack.c.b16 %v9159, %v9158
      %v9191 = vpack.c.b16 %v9161, %v9160
      %v9192 = vpack.c.b16 %v9163, %v9162
      %v9193 = vpack.c.b16 %v9165, %v9164
      %v9194 = vpack.c.b16 %v9167, %v9166
      %v9195 = vpack.c.b16 %v9169, %v9168
      %v9196 = vpack.c.b16 %v9171, %v9170
      %v9197 = vpack.c.b16 %v9173, %v9172
      %v9198 = vpack.c.b16 %v9175, %v9174
      %v9199 = vpack.c.b16 %v9177, %v9176
      %v9200 = vpack.c.b16 %v9179, %v9178
      %v9201 = vpack.c.b16 %v9181, %v9180
      %v9202 = vpack.c.b16 %v9183, %v9182
      %v9203 = vpack.c.b16 %v9185, %v9184
      %v9204 = vpack.c.b16 %v9187, %v9186
      %v9205 = vpack.c.b16 %v9189, %v9188
      %v9238 = vunpack.c.l.b16 %v9142
      %v9239 = vunpack.c.l.b16 %v9143
      %v9240 = vunpack.c.l.b16 %v9144
      %v9241 = vunpack.c.l.b16 %v9145
      %v9242 = vunpack.c.l.b16 %v9146
      %v9243 = vunpack.c.l.b16 %v9147
      %v9244 = vunpack.c.l.b16 %v9148
      %v9245 = vunpack.c.l.b16 %v9149
      %v9246 = vunpack.c.l.b16 %v9150
      %v9247 = vunpack.c.l.b16 %v9151
      %v9248 = vunpack.c.l.b16 %v9152
      %v9249 = vunpack.c.l.b16 %v9153
      %v9250 = vunpack.c.l.b16 %v9154
      %v9251 = vunpack.c.l.b16 %v9155
      %v9252 = vunpack.c.l.b16 %v9156
      %v9253 = vunpack.c.l.b16 %v9157
      %v9254 = vpack.c.b16 %v9239, %v9238
      %v9255 = vpack.c.b16 %v9241, %v9240
      %v9256 = vpack.c.b16 %v9243, %v9242
      %v9257 = vpack.c.b16 %v9245, %v9244
      %v9258 = vpack.c.b16 %v9247, %v9246
      %v9259 = vpack.c.b16 %v9249, %v9248
      %v9260 = vpack.c.b16 %v9251, %v9250
      %v9261 = vpack.c.b16 %v9253, %v9252
      %9270 = vmatpush.bf16.msra.mxu0 %v9261
      %9271 = vmatpush.bf16.msra.mxu0 %v9260
      %9272 = vmatpush.bf16.msra.mxu0 %v9259
      %9273 = vmatpush.bf16.msra.mxu0 %v9258
      %9274 = vmatpush.bf16.msra.mxu0 %v9257
      %9275 = vmatpush.bf16.msra.mxu0 %v9256
      %9276 = vmatpush.bf16.msra.mxu0 %v9255
      %9277 = vmatpush.bf16.msra.mxu0 %v9254
      %9278 = vmatmul.bf16.gmra.mxu0 %v9190
      %v9279 = vpop.f32.mrf.mxu0
      %v9280 = vadd.f32 0.0, %v9279
      %v9281 = vpop.f32.mrf.mxu0
      %v9282 = vadd.f32 0.0, %v9281
      %9283 = vmatmul.bf16.gmra.mxu0 %v9191
      %v9284 = vpop.f32.mrf.mxu0
      %v9285 = vadd.f32 0.0, %v9284
      %v9286 = vpop.f32.mrf.mxu0
      %v9287 = vadd.f32 0.0, %v9286
      %9288 = vmatmul.bf16.gmra.mxu0 %v9192
      %v9289 = vpop.f32.mrf.mxu0
      %v9290 = vadd.f32 0.0, %v9289
      %v9291 = vpop.f32.mrf.mxu0
      %v9292 = vadd.f32 0.0, %v9291
      %9293 = vmatmul.bf16.gmra.mxu0 %v9193
      %v9294 = vpop.f32.mrf.mxu0
      %v9295 = vadd.f32 0.0, %v9294
      %v9296 = vpop.f32.mrf.mxu0
      %v9297 = vadd.f32 0.0, %v9296
      %9298 = vmatmul.bf16.gmra.mxu0 %v9194
      %v9299 = vpop.f32.mrf.mxu0
      %v9300 = vadd.f32 0.0, %v9299
      %v9301 = vpop.f32.mrf.mxu0
      %v9302 = vadd.f32 0.0, %v9301
      %9303 = vmatmul.bf16.gmra.mxu0 %v9195
      %v9304 = vpop.f32.mrf.mxu0
      %v9305 = vadd.f32 0.0, %v9304
      %v9306 = vpop.f32.mrf.mxu0
      %v9307 = vadd.f32 0.0, %v9306
      %9308 = vmatmul.bf16.gmra.mxu0 %v9196
      %v9309 = vpop.f32.mrf.mxu0
      %v9310 = vadd.f32 0.0, %v9309
      %v9311 = vpop.f32.mrf.mxu0
      %v9312 = vadd.f32 0.0, %v9311
      %9313 = vmatmul.bf16.gmra.mxu0 %v9197
      %v9314 = vpop.f32.mrf.mxu0
      %v9315 = vadd.f32 0.0, %v9314
      %v9316 = vpop.f32.mrf.mxu0
      %v9317 = vadd.f32 0.0, %v9316
      %9318 = vmatmul.bf16.gmra.mxu0 %v9198
      %v9319 = vpop.f32.mrf.mxu0
      %v9320 = vadd.f32 0.0, %v9319
      %v9321 = vpop.f32.mrf.mxu0
      %v9322 = vadd.f32 0.0, %v9321
      %9323 = vmatmul.bf16.gmra.mxu0 %v9199
      %v9324 = vpop.f32.mrf.mxu0
      %v9325 = vadd.f32 0.0, %v9324
      %v9326 = vpop.f32.mrf.mxu0
      %v9327 = vadd.f32 0.0, %v9326
      %9328 = vmatmul.bf16.gmra.mxu0 %v9200
      %v9329 = vpop.f32.mrf.mxu0
      %v9330 = vadd.f32 0.0, %v9329
      %v9331 = vpop.f32.mrf.mxu0
      %v9332 = vadd.f32 0.0, %v9331
      %9333 = vmatmul.bf16.gmra.mxu0 %v9201
      %v9334 = vpop.f32.mrf.mxu0
      %v9335 = vadd.f32 0.0, %v9334
      %v9336 = vpop.f32.mrf.mxu0
      %v9337 = vadd.f32 0.0, %v9336
      %9338 = vmatmul.bf16.gmra.mxu0 %v9202
      %v9339 = vpop.f32.mrf.mxu0
      %v9340 = vadd.f32 0.0, %v9339
      %v9341 = vpop.f32.mrf.mxu0
      %v9342 = vadd.f32 0.0, %v9341
      %9343 = vmatmul.bf16.gmra.mxu0 %v9203
      %v9344 = vpop.f32.mrf.mxu0
      %v9345 = vadd.f32 0.0, %v9344
      %v9346 = vpop.f32.mrf.mxu0
      %v9347 = vadd.f32 0.0, %v9346
      %9348 = vmatmul.bf16.gmra.mxu0 %v9204
      %v9349 = vpop.f32.mrf.mxu0
      %v9350 = vadd.f32 0.0, %v9349
      %v9351 = vpop.f32.mrf.mxu0
      %v9352 = vadd.f32 0.0, %v9351
      %9353 = vmatmul.bf16.gmra.mxu0 %v9205
      %v9354 = vpop.f32.mrf.mxu0
      %v9355 = vadd.f32 0.0, %v9354
      %v9356 = vpop.f32.mrf.mxu0
      %v9357 = vadd.f32 0.0, %v9356
      %9358 = vdwg.mxu0
      %v9359 = vadd.f32 %v8677, %v9280
      %v9360 = vadd.f32 %v8678, %v9282
      %v9361 = vadd.f32 %v8679, %v9285
      %v9362 = vadd.f32 %v8680, %v9287
      %v9363 = vadd.f32 %v8681, %v9290
      %v9364 = vadd.f32 %v8682, %v9292
      %v9365 = vadd.f32 %v8683, %v9295
      %v9366 = vadd.f32 %v8684, %v9297
      %v9367 = vadd.f32 %v8685, %v9300
      %v9368 = vadd.f32 %v8686, %v9302
      %v9369 = vadd.f32 %v8687, %v9305
      %v9370 = vadd.f32 %v8688, %v9307
      %v9371 = vadd.f32 %v8689, %v9310
      %v9372 = vadd.f32 %v8690, %v9312
      %v9373 = vadd.f32 %v8691, %v9315
      %v9374 = vadd.f32 %v8692, %v9317
      %v9375 = vadd.f32 %v8693, %v9320
      %v9376 = vadd.f32 %v8694, %v9322
      %v9377 = vadd.f32 %v8695, %v9325
      %v9378 = vadd.f32 %v8696, %v9327
      %v9379 = vadd.f32 %v8697, %v9330
      %v9380 = vadd.f32 %v8698, %v9332
      %v9381 = vadd.f32 %v8699, %v9335
      %v9382 = vadd.f32 %v8700, %v9337
      %v9383 = vadd.f32 %v8701, %v9340
      %v9384 = vadd.f32 %v8702, %v9342
      %v9385 = vadd.f32 %v8703, %v9345
      %v9386 = vadd.f32 %v8704, %v9347
      %v9387 = vadd.f32 %v8705, %v9350
      %v9388 = vadd.f32 %v8706, %v9352
      %v9389 = vadd.f32 %v8707, %v9355
      %v9390 = vadd.f32 %v8708, %v9357
      %v9391 = vld [vmem:[%s8394] sm:$0xe]
      %v9392 = vld [vmem:[%s8394 + $0xc] sm:$0xe]
      %v9393 = vld [vmem:[%s8394 + $0x18] sm:$0xe]
      %v9394 = vld [vmem:[%s8394 + $0x24] sm:$0xe]
      %v9395 = vld [vmem:[%s8394 + $0x30] sm:$0xe]
      %v9396 = vld [vmem:[%s8394 + $0x3c] sm:$0xe]
      %v9397 = vld [vmem:[%s8394 + $0x48] sm:$0xe]
      %v9398 = vld [vmem:[%s8394 + $0x54] sm:$0xe]
      %v9399 = vld [vmem:[%s8394 + $0x60] sm:$0xe]
      %v9400 = vld [vmem:[%s8394 + $0x6c] sm:$0xe]
      %v9401 = vld [vmem:[%s8394 + $0x78] sm:$0xe]
      %v9402 = vld [vmem:[%s8394 + $0x84] sm:$0xe]
      %v9403 = vld [vmem:[%s8394 + $0x90] sm:$0xe]
      %v9404 = vld [vmem:[%s8394 + $0x9c] sm:$0xe]
      %v9405 = vld [vmem:[%s8394 + $0xa8] sm:$0xe]
      %v9406 = vld [vmem:[%s8394 + $0xb4] sm:$0xe]
      %v9455 = vrot.slane %v9391, 5
      %v9456 = vrot.slane %v9455, 4
      %v9457 = vrot.slane %v8710, 5
      %v9458 = vsel %vm1868, %v9456, %v9457
      %v9459 = vrot.slane %v9457, 4
      %v9460 = vrot.slane %v8711, 5
      %v9461 = vsel %vm1868, %v9459, %v9460
      %v9462 = vrot.slane %v9392, 5
      %v9463 = vrot.slane %v9462, 4
      %v9464 = vrot.slane %v8713, 5
      %v9465 = vsel %vm1868, %v9463, %v9464
      %v9466 = vrot.slane %v9464, 4
      %v9467 = vrot.slane %v8714, 5
      %v9468 = vsel %vm1868, %v9466, %v9467
      %v9469 = vrot.slane %v9393, 5
      %v9470 = vrot.slane %v9469, 4
      %v9471 = vrot.slane %v8716, 5
      %v9472 = vsel %vm1868, %v9470, %v9471
      %v9473 = vrot.slane %v9471, 4
      %v9474 = vrot.slane %v8717, 5
      %v9475 = vsel %vm1868, %v9473, %v9474
      %v9476 = vrot.slane %v9394, 5
      %v9477 = vrot.slane %v9476, 4
      %v9478 = vrot.slane %v8719, 5
      %v9479 = vsel %vm1868, %v9477, %v9478
      %v9480 = vrot.slane %v9478, 4
      %v9481 = vrot.slane %v8720, 5
      %v9482 = vsel %vm1868, %v9480, %v9481
      %v9483 = vrot.slane %v9395, 5
      %v9484 = vrot.slane %v9483, 4
      %v9485 = vrot.slane %v8722, 5
      %v9486 = vsel %vm1868, %v9484, %v9485
      %v9487 = vrot.slane %v9485, 4
      %v9488 = vrot.slane %v8723, 5
      %v9489 = vsel %vm1868, %v9487, %v9488
      %v9490 = vrot.slane %v9396, 5
      %v9491 = vrot.slane %v9490, 4
      %v9492 = vrot.slane %v8725, 5
      %v9493 = vsel %vm1868, %v9491, %v9492
      %v9494 = vrot.slane %v9492, 4
      %v9495 = vrot.slane %v8726, 5
      %v9496 = vsel %vm1868, %v9494, %v9495
      %v9497 = vrot.slane %v9397, 5
      %v9498 = vrot.slane %v9497, 4
      %v9499 = vrot.slane %v8728, 5
      %v9500 = vsel %vm1868, %v9498, %v9499
      %v9501 = vrot.slane %v9499, 4
      %v9502 = vrot.slane %v8729, 5
      %v9503 = vsel %vm1868, %v9501, %v9502
      %v9504 = vrot.slane %v9398, 5
      %v9505 = vrot.slane %v9504, 4
      %v9506 = vrot.slane %v8731, 5
      %v9507 = vsel %vm1868, %v9505, %v9506
      %v9508 = vrot.slane %v9506, 4
      %v9509 = vrot.slane %v8732, 5
      %v9510 = vsel %vm1868, %v9508, %v9509
      %v9511 = vrot.slane %v9399, 5
      %v9512 = vrot.slane %v9511, 4
      %v9513 = vrot.slane %v8734, 5
      %v9514 = vsel %vm1868, %v9512, %v9513
      %v9515 = vrot.slane %v9513, 4
      %v9516 = vrot.slane %v8735, 5
      %v9517 = vsel %vm1868, %v9515, %v9516
      %v9518 = vrot.slane %v9400, 5
      %v9519 = vrot.slane %v9518, 4
      %v9520 = vrot.slane %v8737, 5
      %v9521 = vsel %vm1868, %v9519, %v9520
      %v9522 = vrot.slane %v9520, 4
      %v9523 = vrot.slane %v8738, 5
      %v9524 = vsel %vm1868, %v9522, %v9523
      %v9525 = vrot.slane %v9401, 5
      %v9526 = vrot.slane %v9525, 4
      %v9527 = vrot.slane %v8740, 5
      %v9528 = vsel %vm1868, %v9526, %v9527
      %v9529 = vrot.slane %v9527, 4
      %v9530 = vrot.slane %v8741, 5
      %v9531 = vsel %vm1868, %v9529, %v9530
      %v9532 = vrot.slane %v9402, 5
      %v9533 = vrot.slane %v9532, 4
      %v9534 = vrot.slane %v8743, 5
      %v9535 = vsel %vm1868, %v9533, %v9534
      %v9536 = vrot.slane %v9534, 4
      %v9537 = vrot.slane %v8744, 5
      %v9538 = vsel %vm1868, %v9536, %v9537
      %v9539 = vrot.slane %v9403, 5
      %v9540 = vrot.slane %v9539, 4
      %v9541 = vrot.slane %v8746, 5
      %v9542 = vsel %vm1868, %v9540, %v9541
      %v9543 = vrot.slane %v9541, 4
      %v9544 = vrot.slane %v8747, 5
      %v9545 = vsel %vm1868, %v9543, %v9544
      %v9546 = vrot.slane %v9404, 5
      %v9547 = vrot.slane %v9546, 4
      %v9548 = vrot.slane %v8749, 5
      %v9549 = vsel %vm1868, %v9547, %v9548
      %v9550 = vrot.slane %v9548, 4
      %v9551 = vrot.slane %v8750, 5
      %v9552 = vsel %vm1868, %v9550, %v9551
      %v9553 = vrot.slane %v9405, 5
      %v9554 = vrot.slane %v9553, 4
      %v9555 = vrot.slane %v8752, 5
      %v9556 = vsel %vm1868, %v9554, %v9555
      %v9557 = vrot.slane %v9555, 4
      %v9558 = vrot.slane %v8753, 5
      %v9559 = vsel %vm1868, %v9557, %v9558
      %v9560 = vrot.slane %v9406, 5
      %v9561 = vrot.slane %v9560, 4
      %v9562 = vrot.slane %v8755, 5
      %v9563 = vsel %vm1868, %v9561, %v9562
      %v9564 = vrot.slane %v9562, 4
      %v9565 = vrot.slane %v8756, 5
      %v9566 = vsel %vm1868, %v9564, %v9565
      %s9567 = scalar_lea.vmem %s5, 512
      %v9568 = vld [vmem:[%s9567] sm:$0xf]
      %v9569 = vld [vmem:[%s9567 + $0x4] sm:$0xf]
      %v9570 = vld [vmem:[%s9567 + $0x8] sm:$0xf]
      %v9571 = vld [vmem:[%s9567 + $0xc] sm:$0xf]
      %v9572 = vld [vmem:[%s9567 + $0x10] sm:$0xf]
      %v9573 = vld [vmem:[%s9567 + $0x14] sm:$0xf]
      %v9574 = vld [vmem:[%s9567 + $0x18] sm:$0xf]
      %v9575 = vld [vmem:[%s9567 + $0x1c] sm:$0xf]
      %v9576 = vld [vmem:[%s9567 + $0x20] sm:$0xf]
      %v9577 = vld [vmem:[%s9567 + $0x24] sm:$0xf]
      %v9578 = vld [vmem:[%s9567 + $0x28] sm:$0xf]
      %v9579 = vld [vmem:[%s9567 + $0x2c] sm:$0xf]
      %v9580 = vld [vmem:[%s9567 + $0x30] sm:$0xf]
      %v9581 = vld [vmem:[%s9567 + $0x34] sm:$0xf]
      %v9582 = vld [vmem:[%s9567 + $0x38] sm:$0xf]
      %v9583 = vld [vmem:[%s9567 + $0x3c] sm:$0xf]
      %v9584 = vunpack.c.l.b16 %v9458
      %v9585 = vunpack.c.l.b16 %v9461
      %v9586 = vunpack.c.l.b16 %v9465
      %v9587 = vunpack.c.l.b16 %v9468
      %v9588 = vunpack.c.l.b16 %v9472
      %v9589 = vunpack.c.l.b16 %v9475
      %v9590 = vunpack.c.l.b16 %v9479
      %v9591 = vunpack.c.l.b16 %v9482
      %v9592 = vunpack.c.l.b16 %v9486
      %v9593 = vunpack.c.l.b16 %v9489
      %v9594 = vunpack.c.l.b16 %v9493
      %v9595 = vunpack.c.l.b16 %v9496
      %v9596 = vunpack.c.l.b16 %v9500
      %v9597 = vunpack.c.l.b16 %v9503
      %v9598 = vunpack.c.l.b16 %v9507
      %v9599 = vunpack.c.l.b16 %v9510
      %v9600 = vunpack.c.l.b16 %v9514
      %v9601 = vunpack.c.l.b16 %v9517
      %v9602 = vunpack.c.l.b16 %v9521
      %v9603 = vunpack.c.l.b16 %v9524
      %v9604 = vunpack.c.l.b16 %v9528
      %v9605 = vunpack.c.l.b16 %v9531
      %v9606 = vunpack.c.l.b16 %v9535
      %v9607 = vunpack.c.l.b16 %v9538
      %v9608 = vunpack.c.l.b16 %v9542
      %v9609 = vunpack.c.l.b16 %v9545
      %v9610 = vunpack.c.l.b16 %v9549
      %v9611 = vunpack.c.l.b16 %v9552
      %v9612 = vunpack.c.l.b16 %v9556
      %v9613 = vunpack.c.l.b16 %v9559
      %v9614 = vunpack.c.l.b16 %v9563
      %v9615 = vunpack.c.l.b16 %v9566
      %v9616 = vpack.c.b16 %v9585, %v9584
      %v9617 = vpack.c.b16 %v9587, %v9586
      %v9618 = vpack.c.b16 %v9589, %v9588
      %v9619 = vpack.c.b16 %v9591, %v9590
      %v9620 = vpack.c.b16 %v9593, %v9592
      %v9621 = vpack.c.b16 %v9595, %v9594
      %v9622 = vpack.c.b16 %v9597, %v9596
      %v9623 = vpack.c.b16 %v9599, %v9598
      %v9624 = vpack.c.b16 %v9601, %v9600
      %v9625 = vpack.c.b16 %v9603, %v9602
      %v9626 = vpack.c.b16 %v9605, %v9604
      %v9627 = vpack.c.b16 %v9607, %v9606
      %v9628 = vpack.c.b16 %v9609, %v9608
      %v9629 = vpack.c.b16 %v9611, %v9610
      %v9630 = vpack.c.b16 %v9613, %v9612
      %v9631 = vpack.c.b16 %v9615, %v9614
      %v9664 = vunpack.c.l.b16 %v9568
      %v9665 = vunpack.c.l.b16 %v9569
      %v9666 = vunpack.c.l.b16 %v9570
      %v9667 = vunpack.c.l.b16 %v9571
      %v9668 = vunpack.c.l.b16 %v9572
      %v9669 = vunpack.c.l.b16 %v9573
      %v9670 = vunpack.c.l.b16 %v9574
      %v9671 = vunpack.c.l.b16 %v9575
      %v9672 = vunpack.c.l.b16 %v9576
      %v9673 = vunpack.c.l.b16 %v9577
      %v9674 = vunpack.c.l.b16 %v9578
      %v9675 = vunpack.c.l.b16 %v9579
      %v9676 = vunpack.c.l.b16 %v9580
      %v9677 = vunpack.c.l.b16 %v9581
      %v9678 = vunpack.c.l.b16 %v9582
      %v9679 = vunpack.c.l.b16 %v9583
      %v9680 = vpack.c.b16 %v9665, %v9664
      %v9681 = vpack.c.b16 %v9667, %v9666
      %v9682 = vpack.c.b16 %v9669, %v9668
      %v9683 = vpack.c.b16 %v9671, %v9670
      %v9684 = vpack.c.b16 %v9673, %v9672
      %v9685 = vpack.c.b16 %v9675, %v9674
      %v9686 = vpack.c.b16 %v9677, %v9676
      %v9687 = vpack.c.b16 %v9679, %v9678
      %9696 = vmatpush.bf16.msra.mxu0 %v9687
      %9697 = vmatpush.bf16.msra.mxu0 %v9686
      %9698 = vmatpush.bf16.msra.mxu0 %v9685
      %9699 = vmatpush.bf16.msra.mxu0 %v9684
      %9700 = vmatpush.bf16.msra.mxu0 %v9683
      %9701 = vmatpush.bf16.msra.mxu0 %v9682
      %9702 = vmatpush.bf16.msra.mxu0 %v9681
      %9703 = vmatpush.bf16.msra.mxu0 %v9680
      %9704 = vmatmul.bf16.gmra.mxu0 %v9616
      %v9705 = vpop.f32.mrf.mxu0
      %v9706 = vadd.f32 0.0, %v9705
      %v9707 = vpop.f32.mrf.mxu0
      %v9708 = vadd.f32 0.0, %v9707
      %9709 = vmatmul.bf16.gmra.mxu0 %v9617
      %v9710 = vpop.f32.mrf.mxu0
      %v9711 = vadd.f32 0.0, %v9710
      %v9712 = vpop.f32.mrf.mxu0
      %v9713 = vadd.f32 0.0, %v9712
      %9714 = vmatmul.bf16.gmra.mxu0 %v9618
      %v9715 = vpop.f32.mrf.mxu0
      %v9716 = vadd.f32 0.0, %v9715
      %v9717 = vpop.f32.mrf.mxu0
      %v9718 = vadd.f32 0.0, %v9717
      %9719 = vmatmul.bf16.gmra.mxu0 %v9619
      %v9720 = vpop.f32.mrf.mxu0
      %v9721 = vadd.f32 0.0, %v9720
      %v9722 = vpop.f32.mrf.mxu0
      %v9723 = vadd.f32 0.0, %v9722
      %9724 = vmatmul.bf16.gmra.mxu0 %v9620
      %v9725 = vpop.f32.mrf.mxu0
      %v9726 = vadd.f32 0.0, %v9725
      %v9727 = vpop.f32.mrf.mxu0
      %v9728 = vadd.f32 0.0, %v9727
      %9729 = vmatmul.bf16.gmra.mxu0 %v9621
      %v9730 = vpop.f32.mrf.mxu0
      %v9731 = vadd.f32 0.0, %v9730
      %v9732 = vpop.f32.mrf.mxu0
      %v9733 = vadd.f32 0.0, %v9732
      %9734 = vmatmul.bf16.gmra.mxu0 %v9622
      %v9735 = vpop.f32.mrf.mxu0
      %v9736 = vadd.f32 0.0, %v9735
      %v9737 = vpop.f32.mrf.mxu0
      %v9738 = vadd.f32 0.0, %v9737
      %9739 = vmatmul.bf16.gmra.mxu0 %v9623
      %v9740 = vpop.f32.mrf.mxu0
      %v9741 = vadd.f32 0.0, %v9740
      %v9742 = vpop.f32.mrf.mxu0
      %v9743 = vadd.f32 0.0, %v9742
      %9744 = vmatmul.bf16.gmra.mxu0 %v9624
      %v9745 = vpop.f32.mrf.mxu0
      %v9746 = vadd.f32 0.0, %v9745
      %v9747 = vpop.f32.mrf.mxu0
      %v9748 = vadd.f32 0.0, %v9747
      %9749 = vmatmul.bf16.gmra.mxu0 %v9625
      %v9750 = vpop.f32.mrf.mxu0
      %v9751 = vadd.f32 0.0, %v9750
      %v9752 = vpop.f32.mrf.mxu0
      %v9753 = vadd.f32 0.0, %v9752
      %9754 = vmatmul.bf16.gmra.mxu0 %v9626
      %v9755 = vpop.f32.mrf.mxu0
      %v9756 = vadd.f32 0.0, %v9755
      %v9757 = vpop.f32.mrf.mxu0
      %v9758 = vadd.f32 0.0, %v9757
      %9759 = vmatmul.bf16.gmra.mxu0 %v9627
      %v9760 = vpop.f32.mrf.mxu0
      %v9761 = vadd.f32 0.0, %v9760
      %v9762 = vpop.f32.mrf.mxu0
      %v9763 = vadd.f32 0.0, %v9762
      %9764 = vmatmul.bf16.gmra.mxu0 %v9628
      %v9765 = vpop.f32.mrf.mxu0
      %v9766 = vadd.f32 0.0, %v9765
      %v9767 = vpop.f32.mrf.mxu0
      %v9768 = vadd.f32 0.0, %v9767
      %9769 = vmatmul.bf16.gmra.mxu0 %v9629
      %v9770 = vpop.f32.mrf.mxu0
      %v9771 = vadd.f32 0.0, %v9770
      %v9772 = vpop.f32.mrf.mxu0
      %v9773 = vadd.f32 0.0, %v9772
      %9774 = vmatmul.bf16.gmra.mxu0 %v9630
      %v9775 = vpop.f32.mrf.mxu0
      %v9776 = vadd.f32 0.0, %v9775
      %v9777 = vpop.f32.mrf.mxu0
      %v9778 = vadd.f32 0.0, %v9777
      %9779 = vmatmul.bf16.gmra.mxu0 %v9631
      %v9780 = vpop.f32.mrf.mxu0
      %v9781 = vadd.f32 0.0, %v9780
      %v9782 = vpop.f32.mrf.mxu0
      %v9783 = vadd.f32 0.0, %v9782
      %9784 = vdwg.mxu0
      %v9785 = vadd.f32 %v9359, %v9706
      %v9786 = vadd.f32 %v9360, %v9708
      %v9787 = vadd.f32 %v9361, %v9711
      %v9788 = vadd.f32 %v9362, %v9713
      %v9789 = vadd.f32 %v9363, %v9716
      %v9790 = vadd.f32 %v9364, %v9718
      %v9791 = vadd.f32 %v9365, %v9721
      %v9792 = vadd.f32 %v9366, %v9723
      %v9793 = vadd.f32 %v9367, %v9726
      %v9794 = vadd.f32 %v9368, %v9728
      %v9795 = vadd.f32 %v9369, %v9731
      %v9796 = vadd.f32 %v9370, %v9733
      %v9797 = vadd.f32 %v9371, %v9736
      %v9798 = vadd.f32 %v9372, %v9738
      %v9799 = vadd.f32 %v9373, %v9741
      %v9800 = vadd.f32 %v9374, %v9743
      %v9801 = vadd.f32 %v9375, %v9746
      %v9802 = vadd.f32 %v9376, %v9748
      %v9803 = vadd.f32 %v9377, %v9751
      %v9804 = vadd.f32 %v9378, %v9753
      %v9805 = vadd.f32 %v9379, %v9756
      %v9806 = vadd.f32 %v9380, %v9758
      %v9807 = vadd.f32 %v9381, %v9761
      %v9808 = vadd.f32 %v9382, %v9763
      %v9809 = vadd.f32 %v9383, %v9766
      %v9810 = vadd.f32 %v9384, %v9768
      %v9811 = vadd.f32 %v9385, %v9771
      %v9812 = vadd.f32 %v9386, %v9773
      %v9813 = vadd.f32 %v9387, %v9776
      %v9814 = vadd.f32 %v9388, %v9778
      %v9815 = vadd.f32 %v9389, %v9781
      %v9816 = vadd.f32 %v9390, %v9783
      %v9817 = vadd.f32 %v9785, %v253
      %v9818 = vadd.f32 %v9786, %v254
      %v9819 = vadd.f32 %v9787, %v255
      %v9820 = vadd.f32 %v9788, %v256
      %v9821 = vadd.f32 %v9789, %v257
      %v9822 = vadd.f32 %v9790, %v258
      %v9823 = vadd.f32 %v9791, %v259
      %v9824 = vadd.f32 %v9792, %v260
      %v9825 = vadd.f32 %v9793, %v261
      %v9826 = vadd.f32 %v9794, %v262
      %v9827 = vadd.f32 %v9795, %v263
      %v9828 = vadd.f32 %v9796, %v264
      %v9829 = vadd.f32 %v9797, %v265
      %v9830 = vadd.f32 %v9798, %v266
      %v9831 = vadd.f32 %v9799, %v267
      %v9832 = vadd.f32 %v9800, %v268
      %v9833 = vadd.f32 %v9801, %v269
      %v9834 = vadd.f32 %v9802, %v270
      %v9835 = vadd.f32 %v9803, %v271
      %v9836 = vadd.f32 %v9804, %v272
      %v9837 = vadd.f32 %v9805, %v273
      %v9838 = vadd.f32 %v9806, %v274
      %v9839 = vadd.f32 %v9807, %v275
      %v9840 = vadd.f32 %v9808, %v276
      %v9841 = vadd.f32 %v9809, %v277
      %v9842 = vadd.f32 %v9810, %v278
      %v9843 = vadd.f32 %v9811, %v279
      %v9844 = vadd.f32 %v9812, %v280
      %v9845 = vadd.f32 %v9813, %v281
      %v9846 = vadd.f32 %v9814, %v282
      %v9847 = vadd.f32 %v9815, %v283
      %v9848 = vadd.f32 %v9816, %v284
      %v9849 = vpack.c.bf16 %v9817, %v9817
      %v9850 = vpack.c.bf16 %v9818, %v9818
      %v9851 = vpack.c.bf16 %v9819, %v9819
      %v9852 = vpack.c.bf16 %v9820, %v9820
      %v9853 = vpack.c.bf16 %v9821, %v9821
      %v9854 = vpack.c.bf16 %v9822, %v9822
      %v9855 = vpack.c.bf16 %v9823, %v9823
      %v9856 = vpack.c.bf16 %v9824, %v9824
      %v9857 = vpack.c.bf16 %v9825, %v9825
      %v9858 = vpack.c.bf16 %v9826, %v9826
      %v9859 = vpack.c.bf16 %v9827, %v9827
      %v9860 = vpack.c.bf16 %v9828, %v9828
      %v9861 = vpack.c.bf16 %v9829, %v9829
      %v9862 = vpack.c.bf16 %v9830, %v9830
      %v9863 = vpack.c.bf16 %v9831, %v9831
      %v9864 = vpack.c.bf16 %v9832, %v9832
      %v9865 = vpack.c.bf16 %v9833, %v9833
      %v9866 = vpack.c.bf16 %v9834, %v9834
      %v9867 = vpack.c.bf16 %v9835, %v9835
      %v9868 = vpack.c.bf16 %v9836, %v9836
      %v9869 = vpack.c.bf16 %v9837, %v9837
      %v9870 = vpack.c.bf16 %v9838, %v9838
      %v9871 = vpack.c.bf16 %v9839, %v9839
      %v9872 = vpack.c.bf16 %v9840, %v9840
      %v9873 = vpack.c.bf16 %v9841, %v9841
      %v9874 = vpack.c.bf16 %v9842, %v9842
      %v9875 = vpack.c.bf16 %v9843, %v9843
      %v9876 = vpack.c.bf16 %v9844, %v9844
      %v9877 = vpack.c.bf16 %v9845, %v9845
      %v9878 = vpack.c.bf16 %v9846, %v9846
      %v9879 = vpack.c.bf16 %v9847, %v9847
      %v9880 = vpack.c.bf16 %v9848, %v9848
      %9881 = vst [vmem:[%s251] sm:$0xf] %v9849
      %9882 = vst [vmem:[%s251 + $0x4] sm:$0xf] %v9850
      %9883 = vst [vmem:[%s251 + $0x8] sm:$0xf] %v9851
      %9884 = vst [vmem:[%s251 + $0xc] sm:$0xf] %v9852
      %9885 = vst [vmem:[%s251 + $0x10] sm:$0xf] %v9853
      %9886 = vst [vmem:[%s251 + $0x14] sm:$0xf] %v9854
      %9887 = vst [vmem:[%s251 + $0x18] sm:$0xf] %v9855
      %9888 = vst [vmem:[%s251 + $0x1c] sm:$0xf] %v9856
      %9889 = vst [vmem:[%s251 + $0x20] sm:$0xf] %v9857
      %9890 = vst [vmem:[%s251 + $0x24] sm:$0xf] %v9858
      %9891 = vst [vmem:[%s251 + $0x28] sm:$0xf] %v9859
      %9892 = vst [vmem:[%s251 + $0x2c] sm:$0xf] %v9860
      %9893 = vst [vmem:[%s251 + $0x30] sm:$0xf] %v9861
      %9894 = vst [vmem:[%s251 + $0x34] sm:$0xf] %v9862
      %9895 = vst [vmem:[%s251 + $0x38] sm:$0xf] %v9863
      %9896 = vst [vmem:[%s251 + $0x3c] sm:$0xf] %v9864
      %9897 = vst [vmem:[%s251 + $0x40] sm:$0xf] %v9865
      %9898 = vst [vmem:[%s251 + $0x44] sm:$0xf] %v9866
      %9899 = vst [vmem:[%s251 + $0x48] sm:$0xf] %v9867
      %9900 = vst [vmem:[%s251 + $0x4c] sm:$0xf] %v9868
      %9901 = vst [vmem:[%s251 + $0x50] sm:$0xf] %v9869
      %9902 = vst [vmem:[%s251 + $0x54] sm:$0xf] %v9870
      %9903 = vst [vmem:[%s251 + $0x58] sm:$0xf] %v9871
      %9904 = vst [vmem:[%s251 + $0x5c] sm:$0xf] %v9872
      %9905 = vst [vmem:[%s251 + $0x60] sm:$0xf] %v9873
      %9906 = vst [vmem:[%s251 + $0x64] sm:$0xf] %v9874
      %9907 = vst [vmem:[%s251 + $0x68] sm:$0xf] %v9875
      %9908 = vst [vmem:[%s251 + $0x6c] sm:$0xf] %v9876
      %9909 = vst [vmem:[%s251 + $0x70] sm:$0xf] %v9877
      %9910 = vst [vmem:[%s251 + $0x74] sm:$0xf] %v9878
      %9911 = vst [vmem:[%s251 + $0x78] sm:$0xf] %v9879
      %9912 = vst [vmem:[%s251 + $0x7c] sm:$0xf] %v9880
      %p9913 = scmp.lt.s32.totalorder %s17, 1
      %s9914 = scalar_select %p9913, %s17, 1
      %s9915 = smul.addr %s9914, 32
      %s9916 = smul.addr %s9915, 4
      %s9917 = scalar_lea.vmem %s6, %s9916
      // Predicated region
      $region45: #{decoder_residual_layer.1} parent=43 // pred_check
        %p9918 = pneg %p166
      $region46: #{decoder_residual_layer.1} parent=43 // pred_check_branch
        %9920 = sbr.rel (%p9918) target = $region48
      $region47: #{decoder_residual_layer.1} parent=43 // pred_region
        _
      $region48: #{decoder_residual_layer.1} parent=43 // pred_fallthru
        _
    $region44: #{decoder_residual_layer.1} parent=5 // pred_fallthru
      _
    %p9921 = scmp.le.s32.totalorder 2, %s12
    // Predicated region
    $region49: #{decoder_residual_layer.1} parent=5 // pred_check
      %p9922 = pneg %p9921
    $region50: #{decoder_residual_layer.1} parent=5 // pred_check_branch
      %9924 = sbr.rel (%p9922) target = $region52
    $region51: #{decoder_residual_layer.1} parent=5 // pred_region
      %s9925 = ssub.s32 %s12, 2
      // Predicated region
      $region53: #{decoder_residual_layer.1} parent=51 // pred_check
        %p9926 = pneg %p172
      $region54: #{decoder_residual_layer.1} parent=51 // pred_check_branch
        %9928 = sbr.rel (%p9926) target = $region56
      $region55: #{decoder_residual_layer.1} parent=51 // pred_region
        %p9929 = scmp.lt.s32.totalorder %s18, 1
        %s9930 = scalar_select %p9929, %s18, 1
        %s9931 = smul.addr %s9930, 32
        %s9932 = smul.addr %s9931, 4
        %s9933 = scalar_lea.vmem %s6, %s9932
      $region56: #{decoder_residual_layer.1} parent=51 // pred_fallthru
        _
    $region52: #{decoder_residual_layer.1} parent=5 // pred_fallthru
      _
  $region6: #{decoder_residual_layer.1} parent=0 // loop_footer
    %s16 = sadd.s32 1, %s12
  $region7: #{decoder_residual_layer.1} parent=0 // loop_footer_branch
    %11 = sbr.rel target = $region3
  $region8: #{decoder_residual_layer.1} parent=0 // loop_exit
    _

</llo_original>
